<compile_context>
chip_gen: v6e
topology: v6e:2x2x1
jax: 0.10.0
libtpu: 0.0.40
codegen_flags: <defaults>
</compile_context>

<pallas_src>
import functools
import math

import jax
import jax.numpy as jnp
from jax import lax
from jax.experimental import pallas as pl
from jax.experimental.pallas import tpu as pltpu


def _round_up(n, m):
    return ((n + m - 1) // m) * m


def _tap_offset(t, tpg, cq):
    """Lane offset of tap t inside the K-packed im2col / weight slab."""
    g, ti = divmod(t, tpg)
    return g * tpg * cq + ti * cq


# ----------------------------- Pallas kernel --------------------------------

def _residual_stack_kernel(x_ref, w3_ref, w1_ref, o_ref, hpad_ref, col_ref,
                           *, H, W, C, CQ, TPG, L, PAD):
    """Full residual stack for one image (one grid step = one batch element).

    x_ref   : (1, H*W, C)          f32   input activation (compact)
    w3_ref  : (L, K, Cr)           bf16  K-packed 3x3 conv weights
    w1_ref  : (L, Cr, C)           bf16  1x1 conv weights
    o_ref   : (1, H*W, C)          f32   output; also the running activation
    hpad_ref: (H*W + 2*PAD, C)     f32   flat halo (>= W+1 zero rows each side)
    col_ref : (H*W, K)             bf16  K-packed im2col slab (MXU lhs)
    """
    HW = H * W
    bf16 = jnp.bfloat16

    # ---- once per image: zero the halo borders (they stay zero forever) ----
    zpad = jnp.zeros((PAD, C), jnp.float32)
    hpad_ref[pl.ds(0, PAD), :] = zpad
    hpad_ref[pl.ds(PAD + HW, PAD), :] = zpad

    # ---- once per image: zero im2col columns that are never written --------
    # (their weight rows are zero too, but 0 * stale-NaN would not be).
    ntaps_padded = ((9 + TPG - 1) // TPG) * TPG
    for t in range(9, ntaps_padded):
        off = _tap_offset(t, TPG, CQ)
        col_ref[:, pl.ds(off, CQ)] = jnp.zeros((HW, CQ), col_ref.dtype)
    if CQ > C:
        for t in range(9):
            off = _tap_offset(t, TPG, CQ) + C
            col_ref[:, pl.ds(off, CQ - C)] = jnp.zeros((HW, CQ - C),
                                                       col_ref.dtype)

    # ---- column-boundary masks for the +-1 column taps ---------------------
    # Flattened-row shifts wrap across image rows; these masks zero the wraps.
    p_idx = lax.broadcasted_iota(jnp.int32, (HW, C), 0)
    if (W & (W - 1)) == 0:
        j_idx = jnp.bitwise_and(p_idx, W - 1)
    else:
        j_idx = p_idx % W
    mask_l = j_idx > 0            # valid when reading column j-1
    mask_r = j_idx < (W - 1)      # valid when reading column j+1

    # Running activation lives in the output block (f32).
    o_ref[0] = x_ref[0]

    for l in range(L):
        # nn.ReLU(inplace=True) quirk: the skip connection adds relu(x).
        hpad_ref[pl.ds(PAD, HW), :] = jnp.maximum(o_ref[0], 0.0)

        # Build the K-packed im2col slab: tap (ki, kj) of output pixel p is
        # h_flat[p + (ki-1)*W + (kj-1)], zero when out of bounds (row
        # out-of-range -> halo pad rows; column out-of-range -> masks).
        for t in range(9):
            ki, kj = divmod(t, 3)
            shift = (ki - 1) * W + (kj - 1)
            win = hpad_ref[pl.ds(PAD + shift, HW), :]      # (HW, C) f32
            if kj == 0:
                win = jnp.where(mask_l, win, 0.0)
            elif kj == 2:
                win = jnp.where(mask_r, win, 0.0)
            col_ref[:, pl.ds(_tap_offset(t, TPG, CQ), C)] = win.astype(bf16)

        # 3x3 conv == ONE matmul; all 9-tap accumulation stays inside the MXU.
        t_pre = jnp.dot(col_ref[...], w3_ref[l],
                        preferred_element_type=jnp.float32)   # (HW, Cr) f32
        t_act = jnp.maximum(t_pre, 0.0).astype(bf16)
        # 1x1 conv + skip connection (f32 epilogue).
        y = jnp.dot(t_act, w1_ref[l], preferred_element_type=jnp.float32)
        o_ref[0] = jnp.maximum(o_ref[0], 0.0) + y

    o_ref[0] = jnp.maximum(o_ref[0], 0.0)                     # final F.relu


# ------------------------------ wrapper --------------------------------------

def residual_stack_forward(x_nchw, params, num_residual_layers):
    """ResidualStack forward.  NCHW in / NCHW out (PyTorch convention)."""
    L = num_residual_layers
    N, C, H, W = x_nchw.shape
    Cr = params["res0_w3"].shape[0]
    HW = H * W
    PAD = _round_up(W + 1, 8)

    # K-packing: TPG taps of CQ lanes per 128-lane K group.
    if C >= 128:
        CQ = _round_up(C, 128)
        TPG = 1
    else:
        CQ = 1 << (C - 1).bit_length()       # next pow2 >= C (divides 128)
        TPG = 128 // CQ
    G = -(-9 // TPG)                          # ceil(9 / TPG)
    K = G * TPG * CQ

    # Activations: NCHW -> (N, H*W, C) f32, compact (no channel padding).
    x = jnp.transpose(x_nchw, (0, 2, 3, 1)).reshape(N, HW, C)
    x = x.astype(jnp.float32)

    # Weights: compact, matmul-ready, bf16.
    #   w3m[l, off(t)+c, r] = w3[r, c, ki, kj]   (K-packed rows)
    #   w1m[l, r, co]       = w1[co, r, 0, 0]
    w3m = jnp.zeros((L, K, Cr), jnp.float32)
    w1m = jnp.zeros((L, Cr, C), jnp.float32)
    for l in range(L):
        w3 = params[f"res{l}_w3"]            # (Cr, C, 3, 3) OIHW
        w1 = params[f"res{l}_w1"]            # (C, Cr, 1, 1) OIHW
        for t in range(9):
            ki, kj = divmod(t, 3)
            off = _tap_offset(t, TPG, CQ)
            w3m = w3m.at[l, off:off + C, :].set(w3[:, :, ki, kj].T)
        w1m = w1m.at[l].set(w1[:, :, 0, 0].T)
    w3m = w3m.astype(jnp.bfloat16)
    w1m = w1m.astype(jnp.bfloat16)

    kernel = functools.partial(_residual_stack_kernel,
                               H=H, W=W, C=C, CQ=CQ, TPG=TPG, L=L, PAD=PAD)
    out = pl.pallas_call(
        kernel,
        out_shape=jax.ShapeDtypeStruct((N, HW, C), jnp.float32),
        grid=(N,),
        in_specs=[
            pl.BlockSpec((1, HW, C), lambda n: (n, 0, 0)),
            pl.BlockSpec((L, K, Cr), lambda n: (0, 0, 0)),
            pl.BlockSpec((L, Cr, C), lambda n: (0, 0, 0)),
        ],
        out_specs=pl.BlockSpec((1, HW, C), lambda n: (n, 0, 0)),
        scratch_shapes=[
            pltpu.VMEM((HW + 2 * PAD, C), jnp.float32),    # flat halo
            pltpu.VMEM((HW, K), jnp.bfloat16),             # K-packed im2col
        ],
        compiler_params=pltpu.CompilerParams(
            dimension_semantics=("parallel",)),
    )(x, w3m, w1m)

    out = out.reshape(N, H, W, C)
    return jnp.transpose(out, (0, 3, 1, 2))


# --------------------------- params & reference ------------------------------

def init_residual_stack_params(key, num_hiddens, num_residual_layers,
                               num_residual_hiddens):
    params = {}
    for l in range(num_residual_layers):
        key, k1, k2 = jax.random.split(key, 3)
        params[f"res{l}_w3"] = (
            jax.random.normal(k1, (num_residual_hiddens, num_hiddens, 3, 3),
                              jnp.float32) / math.sqrt(num_hiddens * 9))
        params[f"res{l}_w1"] = (
            jax.random.normal(k2, (num_hiddens, num_residual_hiddens, 1, 1),
                              jnp.float32) / math.sqrt(num_residual_hiddens))
    return params


def _ref_conv(x_nchw, w, stride, pad):
    return lax.conv_general_dilated(
        x_nchw, w, (stride, stride), [(pad, pad), (pad, pad)],
        dimension_numbers=("NCHW", "OIHW", "NCHW"),
        precision=lax.Precision.HIGHEST)


def residual_stack_reference(x_nchw, params, num_residual_layers):
    x = x_nchw.astype(jnp.float32)
    for l in range(num_residual_layers):
        h = jnp.maximum(x, 0.0)                              # inplace-ReLU quirk
        t = jnp.maximum(_ref_conv(h, params[f"res{l}_w3"], 1, 1), 0.0)
        x = h + _ref_conv(t, params[f"res{l}_w1"], 1, 0)
    return jnp.maximum(x, 0.0)


# --------------------------------- main --------------------------------------

if __name__ == "__main__":
    in_channels = 32            # must equal num_hiddens for the skip add
    num_hiddens = 32
    num_residual_layers = 2
    num_residual_hiddens = 8
    batch, spatial = 2, 16

    key = jax.random.PRNGKey(0)
    key, kx = jax.random.split(key)
    x = jax.random.normal(kx, (batch, in_channels, spatial, spatial),
                          jnp.float32)

    params = init_residual_stack_params(key, num_hiddens, num_residual_layers,
                                        num_residual_hiddens)

    fwd = jax.jit(functools.partial(residual_stack_forward,
                                    num_residual_layers=num_residual_layers))
    out = jax.block_until_ready(fwd(x, params))

    ref = jax.block_until_ready(
        residual_stack_reference(x, params, num_residual_layers))

    assert out.shape == (batch, num_hiddens, spatial, spatial), out.shape
    # bf16 MXU operands with f32 accumulation -> tolerance loosened vs pure f32.
    max_err = float(jnp.max(jnp.abs(out - ref)))
    assert jnp.allclose(out, ref, atol=3e-2, rtol=3e-2), max_err

    print("KERNEL_OK")
</pallas_src>

<mosaic_0001>
module attributes {stable_mosaic.version = 11 : i64} {
  func.func @_residual_stack_kernel(%arg0: i32, %arg1: memref<1x256x32xf32, #tpu.memory_space<vmem>>, %arg2: memref<2x384x8xbf16, #tpu.memory_space<vmem>>, %arg3: memref<2x8x32xbf16, #tpu.memory_space<vmem>>, %arg4: memref<1x256x32xf32, #tpu.memory_space<vmem>>, %arg5: memref<304x32xf32, #tpu.memory_space<vmem>>, %arg6: memref<256x384xbf16, #tpu.memory_space<vmem>>) attributes {dimension_semantics = [#tpu.dimension_semantics<parallel>], iteration_bounds = array<i64: 2>, scalar_prefetch = 0 : i64, scratch_operands = 2 : i64, tpu.core_type = #tpu.core_type<tc>, window_params = [{transform_indices = @transform_0, window_bounds = array<i64: 1, 256, 32>}, {pipeline_mode = #tpu.pipeline_mode<synchronous>, transform_indices = @transform_1, window_bounds = array<i64: 2, 384, 8>}, {pipeline_mode = #tpu.pipeline_mode<synchronous>, transform_indices = @transform_2, window_bounds = array<i64: 2, 8, 32>}, {transform_indices = @transform_3, window_bounds = array<i64: 1, 256, 32>}]} {
    %cst = arith.constant 0.000000e+00 : f32
    %0 = vector.broadcast %cst : f32 to vector<24x32xf32>
    %c0 = arith.constant 0 : index
    %c0_0 = arith.constant 0 : index
    %1 = vector.load %arg5[%c0, %c0_0] : memref<304x32xf32, #tpu.memory_space<vmem>>, vector<24x32xf32>
    tpu.vector_store %arg5[%c0, %c0_0], %0 {strides = array<i32>} : memref<304x32xf32, #tpu.memory_space<vmem>>, vector<24x32xf32>,
    %c280 = arith.constant 280 : index
    %c0_1 = arith.constant 0 : index
    %2 = vector.load %arg5[%c280, %c0_1] : memref<304x32xf32, #tpu.memory_space<vmem>>, vector<24x32xf32>
    tpu.vector_store %arg5[%c280, %c0_1], %0 {strides = array<i32>} : memref<304x32xf32, #tpu.memory_space<vmem>>, vector<24x32xf32>,
    %cst_2 = arith.constant 0.000000e+00 : bf16
    %3 = vector.broadcast %cst_2 : bf16 to vector<256x32xbf16>
    %c0_3 = arith.constant 0 : index
    %c288 = arith.constant 288 : index
    %4 = vector.load %arg6[%c0_3, %c288] : memref<256x384xbf16, #tpu.memory_space<vmem>>, vector<256x32xbf16>
    tpu.vector_store %arg6[%c0_3, %c288], %3 {strides = array<i32>} : memref<256x384xbf16, #tpu.memory_space<vmem>>, vector<256x32xbf16>,
    %cst_4 = arith.constant 0.000000e+00 : bf16
    %5 = vector.broadcast %cst_4 : bf16 to vector<256x32xbf16>
    %c0_5 = arith.constant 0 : index
    %c320 = arith.constant 320 : index
    %6 = vector.load %arg6[%c0_5, %c320] : memref<256x384xbf16, #tpu.memory_space<vmem>>, vector<256x32xbf16>
    tpu.vector_store %arg6[%c0_5, %c320], %5 {strides = array<i32>} : memref<256x384xbf16, #tpu.memory_space<vmem>>, vector<256x32xbf16>,
    %cst_6 = arith.constant 0.000000e+00 : bf16
    %7 = vector.broadcast %cst_6 : bf16 to vector<256x32xbf16>
    %c0_7 = arith.constant 0 : index
    %c352 = arith.constant 352 : index
    %8 = vector.load %arg6[%c0_7, %c352] : memref<256x384xbf16, #tpu.memory_space<vmem>>, vector<256x32xbf16>
    tpu.vector_store %arg6[%c0_7, %c352], %7 {strides = array<i32>} : memref<256x384xbf16, #tpu.memory_space<vmem>>, vector<256x32xbf16>,
    %9 = tpu.iota {dimensions = array<i32: 0>} : vector<256x32xi32>
    %c15_i32 = arith.constant 15 : i32
    %10 = vector.broadcast %c15_i32 : i32 to vector<256x32xi32>
    %11 = arith.andi %9, %10 : vector<256x32xi32>
    %c0_i32 = arith.constant 0 : i32
    %12 = vector.broadcast %c0_i32 : i32 to vector<256x32xi32>
    %13 = arith.cmpi sgt, %11, %12 : vector<256x32xi32>
    %c15_i32_8 = arith.constant 15 : i32
    %14 = vector.broadcast %c15_i32_8 : i32 to vector<256x32xi32>
    %15 = arith.cmpi slt, %11, %14 : vector<256x32xi32>
    %c0_9 = arith.constant 0 : index
    %c0_10 = arith.constant 0 : index
    %c0_11 = arith.constant 0 : index
    %16 = vector.load %arg1[%c0_9, %c0_10, %c0_11] : memref<1x256x32xf32, #tpu.memory_space<vmem>>, vector<1x256x32xf32>
    %17 = vector.shape_cast %16 : vector<1x256x32xf32> to vector<256x32xf32>
    %c0_12 = arith.constant 0 : index
    %c0_13 = arith.constant 0 : index
    %c0_14 = arith.constant 0 : index
    %18 = vector.load %arg4[%c0_12, %c0_13, %c0_14] : memref<1x256x32xf32, #tpu.memory_space<vmem>>, vector<1x256x32xf32>
    %19 = vector.shape_cast %18 : vector<1x256x32xf32> to vector<256x32xf32>
    %20 = vector.shape_cast %17 : vector<256x32xf32> to vector<1x256x32xf32>
    tpu.vector_store %arg4[%c0_12, %c0_13, %c0_14], %20 {strides = array<i32>} : memref<1x256x32xf32, #tpu.memory_space<vmem>>, vector<1x256x32xf32>,
    %c0_15 = arith.constant 0 : index
    %c0_16 = arith.constant 0 : index
    %c0_17 = arith.constant 0 : index
    %21 = vector.load %arg4[%c0_15, %c0_16, %c0_17] : memref<1x256x32xf32, #tpu.memory_space<vmem>>, vector<1x256x32xf32>
    %22 = vector.shape_cast %21 : vector<1x256x32xf32> to vector<256x32xf32>
    %cst_18 = arith.constant 0.000000e+00 : f32
    %23 = vector.broadcast %cst_18 : f32 to vector<256x32xf32>
    %24 = arith.maximumf %22, %23 : vector<256x32xf32>
    %c24 = arith.constant 24 : index
    %c0_19 = arith.constant 0 : index
    %25 = vector.load %arg5[%c24, %c0_19] : memref<304x32xf32, #tpu.memory_space<vmem>>, vector<256x32xf32>
    tpu.vector_store %arg5[%c24, %c0_19], %24 {strides = array<i32>} : memref<304x32xf32, #tpu.memory_space<vmem>>, vector<256x32xf32>,
    %c7 = arith.constant 7 : index
    %c0_20 = arith.constant 0 : index
    %26 = vector.load %arg5[%c7, %c0_20] : memref<304x32xf32, #tpu.memory_space<vmem>>, vector<256x32xf32>
    %cst_21 = arith.constant 0.000000e+00 : f32
    %27 = vector.broadcast %cst_21 : f32 to vector<256x32xf32>
    %28 = arith.select %13, %26, %27 : vector<256x32xi1>, vector<256x32xf32>
    %29 = arith.truncf %28 : vector<256x32xf32> to vector<256x32xbf16>
    %c0_22 = arith.constant 0 : index
    %c0_23 = arith.constant 0 : index
    %30 = vector.load %arg6[%c0_22, %c0_23] : memref<256x384xbf16, #tpu.memory_space<vmem>>, vector<256x32xbf16>
    tpu.vector_store %arg6[%c0_22, %c0_23], %29 {strides = array<i32>} : memref<256x384xbf16, #tpu.memory_space<vmem>>, vector<256x32xbf16>,
    %c8 = arith.constant 8 : index
    %c0_24 = arith.constant 0 : index
    %31 = vector.load %arg5[%c8, %c0_24] : memref<304x32xf32, #tpu.memory_space<vmem>>, vector<256x32xf32>
    %32 = arith.truncf %31 : vector<256x32xf32> to vector<256x32xbf16>
    %c0_25 = arith.constant 0 : index
    %c32 = arith.constant 32 : index
    %33 = vector.load %arg6[%c0_25, %c32] : memref<256x384xbf16, #tpu.memory_space<vmem>>, vector<256x32xbf16>
    tpu.vector_store %arg6[%c0_25, %c32], %32 {strides = array<i32>} : memref<256x384xbf16, #tpu.memory_space<vmem>>, vector<256x32xbf16>,
    %c9 = arith.constant 9 : index
    %c0_26 = arith.constant 0 : index
    %34 = vector.load %arg5[%c9, %c0_26] : memref<304x32xf32, #tpu.memory_space<vmem>>, vector<256x32xf32>
    %cst_27 = arith.constant 0.000000e+00 : f32
    %35 = vector.broadcast %cst_27 : f32 to vector<256x32xf32>
    %36 = arith.select %15, %34, %35 : vector<256x32xi1>, vector<256x32xf32>
    %37 = arith.truncf %36 : vector<256x32xf32> to vector<256x32xbf16>
    %c0_28 = arith.constant 0 : index
    %c64 = arith.constant 64 : index
    %38 = vector.load %arg6[%c0_28, %c64] : memref<256x384xbf16, #tpu.memory_space<vmem>>, vector<256x32xbf16>
    tpu.vector_store %arg6[%c0_28, %c64], %37 {strides = array<i32>} : memref<256x384xbf16, #tpu.memory_space<vmem>>, vector<256x32xbf16>,
    %c23 = arith.constant 23 : index
    %c0_29 = arith.constant 0 : index
    %39 = vector.load %arg5[%c23, %c0_29] : memref<304x32xf32, #tpu.memory_space<vmem>>, vector<256x32xf32>
    %cst_30 = arith.constant 0.000000e+00 : f32
    %40 = vector.broadcast %cst_30 : f32 to vector<256x32xf32>
    %41 = arith.select %13, %39, %40 : vector<256x32xi1>, vector<256x32xf32>
    %42 = arith.truncf %41 : vector<256x32xf32> to vector<256x32xbf16>
    %c0_31 = arith.constant 0 : index
    %c96 = arith.constant 96 : index
    %43 = vector.load %arg6[%c0_31, %c96] : memref<256x384xbf16, #tpu.memory_space<vmem>>, vector<256x32xbf16>
    tpu.vector_store %arg6[%c0_31, %c96], %42 {strides = array<i32>} : memref<256x384xbf16, #tpu.memory_space<vmem>>, vector<256x32xbf16>,
    %c24_32 = arith.constant 24 : index
    %c0_33 = arith.constant 0 : index
    %44 = vector.load %arg5[%c24_32, %c0_33] : memref<304x32xf32, #tpu.memory_space<vmem>>, vector<256x32xf32>
    %45 = arith.truncf %44 : vector<256x32xf32> to vector<256x32xbf16>
    %c0_34 = arith.constant 0 : index
    %c128 = arith.constant 128 : index
    %46 = vector.load %arg6[%c0_34, %c128] : memref<256x384xbf16, #tpu.memory_space<vmem>>, vector<256x32xbf16>
    tpu.vector_store %arg6[%c0_34, %c128], %45 {strides = array<i32>} : memref<256x384xbf16, #tpu.memory_space<vmem>>, vector<256x32xbf16>,
    %c25 = arith.constant 25 : index
    %c0_35 = arith.constant 0 : index
    %47 = vector.load %arg5[%c25, %c0_35] : memref<304x32xf32, #tpu.memory_space<vmem>>, vector<256x32xf32>
    %cst_36 = arith.constant 0.000000e+00 : f32
    %48 = vector.broadcast %cst_36 : f32 to vector<256x32xf32>
    %49 = arith.select %15, %47, %48 : vector<256x32xi1>, vector<256x32xf32>
    %50 = arith.truncf %49 : vector<256x32xf32> to vector<256x32xbf16>
    %c0_37 = arith.constant 0 : index
    %c160 = arith.constant 160 : index
    %51 = vector.load %arg6[%c0_37, %c160] : memref<256x384xbf16, #tpu.memory_space<vmem>>, vector<256x32xbf16>
    tpu.vector_store %arg6[%c0_37, %c160], %50 {strides = array<i32>} : memref<256x384xbf16, #tpu.memory_space<vmem>>, vector<256x32xbf16>,
    %c39 = arith.constant 39 : index
    %c0_38 = arith.constant 0 : index
    %52 = vector.load %arg5[%c39, %c0_38] : memref<304x32xf32, #tpu.memory_space<vmem>>, vector<256x32xf32>
    %cst_39 = arith.constant 0.000000e+00 : f32
    %53 = vector.broadcast %cst_39 : f32 to vector<256x32xf32>
    %54 = arith.select %13, %52, %53 : vector<256x32xi1>, vector<256x32xf32>
    %55 = arith.truncf %54 : vector<256x32xf32> to vector<256x32xbf16>
    %c0_40 = arith.constant 0 : index
    %c192 = arith.constant 192 : index
    %56 = vector.load %arg6[%c0_40, %c192] : memref<256x384xbf16, #tpu.memory_space<vmem>>, vector<256x32xbf16>
    tpu.vector_store %arg6[%c0_40, %c192], %55 {strides = array<i32>} : memref<256x384xbf16, #tpu.memory_space<vmem>>, vector<256x32xbf16>,
    %c40 = arith.constant 40 : index
    %c0_41 = arith.constant 0 : index
    %57 = vector.load %arg5[%c40, %c0_41] : memref<304x32xf32, #tpu.memory_space<vmem>>, vector<256x32xf32>
    %58 = arith.truncf %57 : vector<256x32xf32> to vector<256x32xbf16>
    %c0_42 = arith.constant 0 : index
    %c224 = arith.constant 224 : index
    %59 = vector.load %arg6[%c0_42, %c224] : memref<256x384xbf16, #tpu.memory_space<vmem>>, vector<256x32xbf16>
    tpu.vector_store %arg6[%c0_42, %c224], %58 {strides = array<i32>} : memref<256x384xbf16, #tpu.memory_space<vmem>>, vector<256x32xbf16>,
    %c41 = arith.constant 41 : index
    %c0_43 = arith.constant 0 : index
    %60 = vector.load %arg5[%c41, %c0_43] : memref<304x32xf32, #tpu.memory_space<vmem>>, vector<256x32xf32>
    %cst_44 = arith.constant 0.000000e+00 : f32
    %61 = vector.broadcast %cst_44 : f32 to vector<256x32xf32>
    %62 = arith.select %15, %60, %61 : vector<256x32xi1>, vector<256x32xf32>
    %63 = arith.truncf %62 : vector<256x32xf32> to vector<256x32xbf16>
    %c0_45 = arith.constant 0 : index
    %c256 = arith.constant 256 : index
    %64 = vector.load %arg6[%c0_45, %c256] : memref<256x384xbf16, #tpu.memory_space<vmem>>, vector<256x32xbf16>
    tpu.vector_store %arg6[%c0_45, %c256], %63 {strides = array<i32>} : memref<256x384xbf16, #tpu.memory_space<vmem>>, vector<256x32xbf16>,
    %c0_46 = arith.constant 0 : index
    %c0_47 = arith.constant 0 : index
    %65 = vector.load %arg6[%c0_46, %c0_47] : memref<256x384xbf16, #tpu.memory_space<vmem>>, vector<256x384xbf16>
    %c0_48 = arith.constant 0 : index
    %c0_49 = arith.constant 0 : index
    %c0_50 = arith.constant 0 : index
    %66 = vector.load %arg2[%c0_48, %c0_49, %c0_50] : memref<2x384x8xbf16, #tpu.memory_space<vmem>>, vector<1x384x8xbf16>
    %67 = vector.shape_cast %66 : vector<1x384x8xbf16> to vector<384x8xbf16>
    %cst_51 = arith.constant dense<0.000000e+00> : vector<256x8xf32>
    %68 = tpu.matmul %65, %67, %cst_51 {dimension_numbers = #tpu.dot_dimension_numbers<[1], [0], [0], [1], [0, 0, 1, 1], [], []>} : vector<256x384xbf16>, vector<384x8xbf16>, vector<256x8xf32> -> vector<256x8xf32>
    %cst_52 = arith.constant 0.000000e+00 : f32
    %69 = vector.broadcast %cst_52 : f32 to vector<256x8xf32>
    %70 = arith.maximumf %68, %69 : vector<256x8xf32>
    %71 = arith.truncf %70 : vector<256x8xf32> to vector<256x8xbf16>
    %c0_53 = arith.constant 0 : index
    %c0_54 = arith.constant 0 : index
    %c0_55 = arith.constant 0 : index
    %72 = vector.load %arg3[%c0_53, %c0_54, %c0_55] : memref<2x8x32xbf16, #tpu.memory_space<vmem>>, vector<1x8x32xbf16>
    %73 = vector.shape_cast %72 : vector<1x8x32xbf16> to vector<8x32xbf16>
    %cst_56 = arith.constant dense<0.000000e+00> : vector<256x32xf32>
    %74 = tpu.matmul %71, %73, %cst_56 {dimension_numbers = #tpu.dot_dimension_numbers<[1], [0], [0], [1], [0, 0, 1, 1], [], []>} : vector<256x8xbf16>, vector<8x32xbf16>, vector<256x32xf32> -> vector<256x32xf32>
    %c0_57 = arith.constant 0 : index
    %c0_58 = arith.constant 0 : index
    %c0_59 = arith.constant 0 : index
    %75 = vector.load %arg4[%c0_57, %c0_58, %c0_59] : memref<1x256x32xf32, #tpu.memory_space<vmem>>, vector<1x256x32xf32>
    %76 = vector.shape_cast %75 : vector<1x256x32xf32> to vector<256x32xf32>
    %cst_60 = arith.constant 0.000000e+00 : f32
    %77 = vector.broadcast %cst_60 : f32 to vector<256x32xf32>
    %78 = arith.maximumf %76, %77 : vector<256x32xf32>
    %79 = arith.addf %78, %74 : vector<256x32xf32>
    %c0_61 = arith.constant 0 : index
    %c0_62 = arith.constant 0 : index
    %c0_63 = arith.constant 0 : index
    %80 = vector.load %arg4[%c0_61, %c0_62, %c0_63] : memref<1x256x32xf32, #tpu.memory_space<vmem>>, vector<1x256x32xf32>
    %81 = vector.shape_cast %80 : vector<1x256x32xf32> to vector<256x32xf32>
    %82 = vector.shape_cast %79 : vector<256x32xf32> to vector<1x256x32xf32>
    tpu.vector_store %arg4[%c0_61, %c0_62, %c0_63], %82 {strides = array<i32>} : memref<1x256x32xf32, #tpu.memory_space<vmem>>, vector<1x256x32xf32>,
    %c0_64 = arith.constant 0 : index
    %c0_65 = arith.constant 0 : index
    %c0_66 = arith.constant 0 : index
    %83 = vector.load %arg4[%c0_64, %c0_65, %c0_66] : memref<1x256x32xf32, #tpu.memory_space<vmem>>, vector<1x256x32xf32>
    %84 = vector.shape_cast %83 : vector<1x256x32xf32> to vector<256x32xf32>
    %cst_67 = arith.constant 0.000000e+00 : f32
    %85 = vector.broadcast %cst_67 : f32 to vector<256x32xf32>
    %86 = arith.maximumf %84, %85 : vector<256x32xf32>
    %c24_68 = arith.constant 24 : index
    %c0_69 = arith.constant 0 : index
    %87 = vector.load %arg5[%c24_68, %c0_69] : memref<304x32xf32, #tpu.memory_space<vmem>>, vector<256x32xf32>
    tpu.vector_store %arg5[%c24_68, %c0_69], %86 {strides = array<i32>} : memref<304x32xf32, #tpu.memory_space<vmem>>, vector<256x32xf32>,
    %c7_70 = arith.constant 7 : index
    %c0_71 = arith.constant 0 : index
    %88 = vector.load %arg5[%c7_70, %c0_71] : memref<304x32xf32, #tpu.memory_space<vmem>>, vector<256x32xf32>
    %cst_72 = arith.constant 0.000000e+00 : f32
    %89 = vector.broadcast %cst_72 : f32 to vector<256x32xf32>
    %90 = arith.select %13, %88, %89 : vector<256x32xi1>, vector<256x32xf32>
    %91 = arith.truncf %90 : vector<256x32xf32> to vector<256x32xbf16>
    %c0_73 = arith.constant 0 : index
    %c0_74 = arith.constant 0 : index
    %92 = vector.load %arg6[%c0_73, %c0_74] : memref<256x384xbf16, #tpu.memory_space<vmem>>, vector<256x32xbf16>
    tpu.vector_store %arg6[%c0_73, %c0_74], %91 {strides = array<i32>} : memref<256x384xbf16, #tpu.memory_space<vmem>>, vector<256x32xbf16>,
    %c8_75 = arith.constant 8 : index
    %c0_76 = arith.constant 0 : index
    %93 = vector.load %arg5[%c8_75, %c0_76] : memref<304x32xf32, #tpu.memory_space<vmem>>, vector<256x32xf32>
    %94 = arith.truncf %93 : vector<256x32xf32> to vector<256x32xbf16>
    %c0_77 = arith.constant 0 : index
    %c32_78 = arith.constant 32 : index
    %95 = vector.load %arg6[%c0_77, %c32_78] : memref<256x384xbf16, #tpu.memory_space<vmem>>, vector<256x32xbf16>
    tpu.vector_store %arg6[%c0_77, %c32_78], %94 {strides = array<i32>} : memref<256x384xbf16, #tpu.memory_space<vmem>>, vector<256x32xbf16>,
    %c9_79 = arith.constant 9 : index
    %c0_80 = arith.constant 0 : index
    %96 = vector.load %arg5[%c9_79, %c0_80] : memref<304x32xf32, #tpu.memory_space<vmem>>, vector<256x32xf32>
    %cst_81 = arith.constant 0.000000e+00 : f32
    %97 = vector.broadcast %cst_81 : f32 to vector<256x32xf32>
    %98 = arith.select %15, %96, %97 : vector<256x32xi1>, vector<256x32xf32>
    %99 = arith.truncf %98 : vector<256x32xf32> to vector<256x32xbf16>
    %c0_82 = arith.constant 0 : index
    %c64_83 = arith.constant 64 : index
    %100 = vector.load %arg6[%c0_82, %c64_83] : memref<256x384xbf16, #tpu.memory_space<vmem>>, vector<256x32xbf16>
    tpu.vector_store %arg6[%c0_82, %c64_83], %99 {strides = array<i32>} : memref<256x384xbf16, #tpu.memory_space<vmem>>, vector<256x32xbf16>,
    %c23_84 = arith.constant 23 : index
    %c0_85 = arith.constant 0 : index
    %101 = vector.load %arg5[%c23_84, %c0_85] : memref<304x32xf32, #tpu.memory_space<vmem>>, vector<256x32xf32>
    %cst_86 = arith.constant 0.000000e+00 : f32
    %102 = vector.broadcast %cst_86 : f32 to vector<256x32xf32>
    %103 = arith.select %13, %101, %102 : vector<256x32xi1>, vector<256x32xf32>
    %104 = arith.truncf %103 : vector<256x32xf32> to vector<256x32xbf16>
    %c0_87 = arith.constant 0 : index
    %c96_88 = arith.constant 96 : index
    %105 = vector.load %arg6[%c0_87, %c96_88] : memref<256x384xbf16, #tpu.memory_space<vmem>>, vector<256x32xbf16>
    tpu.vector_store %arg6[%c0_87, %c96_88], %104 {strides = array<i32>} : memref<256x384xbf16, #tpu.memory_space<vmem>>, vector<256x32xbf16>,
    %c24_89 = arith.constant 24 : index
    %c0_90 = arith.constant 0 : index
    %106 = vector.load %arg5[%c24_89, %c0_90] : memref<304x32xf32, #tpu.memory_space<vmem>>, vector<256x32xf32>
    %107 = arith.truncf %106 : vector<256x32xf32> to vector<256x32xbf16>
    %c0_91 = arith.constant 0 : index
    %c128_92 = arith.constant 128 : index
    %108 = vector.load %arg6[%c0_91, %c128_92] : memref<256x384xbf16, #tpu.memory_space<vmem>>, vector<256x32xbf16>
    tpu.vector_store %arg6[%c0_91, %c128_92], %107 {strides = array<i32>} : memref<256x384xbf16, #tpu.memory_space<vmem>>, vector<256x32xbf16>,
    %c25_93 = arith.constant 25 : index
    %c0_94 = arith.constant 0 : index
    %109 = vector.load %arg5[%c25_93, %c0_94] : memref<304x32xf32, #tpu.memory_space<vmem>>, vector<256x32xf32>
    %cst_95 = arith.constant 0.000000e+00 : f32
    %110 = vector.broadcast %cst_95 : f32 to vector<256x32xf32>
    %111 = arith.select %15, %109, %110 : vector<256x32xi1>, vector<256x32xf32>
    %112 = arith.truncf %111 : vector<256x32xf32> to vector<256x32xbf16>
    %c0_96 = arith.constant 0 : index
    %c160_97 = arith.constant 160 : index
    %113 = vector.load %arg6[%c0_96, %c160_97] : memref<256x384xbf16, #tpu.memory_space<vmem>>, vector<256x32xbf16>
    tpu.vector_store %arg6[%c0_96, %c160_97], %112 {strides = array<i32>} : memref<256x384xbf16, #tpu.memory_space<vmem>>, vector<256x32xbf16>,
    %c39_98 = arith.constant 39 : index
    %c0_99 = arith.constant 0 : index
    %114 = vector.load %arg5[%c39_98, %c0_99] : memref<304x32xf32, #tpu.memory_space<vmem>>, vector<256x32xf32>
    %cst_100 = arith.constant 0.000000e+00 : f32
    %115 = vector.broadcast %cst_100 : f32 to vector<256x32xf32>
    %116 = arith.select %13, %114, %115 : vector<256x32xi1>, vector<256x32xf32>
    %117 = arith.truncf %116 : vector<256x32xf32> to vector<256x32xbf16>
    %c0_101 = arith.constant 0 : index
    %c192_102 = arith.constant 192 : index
    %118 = vector.load %arg6[%c0_101, %c192_102] : memref<256x384xbf16, #tpu.memory_space<vmem>>, vector<256x32xbf16>
    tpu.vector_store %arg6[%c0_101, %c192_102], %117 {strides = array<i32>} : memref<256x384xbf16, #tpu.memory_space<vmem>>, vector<256x32xbf16>,
    %c40_103 = arith.constant 40 : index
    %c0_104 = arith.constant 0 : index
    %119 = vector.load %arg5[%c40_103, %c0_104] : memref<304x32xf32, #tpu.memory_space<vmem>>, vector<256x32xf32>
    %120 = arith.truncf %119 : vector<256x32xf32> to vector<256x32xbf16>
    %c0_105 = arith.constant 0 : index
    %c224_106 = arith.constant 224 : index
    %121 = vector.load %arg6[%c0_105, %c224_106] : memref<256x384xbf16, #tpu.memory_space<vmem>>, vector<256x32xbf16>
    tpu.vector_store %arg6[%c0_105, %c224_106], %120 {strides = array<i32>} : memref<256x384xbf16, #tpu.memory_space<vmem>>, vector<256x32xbf16>,
    %c41_107 = arith.constant 41 : index
    %c0_108 = arith.constant 0 : index
    %122 = vector.load %arg5[%c41_107, %c0_108] : memref<304x32xf32, #tpu.memory_space<vmem>>, vector<256x32xf32>
    %cst_109 = arith.constant 0.000000e+00 : f32
    %123 = vector.broadcast %cst_109 : f32 to vector<256x32xf32>
    %124 = arith.select %15, %122, %123 : vector<256x32xi1>, vector<256x32xf32>
    %125 = arith.truncf %124 : vector<256x32xf32> to vector<256x32xbf16>
    %c0_110 = arith.constant 0 : index
    %c256_111 = arith.constant 256 : index
    %126 = vector.load %arg6[%c0_110, %c256_111] : memref<256x384xbf16, #tpu.memory_space<vmem>>, vector<256x32xbf16>
    tpu.vector_store %arg6[%c0_110, %c256_111], %125 {strides = array<i32>} : memref<256x384xbf16, #tpu.memory_space<vmem>>, vector<256x32xbf16>,
    %c0_112 = arith.constant 0 : index
    %c0_113 = arith.constant 0 : index
    %127 = vector.load %arg6[%c0_112, %c0_113] : memref<256x384xbf16, #tpu.memory_space<vmem>>, vector<256x384xbf16>
    %c1 = arith.constant 1 : index
    %c0_114 = arith.constant 0 : index
    %c0_115 = arith.constant 0 : index
    %128 = vector.load %arg2[%c1, %c0_114, %c0_115] : memref<2x384x8xbf16, #tpu.memory_space<vmem>>, vector<1x384x8xbf16>
    %129 = vector.shape_cast %128 : vector<1x384x8xbf16> to vector<384x8xbf16>
    %cst_116 = arith.constant dense<0.000000e+00> : vector<256x8xf32>
    %130 = tpu.matmul %127, %129, %cst_116 {dimension_numbers = #tpu.dot_dimension_numbers<[1], [0], [0], [1], [0, 0, 1, 1], [], []>} : vector<256x384xbf16>, vector<384x8xbf16>, vector<256x8xf32> -> vector<256x8xf32>
    %cst_117 = arith.constant 0.000000e+00 : f32
    %131 = vector.broadcast %cst_117 : f32 to vector<256x8xf32>
    %132 = arith.maximumf %130, %131 : vector<256x8xf32>
    %133 = arith.truncf %132 : vector<256x8xf32> to vector<256x8xbf16>
    %c1_118 = arith.constant 1 : index
    %c0_119 = arith.constant 0 : index
    %c0_120 = arith.constant 0 : index
    %134 = vector.load %arg3[%c1_118, %c0_119, %c0_120] : memref<2x8x32xbf16, #tpu.memory_space<vmem>>, vector<1x8x32xbf16>
    %135 = vector.shape_cast %134 : vector<1x8x32xbf16> to vector<8x32xbf16>
    %cst_121 = arith.constant dense<0.000000e+00> : vector<256x32xf32>
    %136 = tpu.matmul %133, %135, %cst_121 {dimension_numbers = #tpu.dot_dimension_numbers<[1], [0], [0], [1], [0, 0, 1, 1], [], []>} : vector<256x8xbf16>, vector<8x32xbf16>, vector<256x32xf32> -> vector<256x32xf32>
    %c0_122 = arith.constant 0 : index
    %c0_123 = arith.constant 0 : index
    %c0_124 = arith.constant 0 : index
    %137 = vector.load %arg4[%c0_122, %c0_123, %c0_124] : memref<1x256x32xf32, #tpu.memory_space<vmem>>, vector<1x256x32xf32>
    %138 = vector.shape_cast %137 : vector<1x256x32xf32> to vector<256x32xf32>
    %cst_125 = arith.constant 0.000000e+00 : f32
    %139 = vector.broadcast %cst_125 : f32 to vector<256x32xf32>
    %140 = arith.maximumf %138, %139 : vector<256x32xf32>
    %141 = arith.addf %140, %136 : vector<256x32xf32>
    %c0_126 = arith.constant 0 : index
    %c0_127 = arith.constant 0 : index
    %c0_128 = arith.constant 0 : index
    %142 = vector.load %arg4[%c0_126, %c0_127, %c0_128] : memref<1x256x32xf32, #tpu.memory_space<vmem>>, vector<1x256x32xf32>
    %143 = vector.shape_cast %142 : vector<1x256x32xf32> to vector<256x32xf32>
    %144 = vector.shape_cast %141 : vector<256x32xf32> to vector<1x256x32xf32>
    tpu.vector_store %arg4[%c0_126, %c0_127, %c0_128], %144 {strides = array<i32>} : memref<1x256x32xf32, #tpu.memory_space<vmem>>, vector<1x256x32xf32>,
    %c0_129 = arith.constant 0 : index
    %c0_130 = arith.constant 0 : index
    %c0_131 = arith.constant 0 : index
    %145 = vector.load %arg4[%c0_129, %c0_130, %c0_131] : memref<1x256x32xf32, #tpu.memory_space<vmem>>, vector<1x256x32xf32>
    %146 = vector.shape_cast %145 : vector<1x256x32xf32> to vector<256x32xf32>
    %cst_132 = arith.constant 0.000000e+00 : f32
    %147 = vector.broadcast %cst_132 : f32 to vector<256x32xf32>
    %148 = arith.maximumf %146, %147 : vector<256x32xf32>
    %c0_133 = arith.constant 0 : index
    %c0_134 = arith.constant 0 : index
    %c0_135 = arith.constant 0 : index
    %149 = vector.load %arg4[%c0_133, %c0_134, %c0_135] : memref<1x256x32xf32, #tpu.memory_space<vmem>>, vector<1x256x32xf32>
    %150 = vector.shape_cast %149 : vector<1x256x32xf32> to vector<256x32xf32>
    %151 = vector.shape_cast %148 : vector<256x32xf32> to vector<1x256x32xf32>
    tpu.vector_store %arg4[%c0_133, %c0_134, %c0_135], %151 {strides = array<i32>} : memref<1x256x32xf32, #tpu.memory_space<vmem>>, vector<1x256x32xf32>,
    return
  }
  func.func @transform_0(%arg0: i32) -> (i32, i32, i32) {
    %c0_i32 = arith.constant 0 : i32
    %c0_i32_0 = arith.constant 0 : i32
    %c0_i32_1 = arith.constant 0 : i32
    return %arg0, %c0_i32, %c0_i32_0 : i32, i32, i32
  }
  func.func @transform_1(%arg0: i32) -> (i32, i32, i32) {
    %c0_i32 = arith.constant 0 : i32
    %c0_i32_0 = arith.constant 0 : i32
    %c0_i32_1 = arith.constant 0 : i32
    %c0_i32_2 = arith.constant 0 : i32
    return %c0_i32, %c0_i32_0, %c0_i32_1 : i32, i32, i32
  }
  func.func @transform_2(%arg0: i32) -> (i32, i32, i32) {
    %c0_i32 = arith.constant 0 : i32
    %c0_i32_0 = arith.constant 0 : i32
    %c0_i32_1 = arith.constant 0 : i32
    %c0_i32_2 = arith.constant 0 : i32
    return %c0_i32, %c0_i32_0, %c0_i32_1 : i32, i32, i32
  }
  func.func @transform_3(%arg0: i32) -> (i32, i32, i32) {
    %c0_i32 = arith.constant 0 : i32
    %c0_i32_0 = arith.constant 0 : i32
    %c0_i32_1 = arith.constant 0 : i32
    return %arg0, %c0_i32, %c0_i32_0 : i32, i32, i32
  }
}

</mosaic_0001>

<llo_original>
// kernel: residual_stack_forward.1
$region0: #{residual_stack_forward.1}
  #allocation0 [shape = 'u32[]', space=smem, size = 0x4, offset = 0x4, fixed_abs, tag = 'smem constant byte address 0x4 - core index']
  #allocation1 [shape = 'u32[144,128]{1,0:T(1,128)}', space=vmem, size = 0x12000, scoped, tag = 'internal scratch']
  #allocation2 [shape = 'f32[304,32]{1,0:T(8,128)}', space=vmem, size = 0x26000, scoped, tag = 'scratch operand']
  #allocation3 [shape = 'bf16[256,384]{1,0:T(8,128)(2,1)}', space=vmem, size = 0x30000, scoped, tag = 'scratch operand']
  %s0 = inlined_call_operand.vmem [shape: f32[2,256,32], index: 0, kind: input, shape index: {}]
  %s1 = inlined_call_operand.vmem [shape: bf16[2,384,8], index: 1, kind: input, shape index: {}]
  %s2 = inlined_call_operand.vmem [shape: bf16[2,8,32], index: 2, kind: input, shape index: {}]
  %s3 = inlined_call_operand.hbm [shape: f32[2,256,32], index: 3, kind: output, shape index: {}]
  %s4 = sld [smem:[#allocation0]]
  $region45: #{residual_stack_forward.1} parent=0
    _
  %s6 = ssub.s32 1, %s4
  %s7 = scalar_select 0, %s6, %s4
  $region1: #{residual_stack_forward.1} parent=0
    #allocation4 [shape = 'u8[262144]{0}', space=vmem, size = 0x40000, scoped, tag = 'output window, operand 0']
    #allocation5 [shape = 's32[2]{0}', space=sflag, size = 0x8, scoped, tag = 'scoped memory for residual_stack_forward.1']
    %8 = vsyncpa [#allocation5], 0
    %s9 = scalar_lea.sflag [#allocation5], 1
    %10 = vsyncpa %s9, 0
    loop: start=0, step=1, limit=4
    $region2: #{residual_stack_forward.1} parent=1 // loop_pre_header
      _
    $region3: #{residual_stack_forward.1} parent=1 // loop_header
      %s12 = sphi 0, %s16
      %p13 = scmp.ge.s32.totalorder %s12, 4
      %s22 = sphi 0, %s24
      %s25 = sphi 0, %s22
      %s26 = sphi 0, %s25
      %s42 = sphi 0, %s26
      %s46 = sphi 0, %s46
      %s48 = sphi 0, %s46
      %s49 = sphi 0, %s48
      %s63 = sphi 0, %s49
      %s67 = sphi 0, %s67
      %s69 = sphi 0, %s67
      %s70 = sphi 0, %s69
      %s84 = sphi 0, %s70
      %s90 = sphi 0, %s92
      %s93 = sphi 0, %s90
      %s94 = sphi 0, %s93
      %s110 = sphi 0, %s94
    $region4: #{residual_stack_forward.1} parent=1 // loop_header_branch
      %15 = sbr.rel (%p13) target = $region8
    $region5: #{residual_stack_forward.1} parent=1 // loop_body
      %s17 = ssub.s32 %s12, 1
      %s18 = ssub.s32 %s12, 2
      %s19 = sadd.s32 %s12, 1
      %s20 = ssub.s32 %s12, %s19
      %p21 = scmp.eq.s32.totalorder %s20, 0
      %s23 = sadd.s32 %s22, 1
      %s24 = scalar_select %p21, %s22, %s23
      %p27 = pneg %p21
      %p28 = scmp.eq.s32.totalorder %s12, 1
      %p29 = por %p27, %p28
      %p30 = scmp.ne.s32.totalorder %s22, %s25
      %p31 = scmp.eq.s32.totalorder %s12, 0
      %p32 = por %p30, %p31
      %p33 = scmp.ne.s32.totalorder %s22, %s25
      %p34 = scmp.eq.s32.totalorder %s17, 1
      %p35 = por %p33, %p34
      %p36 = scmp.ne.s32.totalorder %s25, %s26
      %p37 = scmp.eq.s32.totalorder %s17, 0
      %p38 = por %p36, %p37
      %p39 = scmp.ne.s32.totalorder %s25, %s26
      %p40 = scmp.eq.s32.totalorder %s18, 1
      %p41 = por %p39, %p40
      %p43 = scmp.ne.s32.totalorder %s26, %s42
      %p44 = scmp.eq.s32.totalorder %s18, 0
      %p45 = por %p43, %p44
      %s47 = sadd.s32 %s46, 1
      %p50 = scmp.eq.s32.totalorder %s12, 1
      %p51 = scmp.ne.s32.totalorder %s46, %s48
      %p52 = scmp.eq.s32.totalorder %s12, 0
      %p53 = por %p51, %p52
      %p54 = scmp.ne.s32.totalorder %s46, %s48
      %p55 = scmp.eq.s32.totalorder %s17, 1
      %p56 = por %p54, %p55
      %p57 = scmp.ne.s32.totalorder %s48, %s49
      %p58 = scmp.eq.s32.totalorder %s17, 0
      %p59 = por %p57, %p58
      %p60 = scmp.ne.s32.totalorder %s48, %s49
      %p61 = scmp.eq.s32.totalorder %s18, 1
      %p62 = por %p60, %p61
      %p64 = scmp.ne.s32.totalorder %s49, %s63
      %p65 = scmp.eq.s32.totalorder %s18, 0
      %p66 = por %p64, %p65
      %s68 = sadd.s32 %s67, 1
      %p71 = scmp.eq.s32.totalorder %s12, 1
      %p72 = scmp.ne.s32.totalorder %s67, %s69
      %p73 = scmp.eq.s32.totalorder %s12, 0
      %p74 = por %p72, %p73
      %p75 = scmp.ne.s32.totalorder %s67, %s69
      %p76 = scmp.eq.s32.totalorder %s17, 1
      %p77 = por %p75, %p76
      %p78 = scmp.ne.s32.totalorder %s69, %s70
      %p79 = scmp.eq.s32.totalorder %s17, 0
      %p80 = por %p78, %p79
      %p81 = scmp.ne.s32.totalorder %s69, %s70
      %p82 = scmp.eq.s32.totalorder %s18, 1
      %p83 = por %p81, %p82
      %p85 = scmp.ne.s32.totalorder %s70, %s84
      %p86 = scmp.eq.s32.totalorder %s18, 0
      %p87 = por %p85, %p86
      %s88 = ssub.s32 %s12, %s19
      %p89 = scmp.eq.s32.totalorder %s88, 0
      %s91 = sadd.s32 %s90, 1
      %s92 = scalar_select %p89, %s90, %s91
      %p95 = pneg %p89
      %p96 = scmp.eq.s32.totalorder %s12, 1
      %p97 = por %p95, %p96
      %p98 = scmp.ne.s32.totalorder %s90, %s93
      %p99 = scmp.eq.s32.totalorder %s12, 0
      %p100 = por %p98, %p99
      %p101 = scmp.ne.s32.totalorder %s90, %s93
      %p102 = scmp.eq.s32.totalorder %s17, 1
      %p103 = por %p101, %p102
      %p104 = scmp.ne.s32.totalorder %s93, %s94
      %p105 = scmp.eq.s32.totalorder %s17, 0
      %p106 = por %p104, %p105
      %p107 = scmp.ne.s32.totalorder %s93, %s94
      %p108 = scmp.eq.s32.totalorder %s18, 1
      %p109 = por %p107, %p108
      %p111 = scmp.ne.s32.totalorder %s94, %s110
      %p112 = scmp.eq.s32.totalorder %s18, 0
      %p113 = por %p111, %p112
      %p114 = scmp.le.s32.totalorder 1, %s12
      %p115 = scmp.lt.s32.totalorder %s12, 3
      %p116 = pnand %p114, %p115
      %p117 = pneg %p116
      // Predicated region
      $region9: #{residual_stack_forward.1} parent=5 // pred_check
        _
      $region10: #{residual_stack_forward.1} parent=5 // pred_check_branch
        %119 = sbr.rel (%p116) target = $region12
      $region11: #{residual_stack_forward.1} parent=5 // pred_region
        %s120 = ssub.s32 %s12, 1
        // Predicated region
        $region13: #{residual_stack_forward.1} parent=11 // pred_check
          %p121 = pneg %p59
        $region14: #{residual_stack_forward.1} parent=11 // pred_check_branch
          %123 = sbr.rel (%p121) target = $region16
        $region15: #{residual_stack_forward.1} parent=11 // pred_region
          _
        $region16: #{residual_stack_forward.1} parent=11 // pred_fallthru
          _
        // Predicated region
        $region17: #{residual_stack_forward.1} parent=11 // pred_check
          %p124 = pneg %p80
        $region18: #{residual_stack_forward.1} parent=11 // pred_check_branch
          %126 = sbr.rel (%p124) target = $region20
        $region19: #{residual_stack_forward.1} parent=11 // pred_region
          _
        $region20: #{residual_stack_forward.1} parent=11 // pred_fallthru
          _
      $region12: #{residual_stack_forward.1} parent=5 // pred_fallthru
        _
      %p127 = scmp.lt.s32.totalorder %s12, 2
      // Predicated region
      $region21: #{residual_stack_forward.1} parent=5 // pred_check
        %p128 = pneg %p127
      $region22: #{residual_stack_forward.1} parent=5 // pred_check_branch
        %130 = sbr.rel (%p128) target = $region24
      $region23: #{residual_stack_forward.1} parent=5 // pred_region
        // Predicated region
        $region25: #{residual_stack_forward.1} parent=23 // pred_check
          %p131 = pneg %p32
        $region26: #{residual_stack_forward.1} parent=23 // pred_check_branch
          %133 = sbr.rel (%p131) target = $region28
        $region27: #{residual_stack_forward.1} parent=23 // pred_region
          %p134 = scmp.lt.s32.totalorder %s12, 1
          %s135 = scalar_select %p134, %s12, 1
          %s136 = smul.addr %s135, 32
          %s137 = smul.addr %s136, 8
          %s138 = scalar_lea.vmem %s0, %s137
        $region28: #{residual_stack_forward.1} parent=23 // pred_fallthru
          _
      $region24: #{residual_stack_forward.1} parent=5 // pred_fallthru
        _
      %p139 = scmp.le.s32.totalorder 1, %s12
      %p140 = scmp.lt.s32.totalorder %s12, 3
      %p141 = pnand %p139, %p140
      %p142 = pneg %p141
      // Predicated region
      $region29: #{residual_stack_forward.1} parent=5 // pred_check
        _
      $region30: #{residual_stack_forward.1} parent=5 // pred_check_branch
        %144 = sbr.rel (%p141) target = $region32
      $region31: #{residual_stack_forward.1} parent=5 // pred_region
        %s145 = ssub.s32 %s12, 1
        %p146 = scmp.lt.s32.totalorder %s17, 1
        %s147 = scalar_select %p146, %s17, 1
        %s148 = smul.addr %s147, 32
        %s149 = smul.addr %s148, 8
        %s150 = scalar_lea.vmem %s0, %s149
        %p151 = pneg %p38
        %p152 = pneg %p35
        %p153 = pneg %p59
        %p154 = pneg %p56
        %p155 = pneg %p80
        %p156 = pneg %p77
        %p157 = pneg %p106
        %p158 = pneg %p103
        %s159 = sand.u32 %s93, 1
        %s160 = scalar_lea.sflag [#allocation5], %s159
        %s161 = sand.u32 %s93, 1
        %s162 = smul.addr %s161, 256
        %s163 = scalar_lea.vmem [#allocation4], %s162
        %p164 = scmp.lt.s32.totalorder %s17, 1
        %s165 = scalar_select %p164, %s17, 1
        %s166 = smul.addr %s165, 32
        %s167 = smul.addr %s166, 8
        %s168 = scalar_lea.vmem %s0, %s167
        %vm170 = vcmask 261120
        %171 = vst.msk [vmem:[#allocation2] sm:$0xff] %vm170, 0.0
        %172 = vst.msk [vmem:[#allocation2 + $0x8] sm:$0xff] %vm170, 0.0
        %173 = vst.msk [vmem:[#allocation2 + $0x10] sm:$0xff] %vm170, 0.0
        %174 = vst.msk [vmem:[#allocation2 + $0x118] sm:$0xff] %vm170, 0.0
        %175 = vst.msk [vmem:[#allocation2 + $0x120] sm:$0xff] %vm170, 0.0
        %176 = vst.msk [vmem:[#allocation2 + $0x128] sm:$0xff] %vm170, 0.0
        %vm177 = vcmask 519424
        %178 = vst.msk [vmem:[#allocation3 + $0x8] sm:$0xf] %vm177, 0
        %179 = vst.msk [vmem:[#allocation3 + $0x14] sm:$0xf] %vm177, 0
        %180 = vst.msk [vmem:[#allocation3 + $0x20] sm:$0xf] %vm177, 0
        %181 = vst.msk [vmem:[#allocation3 + $0x2c] sm:$0xf] %vm177, 0
        %182 = vst.msk [vmem:[#allocation3 + $0x38] sm:$0xf] %vm177, 0
        %183 = vst.msk [vmem:[#allocation3 + $0x44] sm:$0xf] %vm177, 0
        %184 = vst.msk [vmem:[#allocation3 + $0x50] sm:$0xf] %vm177, 0
        %185 = vst.msk [vmem:[#allocation3 + $0x5c] sm:$0xf] %vm177, 0
        %186 = vst.msk [vmem:[#allocation3 + $0x68] sm:$0xf] %vm177, 0
        %187 = vst.msk [vmem:[#allocation3 + $0x74] sm:$0xf] %vm177, 0
        %188 = vst.msk [vmem:[#allocation3 + $0x80] sm:$0xf] %vm177, 0
        %189 = vst.msk [vmem:[#allocation3 + $0x8c] sm:$0xf] %vm177, 0
        %190 = vst.msk [vmem:[#allocation3 + $0x98] sm:$0xf] %vm177, 0
        %191 = vst.msk [vmem:[#allocation3 + $0xa4] sm:$0xf] %vm177, 0
        %192 = vst.msk [vmem:[#allocation3 + $0xb0] sm:$0xf] %vm177, 0
        %193 = vst.msk [vmem:[#allocation3 + $0xbc] sm:$0xf] %vm177, 0
        %194 = vst.msk [vmem:[#allocation3 + $0xc8] sm:$0xf] %vm177, 0
        %195 = vst.msk [vmem:[#allocation3 + $0xd4] sm:$0xf] %vm177, 0
        %196 = vst.msk [vmem:[#allocation3 + $0xe0] sm:$0xf] %vm177, 0
        %197 = vst.msk [vmem:[#allocation3 + $0xec] sm:$0xf] %vm177, 0
        %198 = vst.msk [vmem:[#allocation3 + $0xf8] sm:$0xf] %vm177, 0
        %199 = vst.msk [vmem:[#allocation3 + $0x104] sm:$0xf] %vm177, 0
        %200 = vst.msk [vmem:[#allocation3 + $0x110] sm:$0xf] %vm177, 0
        %201 = vst.msk [vmem:[#allocation3 + $0x11c] sm:$0xf] %vm177, 0
        %202 = vst.msk [vmem:[#allocation3 + $0x128] sm:$0xf] %vm177, 0
        %203 = vst.msk [vmem:[#allocation3 + $0x134] sm:$0xf] %vm177, 0
        %204 = vst.msk [vmem:[#allocation3 + $0x140] sm:$0xf] %vm177, 0
        %205 = vst.msk [vmem:[#allocation3 + $0x14c] sm:$0xf] %vm177, 0
        %206 = vst.msk [vmem:[#allocation3 + $0x158] sm:$0xf] %vm177, 0
        %207 = vst.msk [vmem:[#allocation3 + $0x164] sm:$0xf] %vm177, 0
        %208 = vst.msk [vmem:[#allocation3 + $0x170] sm:$0xf] %vm177, 0
        %209 = vst.msk [vmem:[#allocation3 + $0x17c] sm:$0xf] %vm177, 0
        %vm210 = vcmask 781824
        %211 = vst.msk [vmem:[#allocation3 + $0x8] sm:$0xf] %vm210, 0
        %212 = vst.msk [vmem:[#allocation3 + $0x14] sm:$0xf] %vm210, 0
        %213 = vst.msk [vmem:[#allocation3 + $0x20] sm:$0xf] %vm210, 0
        %214 = vst.msk [vmem:[#allocation3 + $0x2c] sm:$0xf] %vm210, 0
        %215 = vst.msk [vmem:[#allocation3 + $0x38] sm:$0xf] %vm210, 0
        %216 = vst.msk [vmem:[#allocation3 + $0x44] sm:$0xf] %vm210, 0
        %217 = vst.msk [vmem:[#allocation3 + $0x50] sm:$0xf] %vm210, 0
        %218 = vst.msk [vmem:[#allocation3 + $0x5c] sm:$0xf] %vm210, 0
        %219 = vst.msk [vmem:[#allocation3 + $0x68] sm:$0xf] %vm210, 0
        %220 = vst.msk [vmem:[#allocation3 + $0x74] sm:$0xf] %vm210, 0
        %221 = vst.msk [vmem:[#allocation3 + $0x80] sm:$0xf] %vm210, 0
        %222 = vst.msk [vmem:[#allocation3 + $0x8c] sm:$0xf] %vm210, 0
        %223 = vst.msk [vmem:[#allocation3 + $0x98] sm:$0xf] %vm210, 0
        %224 = vst.msk [vmem:[#allocation3 + $0xa4] sm:$0xf] %vm210, 0
        %225 = vst.msk [vmem:[#allocation3 + $0xb0] sm:$0xf] %vm210, 0
        %226 = vst.msk [vmem:[#allocation3 + $0xbc] sm:$0xf] %vm210, 0
        %227 = vst.msk [vmem:[#allocation3 + $0xc8] sm:$0xf] %vm210, 0
        %228 = vst.msk [vmem:[#allocation3 + $0xd4] sm:$0xf] %vm210, 0
        %229 = vst.msk [vmem:[#allocation3 + $0xe0] sm:$0xf] %vm210, 0
        %230 = vst.msk [vmem:[#allocation3 + $0xec] sm:$0xf] %vm210, 0
        %231 = vst.msk [vmem:[#allocation3 + $0xf8] sm:$0xf] %vm210, 0
        %232 = vst.msk [vmem:[#allocation3 + $0x104] sm:$0xf] %vm210, 0
        %233 = vst.msk [vmem:[#allocation3 + $0x110] sm:$0xf] %vm210, 0
        %234 = vst.msk [vmem:[#allocation3 + $0x11c] sm:$0xf] %vm210, 0
        %235 = vst.msk [vmem:[#allocation3 + $0x128] sm:$0xf] %vm210, 0
        %236 = vst.msk [vmem:[#allocation3 + $0x134] sm:$0xf] %vm210, 0
        %237 = vst.msk [vmem:[#allocation3 + $0x140] sm:$0xf] %vm210, 0
        %238 = vst.msk [vmem:[#allocation3 + $0x14c] sm:$0xf] %vm210, 0
        %239 = vst.msk [vmem:[#allocation3 + $0x158] sm:$0xf] %vm210, 0
        %240 = vst.msk [vmem:[#allocation3 + $0x164] sm:$0xf] %vm210, 0
        %241 = vst.msk [vmem:[#allocation3 + $0x170] sm:$0xf] %vm210, 0
        %242 = vst.msk [vmem:[#allocation3 + $0x17c] sm:$0xf] %vm210, 0
        %vm243 = vcmask 1044224
        %244 = vst.msk [vmem:[#allocation3 + $0x8] sm:$0xf] %vm243, 0
        %245 = vst.msk [vmem:[#allocation3 + $0x14] sm:$0xf] %vm243, 0
        %246 = vst.msk [vmem:[#allocation3 + $0x20] sm:$0xf] %vm243, 0
        %247 = vst.msk [vmem:[#allocation3 + $0x2c] sm:$0xf] %vm243, 0
        %248 = vst.msk [vmem:[#allocation3 + $0x38] sm:$0xf] %vm243, 0
        %249 = vst.msk [vmem:[#allocation3 + $0x44] sm:$0xf] %vm243, 0
        %250 = vst.msk [vmem:[#allocation3 + $0x50] sm:$0xf] %vm243, 0
        %251 = vst.msk [vmem:[#allocation3 + $0x5c] sm:$0xf] %vm243, 0
        %252 = vst.msk [vmem:[#allocation3 + $0x68] sm:$0xf] %vm243, 0
        %253 = vst.msk [vmem:[#allocation3 + $0x74] sm:$0xf] %vm243, 0
        %254 = vst.msk [vmem:[#allocation3 + $0x80] sm:$0xf] %vm243, 0
        %255 = vst.msk [vmem:[#allocation3 + $0x8c] sm:$0xf] %vm243, 0
        %256 = vst.msk [vmem:[#allocation3 + $0x98] sm:$0xf] %vm243, 0
        %257 = vst.msk [vmem:[#allocation3 + $0xa4] sm:$0xf] %vm243, 0
        %258 = vst.msk [vmem:[#allocation3 + $0xb0] sm:$0xf] %vm243, 0
        %259 = vst.msk [vmem:[#allocation3 + $0xbc] sm:$0xf] %vm243, 0
        %260 = vst.msk [vmem:[#allocation3 + $0xc8] sm:$0xf] %vm243, 0
        %261 = vst.msk [vmem:[#allocation3 + $0xd4] sm:$0xf] %vm243, 0
        %262 = vst.msk [vmem:[#allocation3 + $0xe0] sm:$0xf] %vm243, 0
        %263 = vst.msk [vmem:[#allocation3 + $0xec] sm:$0xf] %vm243, 0
        %264 = vst.msk [vmem:[#allocation3 + $0xf8] sm:$0xf] %vm243, 0
        %265 = vst.msk [vmem:[#allocation3 + $0x104] sm:$0xf] %vm243, 0
        %266 = vst.msk [vmem:[#allocation3 + $0x110] sm:$0xf] %vm243, 0
        %267 = vst.msk [vmem:[#allocation3 + $0x11c] sm:$0xf] %vm243, 0
        %268 = vst.msk [vmem:[#allocation3 + $0x128] sm:$0xf] %vm243, 0
        %269 = vst.msk [vmem:[#allocation3 + $0x134] sm:$0xf] %vm243, 0
        %270 = vst.msk [vmem:[#allocation3 + $0x140] sm:$0xf] %vm243, 0
        %271 = vst.msk [vmem:[#allocation3 + $0x14c] sm:$0xf] %vm243, 0
        %272 = vst.msk [vmem:[#allocation3 + $0x158] sm:$0xf] %vm243, 0
        %273 = vst.msk [vmem:[#allocation3 + $0x164] sm:$0xf] %vm243, 0
        %274 = vst.msk [vmem:[#allocation3 + $0x170] sm:$0xf] %vm243, 0
        %275 = vst.msk [vmem:[#allocation3 + $0x17c] sm:$0xf] %vm243, 0
        %v276 = vlaneseq
        %v277 = vshrl.u32 %v276, 7
        %v278 = vadd.s32 %v277, 8
        %v279 = vadd.s32 %v277, 16
        %v280 = vadd.s32 %v277, 24
        %v281 = vadd.s32 %v277, 32
        %v282 = vadd.s32 %v277, 40
        %v283 = vadd.s32 %v277, 48
        %v284 = vadd.s32 %v277, 56
        %v285 = vadd.s32 %v277, 64
        %v286 = vadd.s32 %v277, 72
        %v287 = vadd.s32 %v277, 80
        %v288 = vadd.s32 %v277, 88
        %v289 = vadd.s32 %v277, 96
        %v290 = vadd.s32 %v277, 104
        %v291 = vadd.s32 %v277, 112
        %v292 = vadd.s32 %v277, 120
        %v293 = vadd.s32 %v277, 128
        %v294 = vadd.s32 %v277, 136
        %v295 = vadd.s32 %v277, 144
        %v296 = vadd.s32 %v277, 152
        %v297 = vadd.s32 %v277, 160
        %v298 = vadd.s32 %v277, 168
        %v299 = vadd.s32 %v277, 176
        %v300 = vadd.s32 %v277, 184
        %v301 = vadd.s32 %v277, 192
        %v302 = vadd.s32 %v277, 200
        %v303 = vadd.s32 %v277, 208
        %v304 = vadd.s32 %v277, 216
        %v305 = vadd.s32 %v277, 224
        %v306 = vadd.s32 %v277, 232
        %v307 = vadd.s32 %v277, 240
        %v308 = vadd.s32 %v277, 248
        %v309 = vand.u32 %v277, 15
        %v310 = vand.u32 %v278, 15
        %v311 = vand.u32 %v279, 15
        %v312 = vand.u32 %v280, 15
        %v313 = vand.u32 %v281, 15
        %v314 = vand.u32 %v282, 15
        %v315 = vand.u32 %v283, 15
        %v316 = vand.u32 %v284, 15
        %v317 = vand.u32 %v285, 15
        %v318 = vand.u32 %v286, 15
        %v319 = vand.u32 %v287, 15
        %v320 = vand.u32 %v288, 15
        %v321 = vand.u32 %v289, 15
        %v322 = vand.u32 %v290, 15
        %v323 = vand.u32 %v291, 15
        %v324 = vand.u32 %v292, 15
        %v325 = vand.u32 %v293, 15
        %v326 = vand.u32 %v294, 15
        %v327 = vand.u32 %v295, 15
        %v328 = vand.u32 %v296, 15
        %v329 = vand.u32 %v297, 15
        %v330 = vand.u32 %v298, 15
        %v331 = vand.u32 %v299, 15
        %v332 = vand.u32 %v300, 15
        %v333 = vand.u32 %v301, 15
        %v334 = vand.u32 %v302, 15
        %v335 = vand.u32 %v303, 15
        %v336 = vand.u32 %v304, 15
        %v337 = vand.u32 %v305, 15
        %v338 = vand.u32 %v306, 15
        %v339 = vand.u32 %v307, 15
        %v340 = vand.u32 %v308, 15
        %vm341 = vcmp.gt.s32.totalorder %v309, 0
        %vm342 = vcmp.gt.s32.totalorder %v310, 0
        %vm343 = vcmp.gt.s32.totalorder %v311, 0
        %vm344 = vcmp.gt.s32.totalorder %v312, 0
        %vm345 = vcmp.gt.s32.totalorder %v313, 0
        %vm346 = vcmp.gt.s32.totalorder %v314, 0
        %vm347 = vcmp.gt.s32.totalorder %v315, 0
        %vm348 = vcmp.gt.s32.totalorder %v316, 0
        %vm349 = vcmp.gt.s32.totalorder %v317, 0
        %vm350 = vcmp.gt.s32.totalorder %v318, 0
        %vm351 = vcmp.gt.s32.totalorder %v319, 0
        %vm352 = vcmp.gt.s32.totalorder %v320, 0
        %vm353 = vcmp.gt.s32.totalorder %v321, 0
        %vm354 = vcmp.gt.s32.totalorder %v322, 0
        %vm355 = vcmp.gt.s32.totalorder %v323, 0
        %vm356 = vcmp.gt.s32.totalorder %v324, 0
        %vm357 = vcmp.gt.s32.totalorder %v325, 0
        %vm358 = vcmp.gt.s32.totalorder %v326, 0
        %vm359 = vcmp.gt.s32.totalorder %v327, 0
        %vm360 = vcmp.gt.s32.totalorder %v328, 0
        %vm361 = vcmp.gt.s32.totalorder %v329, 0
        %vm362 = vcmp.gt.s32.totalorder %v330, 0
        %vm363 = vcmp.gt.s32.totalorder %v331, 0
        %vm364 = vcmp.gt.s32.totalorder %v332, 0
        %vm365 = vcmp.gt.s32.totalorder %v333, 0
        %vm366 = vcmp.gt.s32.totalorder %v334, 0
        %vm367 = vcmp.gt.s32.totalorder %v335, 0
        %vm368 = vcmp.gt.s32.totalorder %v336, 0
        %vm369 = vcmp.gt.s32.totalorder %v337, 0
        %vm370 = vcmp.gt.s32.totalorder %v338, 0
        %vm371 = vcmp.gt.s32.totalorder %v339, 0
        %vm372 = vcmp.gt.s32.totalorder %v340, 0
        %vm373 = vcmp.lt.s32.totalorder %v309, 15
        %vm374 = vcmp.lt.s32.totalorder %v310, 15
        %vm375 = vcmp.lt.s32.totalorder %v311, 15
        %vm376 = vcmp.lt.s32.totalorder %v312, 15
        %vm377 = vcmp.lt.s32.totalorder %v313, 15
        %vm378 = vcmp.lt.s32.totalorder %v314, 15
        %vm379 = vcmp.lt.s32.totalorder %v315, 15
        %vm380 = vcmp.lt.s32.totalorder %v316, 15
        %vm381 = vcmp.lt.s32.totalorder %v317, 15
        %vm382 = vcmp.lt.s32.totalorder %v318, 15
        %vm383 = vcmp.lt.s32.totalorder %v319, 15
        %vm384 = vcmp.lt.s32.totalorder %v320, 15
        %vm385 = vcmp.lt.s32.totalorder %v321, 15
        %vm386 = vcmp.lt.s32.totalorder %v322, 15
        %vm387 = vcmp.lt.s32.totalorder %v323, 15
        %vm388 = vcmp.lt.s32.totalorder %v324, 15
        %vm389 = vcmp.lt.s32.totalorder %v325, 15
        %vm390 = vcmp.lt.s32.totalorder %v326, 15
        %vm391 = vcmp.lt.s32.totalorder %v327, 15
        %vm392 = vcmp.lt.s32.totalorder %v328, 15
        %vm393 = vcmp.lt.s32.totalorder %v329, 15
        %vm394 = vcmp.lt.s32.totalorder %v330, 15
        %vm395 = vcmp.lt.s32.totalorder %v331, 15
        %vm396 = vcmp.lt.s32.totalorder %v332, 15
        %vm397 = vcmp.lt.s32.totalorder %v333, 15
        %vm398 = vcmp.lt.s32.totalorder %v334, 15
        %vm399 = vcmp.lt.s32.totalorder %v335, 15
        %vm400 = vcmp.lt.s32.totalorder %v336, 15
        %vm401 = vcmp.lt.s32.totalorder %v337, 15
        %vm402 = vcmp.lt.s32.totalorder %v338, 15
        %vm403 = vcmp.lt.s32.totalorder %v339, 15
        %vm404 = vcmp.lt.s32.totalorder %v340, 15
        %v405 = vld [vmem:[%s168] sm:$0xff]
        %v406 = vld [vmem:[%s168 + $0x8] sm:$0xff]
        %v407 = vld [vmem:[%s168 + $0x10] sm:$0xff]
        %v408 = vld [vmem:[%s168 + $0x18] sm:$0xff]
        %v409 = vld [vmem:[%s168 + $0x20] sm:$0xff]
        %v410 = vld [vmem:[%s168 + $0x28] sm:$0xff]
        %v411 = vld [vmem:[%s168 + $0x30] sm:$0xff]
        %v412 = vld [vmem:[%s168 + $0x38] sm:$0xff]
        %v413 = vld [vmem:[%s168 + $0x40] sm:$0xff]
        %v414 = vld [vmem:[%s168 + $0x48] sm:$0xff]
        %v415 = vld [vmem:[%s168 + $0x50] sm:$0xff]
        %v416 = vld [vmem:[%s168 + $0x58] sm:$0xff]
        %v417 = vld [vmem:[%s168 + $0x60] sm:$0xff]
        %v418 = vld [vmem:[%s168 + $0x68] sm:$0xff]
        %v419 = vld [vmem:[%s168 + $0x70] sm:$0xff]
        %v420 = vld [vmem:[%s168 + $0x78] sm:$0xff]
        %v421 = vld [vmem:[%s168 + $0x80] sm:$0xff]
        %v422 = vld [vmem:[%s168 + $0x88] sm:$0xff]
        %v423 = vld [vmem:[%s168 + $0x90] sm:$0xff]
        %v424 = vld [vmem:[%s168 + $0x98] sm:$0xff]
        %v425 = vld [vmem:[%s168 + $0xa0] sm:$0xff]
        %v426 = vld [vmem:[%s168 + $0xa8] sm:$0xff]
        %v427 = vld [vmem:[%s168 + $0xb0] sm:$0xff]
        %v428 = vld [vmem:[%s168 + $0xb8] sm:$0xff]
        %v429 = vld [vmem:[%s168 + $0xc0] sm:$0xff]
        %v430 = vld [vmem:[%s168 + $0xc8] sm:$0xff]
        %v431 = vld [vmem:[%s168 + $0xd0] sm:$0xff]
        %v432 = vld [vmem:[%s168 + $0xd8] sm:$0xff]
        %v433 = vld [vmem:[%s168 + $0xe0] sm:$0xff]
        %v434 = vld [vmem:[%s168 + $0xe8] sm:$0xff]
        %v435 = vld [vmem:[%s168 + $0xf0] sm:$0xff]
        %v436 = vld [vmem:[%s168 + $0xf8] sm:$0xff]
        %437 = vst.msk [vmem:[%s163] sm:$0xff] %vm170, %v405
        %438 = vst.msk [vmem:[%s163 + $0x8] sm:$0xff] %vm170, %v406
        %439 = vst.msk [vmem:[%s163 + $0x10] sm:$0xff] %vm170, %v407
        %440 = vst.msk [vmem:[%s163 + $0x18] sm:$0xff] %vm170, %v408
        %441 = vst.msk [vmem:[%s163 + $0x20] sm:$0xff] %vm170, %v409
        %442 = vst.msk [vmem:[%s163 + $0x28] sm:$0xff] %vm170, %v410
        %443 = vst.msk [vmem:[%s163 + $0x30] sm:$0xff] %vm170, %v411
        %444 = vst.msk [vmem:[%s163 + $0x38] sm:$0xff] %vm170, %v412
        %445 = vst.msk [vmem:[%s163 + $0x40] sm:$0xff] %vm170, %v413
        %446 = vst.msk [vmem:[%s163 + $0x48] sm:$0xff] %vm170, %v414
        %447 = vst.msk [vmem:[%s163 + $0x50] sm:$0xff] %vm170, %v415
        %448 = vst.msk [vmem:[%s163 + $0x58] sm:$0xff] %vm170, %v416
        %449 = vst.msk [vmem:[%s163 + $0x60] sm:$0xff] %vm170, %v417
        %450 = vst.msk [vmem:[%s163 + $0x68] sm:$0xff] %vm170, %v418
        %451 = vst.msk [vmem:[%s163 + $0x70] sm:$0xff] %vm170, %v419
        %452 = vst.msk [vmem:[%s163 + $0x78] sm:$0xff] %vm170, %v420
        %453 = vst.msk [vmem:[%s163 + $0x80] sm:$0xff] %vm170, %v421
        %454 = vst.msk [vmem:[%s163 + $0x88] sm:$0xff] %vm170, %v422
        %455 = vst.msk [vmem:[%s163 + $0x90] sm:$0xff] %vm170, %v423
        %456 = vst.msk [vmem:[%s163 + $0x98] sm:$0xff] %vm170, %v424
        %457 = vst.msk [vmem:[%s163 + $0xa0] sm:$0xff] %vm170, %v425
        %458 = vst.msk [vmem:[%s163 + $0xa8] sm:$0xff] %vm170, %v426
        %459 = vst.msk [vmem:[%s163 + $0xb0] sm:$0xff] %vm170, %v427
        %460 = vst.msk [vmem:[%s163 + $0xb8] sm:$0xff] %vm170, %v428
        %461 = vst.msk [vmem:[%s163 + $0xc0] sm:$0xff] %vm170, %v429
        %462 = vst.msk [vmem:[%s163 + $0xc8] sm:$0xff] %vm170, %v430
        %463 = vst.msk [vmem:[%s163 + $0xd0] sm:$0xff] %vm170, %v431
        %464 = vst.msk [vmem:[%s163 + $0xd8] sm:$0xff] %vm170, %v432
        %465 = vst.msk [vmem:[%s163 + $0xe0] sm:$0xff] %vm170, %v433
        %466 = vst.msk [vmem:[%s163 + $0xe8] sm:$0xff] %vm170, %v434
        %467 = vst.msk [vmem:[%s163 + $0xf0] sm:$0xff] %vm170, %v435
        %468 = vst.msk [vmem:[%s163 + $0xf8] sm:$0xff] %vm170, %v436
        %v469 = vld [vmem:[%s163] sm:$0xff]
        %v470 = vld [vmem:[%s163 + $0x8] sm:$0xff]
        %v471 = vld [vmem:[%s163 + $0x10] sm:$0xff]
        %v472 = vld [vmem:[%s163 + $0x18] sm:$0xff]
        %v473 = vld [vmem:[%s163 + $0x20] sm:$0xff]
        %v474 = vld [vmem:[%s163 + $0x28] sm:$0xff]
        %v475 = vld [vmem:[%s163 + $0x30] sm:$0xff]
        %v476 = vld [vmem:[%s163 + $0x38] sm:$0xff]
        %v477 = vld [vmem:[%s163 + $0x40] sm:$0xff]
        %v478 = vld [vmem:[%s163 + $0x48] sm:$0xff]
        %v479 = vld [vmem:[%s163 + $0x50] sm:$0xff]
        %v480 = vld [vmem:[%s163 + $0x58] sm:$0xff]
        %v481 = vld [vmem:[%s163 + $0x60] sm:$0xff]
        %v482 = vld [vmem:[%s163 + $0x68] sm:$0xff]
        %v483 = vld [vmem:[%s163 + $0x70] sm:$0xff]
        %v484 = vld [vmem:[%s163 + $0x78] sm:$0xff]
        %v485 = vld [vmem:[%s163 + $0x80] sm:$0xff]
        %v486 = vld [vmem:[%s163 + $0x88] sm:$0xff]
        %v487 = vld [vmem:[%s163 + $0x90] sm:$0xff]
        %v488 = vld [vmem:[%s163 + $0x98] sm:$0xff]
        %v489 = vld [vmem:[%s163 + $0xa0] sm:$0xff]
        %v490 = vld [vmem:[%s163 + $0xa8] sm:$0xff]
        %v491 = vld [vmem:[%s163 + $0xb0] sm:$0xff]
        %v492 = vld [vmem:[%s163 + $0xb8] sm:$0xff]
        %v493 = vld [vmem:[%s163 + $0xc0] sm:$0xff]
        %v494 = vld [vmem:[%s163 + $0xc8] sm:$0xff]
        %v495 = vld [vmem:[%s163 + $0xd0] sm:$0xff]
        %v496 = vld [vmem:[%s163 + $0xd8] sm:$0xff]
        %v497 = vld [vmem:[%s163 + $0xe0] sm:$0xff]
        %v498 = vld [vmem:[%s163 + $0xe8] sm:$0xff]
        %v499 = vld [vmem:[%s163 + $0xf0] sm:$0xff]
        %v500 = vld [vmem:[%s163 + $0xf8] sm:$0xff]
        %v501 = vmax.f32 %v469, 0.0
        %v502 = vmax.f32 %v470, 0.0
        %v503 = vmax.f32 %v471, 0.0
        %v504 = vmax.f32 %v472, 0.0
        %v505 = vmax.f32 %v473, 0.0
        %v506 = vmax.f32 %v474, 0.0
        %v507 = vmax.f32 %v475, 0.0
        %v508 = vmax.f32 %v476, 0.0
        %v509 = vmax.f32 %v477, 0.0
        %v510 = vmax.f32 %v478, 0.0
        %v511 = vmax.f32 %v479, 0.0
        %v512 = vmax.f32 %v480, 0.0
        %v513 = vmax.f32 %v481, 0.0
        %v514 = vmax.f32 %v482, 0.0
        %v515 = vmax.f32 %v483, 0.0
        %v516 = vmax.f32 %v484, 0.0
        %v517 = vmax.f32 %v485, 0.0
        %v518 = vmax.f32 %v486, 0.0
        %v519 = vmax.f32 %v487, 0.0
        %v520 = vmax.f32 %v488, 0.0
        %v521 = vmax.f32 %v489, 0.0
        %v522 = vmax.f32 %v490, 0.0
        %v523 = vmax.f32 %v491, 0.0
        %v524 = vmax.f32 %v492, 0.0
        %v525 = vmax.f32 %v493, 0.0
        %v526 = vmax.f32 %v494, 0.0
        %v527 = vmax.f32 %v495, 0.0
        %v528 = vmax.f32 %v496, 0.0
        %v529 = vmax.f32 %v497, 0.0
        %v530 = vmax.f32 %v498, 0.0
        %v531 = vmax.f32 %v499, 0.0
        %v532 = vmax.f32 %v500, 0.0
        %533 = vst.msk [vmem:[#allocation2 + $0x18] sm:$0xff] %vm170, %v501
        %534 = vst.msk [vmem:[#allocation2 + $0x20] sm:$0xff] %vm170, %v502
        %535 = vst.msk [vmem:[#allocation2 + $0x28] sm:$0xff] %vm170, %v503
        %536 = vst.msk [vmem:[#allocation2 + $0x30] sm:$0xff] %vm170, %v504
        %537 = vst.msk [vmem:[#allocation2 + $0x38] sm:$0xff] %vm170, %v505
        %538 = vst.msk [vmem:[#allocation2 + $0x40] sm:$0xff] %vm170, %v506
        %539 = vst.msk [vmem:[#allocation2 + $0x48] sm:$0xff] %vm170, %v507
        %540 = vst.msk [vmem:[#allocation2 + $0x50] sm:$0xff] %vm170, %v508
        %541 = vst.msk [vmem:[#allocation2 + $0x58] sm:$0xff] %vm170, %v509
        %542 = vst.msk [vmem:[#allocation2 + $0x60] sm:$0xff] %vm170, %v510
        %543 = vst.msk [vmem:[#allocation2 + $0x68] sm:$0xff] %vm170, %v511
        %544 = vst.msk [vmem:[#allocation2 + $0x70] sm:$0xff] %vm170, %v512
        %545 = vst.msk [vmem:[#allocation2 + $0x78] sm:$0xff] %vm170, %v513
        %546 = vst.msk [vmem:[#allocation2 + $0x80] sm:$0xff] %vm170, %v514
        %547 = vst.msk [vmem:[#allocation2 + $0x88] sm:$0xff] %vm170, %v515
        %548 = vst.msk [vmem:[#allocation2 + $0x90] sm:$0xff] %vm170, %v516
        %549 = vst.msk [vmem:[#allocation2 + $0x98] sm:$0xff] %vm170, %v517
        %550 = vst.msk [vmem:[#allocation2 + $0xa0] sm:$0xff] %vm170, %v518
        %551 = vst.msk [vmem:[#allocation2 + $0xa8] sm:$0xff] %vm170, %v519
        %552 = vst.msk [vmem:[#allocation2 + $0xb0] sm:$0xff] %vm170, %v520
        %553 = vst.msk [vmem:[#allocation2 + $0xb8] sm:$0xff] %vm170, %v521
        %554 = vst.msk [vmem:[#allocation2 + $0xc0] sm:$0xff] %vm170, %v522
        %555 = vst.msk [vmem:[#allocation2 + $0xc8] sm:$0xff] %vm170, %v523
        %556 = vst.msk [vmem:[#allocation2 + $0xd0] sm:$0xff] %vm170, %v524
        %557 = vst.msk [vmem:[#allocation2 + $0xd8] sm:$0xff] %vm170, %v525
        %558 = vst.msk [vmem:[#allocation2 + $0xe0] sm:$0xff] %vm170, %v526
        %559 = vst.msk [vmem:[#allocation2 + $0xe8] sm:$0xff] %vm170, %v527
        %560 = vst.msk [vmem:[#allocation2 + $0xf0] sm:$0xff] %vm170, %v528
        %561 = vst.msk [vmem:[#allocation2 + $0xf8] sm:$0xff] %vm170, %v529
        %562 = vst.msk [vmem:[#allocation2 + $0x100] sm:$0xff] %vm170, %v530
        %563 = vst.msk [vmem:[#allocation2 + $0x108] sm:$0xff] %vm170, %v531
        %564 = vst.msk [vmem:[#allocation2 + $0x110] sm:$0xff] %vm170, %v532
        %v565 = vld [vmem:[#allocation2 + $0x7] sm:$0xff]
        %v566 = vld [vmem:[#allocation2 + $0xf] sm:$0xff]
        %v567 = vld [vmem:[#allocation2 + $0x17] sm:$0xff]
        %v568 = vld [vmem:[#allocation2 + $0x1f] sm:$0xff]
        %v569 = vld [vmem:[#allocation2 + $0x27] sm:$0xff]
        %v570 = vld [vmem:[#allocation2 + $0x2f] sm:$0xff]
        %v571 = vld [vmem:[#allocation2 + $0x37] sm:$0xff]
        %v572 = vld [vmem:[#allocation2 + $0x3f] sm:$0xff]
        %v573 = vld [vmem:[#allocation2 + $0x47] sm:$0xff]
        %v574 = vld [vmem:[#allocation2 + $0x4f] sm:$0xff]
        %v575 = vld [vmem:[#allocation2 + $0x57] sm:$0xff]
        %v576 = vld [vmem:[#allocation2 + $0x5f] sm:$0xff]
        %v577 = vld [vmem:[#allocation2 + $0x67] sm:$0xff]
        %v578 = vld [vmem:[#allocation2 + $0x6f] sm:$0xff]
        %v579 = vld [vmem:[#allocation2 + $0x77] sm:$0xff]
        %v580 = vld [vmem:[#allocation2 + $0x7f] sm:$0xff]
        %v581 = vld [vmem:[#allocation2 + $0x87] sm:$0xff]
        %v582 = vld [vmem:[#allocation2 + $0x8f] sm:$0xff]
        %v583 = vld [vmem:[#allocation2 + $0x97] sm:$0xff]
        %v584 = vld [vmem:[#allocation2 + $0x9f] sm:$0xff]
        %v585 = vld [vmem:[#allocation2 + $0xa7] sm:$0xff]
        %v586 = vld [vmem:[#allocation2 + $0xaf] sm:$0xff]
        %v587 = vld [vmem:[#allocation2 + $0xb7] sm:$0xff]
        %v588 = vld [vmem:[#allocation2 + $0xbf] sm:$0xff]
        %v589 = vld [vmem:[#allocation2 + $0xc7] sm:$0xff]
        %v590 = vld [vmem:[#allocation2 + $0xcf] sm:$0xff]
        %v591 = vld [vmem:[#allocation2 + $0xd7] sm:$0xff]
        %v592 = vld [vmem:[#allocation2 + $0xdf] sm:$0xff]
        %v593 = vld [vmem:[#allocation2 + $0xe7] sm:$0xff]
        %v594 = vld [vmem:[#allocation2 + $0xef] sm:$0xff]
        %v595 = vld [vmem:[#allocation2 + $0xf7] sm:$0xff]
        %v596 = vld [vmem:[#allocation2 + $0xff] sm:$0xff]
        %v597 = vsel %vm341, %v565, 0.0
        %v598 = vsel %vm342, %v566, 0.0
        %v599 = vsel %vm343, %v567, 0.0
        %v600 = vsel %vm344, %v568, 0.0
        %v601 = vsel %vm345, %v569, 0.0
        %v602 = vsel %vm346, %v570, 0.0
        %v603 = vsel %vm347, %v571, 0.0
        %v604 = vsel %vm348, %v572, 0.0
        %v605 = vsel %vm349, %v573, 0.0
        %v606 = vsel %vm350, %v574, 0.0
        %v607 = vsel %vm351, %v575, 0.0
        %v608 = vsel %vm352, %v576, 0.0
        %v609 = vsel %vm353, %v577, 0.0
        %v610 = vsel %vm354, %v578, 0.0
        %v611 = vsel %vm355, %v579, 0.0
        %v612 = vsel %vm356, %v580, 0.0
        %v613 = vsel %vm357, %v581, 0.0
        %v614 = vsel %vm358, %v582, 0.0
        %v615 = vsel %vm359, %v583, 0.0
        %v616 = vsel %vm360, %v584, 0.0
        %v617 = vsel %vm361, %v585, 0.0
        %v618 = vsel %vm362, %v586, 0.0
        %v619 = vsel %vm363, %v587, 0.0
        %v620 = vsel %vm364, %v588, 0.0
        %v621 = vsel %vm365, %v589, 0.0
        %v622 = vsel %vm366, %v590, 0.0
        %v623 = vsel %vm367, %v591, 0.0
        %v624 = vsel %vm368, %v592, 0.0
        %v625 = vsel %vm369, %v593, 0.0
        %v626 = vsel %vm370, %v594, 0.0
        %v627 = vsel %vm371, %v595, 0.0
        %v628 = vsel %vm372, %v596, 0.0
        %v629 = vpack.c.bf16 %v598, %v597
        %v630 = vpack.c.bf16 %v600, %v599
        %v631 = vpack.c.bf16 %v602, %v601
        %v632 = vpack.c.bf16 %v604, %v603
        %v633 = vpack.c.bf16 %v606, %v605
        %v634 = vpack.c.bf16 %v608, %v607
        %v635 = vpack.c.bf16 %v610, %v609
        %v636 = vpack.c.bf16 %v612, %v611
        %v637 = vpack.c.bf16 %v614, %v613
        %v638 = vpack.c.bf16 %v616, %v615
        %v639 = vpack.c.bf16 %v618, %v617
        %v640 = vpack.c.bf16 %v620, %v619
        %v641 = vpack.c.bf16 %v622, %v621
        %v642 = vpack.c.bf16 %v624, %v623
        %v643 = vpack.c.bf16 %v626, %v625
        %v644 = vpack.c.bf16 %v628, %v627
        %v661 = vunpack.c.l.b16 %v629
        %v662 = vunpack.c.h.b16 %v629
        %v663 = vunpack.c.l.b16 %v630
        %v664 = vunpack.c.h.b16 %v630
        %v665 = vunpack.c.l.b16 %v631
        %v666 = vunpack.c.h.b16 %v631
        %v667 = vunpack.c.l.b16 %v632
        %v668 = vunpack.c.h.b16 %v632
        %v669 = vunpack.c.l.b16 %v633
        %v670 = vunpack.c.h.b16 %v633
        %v671 = vunpack.c.l.b16 %v634
        %v672 = vunpack.c.h.b16 %v634
        %v673 = vunpack.c.l.b16 %v635
        %v674 = vunpack.c.h.b16 %v635
        %v675 = vunpack.c.l.b16 %v636
        %v676 = vunpack.c.h.b16 %v636
        %v677 = vunpack.c.l.b16 %v637
        %v678 = vunpack.c.h.b16 %v637
        %v679 = vunpack.c.l.b16 %v638
        %v680 = vunpack.c.h.b16 %v638
        %v681 = vunpack.c.l.b16 %v639
        %v682 = vunpack.c.h.b16 %v639
        %v683 = vunpack.c.l.b16 %v640
        %v684 = vunpack.c.h.b16 %v640
        %v685 = vunpack.c.l.b16 %v641
        %v686 = vunpack.c.h.b16 %v641
        %v687 = vunpack.c.l.b16 %v642
        %v688 = vunpack.c.h.b16 %v642
        %v689 = vunpack.c.l.b16 %v643
        %v690 = vunpack.c.h.b16 %v643
        %v691 = vunpack.c.l.b16 %v644
        %v692 = vunpack.c.h.b16 %v644
        %v693 = vpack.c.b16 %v661, %v661
        %v694 = vpack.c.b16 %v662, %v662
        %v695 = vpack.c.b16 %v663, %v663
        %v696 = vpack.c.b16 %v664, %v664
        %v697 = vpack.c.b16 %v665, %v665
        %v698 = vpack.c.b16 %v666, %v666
        %v699 = vpack.c.b16 %v667, %v667
        %v700 = vpack.c.b16 %v668, %v668
        %v701 = vpack.c.b16 %v669, %v669
        %v702 = vpack.c.b16 %v670, %v670
        %v703 = vpack.c.b16 %v671, %v671
        %v704 = vpack.c.b16 %v672, %v672
        %v705 = vpack.c.b16 %v673, %v673
        %v706 = vpack.c.b16 %v674, %v674
        %v707 = vpack.c.b16 %v675, %v675
        %v708 = vpack.c.b16 %v676, %v676
        %v709 = vpack.c.b16 %v677, %v677
        %v710 = vpack.c.b16 %v678, %v678
        %v711 = vpack.c.b16 %v679, %v679
        %v712 = vpack.c.b16 %v680, %v680
        %v713 = vpack.c.b16 %v681, %v681
        %v714 = vpack.c.b16 %v682, %v682
        %v715 = vpack.c.b16 %v683, %v683
        %v716 = vpack.c.b16 %v684, %v684
        %v717 = vpack.c.b16 %v685, %v685
        %v718 = vpack.c.b16 %v686, %v686
        %v719 = vpack.c.b16 %v687, %v687
        %v720 = vpack.c.b16 %v688, %v688
        %v721 = vpack.c.b16 %v689, %v689
        %v722 = vpack.c.b16 %v690, %v690
        %v723 = vpack.c.b16 %v691, %v691
        %v724 = vpack.c.b16 %v692, %v692
        %vm757 = vcmask 257024
        %758 = vst.msk [vmem:[#allocation3] sm:$0xf] %vm757, %v693
        %759 = vst.msk [vmem:[#allocation3 + $0xc] sm:$0xf] %vm757, %v694
        %760 = vst.msk [vmem:[#allocation3 + $0x18] sm:$0xf] %vm757, %v695
        %761 = vst.msk [vmem:[#allocation3 + $0x24] sm:$0xf] %vm757, %v696
        %762 = vst.msk [vmem:[#allocation3 + $0x30] sm:$0xf] %vm757, %v697
        %763 = vst.msk [vmem:[#allocation3 + $0x3c] sm:$0xf] %vm757, %v698
        %764 = vst.msk [vmem:[#allocation3 + $0x48] sm:$0xf] %vm757, %v699
        %765 = vst.msk [vmem:[#allocation3 + $0x54] sm:$0xf] %vm757, %v700
        %766 = vst.msk [vmem:[#allocation3 + $0x60] sm:$0xf] %vm757, %v701
        %767 = vst.msk [vmem:[#allocation3 + $0x6c] sm:$0xf] %vm757, %v702
        %768 = vst.msk [vmem:[#allocation3 + $0x78] sm:$0xf] %vm757, %v703
        %769 = vst.msk [vmem:[#allocation3 + $0x84] sm:$0xf] %vm757, %v704
        %770 = vst.msk [vmem:[#allocation3 + $0x90] sm:$0xf] %vm757, %v705
        %771 = vst.msk [vmem:[#allocation3 + $0x9c] sm:$0xf] %vm757, %v706
        %772 = vst.msk [vmem:[#allocation3 + $0xa8] sm:$0xf] %vm757, %v707
        %773 = vst.msk [vmem:[#allocation3 + $0xb4] sm:$0xf] %vm757, %v708
        %774 = vst.msk [vmem:[#allocation3 + $0xc0] sm:$0xf] %vm757, %v709
        %775 = vst.msk [vmem:[#allocation3 + $0xcc] sm:$0xf] %vm757, %v710
        %776 = vst.msk [vmem:[#allocation3 + $0xd8] sm:$0xf] %vm757, %v711
        %777 = vst.msk [vmem:[#allocation3 + $0xe4] sm:$0xf] %vm757, %v712
        %778 = vst.msk [vmem:[#allocation3 + $0xf0] sm:$0xf] %vm757, %v713
        %779 = vst.msk [vmem:[#allocation3 + $0xfc] sm:$0xf] %vm757, %v714
        %780 = vst.msk [vmem:[#allocation3 + $0x108] sm:$0xf] %vm757, %v715
        %781 = vst.msk [vmem:[#allocation3 + $0x114] sm:$0xf] %vm757, %v716
        %782 = vst.msk [vmem:[#allocation3 + $0x120] sm:$0xf] %vm757, %v717
        %783 = vst.msk [vmem:[#allocation3 + $0x12c] sm:$0xf] %vm757, %v718
        %784 = vst.msk [vmem:[#allocation3 + $0x138] sm:$0xf] %vm757, %v719
        %785 = vst.msk [vmem:[#allocation3 + $0x144] sm:$0xf] %vm757, %v720
        %786 = vst.msk [vmem:[#allocation3 + $0x150] sm:$0xf] %vm757, %v721
        %787 = vst.msk [vmem:[#allocation3 + $0x15c] sm:$0xf] %vm757, %v722
        %788 = vst.msk [vmem:[#allocation3 + $0x168] sm:$0xf] %vm757, %v723
        %789 = vst.msk [vmem:[#allocation3 + $0x174] sm:$0xf] %vm757, %v724
        %v790 = vld [vmem:[#allocation2 + $0x8] sm:$0xff]
        %v791 = vld [vmem:[#allocation2 + $0x10] sm:$0xff]
        %v792 = vld [vmem:[#allocation2 + $0x18] sm:$0xff]
        %v793 = vld [vmem:[#allocation2 + $0x20] sm:$0xff]
        %v794 = vld [vmem:[#allocation2 + $0x28] sm:$0xff]
        %v795 = vld [vmem:[#allocation2 + $0x30] sm:$0xff]
        %v796 = vld [vmem:[#allocation2 + $0x38] sm:$0xff]
        %v797 = vld [vmem:[#allocation2 + $0x40] sm:$0xff]
        %v798 = vld [vmem:[#allocation2 + $0x48] sm:$0xff]
        %v799 = vld [vmem:[#allocation2 + $0x50] sm:$0xff]
        %v800 = vld [vmem:[#allocation2 + $0x58] sm:$0xff]
        %v801 = vld [vmem:[#allocation2 + $0x60] sm:$0xff]
        %v802 = vld [vmem:[#allocation2 + $0x68] sm:$0xff]
        %v803 = vld [vmem:[#allocation2 + $0x70] sm:$0xff]
        %v804 = vld [vmem:[#allocation2 + $0x78] sm:$0xff]
        %v805 = vld [vmem:[#allocation2 + $0x80] sm:$0xff]
        %v806 = vld [vmem:[#allocation2 + $0x88] sm:$0xff]
        %v807 = vld [vmem:[#allocation2 + $0x90] sm:$0xff]
        %v808 = vld [vmem:[#allocation2 + $0x98] sm:$0xff]
        %v809 = vld [vmem:[#allocation2 + $0xa0] sm:$0xff]
        %v810 = vld [vmem:[#allocation2 + $0xa8] sm:$0xff]
        %v811 = vld [vmem:[#allocation2 + $0xb0] sm:$0xff]
        %v812 = vld [vmem:[#allocation2 + $0xb8] sm:$0xff]
        %v813 = vld [vmem:[#allocation2 + $0xc0] sm:$0xff]
        %v814 = vld [vmem:[#allocation2 + $0xc8] sm:$0xff]
        %v815 = vld [vmem:[#allocation2 + $0xd0] sm:$0xff]
        %v816 = vld [vmem:[#allocation2 + $0xd8] sm:$0xff]
        %v817 = vld [vmem:[#allocation2 + $0xe0] sm:$0xff]
        %v818 = vld [vmem:[#allocation2 + $0xe8] sm:$0xff]
        %v819 = vld [vmem:[#allocation2 + $0xf0] sm:$0xff]
        %v820 = vld [vmem:[#allocation2 + $0xf8] sm:$0xff]
        %v821 = vld [vmem:[#allocation2 + $0x100] sm:$0xff]
        %v822 = vpack.c.bf16 %v791, %v790
        %v823 = vpack.c.bf16 %v793, %v792
        %v824 = vpack.c.bf16 %v795, %v794
        %v825 = vpack.c.bf16 %v797, %v796
        %v826 = vpack.c.bf16 %v799, %v798
        %v827 = vpack.c.bf16 %v801, %v800
        %v828 = vpack.c.bf16 %v803, %v802
        %v829 = vpack.c.bf16 %v805, %v804
        %v830 = vpack.c.bf16 %v807, %v806
        %v831 = vpack.c.bf16 %v809, %v808
        %v832 = vpack.c.bf16 %v811, %v810
        %v833 = vpack.c.bf16 %v813, %v812
        %v834 = vpack.c.bf16 %v815, %v814
        %v835 = vpack.c.bf16 %v817, %v816
        %v836 = vpack.c.bf16 %v819, %v818
        %v837 = vpack.c.bf16 %v821, %v820
        %v854 = vunpack.c.l.b16 %v822
        %v855 = vunpack.c.h.b16 %v822
        %v856 = vunpack.c.l.b16 %v823
        %v857 = vunpack.c.h.b16 %v823
        %v858 = vunpack.c.l.b16 %v824
        %v859 = vunpack.c.h.b16 %v824
        %v860 = vunpack.c.l.b16 %v825
        %v861 = vunpack.c.h.b16 %v825
        %v862 = vunpack.c.l.b16 %v826
        %v863 = vunpack.c.h.b16 %v826
        %v864 = vunpack.c.l.b16 %v827
        %v865 = vunpack.c.h.b16 %v827
        %v866 = vunpack.c.l.b16 %v828
        %v867 = vunpack.c.h.b16 %v828
        %v868 = vunpack.c.l.b16 %v829
        %v869 = vunpack.c.h.b16 %v829
        %v870 = vunpack.c.l.b16 %v830
        %v871 = vunpack.c.h.b16 %v830
        %v872 = vunpack.c.l.b16 %v831
        %v873 = vunpack.c.h.b16 %v831
        %v874 = vunpack.c.l.b16 %v832
        %v875 = vunpack.c.h.b16 %v832
        %v876 = vunpack.c.l.b16 %v833
        %v877 = vunpack.c.h.b16 %v833
        %v878 = vunpack.c.l.b16 %v834
        %v879 = vunpack.c.h.b16 %v834
        %v880 = vunpack.c.l.b16 %v835
        %v881 = vunpack.c.h.b16 %v835
        %v882 = vunpack.c.l.b16 %v836
        %v883 = vunpack.c.h.b16 %v836
        %v884 = vunpack.c.l.b16 %v837
        %v885 = vunpack.c.h.b16 %v837
        %v886 = vpack.c.b16 %v854, %v854
        %v887 = vpack.c.b16 %v855, %v855
        %v888 = vpack.c.b16 %v856, %v856
        %v889 = vpack.c.b16 %v857, %v857
        %v890 = vpack.c.b16 %v858, %v858
        %v891 = vpack.c.b16 %v859, %v859
        %v892 = vpack.c.b16 %v860, %v860
        %v893 = vpack.c.b16 %v861, %v861
        %v894 = vpack.c.b16 %v862, %v862
        %v895 = vpack.c.b16 %v863, %v863
        %v896 = vpack.c.b16 %v864, %v864
        %v897 = vpack.c.b16 %v865, %v865
        %v898 = vpack.c.b16 %v866, %v866
        %v899 = vpack.c.b16 %v867, %v867
        %v900 = vpack.c.b16 %v868, %v868
        %v901 = vpack.c.b16 %v869, %v869
        %v902 = vpack.c.b16 %v870, %v870
        %v903 = vpack.c.b16 %v871, %v871
        %v904 = vpack.c.b16 %v872, %v872
        %v905 = vpack.c.b16 %v873, %v873
        %v906 = vpack.c.b16 %v874, %v874
        %v907 = vpack.c.b16 %v875, %v875
        %v908 = vpack.c.b16 %v876, %v876
        %v909 = vpack.c.b16 %v877, %v877
        %v910 = vpack.c.b16 %v878, %v878
        %v911 = vpack.c.b16 %v879, %v879
        %v912 = vpack.c.b16 %v880, %v880
        %v913 = vpack.c.b16 %v881, %v881
        %v914 = vpack.c.b16 %v882, %v882
        %v915 = vpack.c.b16 %v883, %v883
        %v916 = vpack.c.b16 %v884, %v884
        %v917 = vpack.c.b16 %v885, %v885
        %918 = vrot.lane.b32.xlu0 %v886, 32
        %v919 = vpop.permute.xlu0 %918
        %920 = vrot.lane.b32.xlu0 %v887, 32
        %v921 = vpop.permute.xlu0 %920
        %922 = vrot.lane.b32.xlu0 %v888, 32
        %v923 = vpop.permute.xlu0 %922
        %924 = vrot.lane.b32.xlu0 %v889, 32
        %v925 = vpop.permute.xlu0 %924
        %926 = vrot.lane.b32.xlu0 %v890, 32
        %v927 = vpop.permute.xlu0 %926
        %928 = vrot.lane.b32.xlu0 %v891, 32
        %v929 = vpop.permute.xlu0 %928
        %930 = vrot.lane.b32.xlu0 %v892, 32
        %v931 = vpop.permute.xlu0 %930
        %932 = vrot.lane.b32.xlu0 %v893, 32
        %v933 = vpop.permute.xlu0 %932
        %934 = vrot.lane.b32.xlu0 %v894, 32
        %v935 = vpop.permute.xlu0 %934
        %936 = vrot.lane.b32.xlu0 %v895, 32
        %v937 = vpop.permute.xlu0 %936
        %938 = vrot.lane.b32.xlu0 %v896, 32
        %v939 = vpop.permute.xlu0 %938
        %940 = vrot.lane.b32.xlu0 %v897, 32
        %v941 = vpop.permute.xlu0 %940
        %942 = vrot.lane.b32.xlu0 %v898, 32
        %v943 = vpop.permute.xlu0 %942
        %944 = vrot.lane.b32.xlu0 %v899, 32
        %v945 = vpop.permute.xlu0 %944
        %946 = vrot.lane.b32.xlu0 %v900, 32
        %v947 = vpop.permute.xlu0 %946
        %948 = vrot.lane.b32.xlu0 %v901, 32
        %v949 = vpop.permute.xlu0 %948
        %950 = vrot.lane.b32.xlu0 %v902, 32
        %v951 = vpop.permute.xlu0 %950
        %952 = vrot.lane.b32.xlu0 %v903, 32
        %v953 = vpop.permute.xlu0 %952
        %954 = vrot.lane.b32.xlu0 %v904, 32
        %v955 = vpop.permute.xlu0 %954
        %956 = vrot.lane.b32.xlu0 %v905, 32
        %v957 = vpop.permute.xlu0 %956
        %958 = vrot.lane.b32.xlu0 %v906, 32
        %v959 = vpop.permute.xlu0 %958
        %960 = vrot.lane.b32.xlu0 %v907, 32
        %v961 = vpop.permute.xlu0 %960
        %962 = vrot.lane.b32.xlu0 %v908, 32
        %v963 = vpop.permute.xlu0 %962
        %964 = vrot.lane.b32.xlu0 %v909, 32
        %v965 = vpop.permute.xlu0 %964
        %966 = vrot.lane.b32.xlu0 %v910, 32
        %v967 = vpop.permute.xlu0 %966
        %968 = vrot.lane.b32.xlu0 %v911, 32
        %v969 = vpop.permute.xlu0 %968
        %970 = vrot.lane.b32.xlu0 %v912, 32
        %v971 = vpop.permute.xlu0 %970
        %972 = vrot.lane.b32.xlu0 %v913, 32
        %v973 = vpop.permute.xlu0 %972
        %974 = vrot.lane.b32.xlu0 %v914, 32
        %v975 = vpop.permute.xlu0 %974
        %976 = vrot.lane.b32.xlu0 %v915, 32
        %v977 = vpop.permute.xlu0 %976
        %978 = vrot.lane.b32.xlu0 %v916, 32
        %v979 = vpop.permute.xlu0 %978
        %980 = vrot.lane.b32.xlu0 %v917, 32
        %v981 = vpop.permute.xlu0 %980
        %1014 = vst.msk [vmem:[#allocation3] sm:$0xf] %vm177, %v919
        %1015 = vst.msk [vmem:[#allocation3 + $0xc] sm:$0xf] %vm177, %v921
        %1016 = vst.msk [vmem:[#allocation3 + $0x18] sm:$0xf] %vm177, %v923
        %1017 = vst.msk [vmem:[#allocation3 + $0x24] sm:$0xf] %vm177, %v925
        %1018 = vst.msk [vmem:[#allocation3 + $0x30] sm:$0xf] %vm177, %v927
        %1019 = vst.msk [vmem:[#allocation3 + $0x3c] sm:$0xf] %vm177, %v929
        %1020 = vst.msk [vmem:[#allocation3 + $0x48] sm:$0xf] %vm177, %v931
        %1021 = vst.msk [vmem:[#allocation3 + $0x54] sm:$0xf] %vm177, %v933
        %1022 = vst.msk [vmem:[#allocation3 + $0x60] sm:$0xf] %vm177, %v935
        %1023 = vst.msk [vmem:[#allocation3 + $0x6c] sm:$0xf] %vm177, %v937
        %1024 = vst.msk [vmem:[#allocation3 + $0x78] sm:$0xf] %vm177, %v939
        %1025 = vst.msk [vmem:[#allocation3 + $0x84] sm:$0xf] %vm177, %v941
        %1026 = vst.msk [vmem:[#allocation3 + $0x90] sm:$0xf] %vm177, %v943
        %1027 = vst.msk [vmem:[#allocation3 + $0x9c] sm:$0xf] %vm177, %v945
        %1028 = vst.msk [vmem:[#allocation3 + $0xa8] sm:$0xf] %vm177, %v947
        %1029 = vst.msk [vmem:[#allocation3 + $0xb4] sm:$0xf] %vm177, %v949
        %1030 = vst.msk [vmem:[#allocation3 + $0xc0] sm:$0xf] %vm177, %v951
        %1031 = vst.msk [vmem:[#allocation3 + $0xcc] sm:$0xf] %vm177, %v953
        %1032 = vst.msk [vmem:[#allocation3 + $0xd8] sm:$0xf] %vm177, %v955
        %1033 = vst.msk [vmem:[#allocation3 + $0xe4] sm:$0xf] %vm177, %v957
        %1034 = vst.msk [vmem:[#allocation3 + $0xf0] sm:$0xf] %vm177, %v959
        %1035 = vst.msk [vmem:[#allocation3 + $0xfc] sm:$0xf] %vm177, %v961
        %1036 = vst.msk [vmem:[#allocation3 + $0x108] sm:$0xf] %vm177, %v963
        %1037 = vst.msk [vmem:[#allocation3 + $0x114] sm:$0xf] %vm177, %v965
        %1038 = vst.msk [vmem:[#allocation3 + $0x120] sm:$0xf] %vm177, %v967
        %1039 = vst.msk [vmem:[#allocation3 + $0x12c] sm:$0xf] %vm177, %v969
        %1040 = vst.msk [vmem:[#allocation3 + $0x138] sm:$0xf] %vm177, %v971
        %1041 = vst.msk [vmem:[#allocation3 + $0x144] sm:$0xf] %vm177, %v973
        %1042 = vst.msk [vmem:[#allocation3 + $0x150] sm:$0xf] %vm177, %v975
        %1043 = vst.msk [vmem:[#allocation3 + $0x15c] sm:$0xf] %vm177, %v977
        %1044 = vst.msk [vmem:[#allocation3 + $0x168] sm:$0xf] %vm177, %v979
        %1045 = vst.msk [vmem:[#allocation3 + $0x174] sm:$0xf] %vm177, %v981
        %v1046 = vld [vmem:[#allocation2 + $0x9] sm:$0xff]
        %v1047 = vld [vmem:[#allocation2 + $0x11] sm:$0xff]
        %v1048 = vld [vmem:[#allocation2 + $0x19] sm:$0xff]
        %v1049 = vld [vmem:[#allocation2 + $0x21] sm:$0xff]
        %v1050 = vld [vmem:[#allocation2 + $0x29] sm:$0xff]
        %v1051 = vld [vmem:[#allocation2 + $0x31] sm:$0xff]
        %v1052 = vld [vmem:[#allocation2 + $0x39] sm:$0xff]
        %v1053 = vld [vmem:[#allocation2 + $0x41] sm:$0xff]
        %v1054 = vld [vmem:[#allocation2 + $0x49] sm:$0xff]
        %v1055 = vld [vmem:[#allocation2 + $0x51] sm:$0xff]
        %v1056 = vld [vmem:[#allocation2 + $0x59] sm:$0xff]
        %v1057 = vld [vmem:[#allocation2 + $0x61] sm:$0xff]
        %v1058 = vld [vmem:[#allocation2 + $0x69] sm:$0xff]
        %v1059 = vld [vmem:[#allocation2 + $0x71] sm:$0xff]
        %v1060 = vld [vmem:[#allocation2 + $0x79] sm:$0xff]
        %v1061 = vld [vmem:[#allocation2 + $0x81] sm:$0xff]
        %v1062 = vld [vmem:[#allocation2 + $0x89] sm:$0xff]
        %v1063 = vld [vmem:[#allocation2 + $0x91] sm:$0xff]
        %v1064 = vld [vmem:[#allocation2 + $0x99] sm:$0xff]
        %v1065 = vld [vmem:[#allocation2 + $0xa1] sm:$0xff]
        %v1066 = vld [vmem:[#allocation2 + $0xa9] sm:$0xff]
        %v1067 = vld [vmem:[#allocation2 + $0xb1] sm:$0xff]
        %v1068 = vld [vmem:[#allocation2 + $0xb9] sm:$0xff]
        %v1069 = vld [vmem:[#allocation2 + $0xc1] sm:$0xff]
        %v1070 = vld [vmem:[#allocation2 + $0xc9] sm:$0xff]
        %v1071 = vld [vmem:[#allocation2 + $0xd1] sm:$0xff]
        %v1072 = vld [vmem:[#allocation2 + $0xd9] sm:$0xff]
        %v1073 = vld [vmem:[#allocation2 + $0xe1] sm:$0xff]
        %v1074 = vld [vmem:[#allocation2 + $0xe9] sm:$0xff]
        %v1075 = vld [vmem:[#allocation2 + $0xf1] sm:$0xff]
        %v1076 = vld [vmem:[#allocation2 + $0xf9] sm:$0xff]
        %v1077 = vld [vmem:[#allocation2 + $0x101] sm:$0xff]
        %v1078 = vsel %vm373, %v1046, 0.0
        %v1079 = vsel %vm374, %v1047, 0.0
        %v1080 = vsel %vm375, %v1048, 0.0
        %v1081 = vsel %vm376, %v1049, 0.0
        %v1082 = vsel %vm377, %v1050, 0.0
        %v1083 = vsel %vm378, %v1051, 0.0
        %v1084 = vsel %vm379, %v1052, 0.0
        %v1085 = vsel %vm380, %v1053, 0.0
        %v1086 = vsel %vm381, %v1054, 0.0
        %v1087 = vsel %vm382, %v1055, 0.0
        %v1088 = vsel %vm383, %v1056, 0.0
        %v1089 = vsel %vm384, %v1057, 0.0
        %v1090 = vsel %vm385, %v1058, 0.0
        %v1091 = vsel %vm386, %v1059, 0.0
        %v1092 = vsel %vm387, %v1060, 0.0
        %v1093 = vsel %vm388, %v1061, 0.0
        %v1094 = vsel %vm389, %v1062, 0.0
        %v1095 = vsel %vm390, %v1063, 0.0
        %v1096 = vsel %vm391, %v1064, 0.0
        %v1097 = vsel %vm392, %v1065, 0.0
        %v1098 = vsel %vm393, %v1066, 0.0
        %v1099 = vsel %vm394, %v1067, 0.0
        %v1100 = vsel %vm395, %v1068, 0.0
        %v1101 = vsel %vm396, %v1069, 0.0
        %v1102 = vsel %vm397, %v1070, 0.0
        %v1103 = vsel %vm398, %v1071, 0.0
        %v1104 = vsel %vm399, %v1072, 0.0
        %v1105 = vsel %vm400, %v1073, 0.0
        %v1106 = vsel %vm401, %v1074, 0.0
        %v1107 = vsel %vm402, %v1075, 0.0
        %v1108 = vsel %vm403, %v1076, 0.0
        %v1109 = vsel %vm404, %v1077, 0.0
        %v1110 = vpack.c.bf16 %v1079, %v1078
        %v1111 = vpack.c.bf16 %v1081, %v1080
        %v1112 = vpack.c.bf16 %v1083, %v1082
        %v1113 = vpack.c.bf16 %v1085, %v1084
        %v1114 = vpack.c.bf16 %v1087, %v1086
        %v1115 = vpack.c.bf16 %v1089, %v1088
        %v1116 = vpack.c.bf16 %v1091, %v1090
        %v1117 = vpack.c.bf16 %v1093, %v1092
        %v1118 = vpack.c.bf16 %v1095, %v1094
        %v1119 = vpack.c.bf16 %v1097, %v1096
        %v1120 = vpack.c.bf16 %v1099, %v1098
        %v1121 = vpack.c.bf16 %v1101, %v1100
        %v1122 = vpack.c.bf16 %v1103, %v1102
        %v1123 = vpack.c.bf16 %v1105, %v1104
        %v1124 = vpack.c.bf16 %v1107, %v1106
        %v1125 = vpack.c.bf16 %v1109, %v1108
        %v1142 = vunpack.c.l.b16 %v1110
        %v1143 = vunpack.c.h.b16 %v1110
        %v1144 = vunpack.c.l.b16 %v1111
        %v1145 = vunpack.c.h.b16 %v1111
        %v1146 = vunpack.c.l.b16 %v1112
        %v1147 = vunpack.c.h.b16 %v1112
        %v1148 = vunpack.c.l.b16 %v1113
        %v1149 = vunpack.c.h.b16 %v1113
        %v1150 = vunpack.c.l.b16 %v1114
        %v1151 = vunpack.c.h.b16 %v1114
        %v1152 = vunpack.c.l.b16 %v1115
        %v1153 = vunpack.c.h.b16 %v1115
        %v1154 = vunpack.c.l.b16 %v1116
        %v1155 = vunpack.c.h.b16 %v1116
        %v1156 = vunpack.c.l.b16 %v1117
        %v1157 = vunpack.c.h.b16 %v1117
        %v1158 = vunpack.c.l.b16 %v1118
        %v1159 = vunpack.c.h.b16 %v1118
        %v1160 = vunpack.c.l.b16 %v1119
        %v1161 = vunpack.c.h.b16 %v1119
        %v1162 = vunpack.c.l.b16 %v1120
        %v1163 = vunpack.c.h.b16 %v1120
        %v1164 = vunpack.c.l.b16 %v1121
        %v1165 = vunpack.c.h.b16 %v1121
        %v1166 = vunpack.c.l.b16 %v1122
        %v1167 = vunpack.c.h.b16 %v1122
        %v1168 = vunpack.c.l.b16 %v1123
        %v1169 = vunpack.c.h.b16 %v1123
        %v1170 = vunpack.c.l.b16 %v1124
        %v1171 = vunpack.c.h.b16 %v1124
        %v1172 = vunpack.c.l.b16 %v1125
        %v1173 = vunpack.c.h.b16 %v1125
        %v1174 = vpack.c.b16 %v1142, %v1142
        %v1175 = vpack.c.b16 %v1143, %v1143
        %v1176 = vpack.c.b16 %v1144, %v1144
        %v1177 = vpack.c.b16 %v1145, %v1145
        %v1178 = vpack.c.b16 %v1146, %v1146
        %v1179 = vpack.c.b16 %v1147, %v1147
        %v1180 = vpack.c.b16 %v1148, %v1148
        %v1181 = vpack.c.b16 %v1149, %v1149
        %v1182 = vpack.c.b16 %v1150, %v1150
        %v1183 = vpack.c.b16 %v1151, %v1151
        %v1184 = vpack.c.b16 %v1152, %v1152
        %v1185 = vpack.c.b16 %v1153, %v1153
        %v1186 = vpack.c.b16 %v1154, %v1154
        %v1187 = vpack.c.b16 %v1155, %v1155
        %v1188 = vpack.c.b16 %v1156, %v1156
        %v1189 = vpack.c.b16 %v1157, %v1157
        %v1190 = vpack.c.b16 %v1158, %v1158
        %v1191 = vpack.c.b16 %v1159, %v1159
        %v1192 = vpack.c.b16 %v1160, %v1160
        %v1193 = vpack.c.b16 %v1161, %v1161
        %v1194 = vpack.c.b16 %v1162, %v1162
        %v1195 = vpack.c.b16 %v1163, %v1163
        %v1196 = vpack.c.b16 %v1164, %v1164
        %v1197 = vpack.c.b16 %v1165, %v1165
        %v1198 = vpack.c.b16 %v1166, %v1166
        %v1199 = vpack.c.b16 %v1167, %v1167
        %v1200 = vpack.c.b16 %v1168, %v1168
        %v1201 = vpack.c.b16 %v1169, %v1169
        %v1202 = vpack.c.b16 %v1170, %v1170
        %v1203 = vpack.c.b16 %v1171, %v1171
        %v1204 = vpack.c.b16 %v1172, %v1172
        %v1205 = vpack.c.b16 %v1173, %v1173
        %1206 = vrot.lane.b32.xlu0 %v1174, 64
        %v1207 = vpop.permute.xlu0 %1206
        %1208 = vrot.lane.b32.xlu0 %v1175, 64
        %v1209 = vpop.permute.xlu0 %1208
        %1210 = vrot.lane.b32.xlu0 %v1176, 64
        %v1211 = vpop.permute.xlu0 %1210
        %1212 = vrot.lane.b32.xlu0 %v1177, 64
        %v1213 = vpop.permute.xlu0 %1212
        %1214 = vrot.lane.b32.xlu0 %v1178, 64
        %v1215 = vpop.permute.xlu0 %1214
        %1216 = vrot.lane.b32.xlu0 %v1179, 64
        %v1217 = vpop.permute.xlu0 %1216
        %1218 = vrot.lane.b32.xlu0 %v1180, 64
        %v1219 = vpop.permute.xlu0 %1218
        %1220 = vrot.lane.b32.xlu0 %v1181, 64
        %v1221 = vpop.permute.xlu0 %1220
        %1222 = vrot.lane.b32.xlu0 %v1182, 64
        %v1223 = vpop.permute.xlu0 %1222
        %1224 = vrot.lane.b32.xlu0 %v1183, 64
        %v1225 = vpop.permute.xlu0 %1224
        %1226 = vrot.lane.b32.xlu0 %v1184, 64
        %v1227 = vpop.permute.xlu0 %1226
        %1228 = vrot.lane.b32.xlu0 %v1185, 64
        %v1229 = vpop.permute.xlu0 %1228
        %1230 = vrot.lane.b32.xlu0 %v1186, 64
        %v1231 = vpop.permute.xlu0 %1230
        %1232 = vrot.lane.b32.xlu0 %v1187, 64
        %v1233 = vpop.permute.xlu0 %1232
        %1234 = vrot.lane.b32.xlu0 %v1188, 64
        %v1235 = vpop.permute.xlu0 %1234
        %1236 = vrot.lane.b32.xlu0 %v1189, 64
        %v1237 = vpop.permute.xlu0 %1236
        %1238 = vrot.lane.b32.xlu0 %v1190, 64
        %v1239 = vpop.permute.xlu0 %1238
        %1240 = vrot.lane.b32.xlu0 %v1191, 64
        %v1241 = vpop.permute.xlu0 %1240
        %1242 = vrot.lane.b32.xlu0 %v1192, 64
        %v1243 = vpop.permute.xlu0 %1242
        %1244 = vrot.lane.b32.xlu0 %v1193, 64
        %v1245 = vpop.permute.xlu0 %1244
        %1246 = vrot.lane.b32.xlu0 %v1194, 64
        %v1247 = vpop.permute.xlu0 %1246
        %1248 = vrot.lane.b32.xlu0 %v1195, 64
        %v1249 = vpop.permute.xlu0 %1248
        %1250 = vrot.lane.b32.xlu0 %v1196, 64
        %v1251 = vpop.permute.xlu0 %1250
        %1252 = vrot.lane.b32.xlu0 %v1197, 64
        %v1253 = vpop.permute.xlu0 %1252
        %1254 = vrot.lane.b32.xlu0 %v1198, 64
        %v1255 = vpop.permute.xlu0 %1254
        %1256 = vrot.lane.b32.xlu0 %v1199, 64
        %v1257 = vpop.permute.xlu0 %1256
        %1258 = vrot.lane.b32.xlu0 %v1200, 64
        %v1259 = vpop.permute.xlu0 %1258
        %1260 = vrot.lane.b32.xlu0 %v1201, 64
        %v1261 = vpop.permute.xlu0 %1260
        %1262 = vrot.lane.b32.xlu0 %v1202, 64
        %v1263 = vpop.permute.xlu0 %1262
        %1264 = vrot.lane.b32.xlu0 %v1203, 64
        %v1265 = vpop.permute.xlu0 %1264
        %1266 = vrot.lane.b32.xlu0 %v1204, 64
        %v1267 = vpop.permute.xlu0 %1266
        %1268 = vrot.lane.b32.xlu0 %v1205, 64
        %v1269 = vpop.permute.xlu0 %1268
        %1302 = vst.msk [vmem:[#allocation3] sm:$0xf] %vm210, %v1207
        %1303 = vst.msk [vmem:[#allocation3 + $0xc] sm:$0xf] %vm210, %v1209
        %1304 = vst.msk [vmem:[#allocation3 + $0x18] sm:$0xf] %vm210, %v1211
        %1305 = vst.msk [vmem:[#allocation3 + $0x24] sm:$0xf] %vm210, %v1213
        %1306 = vst.msk [vmem:[#allocation3 + $0x30] sm:$0xf] %vm210, %v1215
        %1307 = vst.msk [vmem:[#allocation3 + $0x3c] sm:$0xf] %vm210, %v1217
        %1308 = vst.msk [vmem:[#allocation3 + $0x48] sm:$0xf] %vm210, %v1219
        %1309 = vst.msk [vmem:[#allocation3 + $0x54] sm:$0xf] %vm210, %v1221
        %1310 = vst.msk [vmem:[#allocation3 + $0x60] sm:$0xf] %vm210, %v1223
        %1311 = vst.msk [vmem:[#allocation3 + $0x6c] sm:$0xf] %vm210, %v1225
        %1312 = vst.msk [vmem:[#allocation3 + $0x78] sm:$0xf] %vm210, %v1227
        %1313 = vst.msk [vmem:[#allocation3 + $0x84] sm:$0xf] %vm210, %v1229
        %1314 = vst.msk [vmem:[#allocation3 + $0x90] sm:$0xf] %vm210, %v1231
        %1315 = vst.msk [vmem:[#allocation3 + $0x9c] sm:$0xf] %vm210, %v1233
        %1316 = vst.msk [vmem:[#allocation3 + $0xa8] sm:$0xf] %vm210, %v1235
        %1317 = vst.msk [vmem:[#allocation3 + $0xb4] sm:$0xf] %vm210, %v1237
        %1318 = vst.msk [vmem:[#allocation3 + $0xc0] sm:$0xf] %vm210, %v1239
        %1319 = vst.msk [vmem:[#allocation3 + $0xcc] sm:$0xf] %vm210, %v1241
        %1320 = vst.msk [vmem:[#allocation3 + $0xd8] sm:$0xf] %vm210, %v1243
        %1321 = vst.msk [vmem:[#allocation3 + $0xe4] sm:$0xf] %vm210, %v1245
        %1322 = vst.msk [vmem:[#allocation3 + $0xf0] sm:$0xf] %vm210, %v1247
        %1323 = vst.msk [vmem:[#allocation3 + $0xfc] sm:$0xf] %vm210, %v1249
        %1324 = vst.msk [vmem:[#allocation3 + $0x108] sm:$0xf] %vm210, %v1251
        %1325 = vst.msk [vmem:[#allocation3 + $0x114] sm:$0xf] %vm210, %v1253
        %1326 = vst.msk [vmem:[#allocation3 + $0x120] sm:$0xf] %vm210, %v1255
        %1327 = vst.msk [vmem:[#allocation3 + $0x12c] sm:$0xf] %vm210, %v1257
        %1328 = vst.msk [vmem:[#allocation3 + $0x138] sm:$0xf] %vm210, %v1259
        %1329 = vst.msk [vmem:[#allocation3 + $0x144] sm:$0xf] %vm210, %v1261
        %1330 = vst.msk [vmem:[#allocation3 + $0x150] sm:$0xf] %vm210, %v1263
        %1331 = vst.msk [vmem:[#allocation3 + $0x15c] sm:$0xf] %vm210, %v1265
        %1332 = vst.msk [vmem:[#allocation3 + $0x168] sm:$0xf] %vm210, %v1267
        %1333 = vst.msk [vmem:[#allocation3 + $0x174] sm:$0xf] %vm210, %v1269
        %v1334 = vld [vmem:[#allocation2 + $0x17] sm:$0xff]
        %v1335 = vld [vmem:[#allocation2 + $0x1f] sm:$0xff]
        %v1336 = vld [vmem:[#allocation2 + $0x27] sm:$0xff]
        %v1337 = vld [vmem:[#allocation2 + $0x2f] sm:$0xff]
        %v1338 = vld [vmem:[#allocation2 + $0x37] sm:$0xff]
        %v1339 = vld [vmem:[#allocation2 + $0x3f] sm:$0xff]
        %v1340 = vld [vmem:[#allocation2 + $0x47] sm:$0xff]
        %v1341 = vld [vmem:[#allocation2 + $0x4f] sm:$0xff]
        %v1342 = vld [vmem:[#allocation2 + $0x57] sm:$0xff]
        %v1343 = vld [vmem:[#allocation2 + $0x5f] sm:$0xff]
        %v1344 = vld [vmem:[#allocation2 + $0x67] sm:$0xff]
        %v1345 = vld [vmem:[#allocation2 + $0x6f] sm:$0xff]
        %v1346 = vld [vmem:[#allocation2 + $0x77] sm:$0xff]
        %v1347 = vld [vmem:[#allocation2 + $0x7f] sm:$0xff]
        %v1348 = vld [vmem:[#allocation2 + $0x87] sm:$0xff]
        %v1349 = vld [vmem:[#allocation2 + $0x8f] sm:$0xff]
        %v1350 = vld [vmem:[#allocation2 + $0x97] sm:$0xff]
        %v1351 = vld [vmem:[#allocation2 + $0x9f] sm:$0xff]
        %v1352 = vld [vmem:[#allocation2 + $0xa7] sm:$0xff]
        %v1353 = vld [vmem:[#allocation2 + $0xaf] sm:$0xff]
        %v1354 = vld [vmem:[#allocation2 + $0xb7] sm:$0xff]
        %v1355 = vld [vmem:[#allocation2 + $0xbf] sm:$0xff]
        %v1356 = vld [vmem:[#allocation2 + $0xc7] sm:$0xff]
        %v1357 = vld [vmem:[#allocation2 + $0xcf] sm:$0xff]
        %v1358 = vld [vmem:[#allocation2 + $0xd7] sm:$0xff]
        %v1359 = vld [vmem:[#allocation2 + $0xdf] sm:$0xff]
        %v1360 = vld [vmem:[#allocation2 + $0xe7] sm:$0xff]
        %v1361 = vld [vmem:[#allocation2 + $0xef] sm:$0xff]
        %v1362 = vld [vmem:[#allocation2 + $0xf7] sm:$0xff]
        %v1363 = vld [vmem:[#allocation2 + $0xff] sm:$0xff]
        %v1364 = vld [vmem:[#allocation2 + $0x107] sm:$0xff]
        %v1365 = vld [vmem:[#allocation2 + $0x10f] sm:$0xff]
        %v1366 = vsel %vm341, %v1334, 0.0
        %v1367 = vsel %vm342, %v1335, 0.0
        %v1368 = vsel %vm343, %v1336, 0.0
        %v1369 = vsel %vm344, %v1337, 0.0
        %v1370 = vsel %vm345, %v1338, 0.0
        %v1371 = vsel %vm346, %v1339, 0.0
        %v1372 = vsel %vm347, %v1340, 0.0
        %v1373 = vsel %vm348, %v1341, 0.0
        %v1374 = vsel %vm349, %v1342, 0.0
        %v1375 = vsel %vm350, %v1343, 0.0
        %v1376 = vsel %vm351, %v1344, 0.0
        %v1377 = vsel %vm352, %v1345, 0.0
        %v1378 = vsel %vm353, %v1346, 0.0
        %v1379 = vsel %vm354, %v1347, 0.0
        %v1380 = vsel %vm355, %v1348, 0.0
        %v1381 = vsel %vm356, %v1349, 0.0
        %v1382 = vsel %vm357, %v1350, 0.0
        %v1383 = vsel %vm358, %v1351, 0.0
        %v1384 = vsel %vm359, %v1352, 0.0
        %v1385 = vsel %vm360, %v1353, 0.0
        %v1386 = vsel %vm361, %v1354, 0.0
        %v1387 = vsel %vm362, %v1355, 0.0
        %v1388 = vsel %vm363, %v1356, 0.0
        %v1389 = vsel %vm364, %v1357, 0.0
        %v1390 = vsel %vm365, %v1358, 0.0
        %v1391 = vsel %vm366, %v1359, 0.0
        %v1392 = vsel %vm367, %v1360, 0.0
        %v1393 = vsel %vm368, %v1361, 0.0
        %v1394 = vsel %vm369, %v1362, 0.0
        %v1395 = vsel %vm370, %v1363, 0.0
        %v1396 = vsel %vm371, %v1364, 0.0
        %v1397 = vsel %vm372, %v1365, 0.0
        %v1398 = vpack.c.bf16 %v1367, %v1366
        %v1399 = vpack.c.bf16 %v1369, %v1368
        %v1400 = vpack.c.bf16 %v1371, %v1370
        %v1401 = vpack.c.bf16 %v1373, %v1372
        %v1402 = vpack.c.bf16 %v1375, %v1374
        %v1403 = vpack.c.bf16 %v1377, %v1376
        %v1404 = vpack.c.bf16 %v1379, %v1378
        %v1405 = vpack.c.bf16 %v1381, %v1380
        %v1406 = vpack.c.bf16 %v1383, %v1382
        %v1407 = vpack.c.bf16 %v1385, %v1384
        %v1408 = vpack.c.bf16 %v1387, %v1386
        %v1409 = vpack.c.bf16 %v1389, %v1388
        %v1410 = vpack.c.bf16 %v1391, %v1390
        %v1411 = vpack.c.bf16 %v1393, %v1392
        %v1412 = vpack.c.bf16 %v1395, %v1394
        %v1413 = vpack.c.bf16 %v1397, %v1396
        %v1430 = vunpack.c.l.b16 %v1398
        %v1431 = vunpack.c.h.b16 %v1398
        %v1432 = vunpack.c.l.b16 %v1399
        %v1433 = vunpack.c.h.b16 %v1399
        %v1434 = vunpack.c.l.b16 %v1400
        %v1435 = vunpack.c.h.b16 %v1400
        %v1436 = vunpack.c.l.b16 %v1401
        %v1437 = vunpack.c.h.b16 %v1401
        %v1438 = vunpack.c.l.b16 %v1402
        %v1439 = vunpack.c.h.b16 %v1402
        %v1440 = vunpack.c.l.b16 %v1403
        %v1441 = vunpack.c.h.b16 %v1403
        %v1442 = vunpack.c.l.b16 %v1404
        %v1443 = vunpack.c.h.b16 %v1404
        %v1444 = vunpack.c.l.b16 %v1405
        %v1445 = vunpack.c.h.b16 %v1405
        %v1446 = vunpack.c.l.b16 %v1406
        %v1447 = vunpack.c.h.b16 %v1406
        %v1448 = vunpack.c.l.b16 %v1407
        %v1449 = vunpack.c.h.b16 %v1407
        %v1450 = vunpack.c.l.b16 %v1408
        %v1451 = vunpack.c.h.b16 %v1408
        %v1452 = vunpack.c.l.b16 %v1409
        %v1453 = vunpack.c.h.b16 %v1409
        %v1454 = vunpack.c.l.b16 %v1410
        %v1455 = vunpack.c.h.b16 %v1410
        %v1456 = vunpack.c.l.b16 %v1411
        %v1457 = vunpack.c.h.b16 %v1411
        %v1458 = vunpack.c.l.b16 %v1412
        %v1459 = vunpack.c.h.b16 %v1412
        %v1460 = vunpack.c.l.b16 %v1413
        %v1461 = vunpack.c.h.b16 %v1413
        %v1462 = vpack.c.b16 %v1430, %v1430
        %v1463 = vpack.c.b16 %v1431, %v1431
        %v1464 = vpack.c.b16 %v1432, %v1432
        %v1465 = vpack.c.b16 %v1433, %v1433
        %v1466 = vpack.c.b16 %v1434, %v1434
        %v1467 = vpack.c.b16 %v1435, %v1435
        %v1468 = vpack.c.b16 %v1436, %v1436
        %v1469 = vpack.c.b16 %v1437, %v1437
        %v1470 = vpack.c.b16 %v1438, %v1438
        %v1471 = vpack.c.b16 %v1439, %v1439
        %v1472 = vpack.c.b16 %v1440, %v1440
        %v1473 = vpack.c.b16 %v1441, %v1441
        %v1474 = vpack.c.b16 %v1442, %v1442
        %v1475 = vpack.c.b16 %v1443, %v1443
        %v1476 = vpack.c.b16 %v1444, %v1444
        %v1477 = vpack.c.b16 %v1445, %v1445
        %v1478 = vpack.c.b16 %v1446, %v1446
        %v1479 = vpack.c.b16 %v1447, %v1447
        %v1480 = vpack.c.b16 %v1448, %v1448
        %v1481 = vpack.c.b16 %v1449, %v1449
        %v1482 = vpack.c.b16 %v1450, %v1450
        %v1483 = vpack.c.b16 %v1451, %v1451
        %v1484 = vpack.c.b16 %v1452, %v1452
        %v1485 = vpack.c.b16 %v1453, %v1453
        %v1486 = vpack.c.b16 %v1454, %v1454
        %v1487 = vpack.c.b16 %v1455, %v1455
        %v1488 = vpack.c.b16 %v1456, %v1456
        %v1489 = vpack.c.b16 %v1457, %v1457
        %v1490 = vpack.c.b16 %v1458, %v1458
        %v1491 = vpack.c.b16 %v1459, %v1459
        %v1492 = vpack.c.b16 %v1460, %v1460
        %v1493 = vpack.c.b16 %v1461, %v1461
        %1494 = vrot.lane.b32.xlu0 %v1462, 96
        %v1495 = vpop.permute.xlu0 %1494
        %1496 = vrot.lane.b32.xlu0 %v1463, 96
        %v1497 = vpop.permute.xlu0 %1496
        %1498 = vrot.lane.b32.xlu0 %v1464, 96
        %v1499 = vpop.permute.xlu0 %1498
        %1500 = vrot.lane.b32.xlu0 %v1465, 96
        %v1501 = vpop.permute.xlu0 %1500
        %1502 = vrot.lane.b32.xlu0 %v1466, 96
        %v1503 = vpop.permute.xlu0 %1502
        %1504 = vrot.lane.b32.xlu0 %v1467, 96
        %v1505 = vpop.permute.xlu0 %1504
        %1506 = vrot.lane.b32.xlu0 %v1468, 96
        %v1507 = vpop.permute.xlu0 %1506
        %1508 = vrot.lane.b32.xlu0 %v1469, 96
        %v1509 = vpop.permute.xlu0 %1508
        %1510 = vrot.lane.b32.xlu0 %v1470, 96
        %v1511 = vpop.permute.xlu0 %1510
        %1512 = vrot.lane.b32.xlu0 %v1471, 96
        %v1513 = vpop.permute.xlu0 %1512
        %1514 = vrot.lane.b32.xlu0 %v1472, 96
        %v1515 = vpop.permute.xlu0 %1514
        %1516 = vrot.lane.b32.xlu0 %v1473, 96
        %v1517 = vpop.permute.xlu0 %1516
        %1518 = vrot.lane.b32.xlu0 %v1474, 96
        %v1519 = vpop.permute.xlu0 %1518
        %1520 = vrot.lane.b32.xlu0 %v1475, 96
        %v1521 = vpop.permute.xlu0 %1520
        %1522 = vrot.lane.b32.xlu0 %v1476, 96
        %v1523 = vpop.permute.xlu0 %1522
        %1524 = vrot.lane.b32.xlu0 %v1477, 96
        %v1525 = vpop.permute.xlu0 %1524
        %1526 = vrot.lane.b32.xlu0 %v1478, 96
        %v1527 = vpop.permute.xlu0 %1526
        %1528 = vrot.lane.b32.xlu0 %v1479, 96
        %v1529 = vpop.permute.xlu0 %1528
        %1530 = vrot.lane.b32.xlu0 %v1480, 96
        %v1531 = vpop.permute.xlu0 %1530
        %1532 = vrot.lane.b32.xlu0 %v1481, 96
        %v1533 = vpop.permute.xlu0 %1532
        %1534 = vrot.lane.b32.xlu0 %v1482, 96
        %v1535 = vpop.permute.xlu0 %1534
        %1536 = vrot.lane.b32.xlu0 %v1483, 96
        %v1537 = vpop.permute.xlu0 %1536
        %1538 = vrot.lane.b32.xlu0 %v1484, 96
        %v1539 = vpop.permute.xlu0 %1538
        %1540 = vrot.lane.b32.xlu0 %v1485, 96
        %v1541 = vpop.permute.xlu0 %1540
        %1542 = vrot.lane.b32.xlu0 %v1486, 96
        %v1543 = vpop.permute.xlu0 %1542
        %1544 = vrot.lane.b32.xlu0 %v1487, 96
        %v1545 = vpop.permute.xlu0 %1544
        %1546 = vrot.lane.b32.xlu0 %v1488, 96
        %v1547 = vpop.permute.xlu0 %1546
        %1548 = vrot.lane.b32.xlu0 %v1489, 96
        %v1549 = vpop.permute.xlu0 %1548
        %1550 = vrot.lane.b32.xlu0 %v1490, 96
        %v1551 = vpop.permute.xlu0 %1550
        %1552 = vrot.lane.b32.xlu0 %v1491, 96
        %v1553 = vpop.permute.xlu0 %1552
        %1554 = vrot.lane.b32.xlu0 %v1492, 96
        %v1555 = vpop.permute.xlu0 %1554
        %1556 = vrot.lane.b32.xlu0 %v1493, 96
        %v1557 = vpop.permute.xlu0 %1556
        %1590 = vst.msk [vmem:[#allocation3] sm:$0xf] %vm243, %v1495
        %1591 = vst.msk [vmem:[#allocation3 + $0xc] sm:$0xf] %vm243, %v1497
        %1592 = vst.msk [vmem:[#allocation3 + $0x18] sm:$0xf] %vm243, %v1499
        %1593 = vst.msk [vmem:[#allocation3 + $0x24] sm:$0xf] %vm243, %v1501
        %1594 = vst.msk [vmem:[#allocation3 + $0x30] sm:$0xf] %vm243, %v1503
        %1595 = vst.msk [vmem:[#allocation3 + $0x3c] sm:$0xf] %vm243, %v1505
        %1596 = vst.msk [vmem:[#allocation3 + $0x48] sm:$0xf] %vm243, %v1507
        %1597 = vst.msk [vmem:[#allocation3 + $0x54] sm:$0xf] %vm243, %v1509
        %1598 = vst.msk [vmem:[#allocation3 + $0x60] sm:$0xf] %vm243, %v1511
        %1599 = vst.msk [vmem:[#allocation3 + $0x6c] sm:$0xf] %vm243, %v1513
        %1600 = vst.msk [vmem:[#allocation3 + $0x78] sm:$0xf] %vm243, %v1515
        %1601 = vst.msk [vmem:[#allocation3 + $0x84] sm:$0xf] %vm243, %v1517
        %1602 = vst.msk [vmem:[#allocation3 + $0x90] sm:$0xf] %vm243, %v1519
        %1603 = vst.msk [vmem:[#allocation3 + $0x9c] sm:$0xf] %vm243, %v1521
        %1604 = vst.msk [vmem:[#allocation3 + $0xa8] sm:$0xf] %vm243, %v1523
        %1605 = vst.msk [vmem:[#allocation3 + $0xb4] sm:$0xf] %vm243, %v1525
        %1606 = vst.msk [vmem:[#allocation3 + $0xc0] sm:$0xf] %vm243, %v1527
        %1607 = vst.msk [vmem:[#allocation3 + $0xcc] sm:$0xf] %vm243, %v1529
        %1608 = vst.msk [vmem:[#allocation3 + $0xd8] sm:$0xf] %vm243, %v1531
        %1609 = vst.msk [vmem:[#allocation3 + $0xe4] sm:$0xf] %vm243, %v1533
        %1610 = vst.msk [vmem:[#allocation3 + $0xf0] sm:$0xf] %vm243, %v1535
        %1611 = vst.msk [vmem:[#allocation3 + $0xfc] sm:$0xf] %vm243, %v1537
        %1612 = vst.msk [vmem:[#allocation3 + $0x108] sm:$0xf] %vm243, %v1539
        %1613 = vst.msk [vmem:[#allocation3 + $0x114] sm:$0xf] %vm243, %v1541
        %1614 = vst.msk [vmem:[#allocation3 + $0x120] sm:$0xf] %vm243, %v1543
        %1615 = vst.msk [vmem:[#allocation3 + $0x12c] sm:$0xf] %vm243, %v1545
        %1616 = vst.msk [vmem:[#allocation3 + $0x138] sm:$0xf] %vm243, %v1547
        %1617 = vst.msk [vmem:[#allocation3 + $0x144] sm:$0xf] %vm243, %v1549
        %1618 = vst.msk [vmem:[#allocation3 + $0x150] sm:$0xf] %vm243, %v1551
        %1619 = vst.msk [vmem:[#allocation3 + $0x15c] sm:$0xf] %vm243, %v1553
        %1620 = vst.msk [vmem:[#allocation3 + $0x168] sm:$0xf] %vm243, %v1555
        %1621 = vst.msk [vmem:[#allocation3 + $0x174] sm:$0xf] %vm243, %v1557
        %v1622 = vld [vmem:[#allocation2 + $0x18] sm:$0xff]
        %v1623 = vld [vmem:[#allocation2 + $0x20] sm:$0xff]
        %v1624 = vld [vmem:[#allocation2 + $0x28] sm:$0xff]
        %v1625 = vld [vmem:[#allocation2 + $0x30] sm:$0xff]
        %v1626 = vld [vmem:[#allocation2 + $0x38] sm:$0xff]
        %v1627 = vld [vmem:[#allocation2 + $0x40] sm:$0xff]
        %v1628 = vld [vmem:[#allocation2 + $0x48] sm:$0xff]
        %v1629 = vld [vmem:[#allocation2 + $0x50] sm:$0xff]
        %v1630 = vld [vmem:[#allocation2 + $0x58] sm:$0xff]
        %v1631 = vld [vmem:[#allocation2 + $0x60] sm:$0xff]
        %v1632 = vld [vmem:[#allocation2 + $0x68] sm:$0xff]
        %v1633 = vld [vmem:[#allocation2 + $0x70] sm:$0xff]
        %v1634 = vld [vmem:[#allocation2 + $0x78] sm:$0xff]
        %v1635 = vld [vmem:[#allocation2 + $0x80] sm:$0xff]
        %v1636 = vld [vmem:[#allocation2 + $0x88] sm:$0xff]
        %v1637 = vld [vmem:[#allocation2 + $0x90] sm:$0xff]
        %v1638 = vld [vmem:[#allocation2 + $0x98] sm:$0xff]
        %v1639 = vld [vmem:[#allocation2 + $0xa0] sm:$0xff]
        %v1640 = vld [vmem:[#allocation2 + $0xa8] sm:$0xff]
        %v1641 = vld [vmem:[#allocation2 + $0xb0] sm:$0xff]
        %v1642 = vld [vmem:[#allocation2 + $0xb8] sm:$0xff]
        %v1643 = vld [vmem:[#allocation2 + $0xc0] sm:$0xff]
        %v1644 = vld [vmem:[#allocation2 + $0xc8] sm:$0xff]
        %v1645 = vld [vmem:[#allocation2 + $0xd0] sm:$0xff]
        %v1646 = vld [vmem:[#allocation2 + $0xd8] sm:$0xff]
        %v1647 = vld [vmem:[#allocation2 + $0xe0] sm:$0xff]
        %v1648 = vld [vmem:[#allocation2 + $0xe8] sm:$0xff]
        %v1649 = vld [vmem:[#allocation2 + $0xf0] sm:$0xff]
        %v1650 = vld [vmem:[#allocation2 + $0xf8] sm:$0xff]
        %v1651 = vld [vmem:[#allocation2 + $0x100] sm:$0xff]
        %v1652 = vld [vmem:[#allocation2 + $0x108] sm:$0xff]
        %v1653 = vld [vmem:[#allocation2 + $0x110] sm:$0xff]
        %v1654 = vpack.c.bf16 %v1623, %v1622
        %v1655 = vpack.c.bf16 %v1625, %v1624
        %v1656 = vpack.c.bf16 %v1627, %v1626
        %v1657 = vpack.c.bf16 %v1629, %v1628
        %v1658 = vpack.c.bf16 %v1631, %v1630
        %v1659 = vpack.c.bf16 %v1633, %v1632
        %v1660 = vpack.c.bf16 %v1635, %v1634
        %v1661 = vpack.c.bf16 %v1637, %v1636
        %v1662 = vpack.c.bf16 %v1639, %v1638
        %v1663 = vpack.c.bf16 %v1641, %v1640
        %v1664 = vpack.c.bf16 %v1643, %v1642
        %v1665 = vpack.c.bf16 %v1645, %v1644
        %v1666 = vpack.c.bf16 %v1647, %v1646
        %v1667 = vpack.c.bf16 %v1649, %v1648
        %v1668 = vpack.c.bf16 %v1651, %v1650
        %v1669 = vpack.c.bf16 %v1653, %v1652
        %v1686 = vunpack.c.l.b16 %v1654
        %v1687 = vunpack.c.h.b16 %v1654
        %v1688 = vunpack.c.l.b16 %v1655
        %v1689 = vunpack.c.h.b16 %v1655
        %v1690 = vunpack.c.l.b16 %v1656
        %v1691 = vunpack.c.h.b16 %v1656
        %v1692 = vunpack.c.l.b16 %v1657
        %v1693 = vunpack.c.h.b16 %v1657
        %v1694 = vunpack.c.l.b16 %v1658
        %v1695 = vunpack.c.h.b16 %v1658
        %v1696 = vunpack.c.l.b16 %v1659
        %v1697 = vunpack.c.h.b16 %v1659
        %v1698 = vunpack.c.l.b16 %v1660
        %v1699 = vunpack.c.h.b16 %v1660
        %v1700 = vunpack.c.l.b16 %v1661
        %v1701 = vunpack.c.h.b16 %v1661
        %v1702 = vunpack.c.l.b16 %v1662
        %v1703 = vunpack.c.h.b16 %v1662
        %v1704 = vunpack.c.l.b16 %v1663
        %v1705 = vunpack.c.h.b16 %v1663
        %v1706 = vunpack.c.l.b16 %v1664
        %v1707 = vunpack.c.h.b16 %v1664
        %v1708 = vunpack.c.l.b16 %v1665
        %v1709 = vunpack.c.h.b16 %v1665
        %v1710 = vunpack.c.l.b16 %v1666
        %v1711 = vunpack.c.h.b16 %v1666
        %v1712 = vunpack.c.l.b16 %v1667
        %v1713 = vunpack.c.h.b16 %v1667
        %v1714 = vunpack.c.l.b16 %v1668
        %v1715 = vunpack.c.h.b16 %v1668
        %v1716 = vunpack.c.l.b16 %v1669
        %v1717 = vunpack.c.h.b16 %v1669
        %v1718 = vpack.c.b16 %v1686, %v1686
        %v1719 = vpack.c.b16 %v1687, %v1687
        %v1720 = vpack.c.b16 %v1688, %v1688
        %v1721 = vpack.c.b16 %v1689, %v1689
        %v1722 = vpack.c.b16 %v1690, %v1690
        %v1723 = vpack.c.b16 %v1691, %v1691
        %v1724 = vpack.c.b16 %v1692, %v1692
        %v1725 = vpack.c.b16 %v1693, %v1693
        %v1726 = vpack.c.b16 %v1694, %v1694
        %v1727 = vpack.c.b16 %v1695, %v1695
        %v1728 = vpack.c.b16 %v1696, %v1696
        %v1729 = vpack.c.b16 %v1697, %v1697
        %v1730 = vpack.c.b16 %v1698, %v1698
        %v1731 = vpack.c.b16 %v1699, %v1699
        %v1732 = vpack.c.b16 %v1700, %v1700
        %v1733 = vpack.c.b16 %v1701, %v1701
        %v1734 = vpack.c.b16 %v1702, %v1702
        %v1735 = vpack.c.b16 %v1703, %v1703
        %v1736 = vpack.c.b16 %v1704, %v1704
        %v1737 = vpack.c.b16 %v1705, %v1705
        %v1738 = vpack.c.b16 %v1706, %v1706
        %v1739 = vpack.c.b16 %v1707, %v1707
        %v1740 = vpack.c.b16 %v1708, %v1708
        %v1741 = vpack.c.b16 %v1709, %v1709
        %v1742 = vpack.c.b16 %v1710, %v1710
        %v1743 = vpack.c.b16 %v1711, %v1711
        %v1744 = vpack.c.b16 %v1712, %v1712
        %v1745 = vpack.c.b16 %v1713, %v1713
        %v1746 = vpack.c.b16 %v1714, %v1714
        %v1747 = vpack.c.b16 %v1715, %v1715
        %v1748 = vpack.c.b16 %v1716, %v1716
        %v1749 = vpack.c.b16 %v1717, %v1717
        %1782 = vst.msk [vmem:[#allocation3 + $0x4] sm:$0xf] %vm757, %v1718
        %1783 = vst.msk [vmem:[#allocation3 + $0x10] sm:$0xf] %vm757, %v1719
        %1784 = vst.msk [vmem:[#allocation3 + $0x1c] sm:$0xf] %vm757, %v1720
        %1785 = vst.msk [vmem:[#allocation3 + $0x28] sm:$0xf] %vm757, %v1721
        %1786 = vst.msk [vmem:[#allocation3 + $0x34] sm:$0xf] %vm757, %v1722
        %1787 = vst.msk [vmem:[#allocation3 + $0x40] sm:$0xf] %vm757, %v1723
        %1788 = vst.msk [vmem:[#allocation3 + $0x4c] sm:$0xf] %vm757, %v1724
        %1789 = vst.msk [vmem:[#allocation3 + $0x58] sm:$0xf] %vm757, %v1725
        %1790 = vst.msk [vmem:[#allocation3 + $0x64] sm:$0xf] %vm757, %v1726
        %1791 = vst.msk [vmem:[#allocation3 + $0x70] sm:$0xf] %vm757, %v1727
        %1792 = vst.msk [vmem:[#allocation3 + $0x7c] sm:$0xf] %vm757, %v1728
        %1793 = vst.msk [vmem:[#allocation3 + $0x88] sm:$0xf] %vm757, %v1729
        %1794 = vst.msk [vmem:[#allocation3 + $0x94] sm:$0xf] %vm757, %v1730
        %1795 = vst.msk [vmem:[#allocation3 + $0xa0] sm:$0xf] %vm757, %v1731
        %1796 = vst.msk [vmem:[#allocation3 + $0xac] sm:$0xf] %vm757, %v1732
        %1797 = vst.msk [vmem:[#allocation3 + $0xb8] sm:$0xf] %vm757, %v1733
        %1798 = vst.msk [vmem:[#allocation3 + $0xc4] sm:$0xf] %vm757, %v1734
        %1799 = vst.msk [vmem:[#allocation3 + $0xd0] sm:$0xf] %vm757, %v1735
        %1800 = vst.msk [vmem:[#allocation3 + $0xdc] sm:$0xf] %vm757, %v1736
        %1801 = vst.msk [vmem:[#allocation3 + $0xe8] sm:$0xf] %vm757, %v1737
        %1802 = vst.msk [vmem:[#allocation3 + $0xf4] sm:$0xf] %vm757, %v1738
        %1803 = vst.msk [vmem:[#allocation3 + $0x100] sm:$0xf] %vm757, %v1739
        %1804 = vst.msk [vmem:[#allocation3 + $0x10c] sm:$0xf] %vm757, %v1740
        %1805 = vst.msk [vmem:[#allocation3 + $0x118] sm:$0xf] %vm757, %v1741
        %1806 = vst.msk [vmem:[#allocation3 + $0x124] sm:$0xf] %vm757, %v1742
        %1807 = vst.msk [vmem:[#allocation3 + $0x130] sm:$0xf] %vm757, %v1743
        %1808 = vst.msk [vmem:[#allocation3 + $0x13c] sm:$0xf] %vm757, %v1744
        %1809 = vst.msk [vmem:[#allocation3 + $0x148] sm:$0xf] %vm757, %v1745
        %1810 = vst.msk [vmem:[#allocation3 + $0x154] sm:$0xf] %vm757, %v1746
        %1811 = vst.msk [vmem:[#allocation3 + $0x160] sm:$0xf] %vm757, %v1747
        %1812 = vst.msk [vmem:[#allocation3 + $0x16c] sm:$0xf] %vm757, %v1748
        %1813 = vst.msk [vmem:[#allocation3 + $0x178] sm:$0xf] %vm757, %v1749
        %v1814 = vld [vmem:[#allocation2 + $0x19] sm:$0xff]
        %v1815 = vld [vmem:[#allocation2 + $0x21] sm:$0xff]
        %v1816 = vld [vmem:[#allocation2 + $0x29] sm:$0xff]
        %v1817 = vld [vmem:[#allocation2 + $0x31] sm:$0xff]
        %v1818 = vld [vmem:[#allocation2 + $0x39] sm:$0xff]
        %v1819 = vld [vmem:[#allocation2 + $0x41] sm:$0xff]
        %v1820 = vld [vmem:[#allocation2 + $0x49] sm:$0xff]
        %v1821 = vld [vmem:[#allocation2 + $0x51] sm:$0xff]
        %v1822 = vld [vmem:[#allocation2 + $0x59] sm:$0xff]
        %v1823 = vld [vmem:[#allocation2 + $0x61] sm:$0xff]
        %v1824 = vld [vmem:[#allocation2 + $0x69] sm:$0xff]
        %v1825 = vld [vmem:[#allocation2 + $0x71] sm:$0xff]
        %v1826 = vld [vmem:[#allocation2 + $0x79] sm:$0xff]
        %v1827 = vld [vmem:[#allocation2 + $0x81] sm:$0xff]
        %v1828 = vld [vmem:[#allocation2 + $0x89] sm:$0xff]
        %v1829 = vld [vmem:[#allocation2 + $0x91] sm:$0xff]
        %v1830 = vld [vmem:[#allocation2 + $0x99] sm:$0xff]
        %v1831 = vld [vmem:[#allocation2 + $0xa1] sm:$0xff]
        %v1832 = vld [vmem:[#allocation2 + $0xa9] sm:$0xff]
        %v1833 = vld [vmem:[#allocation2 + $0xb1] sm:$0xff]
        %v1834 = vld [vmem:[#allocation2 + $0xb9] sm:$0xff]
        %v1835 = vld [vmem:[#allocation2 + $0xc1] sm:$0xff]
        %v1836 = vld [vmem:[#allocation2 + $0xc9] sm:$0xff]
        %v1837 = vld [vmem:[#allocation2 + $0xd1] sm:$0xff]
        %v1838 = vld [vmem:[#allocation2 + $0xd9] sm:$0xff]
        %v1839 = vld [vmem:[#allocation2 + $0xe1] sm:$0xff]
        %v1840 = vld [vmem:[#allocation2 + $0xe9] sm:$0xff]
        %v1841 = vld [vmem:[#allocation2 + $0xf1] sm:$0xff]
        %v1842 = vld [vmem:[#allocation2 + $0xf9] sm:$0xff]
        %v1843 = vld [vmem:[#allocation2 + $0x101] sm:$0xff]
        %v1844 = vld [vmem:[#allocation2 + $0x109] sm:$0xff]
        %v1845 = vld [vmem:[#allocation2 + $0x111] sm:$0xff]
        %v1846 = vsel %vm373, %v1814, 0.0
        %v1847 = vsel %vm374, %v1815, 0.0
        %v1848 = vsel %vm375, %v1816, 0.0
        %v1849 = vsel %vm376, %v1817, 0.0
        %v1850 = vsel %vm377, %v1818, 0.0
        %v1851 = vsel %vm378, %v1819, 0.0
        %v1852 = vsel %vm379, %v1820, 0.0
        %v1853 = vsel %vm380, %v1821, 0.0
        %v1854 = vsel %vm381, %v1822, 0.0
        %v1855 = vsel %vm382, %v1823, 0.0
        %v1856 = vsel %vm383, %v1824, 0.0
        %v1857 = vsel %vm384, %v1825, 0.0
        %v1858 = vsel %vm385, %v1826, 0.0
        %v1859 = vsel %vm386, %v1827, 0.0
        %v1860 = vsel %vm387, %v1828, 0.0
        %v1861 = vsel %vm388, %v1829, 0.0
        %v1862 = vsel %vm389, %v1830, 0.0
        %v1863 = vsel %vm390, %v1831, 0.0
        %v1864 = vsel %vm391, %v1832, 0.0
        %v1865 = vsel %vm392, %v1833, 0.0
        %v1866 = vsel %vm393, %v1834, 0.0
        %v1867 = vsel %vm394, %v1835, 0.0
        %v1868 = vsel %vm395, %v1836, 0.0
        %v1869 = vsel %vm396, %v1837, 0.0
        %v1870 = vsel %vm397, %v1838, 0.0
        %v1871 = vsel %vm398, %v1839, 0.0
        %v1872 = vsel %vm399, %v1840, 0.0
        %v1873 = vsel %vm400, %v1841, 0.0
        %v1874 = vsel %vm401, %v1842, 0.0
        %v1875 = vsel %vm402, %v1843, 0.0
        %v1876 = vsel %vm403, %v1844, 0.0
        %v1877 = vsel %vm404, %v1845, 0.0
        %v1878 = vpack.c.bf16 %v1847, %v1846
        %v1879 = vpack.c.bf16 %v1849, %v1848
        %v1880 = vpack.c.bf16 %v1851, %v1850
        %v1881 = vpack.c.bf16 %v1853, %v1852
        %v1882 = vpack.c.bf16 %v1855, %v1854
        %v1883 = vpack.c.bf16 %v1857, %v1856
        %v1884 = vpack.c.bf16 %v1859, %v1858
        %v1885 = vpack.c.bf16 %v1861, %v1860
        %v1886 = vpack.c.bf16 %v1863, %v1862
        %v1887 = vpack.c.bf16 %v1865, %v1864
        %v1888 = vpack.c.bf16 %v1867, %v1866
        %v1889 = vpack.c.bf16 %v1869, %v1868
        %v1890 = vpack.c.bf16 %v1871, %v1870
        %v1891 = vpack.c.bf16 %v1873, %v1872
        %v1892 = vpack.c.bf16 %v1875, %v1874
        %v1893 = vpack.c.bf16 %v1877, %v1876
        %v1910 = vunpack.c.l.b16 %v1878
        %v1911 = vunpack.c.h.b16 %v1878
        %v1912 = vunpack.c.l.b16 %v1879
        %v1913 = vunpack.c.h.b16 %v1879
        %v1914 = vunpack.c.l.b16 %v1880
        %v1915 = vunpack.c.h.b16 %v1880
        %v1916 = vunpack.c.l.b16 %v1881
        %v1917 = vunpack.c.h.b16 %v1881
        %v1918 = vunpack.c.l.b16 %v1882
        %v1919 = vunpack.c.h.b16 %v1882
        %v1920 = vunpack.c.l.b16 %v1883
        %v1921 = vunpack.c.h.b16 %v1883
        %v1922 = vunpack.c.l.b16 %v1884
        %v1923 = vunpack.c.h.b16 %v1884
        %v1924 = vunpack.c.l.b16 %v1885
        %v1925 = vunpack.c.h.b16 %v1885
        %v1926 = vunpack.c.l.b16 %v1886
        %v1927 = vunpack.c.h.b16 %v1886
        %v1928 = vunpack.c.l.b16 %v1887
        %v1929 = vunpack.c.h.b16 %v1887
        %v1930 = vunpack.c.l.b16 %v1888
        %v1931 = vunpack.c.h.b16 %v1888
        %v1932 = vunpack.c.l.b16 %v1889
        %v1933 = vunpack.c.h.b16 %v1889
        %v1934 = vunpack.c.l.b16 %v1890
        %v1935 = vunpack.c.h.b16 %v1890
        %v1936 = vunpack.c.l.b16 %v1891
        %v1937 = vunpack.c.h.b16 %v1891
        %v1938 = vunpack.c.l.b16 %v1892
        %v1939 = vunpack.c.h.b16 %v1892
        %v1940 = vunpack.c.l.b16 %v1893
        %v1941 = vunpack.c.h.b16 %v1893
        %v1942 = vpack.c.b16 %v1910, %v1910
        %v1943 = vpack.c.b16 %v1911, %v1911
        %v1944 = vpack.c.b16 %v1912, %v1912
        %v1945 = vpack.c.b16 %v1913, %v1913
        %v1946 = vpack.c.b16 %v1914, %v1914
        %v1947 = vpack.c.b16 %v1915, %v1915
        %v1948 = vpack.c.b16 %v1916, %v1916
        %v1949 = vpack.c.b16 %v1917, %v1917
        %v1950 = vpack.c.b16 %v1918, %v1918
        %v1951 = vpack.c.b16 %v1919, %v1919
        %v1952 = vpack.c.b16 %v1920, %v1920
        %v1953 = vpack.c.b16 %v1921, %v1921
        %v1954 = vpack.c.b16 %v1922, %v1922
        %v1955 = vpack.c.b16 %v1923, %v1923
        %v1956 = vpack.c.b16 %v1924, %v1924
        %v1957 = vpack.c.b16 %v1925, %v1925
        %v1958 = vpack.c.b16 %v1926, %v1926
        %v1959 = vpack.c.b16 %v1927, %v1927
        %v1960 = vpack.c.b16 %v1928, %v1928
        %v1961 = vpack.c.b16 %v1929, %v1929
        %v1962 = vpack.c.b16 %v1930, %v1930
        %v1963 = vpack.c.b16 %v1931, %v1931
        %v1964 = vpack.c.b16 %v1932, %v1932
        %v1965 = vpack.c.b16 %v1933, %v1933
        %v1966 = vpack.c.b16 %v1934, %v1934
        %v1967 = vpack.c.b16 %v1935, %v1935
        %v1968 = vpack.c.b16 %v1936, %v1936
        %v1969 = vpack.c.b16 %v1937, %v1937
        %v1970 = vpack.c.b16 %v1938, %v1938
        %v1971 = vpack.c.b16 %v1939, %v1939
        %v1972 = vpack.c.b16 %v1940, %v1940
        %v1973 = vpack.c.b16 %v1941, %v1941
        %1974 = vrot.lane.b32.xlu0 %v1942, 32
        %v1975 = vpop.permute.xlu0 %1974
        %1976 = vrot.lane.b32.xlu0 %v1943, 32
        %v1977 = vpop.permute.xlu0 %1976
        %1978 = vrot.lane.b32.xlu0 %v1944, 32
        %v1979 = vpop.permute.xlu0 %1978
        %1980 = vrot.lane.b32.xlu0 %v1945, 32
        %v1981 = vpop.permute.xlu0 %1980
        %1982 = vrot.lane.b32.xlu0 %v1946, 32
        %v1983 = vpop.permute.xlu0 %1982
        %1984 = vrot.lane.b32.xlu0 %v1947, 32
        %v1985 = vpop.permute.xlu0 %1984
        %1986 = vrot.lane.b32.xlu0 %v1948, 32
        %v1987 = vpop.permute.xlu0 %1986
        %1988 = vrot.lane.b32.xlu0 %v1949, 32
        %v1989 = vpop.permute.xlu0 %1988
        %1990 = vrot.lane.b32.xlu0 %v1950, 32
        %v1991 = vpop.permute.xlu0 %1990
        %1992 = vrot.lane.b32.xlu0 %v1951, 32
        %v1993 = vpop.permute.xlu0 %1992
        %1994 = vrot.lane.b32.xlu0 %v1952, 32
        %v1995 = vpop.permute.xlu0 %1994
        %1996 = vrot.lane.b32.xlu0 %v1953, 32
        %v1997 = vpop.permute.xlu0 %1996
        %1998 = vrot.lane.b32.xlu0 %v1954, 32
        %v1999 = vpop.permute.xlu0 %1998
        %2000 = vrot.lane.b32.xlu0 %v1955, 32
        %v2001 = vpop.permute.xlu0 %2000
        %2002 = vrot.lane.b32.xlu0 %v1956, 32
        %v2003 = vpop.permute.xlu0 %2002
        %2004 = vrot.lane.b32.xlu0 %v1957, 32
        %v2005 = vpop.permute.xlu0 %2004
        %2006 = vrot.lane.b32.xlu0 %v1958, 32
        %v2007 = vpop.permute.xlu0 %2006
        %2008 = vrot.lane.b32.xlu0 %v1959, 32
        %v2009 = vpop.permute.xlu0 %2008
        %2010 = vrot.lane.b32.xlu0 %v1960, 32
        %v2011 = vpop.permute.xlu0 %2010
        %2012 = vrot.lane.b32.xlu0 %v1961, 32
        %v2013 = vpop.permute.xlu0 %2012
        %2014 = vrot.lane.b32.xlu0 %v1962, 32
        %v2015 = vpop.permute.xlu0 %2014
        %2016 = vrot.lane.b32.xlu0 %v1963, 32
        %v2017 = vpop.permute.xlu0 %2016
        %2018 = vrot.lane.b32.xlu0 %v1964, 32
        %v2019 = vpop.permute.xlu0 %2018
        %2020 = vrot.lane.b32.xlu0 %v1965, 32
        %v2021 = vpop.permute.xlu0 %2020
        %2022 = vrot.lane.b32.xlu0 %v1966, 32
        %v2023 = vpop.permute.xlu0 %2022
        %2024 = vrot.lane.b32.xlu0 %v1967, 32
        %v2025 = vpop.permute.xlu0 %2024
        %2026 = vrot.lane.b32.xlu0 %v1968, 32
        %v2027 = vpop.permute.xlu0 %2026
        %2028 = vrot.lane.b32.xlu0 %v1969, 32
        %v2029 = vpop.permute.xlu0 %2028
        %2030 = vrot.lane.b32.xlu0 %v1970, 32
        %v2031 = vpop.permute.xlu0 %2030
        %2032 = vrot.lane.b32.xlu0 %v1971, 32
        %v2033 = vpop.permute.xlu0 %2032
        %2034 = vrot.lane.b32.xlu0 %v1972, 32
        %v2035 = vpop.permute.xlu0 %2034
        %2036 = vrot.lane.b32.xlu0 %v1973, 32
        %v2037 = vpop.permute.xlu0 %2036
        %2070 = vst.msk [vmem:[#allocation3 + $0x4] sm:$0xf] %vm177, %v1975
        %2071 = vst.msk [vmem:[#allocation3 + $0x10] sm:$0xf] %vm177, %v1977
        %2072 = vst.msk [vmem:[#allocation3 + $0x1c] sm:$0xf] %vm177, %v1979
        %2073 = vst.msk [vmem:[#allocation3 + $0x28] sm:$0xf] %vm177, %v1981
        %2074 = vst.msk [vmem:[#allocation3 + $0x34] sm:$0xf] %vm177, %v1983
        %2075 = vst.msk [vmem:[#allocation3 + $0x40] sm:$0xf] %vm177, %v1985
        %2076 = vst.msk [vmem:[#allocation3 + $0x4c] sm:$0xf] %vm177, %v1987
        %2077 = vst.msk [vmem:[#allocation3 + $0x58] sm:$0xf] %vm177, %v1989
        %2078 = vst.msk [vmem:[#allocation3 + $0x64] sm:$0xf] %vm177, %v1991
        %2079 = vst.msk [vmem:[#allocation3 + $0x70] sm:$0xf] %vm177, %v1993
        %2080 = vst.msk [vmem:[#allocation3 + $0x7c] sm:$0xf] %vm177, %v1995
        %2081 = vst.msk [vmem:[#allocation3 + $0x88] sm:$0xf] %vm177, %v1997
        %2082 = vst.msk [vmem:[#allocation3 + $0x94] sm:$0xf] %vm177, %v1999
        %2083 = vst.msk [vmem:[#allocation3 + $0xa0] sm:$0xf] %vm177, %v2001
        %2084 = vst.msk [vmem:[#allocation3 + $0xac] sm:$0xf] %vm177, %v2003
        %2085 = vst.msk [vmem:[#allocation3 + $0xb8] sm:$0xf] %vm177, %v2005
        %2086 = vst.msk [vmem:[#allocation3 + $0xc4] sm:$0xf] %vm177, %v2007
        %2087 = vst.msk [vmem:[#allocation3 + $0xd0] sm:$0xf] %vm177, %v2009
        %2088 = vst.msk [vmem:[#allocation3 + $0xdc] sm:$0xf] %vm177, %v2011
        %2089 = vst.msk [vmem:[#allocation3 + $0xe8] sm:$0xf] %vm177, %v2013
        %2090 = vst.msk [vmem:[#allocation3 + $0xf4] sm:$0xf] %vm177, %v2015
        %2091 = vst.msk [vmem:[#allocation3 + $0x100] sm:$0xf] %vm177, %v2017
        %2092 = vst.msk [vmem:[#allocation3 + $0x10c] sm:$0xf] %vm177, %v2019
        %2093 = vst.msk [vmem:[#allocation3 + $0x118] sm:$0xf] %vm177, %v2021
        %2094 = vst.msk [vmem:[#allocation3 + $0x124] sm:$0xf] %vm177, %v2023
        %2095 = vst.msk [vmem:[#allocation3 + $0x130] sm:$0xf] %vm177, %v2025
        %2096 = vst.msk [vmem:[#allocation3 + $0x13c] sm:$0xf] %vm177, %v2027
        %2097 = vst.msk [vmem:[#allocation3 + $0x148] sm:$0xf] %vm177, %v2029
        %2098 = vst.msk [vmem:[#allocation3 + $0x154] sm:$0xf] %vm177, %v2031
        %2099 = vst.msk [vmem:[#allocation3 + $0x160] sm:$0xf] %vm177, %v2033
        %2100 = vst.msk [vmem:[#allocation3 + $0x16c] sm:$0xf] %vm177, %v2035
        %2101 = vst.msk [vmem:[#allocation3 + $0x178] sm:$0xf] %vm177, %v2037
        %v2102 = vld [vmem:[#allocation2 + $0x27] sm:$0xff]
        %v2103 = vld [vmem:[#allocation2 + $0x2f] sm:$0xff]
        %v2104 = vld [vmem:[#allocation2 + $0x37] sm:$0xff]
        %v2105 = vld [vmem:[#allocation2 + $0x3f] sm:$0xff]
        %v2106 = vld [vmem:[#allocation2 + $0x47] sm:$0xff]
        %v2107 = vld [vmem:[#allocation2 + $0x4f] sm:$0xff]
        %v2108 = vld [vmem:[#allocation2 + $0x57] sm:$0xff]
        %v2109 = vld [vmem:[#allocation2 + $0x5f] sm:$0xff]
        %v2110 = vld [vmem:[#allocation2 + $0x67] sm:$0xff]
        %v2111 = vld [vmem:[#allocation2 + $0x6f] sm:$0xff]
        %v2112 = vld [vmem:[#allocation2 + $0x77] sm:$0xff]
        %v2113 = vld [vmem:[#allocation2 + $0x7f] sm:$0xff]
        %v2114 = vld [vmem:[#allocation2 + $0x87] sm:$0xff]
        %v2115 = vld [vmem:[#allocation2 + $0x8f] sm:$0xff]
        %v2116 = vld [vmem:[#allocation2 + $0x97] sm:$0xff]
        %v2117 = vld [vmem:[#allocation2 + $0x9f] sm:$0xff]
        %v2118 = vld [vmem:[#allocation2 + $0xa7] sm:$0xff]
        %v2119 = vld [vmem:[#allocation2 + $0xaf] sm:$0xff]
        %v2120 = vld [vmem:[#allocation2 + $0xb7] sm:$0xff]
        %v2121 = vld [vmem:[#allocation2 + $0xbf] sm:$0xff]
        %v2122 = vld [vmem:[#allocation2 + $0xc7] sm:$0xff]
        %v2123 = vld [vmem:[#allocation2 + $0xcf] sm:$0xff]
        %v2124 = vld [vmem:[#allocation2 + $0xd7] sm:$0xff]
        %v2125 = vld [vmem:[#allocation2 + $0xdf] sm:$0xff]
        %v2126 = vld [vmem:[#allocation2 + $0xe7] sm:$0xff]
        %v2127 = vld [vmem:[#allocation2 + $0xef] sm:$0xff]
        %v2128 = vld [vmem:[#allocation2 + $0xf7] sm:$0xff]
        %v2129 = vld [vmem:[#allocation2 + $0xff] sm:$0xff]
        %v2130 = vld [vmem:[#allocation2 + $0x107] sm:$0xff]
        %v2131 = vld [vmem:[#allocation2 + $0x10f] sm:$0xff]
        %v2132 = vld [vmem:[#allocation2 + $0x117] sm:$0xff]
        %v2133 = vld [vmem:[#allocation2 + $0x11f] sm:$0xff]
        %v2134 = vsel %vm341, %v2102, 0.0
        %v2135 = vsel %vm342, %v2103, 0.0
        %v2136 = vsel %vm343, %v2104, 0.0
        %v2137 = vsel %vm344, %v2105, 0.0
        %v2138 = vsel %vm345, %v2106, 0.0
        %v2139 = vsel %vm346, %v2107, 0.0
        %v2140 = vsel %vm347, %v2108, 0.0
        %v2141 = vsel %vm348, %v2109, 0.0
        %v2142 = vsel %vm349, %v2110, 0.0
        %v2143 = vsel %vm350, %v2111, 0.0
        %v2144 = vsel %vm351, %v2112, 0.0
        %v2145 = vsel %vm352, %v2113, 0.0
        %v2146 = vsel %vm353, %v2114, 0.0
        %v2147 = vsel %vm354, %v2115, 0.0
        %v2148 = vsel %vm355, %v2116, 0.0
        %v2149 = vsel %vm356, %v2117, 0.0
        %v2150 = vsel %vm357, %v2118, 0.0
        %v2151 = vsel %vm358, %v2119, 0.0
        %v2152 = vsel %vm359, %v2120, 0.0
        %v2153 = vsel %vm360, %v2121, 0.0
        %v2154 = vsel %vm361, %v2122, 0.0
        %v2155 = vsel %vm362, %v2123, 0.0
        %v2156 = vsel %vm363, %v2124, 0.0
        %v2157 = vsel %vm364, %v2125, 0.0
        %v2158 = vsel %vm365, %v2126, 0.0
        %v2159 = vsel %vm366, %v2127, 0.0
        %v2160 = vsel %vm367, %v2128, 0.0
        %v2161 = vsel %vm368, %v2129, 0.0
        %v2162 = vsel %vm369, %v2130, 0.0
        %v2163 = vsel %vm370, %v2131, 0.0
        %v2164 = vsel %vm371, %v2132, 0.0
        %v2165 = vsel %vm372, %v2133, 0.0
        %v2166 = vpack.c.bf16 %v2135, %v2134
        %v2167 = vpack.c.bf16 %v2137, %v2136
        %v2168 = vpack.c.bf16 %v2139, %v2138
        %v2169 = vpack.c.bf16 %v2141, %v2140
        %v2170 = vpack.c.bf16 %v2143, %v2142
        %v2171 = vpack.c.bf16 %v2145, %v2144
        %v2172 = vpack.c.bf16 %v2147, %v2146
        %v2173 = vpack.c.bf16 %v2149, %v2148
        %v2174 = vpack.c.bf16 %v2151, %v2150
        %v2175 = vpack.c.bf16 %v2153, %v2152
        %v2176 = vpack.c.bf16 %v2155, %v2154
        %v2177 = vpack.c.bf16 %v2157, %v2156
        %v2178 = vpack.c.bf16 %v2159, %v2158
        %v2179 = vpack.c.bf16 %v2161, %v2160
        %v2180 = vpack.c.bf16 %v2163, %v2162
        %v2181 = vpack.c.bf16 %v2165, %v2164
        %v2198 = vunpack.c.l.b16 %v2166
        %v2199 = vunpack.c.h.b16 %v2166
        %v2200 = vunpack.c.l.b16 %v2167
        %v2201 = vunpack.c.h.b16 %v2167
        %v2202 = vunpack.c.l.b16 %v2168
        %v2203 = vunpack.c.h.b16 %v2168
        %v2204 = vunpack.c.l.b16 %v2169
        %v2205 = vunpack.c.h.b16 %v2169
        %v2206 = vunpack.c.l.b16 %v2170
        %v2207 = vunpack.c.h.b16 %v2170
        %v2208 = vunpack.c.l.b16 %v2171
        %v2209 = vunpack.c.h.b16 %v2171
        %v2210 = vunpack.c.l.b16 %v2172
        %v2211 = vunpack.c.h.b16 %v2172
        %v2212 = vunpack.c.l.b16 %v2173
        %v2213 = vunpack.c.h.b16 %v2173
        %v2214 = vunpack.c.l.b16 %v2174
        %v2215 = vunpack.c.h.b16 %v2174
        %v2216 = vunpack.c.l.b16 %v2175
        %v2217 = vunpack.c.h.b16 %v2175
        %v2218 = vunpack.c.l.b16 %v2176
        %v2219 = vunpack.c.h.b16 %v2176
        %v2220 = vunpack.c.l.b16 %v2177
        %v2221 = vunpack.c.h.b16 %v2177
        %v2222 = vunpack.c.l.b16 %v2178
        %v2223 = vunpack.c.h.b16 %v2178
        %v2224 = vunpack.c.l.b16 %v2179
        %v2225 = vunpack.c.h.b16 %v2179
        %v2226 = vunpack.c.l.b16 %v2180
        %v2227 = vunpack.c.h.b16 %v2180
        %v2228 = vunpack.c.l.b16 %v2181
        %v2229 = vunpack.c.h.b16 %v2181
        %v2230 = vpack.c.b16 %v2198, %v2198
        %v2231 = vpack.c.b16 %v2199, %v2199
        %v2232 = vpack.c.b16 %v2200, %v2200
        %v2233 = vpack.c.b16 %v2201, %v2201
        %v2234 = vpack.c.b16 %v2202, %v2202
        %v2235 = vpack.c.b16 %v2203, %v2203
        %v2236 = vpack.c.b16 %v2204, %v2204
        %v2237 = vpack.c.b16 %v2205, %v2205
        %v2238 = vpack.c.b16 %v2206, %v2206
        %v2239 = vpack.c.b16 %v2207, %v2207
        %v2240 = vpack.c.b16 %v2208, %v2208
        %v2241 = vpack.c.b16 %v2209, %v2209
        %v2242 = vpack.c.b16 %v2210, %v2210
        %v2243 = vpack.c.b16 %v2211, %v2211
        %v2244 = vpack.c.b16 %v2212, %v2212
        %v2245 = vpack.c.b16 %v2213, %v2213
        %v2246 = vpack.c.b16 %v2214, %v2214
        %v2247 = vpack.c.b16 %v2215, %v2215
        %v2248 = vpack.c.b16 %v2216, %v2216
        %v2249 = vpack.c.b16 %v2217, %v2217
        %v2250 = vpack.c.b16 %v2218, %v2218
        %v2251 = vpack.c.b16 %v2219, %v2219
        %v2252 = vpack.c.b16 %v2220, %v2220
        %v2253 = vpack.c.b16 %v2221, %v2221
        %v2254 = vpack.c.b16 %v2222, %v2222
        %v2255 = vpack.c.b16 %v2223, %v2223
        %v2256 = vpack.c.b16 %v2224, %v2224
        %v2257 = vpack.c.b16 %v2225, %v2225
        %v2258 = vpack.c.b16 %v2226, %v2226
        %v2259 = vpack.c.b16 %v2227, %v2227
        %v2260 = vpack.c.b16 %v2228, %v2228
        %v2261 = vpack.c.b16 %v2229, %v2229
        %2262 = vrot.lane.b32.xlu0 %v2230, 64
        %v2263 = vpop.permute.xlu0 %2262
        %2264 = vrot.lane.b32.xlu0 %v2231, 64
        %v2265 = vpop.permute.xlu0 %2264
        %2266 = vrot.lane.b32.xlu0 %v2232, 64
        %v2267 = vpop.permute.xlu0 %2266
        %2268 = vrot.lane.b32.xlu0 %v2233, 64
        %v2269 = vpop.permute.xlu0 %2268
        %2270 = vrot.lane.b32.xlu0 %v2234, 64
        %v2271 = vpop.permute.xlu0 %2270
        %2272 = vrot.lane.b32.xlu0 %v2235, 64
        %v2273 = vpop.permute.xlu0 %2272
        %2274 = vrot.lane.b32.xlu0 %v2236, 64
        %v2275 = vpop.permute.xlu0 %2274
        %2276 = vrot.lane.b32.xlu0 %v2237, 64
        %v2277 = vpop.permute.xlu0 %2276
        %2278 = vrot.lane.b32.xlu0 %v2238, 64
        %v2279 = vpop.permute.xlu0 %2278
        %2280 = vrot.lane.b32.xlu0 %v2239, 64
        %v2281 = vpop.permute.xlu0 %2280
        %2282 = vrot.lane.b32.xlu0 %v2240, 64
        %v2283 = vpop.permute.xlu0 %2282
        %2284 = vrot.lane.b32.xlu0 %v2241, 64
        %v2285 = vpop.permute.xlu0 %2284
        %2286 = vrot.lane.b32.xlu0 %v2242, 64
        %v2287 = vpop.permute.xlu0 %2286
        %2288 = vrot.lane.b32.xlu0 %v2243, 64
        %v2289 = vpop.permute.xlu0 %2288
        %2290 = vrot.lane.b32.xlu0 %v2244, 64
        %v2291 = vpop.permute.xlu0 %2290
        %2292 = vrot.lane.b32.xlu0 %v2245, 64
        %v2293 = vpop.permute.xlu0 %2292
        %2294 = vrot.lane.b32.xlu0 %v2246, 64
        %v2295 = vpop.permute.xlu0 %2294
        %2296 = vrot.lane.b32.xlu0 %v2247, 64
        %v2297 = vpop.permute.xlu0 %2296
        %2298 = vrot.lane.b32.xlu0 %v2248, 64
        %v2299 = vpop.permute.xlu0 %2298
        %2300 = vrot.lane.b32.xlu0 %v2249, 64
        %v2301 = vpop.permute.xlu0 %2300
        %2302 = vrot.lane.b32.xlu0 %v2250, 64
        %v2303 = vpop.permute.xlu0 %2302
        %2304 = vrot.lane.b32.xlu0 %v2251, 64
        %v2305 = vpop.permute.xlu0 %2304
        %2306 = vrot.lane.b32.xlu0 %v2252, 64
        %v2307 = vpop.permute.xlu0 %2306
        %2308 = vrot.lane.b32.xlu0 %v2253, 64
        %v2309 = vpop.permute.xlu0 %2308
        %2310 = vrot.lane.b32.xlu0 %v2254, 64
        %v2311 = vpop.permute.xlu0 %2310
        %2312 = vrot.lane.b32.xlu0 %v2255, 64
        %v2313 = vpop.permute.xlu0 %2312
        %2314 = vrot.lane.b32.xlu0 %v2256, 64
        %v2315 = vpop.permute.xlu0 %2314
        %2316 = vrot.lane.b32.xlu0 %v2257, 64
        %v2317 = vpop.permute.xlu0 %2316
        %2318 = vrot.lane.b32.xlu0 %v2258, 64
        %v2319 = vpop.permute.xlu0 %2318
        %2320 = vrot.lane.b32.xlu0 %v2259, 64
        %v2321 = vpop.permute.xlu0 %2320
        %2322 = vrot.lane.b32.xlu0 %v2260, 64
        %v2323 = vpop.permute.xlu0 %2322
        %2324 = vrot.lane.b32.xlu0 %v2261, 64
        %v2325 = vpop.permute.xlu0 %2324
        %2358 = vst.msk [vmem:[#allocation3 + $0x4] sm:$0xf] %vm210, %v2263
        %2359 = vst.msk [vmem:[#allocation3 + $0x10] sm:$0xf] %vm210, %v2265
        %2360 = vst.msk [vmem:[#allocation3 + $0x1c] sm:$0xf] %vm210, %v2267
        %2361 = vst.msk [vmem:[#allocation3 + $0x28] sm:$0xf] %vm210, %v2269
        %2362 = vst.msk [vmem:[#allocation3 + $0x34] sm:$0xf] %vm210, %v2271
        %2363 = vst.msk [vmem:[#allocation3 + $0x40] sm:$0xf] %vm210, %v2273
        %2364 = vst.msk [vmem:[#allocation3 + $0x4c] sm:$0xf] %vm210, %v2275
        %2365 = vst.msk [vmem:[#allocation3 + $0x58] sm:$0xf] %vm210, %v2277
        %2366 = vst.msk [vmem:[#allocation3 + $0x64] sm:$0xf] %vm210, %v2279
        %2367 = vst.msk [vmem:[#allocation3 + $0x70] sm:$0xf] %vm210, %v2281
        %2368 = vst.msk [vmem:[#allocation3 + $0x7c] sm:$0xf] %vm210, %v2283
        %2369 = vst.msk [vmem:[#allocation3 + $0x88] sm:$0xf] %vm210, %v2285
        %2370 = vst.msk [vmem:[#allocation3 + $0x94] sm:$0xf] %vm210, %v2287
        %2371 = vst.msk [vmem:[#allocation3 + $0xa0] sm:$0xf] %vm210, %v2289
        %2372 = vst.msk [vmem:[#allocation3 + $0xac] sm:$0xf] %vm210, %v2291
        %2373 = vst.msk [vmem:[#allocation3 + $0xb8] sm:$0xf] %vm210, %v2293
        %2374 = vst.msk [vmem:[#allocation3 + $0xc4] sm:$0xf] %vm210, %v2295
        %2375 = vst.msk [vmem:[#allocation3 + $0xd0] sm:$0xf] %vm210, %v2297
        %2376 = vst.msk [vmem:[#allocation3 + $0xdc] sm:$0xf] %vm210, %v2299
        %2377 = vst.msk [vmem:[#allocation3 + $0xe8] sm:$0xf] %vm210, %v2301
        %2378 = vst.msk [vmem:[#allocation3 + $0xf4] sm:$0xf] %vm210, %v2303
        %2379 = vst.msk [vmem:[#allocation3 + $0x100] sm:$0xf] %vm210, %v2305
        %2380 = vst.msk [vmem:[#allocation3 + $0x10c] sm:$0xf] %vm210, %v2307
        %2381 = vst.msk [vmem:[#allocation3 + $0x118] sm:$0xf] %vm210, %v2309
        %2382 = vst.msk [vmem:[#allocation3 + $0x124] sm:$0xf] %vm210, %v2311
        %2383 = vst.msk [vmem:[#allocation3 + $0x130] sm:$0xf] %vm210, %v2313
        %2384 = vst.msk [vmem:[#allocation3 + $0x13c] sm:$0xf] %vm210, %v2315
        %2385 = vst.msk [vmem:[#allocation3 + $0x148] sm:$0xf] %vm210, %v2317
        %2386 = vst.msk [vmem:[#allocation3 + $0x154] sm:$0xf] %vm210, %v2319
        %2387 = vst.msk [vmem:[#allocation3 + $0x160] sm:$0xf] %vm210, %v2321
        %2388 = vst.msk [vmem:[#allocation3 + $0x16c] sm:$0xf] %vm210, %v2323
        %2389 = vst.msk [vmem:[#allocation3 + $0x178] sm:$0xf] %vm210, %v2325
        %v2390 = vld [vmem:[#allocation2 + $0x28] sm:$0xff]
        %v2391 = vld [vmem:[#allocation2 + $0x30] sm:$0xff]
        %v2392 = vld [vmem:[#allocation2 + $0x38] sm:$0xff]
        %v2393 = vld [vmem:[#allocation2 + $0x40] sm:$0xff]
        %v2394 = vld [vmem:[#allocation2 + $0x48] sm:$0xff]
        %v2395 = vld [vmem:[#allocation2 + $0x50] sm:$0xff]
        %v2396 = vld [vmem:[#allocation2 + $0x58] sm:$0xff]
        %v2397 = vld [vmem:[#allocation2 + $0x60] sm:$0xff]
        %v2398 = vld [vmem:[#allocation2 + $0x68] sm:$0xff]
        %v2399 = vld [vmem:[#allocation2 + $0x70] sm:$0xff]
        %v2400 = vld [vmem:[#allocation2 + $0x78] sm:$0xff]
        %v2401 = vld [vmem:[#allocation2 + $0x80] sm:$0xff]
        %v2402 = vld [vmem:[#allocation2 + $0x88] sm:$0xff]
        %v2403 = vld [vmem:[#allocation2 + $0x90] sm:$0xff]
        %v2404 = vld [vmem:[#allocation2 + $0x98] sm:$0xff]
        %v2405 = vld [vmem:[#allocation2 + $0xa0] sm:$0xff]
        %v2406 = vld [vmem:[#allocation2 + $0xa8] sm:$0xff]
        %v2407 = vld [vmem:[#allocation2 + $0xb0] sm:$0xff]
        %v2408 = vld [vmem:[#allocation2 + $0xb8] sm:$0xff]
        %v2409 = vld [vmem:[#allocation2 + $0xc0] sm:$0xff]
        %v2410 = vld [vmem:[#allocation2 + $0xc8] sm:$0xff]
        %v2411 = vld [vmem:[#allocation2 + $0xd0] sm:$0xff]
        %v2412 = vld [vmem:[#allocation2 + $0xd8] sm:$0xff]
        %v2413 = vld [vmem:[#allocation2 + $0xe0] sm:$0xff]
        %v2414 = vld [vmem:[#allocation2 + $0xe8] sm:$0xff]
        %v2415 = vld [vmem:[#allocation2 + $0xf0] sm:$0xff]
        %v2416 = vld [vmem:[#allocation2 + $0xf8] sm:$0xff]
        %v2417 = vld [vmem:[#allocation2 + $0x100] sm:$0xff]
        %v2418 = vld [vmem:[#allocation2 + $0x108] sm:$0xff]
        %v2419 = vld [vmem:[#allocation2 + $0x110] sm:$0xff]
        %v2420 = vld [vmem:[#allocation2 + $0x118] sm:$0xff]
        %v2421 = vld [vmem:[#allocation2 + $0x120] sm:$0xff]
        %v2422 = vpack.c.bf16 %v2391, %v2390
        %v2423 = vpack.c.bf16 %v2393, %v2392
        %v2424 = vpack.c.bf16 %v2395, %v2394
        %v2425 = vpack.c.bf16 %v2397, %v2396
        %v2426 = vpack.c.bf16 %v2399, %v2398
        %v2427 = vpack.c.bf16 %v2401, %v2400
        %v2428 = vpack.c.bf16 %v2403, %v2402
        %v2429 = vpack.c.bf16 %v2405, %v2404
        %v2430 = vpack.c.bf16 %v2407, %v2406
        %v2431 = vpack.c.bf16 %v2409, %v2408
        %v2432 = vpack.c.bf16 %v2411, %v2410
        %v2433 = vpack.c.bf16 %v2413, %v2412
        %v2434 = vpack.c.bf16 %v2415, %v2414
        %v2435 = vpack.c.bf16 %v2417, %v2416
        %v2436 = vpack.c.bf16 %v2419, %v2418
        %v2437 = vpack.c.bf16 %v2421, %v2420
        %v2454 = vunpack.c.l.b16 %v2422
        %v2455 = vunpack.c.h.b16 %v2422
        %v2456 = vunpack.c.l.b16 %v2423
        %v2457 = vunpack.c.h.b16 %v2423
        %v2458 = vunpack.c.l.b16 %v2424
        %v2459 = vunpack.c.h.b16 %v2424
        %v2460 = vunpack.c.l.b16 %v2425
        %v2461 = vunpack.c.h.b16 %v2425
        %v2462 = vunpack.c.l.b16 %v2426
        %v2463 = vunpack.c.h.b16 %v2426
        %v2464 = vunpack.c.l.b16 %v2427
        %v2465 = vunpack.c.h.b16 %v2427
        %v2466 = vunpack.c.l.b16 %v2428
        %v2467 = vunpack.c.h.b16 %v2428
        %v2468 = vunpack.c.l.b16 %v2429
        %v2469 = vunpack.c.h.b16 %v2429
        %v2470 = vunpack.c.l.b16 %v2430
        %v2471 = vunpack.c.h.b16 %v2430
        %v2472 = vunpack.c.l.b16 %v2431
        %v2473 = vunpack.c.h.b16 %v2431
        %v2474 = vunpack.c.l.b16 %v2432
        %v2475 = vunpack.c.h.b16 %v2432
        %v2476 = vunpack.c.l.b16 %v2433
        %v2477 = vunpack.c.h.b16 %v2433
        %v2478 = vunpack.c.l.b16 %v2434
        %v2479 = vunpack.c.h.b16 %v2434
        %v2480 = vunpack.c.l.b16 %v2435
        %v2481 = vunpack.c.h.b16 %v2435
        %v2482 = vunpack.c.l.b16 %v2436
        %v2483 = vunpack.c.h.b16 %v2436
        %v2484 = vunpack.c.l.b16 %v2437
        %v2485 = vunpack.c.h.b16 %v2437
        %v2486 = vpack.c.b16 %v2454, %v2454
        %v2487 = vpack.c.b16 %v2455, %v2455
        %v2488 = vpack.c.b16 %v2456, %v2456
        %v2489 = vpack.c.b16 %v2457, %v2457
        %v2490 = vpack.c.b16 %v2458, %v2458
        %v2491 = vpack.c.b16 %v2459, %v2459
        %v2492 = vpack.c.b16 %v2460, %v2460
        %v2493 = vpack.c.b16 %v2461, %v2461
        %v2494 = vpack.c.b16 %v2462, %v2462
        %v2495 = vpack.c.b16 %v2463, %v2463
        %v2496 = vpack.c.b16 %v2464, %v2464
        %v2497 = vpack.c.b16 %v2465, %v2465
        %v2498 = vpack.c.b16 %v2466, %v2466
        %v2499 = vpack.c.b16 %v2467, %v2467
        %v2500 = vpack.c.b16 %v2468, %v2468
        %v2501 = vpack.c.b16 %v2469, %v2469
        %v2502 = vpack.c.b16 %v2470, %v2470
        %v2503 = vpack.c.b16 %v2471, %v2471
        %v2504 = vpack.c.b16 %v2472, %v2472
        %v2505 = vpack.c.b16 %v2473, %v2473
        %v2506 = vpack.c.b16 %v2474, %v2474
        %v2507 = vpack.c.b16 %v2475, %v2475
        %v2508 = vpack.c.b16 %v2476, %v2476
        %v2509 = vpack.c.b16 %v2477, %v2477
        %v2510 = vpack.c.b16 %v2478, %v2478
        %v2511 = vpack.c.b16 %v2479, %v2479
        %v2512 = vpack.c.b16 %v2480, %v2480
        %v2513 = vpack.c.b16 %v2481, %v2481
        %v2514 = vpack.c.b16 %v2482, %v2482
        %v2515 = vpack.c.b16 %v2483, %v2483
        %v2516 = vpack.c.b16 %v2484, %v2484
        %v2517 = vpack.c.b16 %v2485, %v2485
        %2518 = vrot.lane.b32.xlu0 %v2486, 96
        %v2519 = vpop.permute.xlu0 %2518
        %2520 = vrot.lane.b32.xlu0 %v2487, 96
        %v2521 = vpop.permute.xlu0 %2520
        %2522 = vrot.lane.b32.xlu0 %v2488, 96
        %v2523 = vpop.permute.xlu0 %2522
        %2524 = vrot.lane.b32.xlu0 %v2489, 96
        %v2525 = vpop.permute.xlu0 %2524
        %2526 = vrot.lane.b32.xlu0 %v2490, 96
        %v2527 = vpop.permute.xlu0 %2526
        %2528 = vrot.lane.b32.xlu0 %v2491, 96
        %v2529 = vpop.permute.xlu0 %2528
        %2530 = vrot.lane.b32.xlu0 %v2492, 96
        %v2531 = vpop.permute.xlu0 %2530
        %2532 = vrot.lane.b32.xlu0 %v2493, 96
        %v2533 = vpop.permute.xlu0 %2532
        %2534 = vrot.lane.b32.xlu0 %v2494, 96
        %v2535 = vpop.permute.xlu0 %2534
        %2536 = vrot.lane.b32.xlu0 %v2495, 96
        %v2537 = vpop.permute.xlu0 %2536
        %2538 = vrot.lane.b32.xlu0 %v2496, 96
        %v2539 = vpop.permute.xlu0 %2538
        %2540 = vrot.lane.b32.xlu0 %v2497, 96
        %v2541 = vpop.permute.xlu0 %2540
        %2542 = vrot.lane.b32.xlu0 %v2498, 96
        %v2543 = vpop.permute.xlu0 %2542
        %2544 = vrot.lane.b32.xlu0 %v2499, 96
        %v2545 = vpop.permute.xlu0 %2544
        %2546 = vrot.lane.b32.xlu0 %v2500, 96
        %v2547 = vpop.permute.xlu0 %2546
        %2548 = vrot.lane.b32.xlu0 %v2501, 96
        %v2549 = vpop.permute.xlu0 %2548
        %2550 = vrot.lane.b32.xlu0 %v2502, 96
        %v2551 = vpop.permute.xlu0 %2550
        %2552 = vrot.lane.b32.xlu0 %v2503, 96
        %v2553 = vpop.permute.xlu0 %2552
        %2554 = vrot.lane.b32.xlu0 %v2504, 96
        %v2555 = vpop.permute.xlu0 %2554
        %2556 = vrot.lane.b32.xlu0 %v2505, 96
        %v2557 = vpop.permute.xlu0 %2556
        %2558 = vrot.lane.b32.xlu0 %v2506, 96
        %v2559 = vpop.permute.xlu0 %2558
        %2560 = vrot.lane.b32.xlu0 %v2507, 96
        %v2561 = vpop.permute.xlu0 %2560
        %2562 = vrot.lane.b32.xlu0 %v2508, 96
        %v2563 = vpop.permute.xlu0 %2562
        %2564 = vrot.lane.b32.xlu0 %v2509, 96
        %v2565 = vpop.permute.xlu0 %2564
        %2566 = vrot.lane.b32.xlu0 %v2510, 96
        %v2567 = vpop.permute.xlu0 %2566
        %2568 = vrot.lane.b32.xlu0 %v2511, 96
        %v2569 = vpop.permute.xlu0 %2568
        %2570 = vrot.lane.b32.xlu0 %v2512, 96
        %v2571 = vpop.permute.xlu0 %2570
        %2572 = vrot.lane.b32.xlu0 %v2513, 96
        %v2573 = vpop.permute.xlu0 %2572
        %2574 = vrot.lane.b32.xlu0 %v2514, 96
        %v2575 = vpop.permute.xlu0 %2574
        %2576 = vrot.lane.b32.xlu0 %v2515, 96
        %v2577 = vpop.permute.xlu0 %2576
        %2578 = vrot.lane.b32.xlu0 %v2516, 96
        %v2579 = vpop.permute.xlu0 %2578
        %2580 = vrot.lane.b32.xlu0 %v2517, 96
        %v2581 = vpop.permute.xlu0 %2580
        %2614 = vst.msk [vmem:[#allocation3 + $0x4] sm:$0xf] %vm243, %v2519
        %2615 = vst.msk [vmem:[#allocation3 + $0x10] sm:$0xf] %vm243, %v2521
        %2616 = vst.msk [vmem:[#allocation3 + $0x1c] sm:$0xf] %vm243, %v2523
        %2617 = vst.msk [vmem:[#allocation3 + $0x28] sm:$0xf] %vm243, %v2525
        %2618 = vst.msk [vmem:[#allocation3 + $0x34] sm:$0xf] %vm243, %v2527
        %2619 = vst.msk [vmem:[#allocation3 + $0x40] sm:$0xf] %vm243, %v2529
        %2620 = vst.msk [vmem:[#allocation3 + $0x4c] sm:$0xf] %vm243, %v2531
        %2621 = vst.msk [vmem:[#allocation3 + $0x58] sm:$0xf] %vm243, %v2533
        %2622 = vst.msk [vmem:[#allocation3 + $0x64] sm:$0xf] %vm243, %v2535
        %2623 = vst.msk [vmem:[#allocation3 + $0x70] sm:$0xf] %vm243, %v2537
        %2624 = vst.msk [vmem:[#allocation3 + $0x7c] sm:$0xf] %vm243, %v2539
        %2625 = vst.msk [vmem:[#allocation3 + $0x88] sm:$0xf] %vm243, %v2541
        %2626 = vst.msk [vmem:[#allocation3 + $0x94] sm:$0xf] %vm243, %v2543
        %2627 = vst.msk [vmem:[#allocation3 + $0xa0] sm:$0xf] %vm243, %v2545
        %2628 = vst.msk [vmem:[#allocation3 + $0xac] sm:$0xf] %vm243, %v2547
        %2629 = vst.msk [vmem:[#allocation3 + $0xb8] sm:$0xf] %vm243, %v2549
        %2630 = vst.msk [vmem:[#allocation3 + $0xc4] sm:$0xf] %vm243, %v2551
        %2631 = vst.msk [vmem:[#allocation3 + $0xd0] sm:$0xf] %vm243, %v2553
        %2632 = vst.msk [vmem:[#allocation3 + $0xdc] sm:$0xf] %vm243, %v2555
        %2633 = vst.msk [vmem:[#allocation3 + $0xe8] sm:$0xf] %vm243, %v2557
        %2634 = vst.msk [vmem:[#allocation3 + $0xf4] sm:$0xf] %vm243, %v2559
        %2635 = vst.msk [vmem:[#allocation3 + $0x100] sm:$0xf] %vm243, %v2561
        %2636 = vst.msk [vmem:[#allocation3 + $0x10c] sm:$0xf] %vm243, %v2563
        %2637 = vst.msk [vmem:[#allocation3 + $0x118] sm:$0xf] %vm243, %v2565
        %2638 = vst.msk [vmem:[#allocation3 + $0x124] sm:$0xf] %vm243, %v2567
        %2639 = vst.msk [vmem:[#allocation3 + $0x130] sm:$0xf] %vm243, %v2569
        %2640 = vst.msk [vmem:[#allocation3 + $0x13c] sm:$0xf] %vm243, %v2571
        %2641 = vst.msk [vmem:[#allocation3 + $0x148] sm:$0xf] %vm243, %v2573
        %2642 = vst.msk [vmem:[#allocation3 + $0x154] sm:$0xf] %vm243, %v2575
        %2643 = vst.msk [vmem:[#allocation3 + $0x160] sm:$0xf] %vm243, %v2577
        %2644 = vst.msk [vmem:[#allocation3 + $0x16c] sm:$0xf] %vm243, %v2579
        %2645 = vst.msk [vmem:[#allocation3 + $0x178] sm:$0xf] %vm243, %v2581
        %v2646 = vld [vmem:[#allocation2 + $0x29] sm:$0xff]
        %v2647 = vld [vmem:[#allocation2 + $0x31] sm:$0xff]
        %v2648 = vld [vmem:[#allocation2 + $0x39] sm:$0xff]
        %v2649 = vld [vmem:[#allocation2 + $0x41] sm:$0xff]
        %v2650 = vld [vmem:[#allocation2 + $0x49] sm:$0xff]
        %v2651 = vld [vmem:[#allocation2 + $0x51] sm:$0xff]
        %v2652 = vld [vmem:[#allocation2 + $0x59] sm:$0xff]
        %v2653 = vld [vmem:[#allocation2 + $0x61] sm:$0xff]
        %v2654 = vld [vmem:[#allocation2 + $0x69] sm:$0xff]
        %v2655 = vld [vmem:[#allocation2 + $0x71] sm:$0xff]
        %v2656 = vld [vmem:[#allocation2 + $0x79] sm:$0xff]
        %v2657 = vld [vmem:[#allocation2 + $0x81] sm:$0xff]
        %v2658 = vld [vmem:[#allocation2 + $0x89] sm:$0xff]
        %v2659 = vld [vmem:[#allocation2 + $0x91] sm:$0xff]
        %v2660 = vld [vmem:[#allocation2 + $0x99] sm:$0xff]
        %v2661 = vld [vmem:[#allocation2 + $0xa1] sm:$0xff]
        %v2662 = vld [vmem:[#allocation2 + $0xa9] sm:$0xff]
        %v2663 = vld [vmem:[#allocation2 + $0xb1] sm:$0xff]
        %v2664 = vld [vmem:[#allocation2 + $0xb9] sm:$0xff]
        %v2665 = vld [vmem:[#allocation2 + $0xc1] sm:$0xff]
        %v2666 = vld [vmem:[#allocation2 + $0xc9] sm:$0xff]
        %v2667 = vld [vmem:[#allocation2 + $0xd1] sm:$0xff]
        %v2668 = vld [vmem:[#allocation2 + $0xd9] sm:$0xff]
        %v2669 = vld [vmem:[#allocation2 + $0xe1] sm:$0xff]
        %v2670 = vld [vmem:[#allocation2 + $0xe9] sm:$0xff]
        %v2671 = vld [vmem:[#allocation2 + $0xf1] sm:$0xff]
        %v2672 = vld [vmem:[#allocation2 + $0xf9] sm:$0xff]
        %v2673 = vld [vmem:[#allocation2 + $0x101] sm:$0xff]
        %v2674 = vld [vmem:[#allocation2 + $0x109] sm:$0xff]
        %v2675 = vld [vmem:[#allocation2 + $0x111] sm:$0xff]
        %v2676 = vld [vmem:[#allocation2 + $0x119] sm:$0xff]
        %v2677 = vld [vmem:[#allocation2 + $0x121] sm:$0xff]
        %v2678 = vsel %vm373, %v2646, 0.0
        %v2679 = vsel %vm374, %v2647, 0.0
        %v2680 = vsel %vm375, %v2648, 0.0
        %v2681 = vsel %vm376, %v2649, 0.0
        %v2682 = vsel %vm377, %v2650, 0.0
        %v2683 = vsel %vm378, %v2651, 0.0
        %v2684 = vsel %vm379, %v2652, 0.0
        %v2685 = vsel %vm380, %v2653, 0.0
        %v2686 = vsel %vm381, %v2654, 0.0
        %v2687 = vsel %vm382, %v2655, 0.0
        %v2688 = vsel %vm383, %v2656, 0.0
        %v2689 = vsel %vm384, %v2657, 0.0
        %v2690 = vsel %vm385, %v2658, 0.0
        %v2691 = vsel %vm386, %v2659, 0.0
        %v2692 = vsel %vm387, %v2660, 0.0
        %v2693 = vsel %vm388, %v2661, 0.0
        %v2694 = vsel %vm389, %v2662, 0.0
        %v2695 = vsel %vm390, %v2663, 0.0
        %v2696 = vsel %vm391, %v2664, 0.0
        %v2697 = vsel %vm392, %v2665, 0.0
        %v2698 = vsel %vm393, %v2666, 0.0
        %v2699 = vsel %vm394, %v2667, 0.0
        %v2700 = vsel %vm395, %v2668, 0.0
        %v2701 = vsel %vm396, %v2669, 0.0
        %v2702 = vsel %vm397, %v2670, 0.0
        %v2703 = vsel %vm398, %v2671, 0.0
        %v2704 = vsel %vm399, %v2672, 0.0
        %v2705 = vsel %vm400, %v2673, 0.0
        %v2706 = vsel %vm401, %v2674, 0.0
        %v2707 = vsel %vm402, %v2675, 0.0
        %v2708 = vsel %vm403, %v2676, 0.0
        %v2709 = vsel %vm404, %v2677, 0.0
        %v2710 = vpack.c.bf16 %v2679, %v2678
        %v2711 = vpack.c.bf16 %v2681, %v2680
        %v2712 = vpack.c.bf16 %v2683, %v2682
        %v2713 = vpack.c.bf16 %v2685, %v2684
        %v2714 = vpack.c.bf16 %v2687, %v2686
        %v2715 = vpack.c.bf16 %v2689, %v2688
        %v2716 = vpack.c.bf16 %v2691, %v2690
        %v2717 = vpack.c.bf16 %v2693, %v2692
        %v2718 = vpack.c.bf16 %v2695, %v2694
        %v2719 = vpack.c.bf16 %v2697, %v2696
        %v2720 = vpack.c.bf16 %v2699, %v2698
        %v2721 = vpack.c.bf16 %v2701, %v2700
        %v2722 = vpack.c.bf16 %v2703, %v2702
        %v2723 = vpack.c.bf16 %v2705, %v2704
        %v2724 = vpack.c.bf16 %v2707, %v2706
        %v2725 = vpack.c.bf16 %v2709, %v2708
        %v2742 = vunpack.c.l.b16 %v2710
        %v2743 = vunpack.c.h.b16 %v2710
        %v2744 = vunpack.c.l.b16 %v2711
        %v2745 = vunpack.c.h.b16 %v2711
        %v2746 = vunpack.c.l.b16 %v2712
        %v2747 = vunpack.c.h.b16 %v2712
        %v2748 = vunpack.c.l.b16 %v2713
        %v2749 = vunpack.c.h.b16 %v2713
        %v2750 = vunpack.c.l.b16 %v2714
        %v2751 = vunpack.c.h.b16 %v2714
        %v2752 = vunpack.c.l.b16 %v2715
        %v2753 = vunpack.c.h.b16 %v2715
        %v2754 = vunpack.c.l.b16 %v2716
        %v2755 = vunpack.c.h.b16 %v2716
        %v2756 = vunpack.c.l.b16 %v2717
        %v2757 = vunpack.c.h.b16 %v2717
        %v2758 = vunpack.c.l.b16 %v2718
        %v2759 = vunpack.c.h.b16 %v2718
        %v2760 = vunpack.c.l.b16 %v2719
        %v2761 = vunpack.c.h.b16 %v2719
        %v2762 = vunpack.c.l.b16 %v2720
        %v2763 = vunpack.c.h.b16 %v2720
        %v2764 = vunpack.c.l.b16 %v2721
        %v2765 = vunpack.c.h.b16 %v2721
        %v2766 = vunpack.c.l.b16 %v2722
        %v2767 = vunpack.c.h.b16 %v2722
        %v2768 = vunpack.c.l.b16 %v2723
        %v2769 = vunpack.c.h.b16 %v2723
        %v2770 = vunpack.c.l.b16 %v2724
        %v2771 = vunpack.c.h.b16 %v2724
        %v2772 = vunpack.c.l.b16 %v2725
        %v2773 = vunpack.c.h.b16 %v2725
        %v2774 = vpack.c.b16 %v2742, %v2742
        %v2775 = vpack.c.b16 %v2743, %v2743
        %v2776 = vpack.c.b16 %v2744, %v2744
        %v2777 = vpack.c.b16 %v2745, %v2745
        %v2778 = vpack.c.b16 %v2746, %v2746
        %v2779 = vpack.c.b16 %v2747, %v2747
        %v2780 = vpack.c.b16 %v2748, %v2748
        %v2781 = vpack.c.b16 %v2749, %v2749
        %v2782 = vpack.c.b16 %v2750, %v2750
        %v2783 = vpack.c.b16 %v2751, %v2751
        %v2784 = vpack.c.b16 %v2752, %v2752
        %v2785 = vpack.c.b16 %v2753, %v2753
        %v2786 = vpack.c.b16 %v2754, %v2754
        %v2787 = vpack.c.b16 %v2755, %v2755
        %v2788 = vpack.c.b16 %v2756, %v2756
        %v2789 = vpack.c.b16 %v2757, %v2757
        %v2790 = vpack.c.b16 %v2758, %v2758
        %v2791 = vpack.c.b16 %v2759, %v2759
        %v2792 = vpack.c.b16 %v2760, %v2760
        %v2793 = vpack.c.b16 %v2761, %v2761
        %v2794 = vpack.c.b16 %v2762, %v2762
        %v2795 = vpack.c.b16 %v2763, %v2763
        %v2796 = vpack.c.b16 %v2764, %v2764
        %v2797 = vpack.c.b16 %v2765, %v2765
        %v2798 = vpack.c.b16 %v2766, %v2766
        %v2799 = vpack.c.b16 %v2767, %v2767
        %v2800 = vpack.c.b16 %v2768, %v2768
        %v2801 = vpack.c.b16 %v2769, %v2769
        %v2802 = vpack.c.b16 %v2770, %v2770
        %v2803 = vpack.c.b16 %v2771, %v2771
        %v2804 = vpack.c.b16 %v2772, %v2772
        %v2805 = vpack.c.b16 %v2773, %v2773
        %2838 = vst.msk [vmem:[#allocation3 + $0x8] sm:$0xf] %vm757, %v2774
        %2839 = vst.msk [vmem:[#allocation3 + $0x14] sm:$0xf] %vm757, %v2775
        %2840 = vst.msk [vmem:[#allocation3 + $0x20] sm:$0xf] %vm757, %v2776
        %2841 = vst.msk [vmem:[#allocation3 + $0x2c] sm:$0xf] %vm757, %v2777
        %2842 = vst.msk [vmem:[#allocation3 + $0x38] sm:$0xf] %vm757, %v2778
        %2843 = vst.msk [vmem:[#allocation3 + $0x44] sm:$0xf] %vm757, %v2779
        %2844 = vst.msk [vmem:[#allocation3 + $0x50] sm:$0xf] %vm757, %v2780
        %2845 = vst.msk [vmem:[#allocation3 + $0x5c] sm:$0xf] %vm757, %v2781
        %2846 = vst.msk [vmem:[#allocation3 + $0x68] sm:$0xf] %vm757, %v2782
        %2847 = vst.msk [vmem:[#allocation3 + $0x74] sm:$0xf] %vm757, %v2783
        %2848 = vst.msk [vmem:[#allocation3 + $0x80] sm:$0xf] %vm757, %v2784
        %2849 = vst.msk [vmem:[#allocation3 + $0x8c] sm:$0xf] %vm757, %v2785
        %2850 = vst.msk [vmem:[#allocation3 + $0x98] sm:$0xf] %vm757, %v2786
        %2851 = vst.msk [vmem:[#allocation3 + $0xa4] sm:$0xf] %vm757, %v2787
        %2852 = vst.msk [vmem:[#allocation3 + $0xb0] sm:$0xf] %vm757, %v2788
        %2853 = vst.msk [vmem:[#allocation3 + $0xbc] sm:$0xf] %vm757, %v2789
        %2854 = vst.msk [vmem:[#allocation3 + $0xc8] sm:$0xf] %vm757, %v2790
        %2855 = vst.msk [vmem:[#allocation3 + $0xd4] sm:$0xf] %vm757, %v2791
        %2856 = vst.msk [vmem:[#allocation3 + $0xe0] sm:$0xf] %vm757, %v2792
        %2857 = vst.msk [vmem:[#allocation3 + $0xec] sm:$0xf] %vm757, %v2793
        %2858 = vst.msk [vmem:[#allocation3 + $0xf8] sm:$0xf] %vm757, %v2794
        %2859 = vst.msk [vmem:[#allocation3 + $0x104] sm:$0xf] %vm757, %v2795
        %2860 = vst.msk [vmem:[#allocation3 + $0x110] sm:$0xf] %vm757, %v2796
        %2861 = vst.msk [vmem:[#allocation3 + $0x11c] sm:$0xf] %vm757, %v2797
        %2862 = vst.msk [vmem:[#allocation3 + $0x128] sm:$0xf] %vm757, %v2798
        %2863 = vst.msk [vmem:[#allocation3 + $0x134] sm:$0xf] %vm757, %v2799
        %2864 = vst.msk [vmem:[#allocation3 + $0x140] sm:$0xf] %vm757, %v2800
        %2865 = vst.msk [vmem:[#allocation3 + $0x14c] sm:$0xf] %vm757, %v2801
        %2866 = vst.msk [vmem:[#allocation3 + $0x158] sm:$0xf] %vm757, %v2802
        %2867 = vst.msk [vmem:[#allocation3 + $0x164] sm:$0xf] %vm757, %v2803
        %2868 = vst.msk [vmem:[#allocation3 + $0x170] sm:$0xf] %vm757, %v2804
        %2869 = vst.msk [vmem:[#allocation3 + $0x17c] sm:$0xf] %vm757, %v2805
        %v2870 = vld [vmem:[#allocation3] sm:$0xff]
        %v2871 = vld [vmem:[#allocation3 + $0x8] sm:$0xf]
        %v2872 = vld [vmem:[#allocation3 + $0xc] sm:$0xff]
        %v2873 = vld [vmem:[#allocation3 + $0x14] sm:$0xf]
        %v2874 = vld [vmem:[#allocation3 + $0x18] sm:$0xff]
        %v2875 = vld [vmem:[#allocation3 + $0x20] sm:$0xf]
        %v2876 = vld [vmem:[#allocation3 + $0x24] sm:$0xff]
        %v2877 = vld [vmem:[#allocation3 + $0x2c] sm:$0xf]
        %v2878 = vld [vmem:[#allocation3 + $0x30] sm:$0xff]
        %v2879 = vld [vmem:[#allocation3 + $0x38] sm:$0xf]
        %v2880 = vld [vmem:[#allocation3 + $0x3c] sm:$0xff]
        %v2881 = vld [vmem:[#allocation3 + $0x44] sm:$0xf]
        %v2882 = vld [vmem:[#allocation3 + $0x48] sm:$0xff]
        %v2883 = vld [vmem:[#allocation3 + $0x50] sm:$0xf]
        %v2884 = vld [vmem:[#allocation3 + $0x54] sm:$0xff]
        %v2885 = vld [vmem:[#allocation3 + $0x5c] sm:$0xf]
        %v2886 = vld [vmem:[#allocation3 + $0x60] sm:$0xff]
        %v2887 = vld [vmem:[#allocation3 + $0x68] sm:$0xf]
        %v2888 = vld [vmem:[#allocation3 + $0x6c] sm:$0xff]
        %v2889 = vld [vmem:[#allocation3 + $0x74] sm:$0xf]
        %v2890 = vld [vmem:[#allocation3 + $0x78] sm:$0xff]
        %v2891 = vld [vmem:[#allocation3 + $0x80] sm:$0xf]
        %v2892 = vld [vmem:[#allocation3 + $0x84] sm:$0xff]
        %v2893 = vld [vmem:[#allocation3 + $0x8c] sm:$0xf]
        %v2894 = vld [vmem:[#allocation3 + $0x90] sm:$0xff]
        %v2895 = vld [vmem:[#allocation3 + $0x98] sm:$0xf]
        %v2896 = vld [vmem:[#allocation3 + $0x9c] sm:$0xff]
        %v2897 = vld [vmem:[#allocation3 + $0xa4] sm:$0xf]
        %v2898 = vld [vmem:[#allocation3 + $0xa8] sm:$0xff]
        %v2899 = vld [vmem:[#allocation3 + $0xb0] sm:$0xf]
        %v2900 = vld [vmem:[#allocation3 + $0xb4] sm:$0xff]
        %v2901 = vld [vmem:[#allocation3 + $0xbc] sm:$0xf]
        %v2902 = vld [vmem:[#allocation3 + $0xc0] sm:$0xff]
        %v2903 = vld [vmem:[#allocation3 + $0xc8] sm:$0xf]
        %v2904 = vld [vmem:[#allocation3 + $0xcc] sm:$0xff]
        %v2905 = vld [vmem:[#allocation3 + $0xd4] sm:$0xf]
        %v2906 = vld [vmem:[#allocation3 + $0xd8] sm:$0xff]
        %v2907 = vld [vmem:[#allocation3 + $0xe0] sm:$0xf]
        %v2908 = vld [vmem:[#allocation3 + $0xe4] sm:$0xff]
        %v2909 = vld [vmem:[#allocation3 + $0xec] sm:$0xf]
        %v2910 = vld [vmem:[#allocation3 + $0xf0] sm:$0xff]
        %v2911 = vld [vmem:[#allocation3 + $0xf8] sm:$0xf]
        %v2912 = vld [vmem:[#allocation3 + $0xfc] sm:$0xff]
        %v2913 = vld [vmem:[#allocation3 + $0x104] sm:$0xf]
        %v2914 = vld [vmem:[#allocation3 + $0x108] sm:$0xff]
        %v2915 = vld [vmem:[#allocation3 + $0x110] sm:$0xf]
        %v2916 = vld [vmem:[#allocation3 + $0x114] sm:$0xff]
        %v2917 = vld [vmem:[#allocation3 + $0x11c] sm:$0xf]
        %v2918 = vld [vmem:[#allocation3 + $0x120] sm:$0xff]
        %v2919 = vld [vmem:[#allocation3 + $0x128] sm:$0xf]
        %v2920 = vld [vmem:[#allocation3 + $0x12c] sm:$0xff]
        %v2921 = vld [vmem:[#allocation3 + $0x134] sm:$0xf]
        %v2922 = vld [vmem:[#allocation3 + $0x138] sm:$0xff]
        %v2923 = vld [vmem:[#allocation3 + $0x140] sm:$0xf]
        %v2924 = vld [vmem:[#allocation3 + $0x144] sm:$0xff]
        %v2925 = vld [vmem:[#allocation3 + $0x14c] sm:$0xf]
        %v2926 = vld [vmem:[#allocation3 + $0x150] sm:$0xff]
        %v2927 = vld [vmem:[#allocation3 + $0x158] sm:$0xf]
        %v2928 = vld [vmem:[#allocation3 + $0x15c] sm:$0xff]
        %v2929 = vld [vmem:[#allocation3 + $0x164] sm:$0xf]
        %v2930 = vld [vmem:[#allocation3 + $0x168] sm:$0xff]
        %v2931 = vld [vmem:[#allocation3 + $0x170] sm:$0xf]
        %v2932 = vld [vmem:[#allocation3 + $0x174] sm:$0xff]
        %v2933 = vld [vmem:[#allocation3 + $0x17c] sm:$0xf]
        %v2934 = vld [vmem:[%s1] sm:$0xf]
        %v2935 = vld [vmem:[%s1 + $0x4] sm:$0xf]
        %v2936 = vld [vmem:[%s1 + $0x8] sm:$0xf]
        %v2937 = vld [vmem:[%s1 + $0xc] sm:$0xf]
        %v2938 = vld [vmem:[%s1 + $0x10] sm:$0xf]
        %v2939 = vld [vmem:[%s1 + $0x14] sm:$0xf]
        %v2940 = vld [vmem:[%s1 + $0x18] sm:$0xf]
        %v2941 = vld [vmem:[%s1 + $0x1c] sm:$0xf]
        %v2942 = vld [vmem:[%s1 + $0x20] sm:$0xf]
        %v2943 = vld [vmem:[%s1 + $0x24] sm:$0xf]
        %v2944 = vld [vmem:[%s1 + $0x28] sm:$0xf]
        %v2945 = vld [vmem:[%s1 + $0x2c] sm:$0xf]
        %v2946 = vld [vmem:[%s1 + $0x30] sm:$0xf]
        %v2947 = vld [vmem:[%s1 + $0x34] sm:$0xf]
        %v2948 = vld [vmem:[%s1 + $0x38] sm:$0xf]
        %v2949 = vld [vmem:[%s1 + $0x3c] sm:$0xf]
        %v2950 = vld [vmem:[%s1 + $0x40] sm:$0xf]
        %v2951 = vld [vmem:[%s1 + $0x44] sm:$0xf]
        %v2952 = vld [vmem:[%s1 + $0x48] sm:$0xf]
        %v2953 = vld [vmem:[%s1 + $0x4c] sm:$0xf]
        %v2954 = vld [vmem:[%s1 + $0x50] sm:$0xf]
        %v2955 = vld [vmem:[%s1 + $0x54] sm:$0xf]
        %v2956 = vld [vmem:[%s1 + $0x58] sm:$0xf]
        %v2957 = vld [vmem:[%s1 + $0x5c] sm:$0xf]
        %v2958 = vld [vmem:[%s1 + $0x60] sm:$0xf]
        %v2959 = vld [vmem:[%s1 + $0x64] sm:$0xf]
        %v2960 = vld [vmem:[%s1 + $0x68] sm:$0xf]
        %v2961 = vld [vmem:[%s1 + $0x6c] sm:$0xf]
        %v2962 = vld [vmem:[%s1 + $0x70] sm:$0xf]
        %v2963 = vld [vmem:[%s1 + $0x74] sm:$0xf]
        %v2964 = vld [vmem:[%s1 + $0x78] sm:$0xf]
        %v2965 = vld [vmem:[%s1 + $0x7c] sm:$0xf]
        %v2966 = vld [vmem:[%s1 + $0x80] sm:$0xf]
        %v2967 = vld [vmem:[%s1 + $0x84] sm:$0xf]
        %v2968 = vld [vmem:[%s1 + $0x88] sm:$0xf]
        %v2969 = vld [vmem:[%s1 + $0x8c] sm:$0xf]
        %v2970 = vld [vmem:[%s1 + $0x90] sm:$0xf]
        %v2971 = vld [vmem:[%s1 + $0x94] sm:$0xf]
        %v2972 = vld [vmem:[%s1 + $0x98] sm:$0xf]
        %v2973 = vld [vmem:[%s1 + $0x9c] sm:$0xf]
        %v2974 = vld [vmem:[%s1 + $0xa0] sm:$0xf]
        %v2975 = vld [vmem:[%s1 + $0xa4] sm:$0xf]
        %v2976 = vld [vmem:[%s1 + $0xa8] sm:$0xf]
        %v2977 = vld [vmem:[%s1 + $0xac] sm:$0xf]
        %v2978 = vld [vmem:[%s1 + $0xb0] sm:$0xf]
        %v2979 = vld [vmem:[%s1 + $0xb4] sm:$0xf]
        %v2980 = vld [vmem:[%s1 + $0xb8] sm:$0xf]
        %v2981 = vld [vmem:[%s1 + $0xbc] sm:$0xf]
        %v3046 = vunpack.c.l.b16 %v2870
        %v3047 = vunpack.c.h.b16 %v2870
        %v3048 = vunpack.c.l.b16 %v2871
        %v3049 = vunpack.c.l.b16 %v2872
        %v3050 = vunpack.c.h.b16 %v2872
        %v3051 = vunpack.c.l.b16 %v2873
        %v3052 = vunpack.c.l.b16 %v2874
        %v3053 = vunpack.c.h.b16 %v2874
        %v3054 = vunpack.c.l.b16 %v2875
        %v3055 = vunpack.c.l.b16 %v2876
        %v3056 = vunpack.c.h.b16 %v2876
        %v3057 = vunpack.c.l.b16 %v2877
        %v3058 = vunpack.c.l.b16 %v2878
        %v3059 = vunpack.c.h.b16 %v2878
        %v3060 = vunpack.c.l.b16 %v2879
        %v3061 = vunpack.c.l.b16 %v2880
        %v3062 = vunpack.c.h.b16 %v2880
        %v3063 = vunpack.c.l.b16 %v2881
        %v3064 = vunpack.c.l.b16 %v2882
        %v3065 = vunpack.c.h.b16 %v2882
        %v3066 = vunpack.c.l.b16 %v2883
        %v3067 = vunpack.c.l.b16 %v2884
        %v3068 = vunpack.c.h.b16 %v2884
        %v3069 = vunpack.c.l.b16 %v2885
        %v3070 = vunpack.c.l.b16 %v2886
        %v3071 = vunpack.c.h.b16 %v2886
        %v3072 = vunpack.c.l.b16 %v2887
        %v3073 = vunpack.c.l.b16 %v2888
        %v3074 = vunpack.c.h.b16 %v2888
        %v3075 = vunpack.c.l.b16 %v2889
        %v3076 = vunpack.c.l.b16 %v2890
        %v3077 = vunpack.c.h.b16 %v2890
        %v3078 = vunpack.c.l.b16 %v2891
        %v3079 = vunpack.c.l.b16 %v2892
        %v3080 = vunpack.c.h.b16 %v2892
        %v3081 = vunpack.c.l.b16 %v2893
        %v3082 = vunpack.c.l.b16 %v2894
        %v3083 = vunpack.c.h.b16 %v2894
        %v3084 = vunpack.c.l.b16 %v2895
        %v3085 = vunpack.c.l.b16 %v2896
        %v3086 = vunpack.c.h.b16 %v2896
        %v3087 = vunpack.c.l.b16 %v2897
        %v3088 = vunpack.c.l.b16 %v2898
        %v3089 = vunpack.c.h.b16 %v2898
        %v3090 = vunpack.c.l.b16 %v2899
        %v3091 = vunpack.c.l.b16 %v2900
        %v3092 = vunpack.c.h.b16 %v2900
        %v3093 = vunpack.c.l.b16 %v2901
        %v3094 = vunpack.c.l.b16 %v2902
        %v3095 = vunpack.c.h.b16 %v2902
        %v3096 = vunpack.c.l.b16 %v2903
        %v3097 = vunpack.c.l.b16 %v2904
        %v3098 = vunpack.c.h.b16 %v2904
        %v3099 = vunpack.c.l.b16 %v2905
        %v3100 = vunpack.c.l.b16 %v2906
        %v3101 = vunpack.c.h.b16 %v2906
        %v3102 = vunpack.c.l.b16 %v2907
        %v3103 = vunpack.c.l.b16 %v2908
        %v3104 = vunpack.c.h.b16 %v2908
        %v3105 = vunpack.c.l.b16 %v2909
        %v3106 = vunpack.c.l.b16 %v2910
        %v3107 = vunpack.c.h.b16 %v2910
        %v3108 = vunpack.c.l.b16 %v2911
        %v3109 = vunpack.c.l.b16 %v2912
        %v3110 = vunpack.c.h.b16 %v2912
        %v3111 = vunpack.c.l.b16 %v2913
        %v3112 = vunpack.c.l.b16 %v2914
        %v3113 = vunpack.c.h.b16 %v2914
        %v3114 = vunpack.c.l.b16 %v2915
        %v3115 = vunpack.c.l.b16 %v2916
        %v3116 = vunpack.c.h.b16 %v2916
        %v3117 = vunpack.c.l.b16 %v2917
        %v3118 = vunpack.c.l.b16 %v2918
        %v3119 = vunpack.c.h.b16 %v2918
        %v3120 = vunpack.c.l.b16 %v2919
        %v3121 = vunpack.c.l.b16 %v2920
        %v3122 = vunpack.c.h.b16 %v2920
        %v3123 = vunpack.c.l.b16 %v2921
        %v3124 = vunpack.c.l.b16 %v2922
        %v3125 = vunpack.c.h.b16 %v2922
        %v3126 = vunpack.c.l.b16 %v2923
        %v3127 = vunpack.c.l.b16 %v2924
        %v3128 = vunpack.c.h.b16 %v2924
        %v3129 = vunpack.c.l.b16 %v2925
        %v3130 = vunpack.c.l.b16 %v2926
        %v3131 = vunpack.c.h.b16 %v2926
        %v3132 = vunpack.c.l.b16 %v2927
        %v3133 = vunpack.c.l.b16 %v2928
        %v3134 = vunpack.c.h.b16 %v2928
        %v3135 = vunpack.c.l.b16 %v2929
        %v3136 = vunpack.c.l.b16 %v2930
        %v3137 = vunpack.c.h.b16 %v2930
        %v3138 = vunpack.c.l.b16 %v2931
        %v3139 = vunpack.c.l.b16 %v2932
        %v3140 = vunpack.c.h.b16 %v2932
        %v3141 = vunpack.c.l.b16 %v2933
        %v3142 = vpack.c.b16 %v3049, %v3046
        %v3143 = vpack.c.b16 %v3050, %v3047
        %v3144 = vpack.c.b16 %v3051, %v3048
        %v3145 = vpack.c.b16 %v3055, %v3052
        %v3146 = vpack.c.b16 %v3056, %v3053
        %v3147 = vpack.c.b16 %v3057, %v3054
        %v3148 = vpack.c.b16 %v3061, %v3058
        %v3149 = vpack.c.b16 %v3062, %v3059
        %v3150 = vpack.c.b16 %v3063, %v3060
        %v3151 = vpack.c.b16 %v3067, %v3064
        %v3152 = vpack.c.b16 %v3068, %v3065
        %v3153 = vpack.c.b16 %v3069, %v3066
        %v3154 = vpack.c.b16 %v3073, %v3070
        %v3155 = vpack.c.b16 %v3074, %v3071
        %v3156 = vpack.c.b16 %v3075, %v3072
        %v3157 = vpack.c.b16 %v3079, %v3076
        %v3158 = vpack.c.b16 %v3080, %v3077
        %v3159 = vpack.c.b16 %v3081, %v3078
        %v3160 = vpack.c.b16 %v3085, %v3082
        %v3161 = vpack.c.b16 %v3086, %v3083
        %v3162 = vpack.c.b16 %v3087, %v3084
        %v3163 = vpack.c.b16 %v3091, %v3088
        %v3164 = vpack.c.b16 %v3092, %v3089
        %v3165 = vpack.c.b16 %v3093, %v3090
        %v3166 = vpack.c.b16 %v3097, %v3094
        %v3167 = vpack.c.b16 %v3098, %v3095
        %v3168 = vpack.c.b16 %v3099, %v3096
        %v3169 = vpack.c.b16 %v3103, %v3100
        %v3170 = vpack.c.b16 %v3104, %v3101
        %v3171 = vpack.c.b16 %v3105, %v3102
        %v3172 = vpack.c.b16 %v3109, %v3106
        %v3173 = vpack.c.b16 %v3110, %v3107
        %v3174 = vpack.c.b16 %v3111, %v3108
        %v3175 = vpack.c.b16 %v3115, %v3112
        %v3176 = vpack.c.b16 %v3116, %v3113
        %v3177 = vpack.c.b16 %v3117, %v3114
        %v3178 = vpack.c.b16 %v3121, %v3118
        %v3179 = vpack.c.b16 %v3122, %v3119
        %v3180 = vpack.c.b16 %v3123, %v3120
        %v3181 = vpack.c.b16 %v3127, %v3124
        %v3182 = vpack.c.b16 %v3128, %v3125
        %v3183 = vpack.c.b16 %v3129, %v3126
        %v3184 = vpack.c.b16 %v3133, %v3130
        %v3185 = vpack.c.b16 %v3134, %v3131
        %v3186 = vpack.c.b16 %v3135, %v3132
        %v3187 = vpack.c.b16 %v3139, %v3136
        %v3188 = vpack.c.b16 %v3140, %v3137
        %v3189 = vpack.c.b16 %v3141, %v3138
        %v3286 = vunpack.c.l.b16 %v2934
        %v3287 = vunpack.c.l.b16 %v2935
        %v3288 = vunpack.c.l.b16 %v2936
        %v3289 = vunpack.c.l.b16 %v2937
        %v3290 = vunpack.c.l.b16 %v2938
        %v3291 = vunpack.c.l.b16 %v2939
        %v3292 = vunpack.c.l.b16 %v2940
        %v3293 = vunpack.c.l.b16 %v2941
        %v3294 = vunpack.c.l.b16 %v2942
        %v3295 = vunpack.c.l.b16 %v2943
        %v3296 = vunpack.c.l.b16 %v2944
        %v3297 = vunpack.c.l.b16 %v2945
        %v3298 = vunpack.c.l.b16 %v2946
        %v3299 = vunpack.c.l.b16 %v2947
        %v3300 = vunpack.c.l.b16 %v2948
        %v3301 = vunpack.c.l.b16 %v2949
        %v3302 = vunpack.c.l.b16 %v2950
        %v3303 = vunpack.c.l.b16 %v2951
        %v3304 = vunpack.c.l.b16 %v2952
        %v3305 = vunpack.c.l.b16 %v2953
        %v3306 = vunpack.c.l.b16 %v2954
        %v3307 = vunpack.c.l.b16 %v2955
        %v3308 = vunpack.c.l.b16 %v2956
        %v3309 = vunpack.c.l.b16 %v2957
        %v3310 = vunpack.c.l.b16 %v2958
        %v3311 = vunpack.c.l.b16 %v2959
        %v3312 = vunpack.c.l.b16 %v2960
        %v3313 = vunpack.c.l.b16 %v2961
        %v3314 = vunpack.c.l.b16 %v2962
        %v3315 = vunpack.c.l.b16 %v2963
        %v3316 = vunpack.c.l.b16 %v2964
        %v3317 = vunpack.c.l.b16 %v2965
        %v3318 = vunpack.c.l.b16 %v2966
        %v3319 = vunpack.c.l.b16 %v2967
        %v3320 = vunpack.c.l.b16 %v2968
        %v3321 = vunpack.c.l.b16 %v2969
        %v3322 = vunpack.c.l.b16 %v2970
        %v3323 = vunpack.c.l.b16 %v2971
        %v3324 = vunpack.c.l.b16 %v2972
        %v3325 = vunpack.c.l.b16 %v2973
        %v3326 = vunpack.c.l.b16 %v2974
        %v3327 = vunpack.c.l.b16 %v2975
        %v3328 = vunpack.c.l.b16 %v2976
        %v3329 = vunpack.c.l.b16 %v2977
        %v3330 = vunpack.c.l.b16 %v2978
        %v3331 = vunpack.c.l.b16 %v2979
        %v3332 = vunpack.c.l.b16 %v2980
        %v3333 = vunpack.c.l.b16 %v2981
        %v3334 = vpack.c.b16 %v3287, %v3286
        %v3335 = vpack.c.b16 %v3289, %v3288
        %v3336 = vpack.c.b16 %v3291, %v3290
        %v3337 = vpack.c.b16 %v3293, %v3292
        %v3338 = vpack.c.b16 %v3295, %v3294
        %v3339 = vpack.c.b16 %v3297, %v3296
        %v3340 = vpack.c.b16 %v3299, %v3298
        %v3341 = vpack.c.b16 %v3301, %v3300
        %v3342 = vpack.c.b16 %v3303, %v3302
        %v3343 = vpack.c.b16 %v3305, %v3304
        %v3344 = vpack.c.b16 %v3307, %v3306
        %v3345 = vpack.c.b16 %v3309, %v3308
        %v3346 = vpack.c.b16 %v3311, %v3310
        %v3347 = vpack.c.b16 %v3313, %v3312
        %v3348 = vpack.c.b16 %v3315, %v3314
        %v3349 = vpack.c.b16 %v3317, %v3316
        %v3350 = vpack.c.b16 %v3319, %v3318
        %v3351 = vpack.c.b16 %v3321, %v3320
        %v3352 = vpack.c.b16 %v3323, %v3322
        %v3353 = vpack.c.b16 %v3325, %v3324
        %v3354 = vpack.c.b16 %v3327, %v3326
        %v3355 = vpack.c.b16 %v3329, %v3328
        %v3356 = vpack.c.b16 %v3331, %v3330
        %v3357 = vpack.c.b16 %v3333, %v3332
        %3382 = vmatprep.subr.bf16.mxu0 0
        %3383 = vmatpush1.bf16.msra.mxu0 %v3341
        %3384 = vmatprep.subr.bf16.mxu0 0
        %3385 = vmatpush1.bf16.msra.mxu0 %v3340
        %3386 = vmatprep.subr.bf16.mxu0 0
        %3387 = vmatpush1.bf16.msra.mxu0 %v3339
        %3388 = vmatprep.subr.bf16.mxu0 0
        %3389 = vmatpush1.bf16.msra.mxu0 %v3338
        %3390 = vmatprep.subr.bf16.mxu0 0
        %3391 = vmatpush1.bf16.msra.mxu0 %v3337
        %3392 = vmatprep.subr.bf16.mxu0 0
        %3393 = vmatpush1.bf16.msra.mxu0 %v3336
        %3394 = vmatprep.subr.bf16.mxu0 0
        %3395 = vmatpush1.bf16.msra.mxu0 %v3335
        %3396 = vmatprep.subr.bf16.mxu0 0
        %3397 = vmatpush1.bf16.msra.mxu0 %v3334
        %3398 = vmatprep.subr.bf16.mxu0 0
        %3399 = vmatpush2.bf16.msra.mxu0 %v3349
        %3400 = vmatprep.subr.bf16.mxu0 0
        %3401 = vmatpush2.bf16.msra.mxu0 %v3348
        %3402 = vmatprep.subr.bf16.mxu0 0
        %3403 = vmatpush2.bf16.msra.mxu0 %v3347
        %3404 = vmatprep.subr.bf16.mxu0 0
        %3405 = vmatpush2.bf16.msra.mxu0 %v3346
        %3406 = vmatprep.subr.bf16.mxu0 0
        %3407 = vmatpush2.bf16.msra.mxu0 %v3345
        %3408 = vmatprep.subr.bf16.mxu0 0
        %3409 = vmatpush2.bf16.msra.mxu0 %v3344
        %3410 = vmatprep.subr.bf16.mxu0 0
        %3411 = vmatpush2.bf16.msra.mxu0 %v3343
        %3412 = vmatprep.subr.bf16.mxu0 0
        %3413 = vmatpush2.bf16.msra.mxu0 %v3342
        %3414 = vmatprep.mubr.bf16.mxu0 %v3143
        %3415 = vmatmul.mubr.bf16.gmra.mxu0 %v3142
        %v3416 = vpop.f32.mrf.mxu0
        %v3417 = vadd.f32 0.0, %v3416
        %v3418 = vpop.f32.mrf.mxu0
        %v3419 = vpop.f32.mrf.mxu0
        %v3420 = vadd.f32 0.0, %v3419
        %v3421 = vpop.f32.mrf.mxu0
        %3422 = vmatprep.mubr.bf16.mxu0 %v3146
        %3423 = vmatmul.mubr.bf16.gmra.mxu0 %v3145
        %v3424 = vpop.f32.mrf.mxu0
        %v3425 = vadd.f32 0.0, %v3424
        %v3426 = vpop.f32.mrf.mxu0
        %v3427 = vpop.f32.mrf.mxu0
        %v3428 = vadd.f32 0.0, %v3427
        %v3429 = vpop.f32.mrf.mxu0
        %3430 = vmatprep.mubr.bf16.mxu0 %v3149
        %3431 = vmatmul.mubr.bf16.gmra.mxu0 %v3148
        %v3432 = vpop.f32.mrf.mxu0
        %v3433 = vadd.f32 0.0, %v3432
        %v3434 = vpop.f32.mrf.mxu0
        %v3435 = vpop.f32.mrf.mxu0
        %v3436 = vadd.f32 0.0, %v3435
        %v3437 = vpop.f32.mrf.mxu0
        %3438 = vmatprep.mubr.bf16.mxu0 %v3152
        %3439 = vmatmul.mubr.bf16.gmra.mxu0 %v3151
        %v3440 = vpop.f32.mrf.mxu0
        %v3441 = vadd.f32 0.0, %v3440
        %v3442 = vpop.f32.mrf.mxu0
        %v3443 = vpop.f32.mrf.mxu0
        %v3444 = vadd.f32 0.0, %v3443
        %v3445 = vpop.f32.mrf.mxu0
        %3446 = vmatprep.mubr.bf16.mxu0 %v3155
        %3447 = vmatmul.mubr.bf16.gmra.mxu0 %v3154
        %v3448 = vpop.f32.mrf.mxu0
        %v3449 = vadd.f32 0.0, %v3448
        %v3450 = vpop.f32.mrf.mxu0
        %v3451 = vpop.f32.mrf.mxu0
        %v3452 = vadd.f32 0.0, %v3451
        %v3453 = vpop.f32.mrf.mxu0
        %3454 = vmatprep.mubr.bf16.mxu0 %v3158
        %3455 = vmatmul.mubr.bf16.gmra.mxu0 %v3157
        %v3456 = vpop.f32.mrf.mxu0
        %v3457 = vadd.f32 0.0, %v3456
        %v3458 = vpop.f32.mrf.mxu0
        %v3459 = vpop.f32.mrf.mxu0
        %v3460 = vadd.f32 0.0, %v3459
        %v3461 = vpop.f32.mrf.mxu0
        %3462 = vmatprep.mubr.bf16.mxu0 %v3161
        %3463 = vmatmul.mubr.bf16.gmra.mxu0 %v3160
        %v3464 = vpop.f32.mrf.mxu0
        %v3465 = vadd.f32 0.0, %v3464
        %v3466 = vpop.f32.mrf.mxu0
        %v3467 = vpop.f32.mrf.mxu0
        %v3468 = vadd.f32 0.0, %v3467
        %v3469 = vpop.f32.mrf.mxu0
        %3470 = vmatprep.mubr.bf16.mxu0 %v3164
        %3471 = vmatmul.mubr.bf16.gmra.mxu0 %v3163
        %v3472 = vpop.f32.mrf.mxu0
        %v3473 = vadd.f32 0.0, %v3472
        %v3474 = vpop.f32.mrf.mxu0
        %v3475 = vpop.f32.mrf.mxu0
        %v3476 = vadd.f32 0.0, %v3475
        %v3477 = vpop.f32.mrf.mxu0
        %3478 = vmatprep.mubr.bf16.mxu0 %v3167
        %3479 = vmatmul.mubr.bf16.gmra.mxu0 %v3166
        %v3480 = vpop.f32.mrf.mxu0
        %v3481 = vadd.f32 0.0, %v3480
        %v3482 = vpop.f32.mrf.mxu0
        %v3483 = vpop.f32.mrf.mxu0
        %v3484 = vadd.f32 0.0, %v3483
        %v3485 = vpop.f32.mrf.mxu0
        %3486 = vmatprep.mubr.bf16.mxu0 %v3170
        %3487 = vmatmul.mubr.bf16.gmra.mxu0 %v3169
        %v3488 = vpop.f32.mrf.mxu0
        %v3489 = vadd.f32 0.0, %v3488
        %v3490 = vpop.f32.mrf.mxu0
        %v3491 = vpop.f32.mrf.mxu0
        %v3492 = vadd.f32 0.0, %v3491
        %v3493 = vpop.f32.mrf.mxu0
        %3494 = vmatprep.mubr.bf16.mxu0 %v3173
        %3495 = vmatmul.mubr.bf16.gmra.mxu0 %v3172
        %v3496 = vpop.f32.mrf.mxu0
        %v3497 = vadd.f32 0.0, %v3496
        %v3498 = vpop.f32.mrf.mxu0
        %v3499 = vpop.f32.mrf.mxu0
        %v3500 = vadd.f32 0.0, %v3499
        %v3501 = vpop.f32.mrf.mxu0
        %3502 = vmatprep.mubr.bf16.mxu0 %v3176
        %3503 = vmatmul.mubr.bf16.gmra.mxu0 %v3175
        %v3504 = vpop.f32.mrf.mxu0
        %v3505 = vadd.f32 0.0, %v3504
        %v3506 = vpop.f32.mrf.mxu0
        %v3507 = vpop.f32.mrf.mxu0
        %v3508 = vadd.f32 0.0, %v3507
        %v3509 = vpop.f32.mrf.mxu0
        %3510 = vmatprep.mubr.bf16.mxu0 %v3179
        %3511 = vmatmul.mubr.bf16.gmra.mxu0 %v3178
        %v3512 = vpop.f32.mrf.mxu0
        %v3513 = vadd.f32 0.0, %v3512
        %v3514 = vpop.f32.mrf.mxu0
        %v3515 = vpop.f32.mrf.mxu0
        %v3516 = vadd.f32 0.0, %v3515
        %v3517 = vpop.f32.mrf.mxu0
        %3518 = vmatprep.mubr.bf16.mxu0 %v3182
        %3519 = vmatmul.mubr.bf16.gmra.mxu0 %v3181
        %v3520 = vpop.f32.mrf.mxu0
        %v3521 = vadd.f32 0.0, %v3520
        %v3522 = vpop.f32.mrf.mxu0
        %v3523 = vpop.f32.mrf.mxu0
        %v3524 = vadd.f32 0.0, %v3523
        %v3525 = vpop.f32.mrf.mxu0
        %3526 = vmatprep.mubr.bf16.mxu0 %v3185
        %3527 = vmatmul.mubr.bf16.gmra.mxu0 %v3184
        %v3528 = vpop.f32.mrf.mxu0
        %v3529 = vadd.f32 0.0, %v3528
        %v3530 = vpop.f32.mrf.mxu0
        %v3531 = vpop.f32.mrf.mxu0
        %v3532 = vadd.f32 0.0, %v3531
        %v3533 = vpop.f32.mrf.mxu0
        %3534 = vmatprep.mubr.bf16.mxu0 %v3188
        %3535 = vmatmul.mubr.bf16.gmra.mxu0 %v3187
        %v3536 = vpop.f32.mrf.mxu0
        %v3537 = vadd.f32 0.0, %v3536
        %v3538 = vpop.f32.mrf.mxu0
        %v3539 = vpop.f32.mrf.mxu0
        %v3540 = vadd.f32 0.0, %v3539
        %v3541 = vpop.f32.mrf.mxu0
        %3542 = vdwg.mxu0
        %3543 = vmatprep.subr.bf16.mxu0 0
        %3544 = vmatpush1.bf16.msra.mxu0 %v3357
        %3545 = vmatprep.subr.bf16.mxu0 0
        %3546 = vmatpush1.bf16.msra.mxu0 %v3356
        %3547 = vmatprep.subr.bf16.mxu0 0
        %3548 = vmatpush1.bf16.msra.mxu0 %v3355
        %3549 = vmatprep.subr.bf16.mxu0 0
        %3550 = vmatpush1.bf16.msra.mxu0 %v3354
        %3551 = vmatprep.subr.bf16.mxu0 0
        %3552 = vmatpush1.bf16.msra.mxu0 %v3353
        %3553 = vmatprep.subr.bf16.mxu0 0
        %3554 = vmatpush1.bf16.msra.mxu0 %v3352
        %3555 = vmatprep.subr.bf16.mxu0 0
        %3556 = vmatpush1.bf16.msra.mxu0 %v3351
        %3557 = vmatprep.subr.bf16.mxu0 0
        %3558 = vmatpush1.bf16.msra.mxu0 %v3350
        %3559 = vmatprep.subr.bf16.mxu0 0
        %3560 = vmatpush2.bf16.msra.mxu0 0
        %3561 = vmatprep.subr.bf16.mxu0 0
        %3562 = vmatpush2.bf16.msra.mxu0 0
        %3563 = vmatprep.subr.bf16.mxu0 0
        %3564 = vmatpush2.bf16.msra.mxu0 0
        %3565 = vmatprep.subr.bf16.mxu0 0
        %3566 = vmatpush2.bf16.msra.mxu0 0
        %3567 = vmatprep.subr.bf16.mxu0 0
        %3568 = vmatpush2.bf16.msra.mxu0 0
        %3569 = vmatprep.subr.bf16.mxu0 0
        %3570 = vmatpush2.bf16.msra.mxu0 0
        %3571 = vmatprep.subr.bf16.mxu0 0
        %3572 = vmatpush2.bf16.msra.mxu0 0
        %3573 = vmatprep.subr.bf16.mxu0 0
        %3574 = vmatpush2.bf16.msra.mxu0 0
        %3575 = vmatprep.mubr.bf16.mxu0 0
        %3576 = vmatmul.mubr.bf16.gmra.mxu0 %v3144
        %v3577 = vpop.f32.mrf.mxu0
        %v3578 = vadd.f32 %v3417, %v3577
        %v3579 = vpop.f32.mrf.mxu0
        %v3580 = vpop.f32.mrf.mxu0
        %v3581 = vadd.f32 %v3420, %v3580
        %v3582 = vpop.f32.mrf.mxu0
        %3583 = vmatprep.mubr.bf16.mxu0 0
        %3584 = vmatmul.mubr.bf16.gmra.mxu0 %v3147
        %v3585 = vpop.f32.mrf.mxu0
        %v3586 = vadd.f32 %v3425, %v3585
        %v3587 = vpop.f32.mrf.mxu0
        %v3588 = vpop.f32.mrf.mxu0
        %v3589 = vadd.f32 %v3428, %v3588
        %v3590 = vpop.f32.mrf.mxu0
        %3591 = vmatprep.mubr.bf16.mxu0 0
        %3592 = vmatmul.mubr.bf16.gmra.mxu0 %v3150
        %v3593 = vpop.f32.mrf.mxu0
        %v3594 = vadd.f32 %v3433, %v3593
        %v3595 = vpop.f32.mrf.mxu0
        %v3596 = vpop.f32.mrf.mxu0
        %v3597 = vadd.f32 %v3436, %v3596
        %v3598 = vpop.f32.mrf.mxu0
        %3599 = vmatprep.mubr.bf16.mxu0 0
        %3600 = vmatmul.mubr.bf16.gmra.mxu0 %v3153
        %v3601 = vpop.f32.mrf.mxu0
        %v3602 = vadd.f32 %v3441, %v3601
        %v3603 = vpop.f32.mrf.mxu0
        %v3604 = vpop.f32.mrf.mxu0
        %v3605 = vadd.f32 %v3444, %v3604
        %v3606 = vpop.f32.mrf.mxu0
        %3607 = vmatprep.mubr.bf16.mxu0 0
        %3608 = vmatmul.mubr.bf16.gmra.mxu0 %v3156
        %v3609 = vpop.f32.mrf.mxu0
        %v3610 = vadd.f32 %v3449, %v3609
        %v3611 = vpop.f32.mrf.mxu0
        %v3612 = vpop.f32.mrf.mxu0
        %v3613 = vadd.f32 %v3452, %v3612
        %v3614 = vpop.f32.mrf.mxu0
        %3615 = vmatprep.mubr.bf16.mxu0 0
        %3616 = vmatmul.mubr.bf16.gmra.mxu0 %v3159
        %v3617 = vpop.f32.mrf.mxu0
        %v3618 = vadd.f32 %v3457, %v3617
        %v3619 = vpop.f32.mrf.mxu0
        %v3620 = vpop.f32.mrf.mxu0
        %v3621 = vadd.f32 %v3460, %v3620
        %v3622 = vpop.f32.mrf.mxu0
        %3623 = vmatprep.mubr.bf16.mxu0 0
        %3624 = vmatmul.mubr.bf16.gmra.mxu0 %v3162
        %v3625 = vpop.f32.mrf.mxu0
        %v3626 = vadd.f32 %v3465, %v3625
        %v3627 = vpop.f32.mrf.mxu0
        %v3628 = vpop.f32.mrf.mxu0
        %v3629 = vadd.f32 %v3468, %v3628
        %v3630 = vpop.f32.mrf.mxu0
        %3631 = vmatprep.mubr.bf16.mxu0 0
        %3632 = vmatmul.mubr.bf16.gmra.mxu0 %v3165
        %v3633 = vpop.f32.mrf.mxu0
        %v3634 = vadd.f32 %v3473, %v3633
        %v3635 = vpop.f32.mrf.mxu0
        %v3636 = vpop.f32.mrf.mxu0
        %v3637 = vadd.f32 %v3476, %v3636
        %v3638 = vpop.f32.mrf.mxu0
        %3639 = vmatprep.mubr.bf16.mxu0 0
        %3640 = vmatmul.mubr.bf16.gmra.mxu0 %v3168
        %v3641 = vpop.f32.mrf.mxu0
        %v3642 = vadd.f32 %v3481, %v3641
        %v3643 = vpop.f32.mrf.mxu0
        %v3644 = vpop.f32.mrf.mxu0
        %v3645 = vadd.f32 %v3484, %v3644
        %v3646 = vpop.f32.mrf.mxu0
        %3647 = vmatprep.mubr.bf16.mxu0 0
        %3648 = vmatmul.mubr.bf16.gmra.mxu0 %v3171
        %v3649 = vpop.f32.mrf.mxu0
        %v3650 = vadd.f32 %v3489, %v3649
        %v3651 = vpop.f32.mrf.mxu0
        %v3652 = vpop.f32.mrf.mxu0
        %v3653 = vadd.f32 %v3492, %v3652
        %v3654 = vpop.f32.mrf.mxu0
        %3655 = vmatprep.mubr.bf16.mxu0 0
        %3656 = vmatmul.mubr.bf16.gmra.mxu0 %v3174
        %v3657 = vpop.f32.mrf.mxu0
        %v3658 = vadd.f32 %v3497, %v3657
        %v3659 = vpop.f32.mrf.mxu0
        %v3660 = vpop.f32.mrf.mxu0
        %v3661 = vadd.f32 %v3500, %v3660
        %v3662 = vpop.f32.mrf.mxu0
        %3663 = vmatprep.mubr.bf16.mxu0 0
        %3664 = vmatmul.mubr.bf16.gmra.mxu0 %v3177
        %v3665 = vpop.f32.mrf.mxu0
        %v3666 = vadd.f32 %v3505, %v3665
        %v3667 = vpop.f32.mrf.mxu0
        %v3668 = vpop.f32.mrf.mxu0
        %v3669 = vadd.f32 %v3508, %v3668
        %v3670 = vpop.f32.mrf.mxu0
        %3671 = vmatprep.mubr.bf16.mxu0 0
        %3672 = vmatmul.mubr.bf16.gmra.mxu0 %v3180
        %v3673 = vpop.f32.mrf.mxu0
        %v3674 = vadd.f32 %v3513, %v3673
        %v3675 = vpop.f32.mrf.mxu0
        %v3676 = vpop.f32.mrf.mxu0
        %v3677 = vadd.f32 %v3516, %v3676
        %v3678 = vpop.f32.mrf.mxu0
        %3679 = vmatprep.mubr.bf16.mxu0 0
        %3680 = vmatmul.mubr.bf16.gmra.mxu0 %v3183
        %v3681 = vpop.f32.mrf.mxu0
        %v3682 = vadd.f32 %v3521, %v3681
        %v3683 = vpop.f32.mrf.mxu0
        %v3684 = vpop.f32.mrf.mxu0
        %v3685 = vadd.f32 %v3524, %v3684
        %v3686 = vpop.f32.mrf.mxu0
        %3687 = vmatprep.mubr.bf16.mxu0 0
        %3688 = vmatmul.mubr.bf16.gmra.mxu0 %v3186
        %v3689 = vpop.f32.mrf.mxu0
        %v3690 = vadd.f32 %v3529, %v3689
        %v3691 = vpop.f32.mrf.mxu0
        %v3692 = vpop.f32.mrf.mxu0
        %v3693 = vadd.f32 %v3532, %v3692
        %v3694 = vpop.f32.mrf.mxu0
        %3695 = vmatprep.mubr.bf16.mxu0 0
        %3696 = vmatmul.mubr.bf16.gmra.mxu0 %v3189
        %v3697 = vpop.f32.mrf.mxu0
        %v3698 = vadd.f32 %v3537, %v3697
        %v3699 = vpop.f32.mrf.mxu0
        %v3700 = vpop.f32.mrf.mxu0
        %v3701 = vadd.f32 %v3540, %v3700
        %v3702 = vpop.f32.mrf.mxu0
        %3703 = vdwg.mxu0
        %v3704 = vmax.f32 %v3578, 0.0
        %v3705 = vmax.f32 %v3581, 0.0
        %v3706 = vmax.f32 %v3586, 0.0
        %v3707 = vmax.f32 %v3589, 0.0
        %v3708 = vmax.f32 %v3594, 0.0
        %v3709 = vmax.f32 %v3597, 0.0
        %v3710 = vmax.f32 %v3602, 0.0
        %v3711 = vmax.f32 %v3605, 0.0
        %v3712 = vmax.f32 %v3610, 0.0
        %v3713 = vmax.f32 %v3613, 0.0
        %v3714 = vmax.f32 %v3618, 0.0
        %v3715 = vmax.f32 %v3621, 0.0
        %v3716 = vmax.f32 %v3626, 0.0
        %v3717 = vmax.f32 %v3629, 0.0
        %v3718 = vmax.f32 %v3634, 0.0
        %v3719 = vmax.f32 %v3637, 0.0
        %v3720 = vmax.f32 %v3642, 0.0
        %v3721 = vmax.f32 %v3645, 0.0
        %v3722 = vmax.f32 %v3650, 0.0
        %v3723 = vmax.f32 %v3653, 0.0
        %v3724 = vmax.f32 %v3658, 0.0
        %v3725 = vmax.f32 %v3661, 0.0
        %v3726 = vmax.f32 %v3666, 0.0
        %v3727 = vmax.f32 %v3669, 0.0
        %v3728 = vmax.f32 %v3674, 0.0
        %v3729 = vmax.f32 %v3677, 0.0
        %v3730 = vmax.f32 %v3682, 0.0
        %v3731 = vmax.f32 %v3685, 0.0
        %v3732 = vmax.f32 %v3690, 0.0
        %v3733 = vmax.f32 %v3693, 0.0
        %v3734 = vmax.f32 %v3698, 0.0
        %v3735 = vmax.f32 %v3701, 0.0
        %v3736 = vpack.c.bf16 %v3705, %v3704
        %v3737 = vpack.c.bf16 %v3707, %v3706
        %v3738 = vpack.c.bf16 %v3709, %v3708
        %v3739 = vpack.c.bf16 %v3711, %v3710
        %v3740 = vpack.c.bf16 %v3713, %v3712
        %v3741 = vpack.c.bf16 %v3715, %v3714
        %v3742 = vpack.c.bf16 %v3717, %v3716
        %v3743 = vpack.c.bf16 %v3719, %v3718
        %v3744 = vpack.c.bf16 %v3721, %v3720
        %v3745 = vpack.c.bf16 %v3723, %v3722
        %v3746 = vpack.c.bf16 %v3725, %v3724
        %v3747 = vpack.c.bf16 %v3727, %v3726
        %v3748 = vpack.c.bf16 %v3729, %v3728
        %v3749 = vpack.c.bf16 %v3731, %v3730
        %v3750 = vpack.c.bf16 %v3733, %v3732
        %v3751 = vpack.c.bf16 %v3735, %v3734
        %v3752 = vld [vmem:[%s2] sm:$0xf]
        %vm3753 = vcmask 64512
        %v3755 = vsel %vm3753, %v3736, 0
        %v3758 = vsel %vm3753, %v3737, 0
        %v3761 = vsel %vm3753, %v3738, 0
        %v3764 = vsel %vm3753, %v3739, 0
        %v3767 = vsel %vm3753, %v3740, 0
        %v3770 = vsel %vm3753, %v3741, 0
        %v3773 = vsel %vm3753, %v3742, 0
        %v3776 = vsel %vm3753, %v3743, 0
        %v3779 = vsel %vm3753, %v3744, 0
        %v3782 = vsel %vm3753, %v3745, 0
        %v3785 = vsel %vm3753, %v3746, 0
        %v3788 = vsel %vm3753, %v3747, 0
        %v3791 = vsel %vm3753, %v3748, 0
        %v3794 = vsel %vm3753, %v3749, 0
        %v3797 = vsel %vm3753, %v3750, 0
        %v3800 = vsel %vm3753, %v3751, 0
        %vm3802 = vcmask 1043456
        %v3804 = vsel %vm3802, %v3752, 0
        %3806 = vmatprep.subr.bf16.mxu0 0
        %3807 = vmatpush1.bf16.msra.mxu0 0
        %3808 = vmatprep.subr.bf16.mxu0 0
        %3809 = vmatpush1.bf16.msra.mxu0 0
        %3810 = vmatprep.subr.bf16.mxu0 0
        %3811 = vmatpush1.bf16.msra.mxu0 0
        %3812 = vmatprep.subr.bf16.mxu0 0
        %3813 = vmatpush1.bf16.msra.mxu0 0
        %3814 = vmatprep.subr.bf16.mxu0 0
        %3815 = vmatpush1.bf16.msra.mxu0 0
        %3816 = vmatprep.subr.bf16.mxu0 0
        %3817 = vmatpush1.bf16.msra.mxu0 0
        %3818 = vmatprep.subr.bf16.mxu0 0
        %3819 = vmatpush1.bf16.msra.mxu0 0
        %3820 = vmatprep.subr.bf16.mxu0 0
        %3821 = vmatpush1.bf16.msra.mxu0 %v3804
        %3822 = vmatprep.subr.bf16.mxu0 0
        %3823 = vmatpush2.bf16.msra.mxu0 0
        %3824 = vmatprep.subr.bf16.mxu0 0
        %3825 = vmatpush2.bf16.msra.mxu0 0
        %3826 = vmatprep.subr.bf16.mxu0 0
        %3827 = vmatpush2.bf16.msra.mxu0 0
        %3828 = vmatprep.subr.bf16.mxu0 0
        %3829 = vmatpush2.bf16.msra.mxu0 0
        %3830 = vmatprep.subr.bf16.mxu0 0
        %3831 = vmatpush2.bf16.msra.mxu0 0
        %3832 = vmatprep.subr.bf16.mxu0 0
        %3833 = vmatpush2.bf16.msra.mxu0 0
        %3834 = vmatprep.subr.bf16.mxu0 0
        %3835 = vmatpush2.bf16.msra.mxu0 0
        %3836 = vmatprep.subr.bf16.mxu0 0
        %3837 = vmatpush2.bf16.msra.mxu0 0
        %3838 = vmatprep.mubr.bf16.mxu0 0
        %3839 = vmatmul.mubr.bf16.gmra.mxu0 %v3755
        %v3840 = vpop.f32.mrf.mxu0
        %v3841 = vadd.f32 0.0, %v3840
        %v3842 = vpop.f32.mrf.mxu0
        %v3843 = vpop.f32.mrf.mxu0
        %v3844 = vadd.f32 0.0, %v3843
        %v3845 = vpop.f32.mrf.mxu0
        %3846 = vmatprep.mubr.bf16.mxu0 0
        %3847 = vmatmul.mubr.bf16.gmra.mxu0 %v3758
        %v3848 = vpop.f32.mrf.mxu0
        %v3849 = vadd.f32 0.0, %v3848
        %v3850 = vpop.f32.mrf.mxu0
        %v3851 = vpop.f32.mrf.mxu0
        %v3852 = vadd.f32 0.0, %v3851
        %v3853 = vpop.f32.mrf.mxu0
        %3854 = vmatprep.mubr.bf16.mxu0 0
        %3855 = vmatmul.mubr.bf16.gmra.mxu0 %v3761
        %v3856 = vpop.f32.mrf.mxu0
        %v3857 = vadd.f32 0.0, %v3856
        %v3858 = vpop.f32.mrf.mxu0
        %v3859 = vpop.f32.mrf.mxu0
        %v3860 = vadd.f32 0.0, %v3859
        %v3861 = vpop.f32.mrf.mxu0
        %3862 = vmatprep.mubr.bf16.mxu0 0
        %3863 = vmatmul.mubr.bf16.gmra.mxu0 %v3764
        %v3864 = vpop.f32.mrf.mxu0
        %v3865 = vadd.f32 0.0, %v3864
        %v3866 = vpop.f32.mrf.mxu0
        %v3867 = vpop.f32.mrf.mxu0
        %v3868 = vadd.f32 0.0, %v3867
        %v3869 = vpop.f32.mrf.mxu0
        %3870 = vmatprep.mubr.bf16.mxu0 0
        %3871 = vmatmul.mubr.bf16.gmra.mxu0 %v3767
        %v3872 = vpop.f32.mrf.mxu0
        %v3873 = vadd.f32 0.0, %v3872
        %v3874 = vpop.f32.mrf.mxu0
        %v3875 = vpop.f32.mrf.mxu0
        %v3876 = vadd.f32 0.0, %v3875
        %v3877 = vpop.f32.mrf.mxu0
        %3878 = vmatprep.mubr.bf16.mxu0 0
        %3879 = vmatmul.mubr.bf16.gmra.mxu0 %v3770
        %v3880 = vpop.f32.mrf.mxu0
        %v3881 = vadd.f32 0.0, %v3880
        %v3882 = vpop.f32.mrf.mxu0
        %v3883 = vpop.f32.mrf.mxu0
        %v3884 = vadd.f32 0.0, %v3883
        %v3885 = vpop.f32.mrf.mxu0
        %3886 = vmatprep.mubr.bf16.mxu0 0
        %3887 = vmatmul.mubr.bf16.gmra.mxu0 %v3773
        %v3888 = vpop.f32.mrf.mxu0
        %v3889 = vadd.f32 0.0, %v3888
        %v3890 = vpop.f32.mrf.mxu0
        %v3891 = vpop.f32.mrf.mxu0
        %v3892 = vadd.f32 0.0, %v3891
        %v3893 = vpop.f32.mrf.mxu0
        %3894 = vmatprep.mubr.bf16.mxu0 0
        %3895 = vmatmul.mubr.bf16.gmra.mxu0 %v3776
        %v3896 = vpop.f32.mrf.mxu0
        %v3897 = vadd.f32 0.0, %v3896
        %v3898 = vpop.f32.mrf.mxu0
        %v3899 = vpop.f32.mrf.mxu0
        %v3900 = vadd.f32 0.0, %v3899
        %v3901 = vpop.f32.mrf.mxu0
        %3902 = vmatprep.mubr.bf16.mxu0 0
        %3903 = vmatmul.mubr.bf16.gmra.mxu0 %v3779
        %v3904 = vpop.f32.mrf.mxu0
        %v3905 = vadd.f32 0.0, %v3904
        %v3906 = vpop.f32.mrf.mxu0
        %v3907 = vpop.f32.mrf.mxu0
        %v3908 = vadd.f32 0.0, %v3907
        %v3909 = vpop.f32.mrf.mxu0
        %3910 = vmatprep.mubr.bf16.mxu0 0
        %3911 = vmatmul.mubr.bf16.gmra.mxu0 %v3782
        %v3912 = vpop.f32.mrf.mxu0
        %v3913 = vadd.f32 0.0, %v3912
        %v3914 = vpop.f32.mrf.mxu0
        %v3915 = vpop.f32.mrf.mxu0
        %v3916 = vadd.f32 0.0, %v3915
        %v3917 = vpop.f32.mrf.mxu0
        %3918 = vmatprep.mubr.bf16.mxu0 0
        %3919 = vmatmul.mubr.bf16.gmra.mxu0 %v3785
        %v3920 = vpop.f32.mrf.mxu0
        %v3921 = vadd.f32 0.0, %v3920
        %v3922 = vpop.f32.mrf.mxu0
        %v3923 = vpop.f32.mrf.mxu0
        %v3924 = vadd.f32 0.0, %v3923
        %v3925 = vpop.f32.mrf.mxu0
        %3926 = vmatprep.mubr.bf16.mxu0 0
        %3927 = vmatmul.mubr.bf16.gmra.mxu0 %v3788
        %v3928 = vpop.f32.mrf.mxu0
        %v3929 = vadd.f32 0.0, %v3928
        %v3930 = vpop.f32.mrf.mxu0
        %v3931 = vpop.f32.mrf.mxu0
        %v3932 = vadd.f32 0.0, %v3931
        %v3933 = vpop.f32.mrf.mxu0
        %3934 = vmatprep.mubr.bf16.mxu0 0
        %3935 = vmatmul.mubr.bf16.gmra.mxu0 %v3791
        %v3936 = vpop.f32.mrf.mxu0
        %v3937 = vadd.f32 0.0, %v3936
        %v3938 = vpop.f32.mrf.mxu0
        %v3939 = vpop.f32.mrf.mxu0
        %v3940 = vadd.f32 0.0, %v3939
        %v3941 = vpop.f32.mrf.mxu0
        %3942 = vmatprep.mubr.bf16.mxu0 0
        %3943 = vmatmul.mubr.bf16.gmra.mxu0 %v3794
        %v3944 = vpop.f32.mrf.mxu0
        %v3945 = vadd.f32 0.0, %v3944
        %v3946 = vpop.f32.mrf.mxu0
        %v3947 = vpop.f32.mrf.mxu0
        %v3948 = vadd.f32 0.0, %v3947
        %v3949 = vpop.f32.mrf.mxu0
        %3950 = vmatprep.mubr.bf16.mxu0 0
        %3951 = vmatmul.mubr.bf16.gmra.mxu0 %v3797
        %v3952 = vpop.f32.mrf.mxu0
        %v3953 = vadd.f32 0.0, %v3952
        %v3954 = vpop.f32.mrf.mxu0
        %v3955 = vpop.f32.mrf.mxu0
        %v3956 = vadd.f32 0.0, %v3955
        %v3957 = vpop.f32.mrf.mxu0
        %3958 = vmatprep.mubr.bf16.mxu0 0
        %3959 = vmatmul.mubr.bf16.gmra.mxu0 %v3800
        %v3960 = vpop.f32.mrf.mxu0
        %v3961 = vadd.f32 0.0, %v3960
        %v3962 = vpop.f32.mrf.mxu0
        %v3963 = vpop.f32.mrf.mxu0
        %v3964 = vadd.f32 0.0, %v3963
        %v3965 = vpop.f32.mrf.mxu0
        %3966 = vdwg.mxu0
        %v3967 = vld [vmem:[%s163] sm:$0xff]
        %v3968 = vld [vmem:[%s163 + $0x8] sm:$0xff]
        %v3969 = vld [vmem:[%s163 + $0x10] sm:$0xff]
        %v3970 = vld [vmem:[%s163 + $0x18] sm:$0xff]
        %v3971 = vld [vmem:[%s163 + $0x20] sm:$0xff]
        %v3972 = vld [vmem:[%s163 + $0x28] sm:$0xff]
        %v3973 = vld [vmem:[%s163 + $0x30] sm:$0xff]
        %v3974 = vld [vmem:[%s163 + $0x38] sm:$0xff]
        %v3975 = vld [vmem:[%s163 + $0x40] sm:$0xff]
        %v3976 = vld [vmem:[%s163 + $0x48] sm:$0xff]
        %v3977 = vld [vmem:[%s163 + $0x50] sm:$0xff]
        %v3978 = vld [vmem:[%s163 + $0x58] sm:$0xff]
        %v3979 = vld [vmem:[%s163 + $0x60] sm:$0xff]
        %v3980 = vld [vmem:[%s163 + $0x68] sm:$0xff]
        %v3981 = vld [vmem:[%s163 + $0x70] sm:$0xff]
        %v3982 = vld [vmem:[%s163 + $0x78] sm:$0xff]
        %v3983 = vld [vmem:[%s163 + $0x80] sm:$0xff]
        %v3984 = vld [vmem:[%s163 + $0x88] sm:$0xff]
        %v3985 = vld [vmem:[%s163 + $0x90] sm:$0xff]
        %v3986 = vld [vmem:[%s163 + $0x98] sm:$0xff]
        %v3987 = vld [vmem:[%s163 + $0xa0] sm:$0xff]
        %v3988 = vld [vmem:[%s163 + $0xa8] sm:$0xff]
        %v3989 = vld [vmem:[%s163 + $0xb0] sm:$0xff]
        %v3990 = vld [vmem:[%s163 + $0xb8] sm:$0xff]
        %v3991 = vld [vmem:[%s163 + $0xc0] sm:$0xff]
        %v3992 = vld [vmem:[%s163 + $0xc8] sm:$0xff]
        %v3993 = vld [vmem:[%s163 + $0xd0] sm:$0xff]
        %v3994 = vld [vmem:[%s163 + $0xd8] sm:$0xff]
        %v3995 = vld [vmem:[%s163 + $0xe0] sm:$0xff]
        %v3996 = vld [vmem:[%s163 + $0xe8] sm:$0xff]
        %v3997 = vld [vmem:[%s163 + $0xf0] sm:$0xff]
        %v3998 = vld [vmem:[%s163 + $0xf8] sm:$0xff]
        %v3999 = vmax.f32 %v3967, 0.0
        %v4000 = vmax.f32 %v3968, 0.0
        %v4001 = vmax.f32 %v3969, 0.0
        %v4002 = vmax.f32 %v3970, 0.0
        %v4003 = vmax.f32 %v3971, 0.0
        %v4004 = vmax.f32 %v3972, 0.0
        %v4005 = vmax.f32 %v3973, 0.0
        %v4006 = vmax.f32 %v3974, 0.0
        %v4007 = vmax.f32 %v3975, 0.0
        %v4008 = vmax.f32 %v3976, 0.0
        %v4009 = vmax.f32 %v3977, 0.0
        %v4010 = vmax.f32 %v3978, 0.0
        %v4011 = vmax.f32 %v3979, 0.0
        %v4012 = vmax.f32 %v3980, 0.0
        %v4013 = vmax.f32 %v3981, 0.0
        %v4014 = vmax.f32 %v3982, 0.0
        %v4015 = vmax.f32 %v3983, 0.0
        %v4016 = vmax.f32 %v3984, 0.0
        %v4017 = vmax.f32 %v3985, 0.0
        %v4018 = vmax.f32 %v3986, 0.0
        %v4019 = vmax.f32 %v3987, 0.0
        %v4020 = vmax.f32 %v3988, 0.0
        %v4021 = vmax.f32 %v3989, 0.0
        %v4022 = vmax.f32 %v3990, 0.0
        %v4023 = vmax.f32 %v3991, 0.0
        %v4024 = vmax.f32 %v3992, 0.0
        %v4025 = vmax.f32 %v3993, 0.0
        %v4026 = vmax.f32 %v3994, 0.0
        %v4027 = vmax.f32 %v3995, 0.0
        %v4028 = vmax.f32 %v3996, 0.0
        %v4029 = vmax.f32 %v3997, 0.0
        %v4030 = vmax.f32 %v3998, 0.0
        %v4031 = vadd.f32 %v3999, %v3841
        %v4032 = vadd.f32 %v4000, %v3844
        %v4033 = vadd.f32 %v4001, %v3849
        %v4034 = vadd.f32 %v4002, %v3852
        %v4035 = vadd.f32 %v4003, %v3857
        %v4036 = vadd.f32 %v4004, %v3860
        %v4037 = vadd.f32 %v4005, %v3865
        %v4038 = vadd.f32 %v4006, %v3868
        %v4039 = vadd.f32 %v4007, %v3873
        %v4040 = vadd.f32 %v4008, %v3876
        %v4041 = vadd.f32 %v4009, %v3881
        %v4042 = vadd.f32 %v4010, %v3884
        %v4043 = vadd.f32 %v4011, %v3889
        %v4044 = vadd.f32 %v4012, %v3892
        %v4045 = vadd.f32 %v4013, %v3897
        %v4046 = vadd.f32 %v4014, %v3900
        %v4047 = vadd.f32 %v4015, %v3905
        %v4048 = vadd.f32 %v4016, %v3908
        %v4049 = vadd.f32 %v4017, %v3913
        %v4050 = vadd.f32 %v4018, %v3916
        %v4051 = vadd.f32 %v4019, %v3921
        %v4052 = vadd.f32 %v4020, %v3924
        %v4053 = vadd.f32 %v4021, %v3929
        %v4054 = vadd.f32 %v4022, %v3932
        %v4055 = vadd.f32 %v4023, %v3937
        %v4056 = vadd.f32 %v4024, %v3940
        %v4057 = vadd.f32 %v4025, %v3945
        %v4058 = vadd.f32 %v4026, %v3948
        %v4059 = vadd.f32 %v4027, %v3953
        %v4060 = vadd.f32 %v4028, %v3956
        %v4061 = vadd.f32 %v4029, %v3961
        %v4062 = vadd.f32 %v4030, %v3964
        %4063 = vst.msk [vmem:[%s163] sm:$0xff] %vm170, %v4031
        %4064 = vst.msk [vmem:[%s163 + $0x8] sm:$0xff] %vm170, %v4032
        %4065 = vst.msk [vmem:[%s163 + $0x10] sm:$0xff] %vm170, %v4033
        %4066 = vst.msk [vmem:[%s163 + $0x18] sm:$0xff] %vm170, %v4034
        %4067 = vst.msk [vmem:[%s163 + $0x20] sm:$0xff] %vm170, %v4035
        %4068 = vst.msk [vmem:[%s163 + $0x28] sm:$0xff] %vm170, %v4036
        %4069 = vst.msk [vmem:[%s163 + $0x30] sm:$0xff] %vm170, %v4037
        %4070 = vst.msk [vmem:[%s163 + $0x38] sm:$0xff] %vm170, %v4038
        %4071 = vst.msk [vmem:[%s163 + $0x40] sm:$0xff] %vm170, %v4039
        %4072 = vst.msk [vmem:[%s163 + $0x48] sm:$0xff] %vm170, %v4040
        %4073 = vst.msk [vmem:[%s163 + $0x50] sm:$0xff] %vm170, %v4041
        %4074 = vst.msk [vmem:[%s163 + $0x58] sm:$0xff] %vm170, %v4042
        %4075 = vst.msk [vmem:[%s163 + $0x60] sm:$0xff] %vm170, %v4043
        %4076 = vst.msk [vmem:[%s163 + $0x68] sm:$0xff] %vm170, %v4044
        %4077 = vst.msk [vmem:[%s163 + $0x70] sm:$0xff] %vm170, %v4045
        %4078 = vst.msk [vmem:[%s163 + $0x78] sm:$0xff] %vm170, %v4046
        %4079 = vst.msk [vmem:[%s163 + $0x80] sm:$0xff] %vm170, %v4047
        %4080 = vst.msk [vmem:[%s163 + $0x88] sm:$0xff] %vm170, %v4048
        %4081 = vst.msk [vmem:[%s163 + $0x90] sm:$0xff] %vm170, %v4049
        %4082 = vst.msk [vmem:[%s163 + $0x98] sm:$0xff] %vm170, %v4050
        %4083 = vst.msk [vmem:[%s163 + $0xa0] sm:$0xff] %vm170, %v4051
        %4084 = vst.msk [vmem:[%s163 + $0xa8] sm:$0xff] %vm170, %v4052
        %4085 = vst.msk [vmem:[%s163 + $0xb0] sm:$0xff] %vm170, %v4053
        %4086 = vst.msk [vmem:[%s163 + $0xb8] sm:$0xff] %vm170, %v4054
        %4087 = vst.msk [vmem:[%s163 + $0xc0] sm:$0xff] %vm170, %v4055
        %4088 = vst.msk [vmem:[%s163 + $0xc8] sm:$0xff] %vm170, %v4056
        %4089 = vst.msk [vmem:[%s163 + $0xd0] sm:$0xff] %vm170, %v4057
        %4090 = vst.msk [vmem:[%s163 + $0xd8] sm:$0xff] %vm170, %v4058
        %4091 = vst.msk [vmem:[%s163 + $0xe0] sm:$0xff] %vm170, %v4059
        %4092 = vst.msk [vmem:[%s163 + $0xe8] sm:$0xff] %vm170, %v4060
        %4093 = vst.msk [vmem:[%s163 + $0xf0] sm:$0xff] %vm170, %v4061
        %4094 = vst.msk [vmem:[%s163 + $0xf8] sm:$0xff] %vm170, %v4062
        %v4095 = vld [vmem:[%s163] sm:$0xff]
        %v4096 = vld [vmem:[%s163 + $0x8] sm:$0xff]
        %v4097 = vld [vmem:[%s163 + $0x10] sm:$0xff]
        %v4098 = vld [vmem:[%s163 + $0x18] sm:$0xff]
        %v4099 = vld [vmem:[%s163 + $0x20] sm:$0xff]
        %v4100 = vld [vmem:[%s163 + $0x28] sm:$0xff]
        %v4101 = vld [vmem:[%s163 + $0x30] sm:$0xff]
        %v4102 = vld [vmem:[%s163 + $0x38] sm:$0xff]
        %v4103 = vld [vmem:[%s163 + $0x40] sm:$0xff]
        %v4104 = vld [vmem:[%s163 + $0x48] sm:$0xff]
        %v4105 = vld [vmem:[%s163 + $0x50] sm:$0xff]
        %v4106 = vld [vmem:[%s163 + $0x58] sm:$0xff]
        %v4107 = vld [vmem:[%s163 + $0x60] sm:$0xff]
        %v4108 = vld [vmem:[%s163 + $0x68] sm:$0xff]
        %v4109 = vld [vmem:[%s163 + $0x70] sm:$0xff]
        %v4110 = vld [vmem:[%s163 + $0x78] sm:$0xff]
        %v4111 = vld [vmem:[%s163 + $0x80] sm:$0xff]
        %v4112 = vld [vmem:[%s163 + $0x88] sm:$0xff]
        %v4113 = vld [vmem:[%s163 + $0x90] sm:$0xff]
        %v4114 = vld [vmem:[%s163 + $0x98] sm:$0xff]
        %v4115 = vld [vmem:[%s163 + $0xa0] sm:$0xff]
        %v4116 = vld [vmem:[%s163 + $0xa8] sm:$0xff]
        %v4117 = vld [vmem:[%s163 + $0xb0] sm:$0xff]
        %v4118 = vld [vmem:[%s163 + $0xb8] sm:$0xff]
        %v4119 = vld [vmem:[%s163 + $0xc0] sm:$0xff]
        %v4120 = vld [vmem:[%s163 + $0xc8] sm:$0xff]
        %v4121 = vld [vmem:[%s163 + $0xd0] sm:$0xff]
        %v4122 = vld [vmem:[%s163 + $0xd8] sm:$0xff]
        %v4123 = vld [vmem:[%s163 + $0xe0] sm:$0xff]
        %v4124 = vld [vmem:[%s163 + $0xe8] sm:$0xff]
        %v4125 = vld [vmem:[%s163 + $0xf0] sm:$0xff]
        %v4126 = vld [vmem:[%s163 + $0xf8] sm:$0xff]
        %v4127 = vmax.f32 %v4095, 0.0
        %v4128 = vmax.f32 %v4096, 0.0
        %v4129 = vmax.f32 %v4097, 0.0
        %v4130 = vmax.f32 %v4098, 0.0
        %v4131 = vmax.f32 %v4099, 0.0
        %v4132 = vmax.f32 %v4100, 0.0
        %v4133 = vmax.f32 %v4101, 0.0
        %v4134 = vmax.f32 %v4102, 0.0
        %v4135 = vmax.f32 %v4103, 0.0
        %v4136 = vmax.f32 %v4104, 0.0
        %v4137 = vmax.f32 %v4105, 0.0
        %v4138 = vmax.f32 %v4106, 0.0
        %v4139 = vmax.f32 %v4107, 0.0
        %v4140 = vmax.f32 %v4108, 0.0
        %v4141 = vmax.f32 %v4109, 0.0
        %v4142 = vmax.f32 %v4110, 0.0
        %v4143 = vmax.f32 %v4111, 0.0
        %v4144 = vmax.f32 %v4112, 0.0
        %v4145 = vmax.f32 %v4113, 0.0
        %v4146 = vmax.f32 %v4114, 0.0
        %v4147 = vmax.f32 %v4115, 0.0
        %v4148 = vmax.f32 %v4116, 0.0
        %v4149 = vmax.f32 %v4117, 0.0
        %v4150 = vmax.f32 %v4118, 0.0
        %v4151 = vmax.f32 %v4119, 0.0
        %v4152 = vmax.f32 %v4120, 0.0
        %v4153 = vmax.f32 %v4121, 0.0
        %v4154 = vmax.f32 %v4122, 0.0
        %v4155 = vmax.f32 %v4123, 0.0
        %v4156 = vmax.f32 %v4124, 0.0
        %v4157 = vmax.f32 %v4125, 0.0
        %v4158 = vmax.f32 %v4126, 0.0
        %4159 = vst.msk [vmem:[#allocation2 + $0x18] sm:$0xff] %vm170, %v4127
        %4160 = vst.msk [vmem:[#allocation2 + $0x20] sm:$0xff] %vm170, %v4128
        %4161 = vst.msk [vmem:[#allocation2 + $0x28] sm:$0xff] %vm170, %v4129
        %4162 = vst.msk [vmem:[#allocation2 + $0x30] sm:$0xff] %vm170, %v4130
        %4163 = vst.msk [vmem:[#allocation2 + $0x38] sm:$0xff] %vm170, %v4131
        %4164 = vst.msk [vmem:[#allocation2 + $0x40] sm:$0xff] %vm170, %v4132
        %4165 = vst.msk [vmem:[#allocation2 + $0x48] sm:$0xff] %vm170, %v4133
        %4166 = vst.msk [vmem:[#allocation2 + $0x50] sm:$0xff] %vm170, %v4134
        %4167 = vst.msk [vmem:[#allocation2 + $0x58] sm:$0xff] %vm170, %v4135
        %4168 = vst.msk [vmem:[#allocation2 + $0x60] sm:$0xff] %vm170, %v4136
        %4169 = vst.msk [vmem:[#allocation2 + $0x68] sm:$0xff] %vm170, %v4137
        %4170 = vst.msk [vmem:[#allocation2 + $0x70] sm:$0xff] %vm170, %v4138
        %4171 = vst.msk [vmem:[#allocation2 + $0x78] sm:$0xff] %vm170, %v4139
        %4172 = vst.msk [vmem:[#allocation2 + $0x80] sm:$0xff] %vm170, %v4140
        %4173 = vst.msk [vmem:[#allocation2 + $0x88] sm:$0xff] %vm170, %v4141
        %4174 = vst.msk [vmem:[#allocation2 + $0x90] sm:$0xff] %vm170, %v4142
        %4175 = vst.msk [vmem:[#allocation2 + $0x98] sm:$0xff] %vm170, %v4143
        %4176 = vst.msk [vmem:[#allocation2 + $0xa0] sm:$0xff] %vm170, %v4144
        %4177 = vst.msk [vmem:[#allocation2 + $0xa8] sm:$0xff] %vm170, %v4145
        %4178 = vst.msk [vmem:[#allocation2 + $0xb0] sm:$0xff] %vm170, %v4146
        %4179 = vst.msk [vmem:[#allocation2 + $0xb8] sm:$0xff] %vm170, %v4147
        %4180 = vst.msk [vmem:[#allocation2 + $0xc0] sm:$0xff] %vm170, %v4148
        %4181 = vst.msk [vmem:[#allocation2 + $0xc8] sm:$0xff] %vm170, %v4149
        %4182 = vst.msk [vmem:[#allocation2 + $0xd0] sm:$0xff] %vm170, %v4150
        %4183 = vst.msk [vmem:[#allocation2 + $0xd8] sm:$0xff] %vm170, %v4151
        %4184 = vst.msk [vmem:[#allocation2 + $0xe0] sm:$0xff] %vm170, %v4152
        %4185 = vst.msk [vmem:[#allocation2 + $0xe8] sm:$0xff] %vm170, %v4153
        %4186 = vst.msk [vmem:[#allocation2 + $0xf0] sm:$0xff] %vm170, %v4154
        %4187 = vst.msk [vmem:[#allocation2 + $0xf8] sm:$0xff] %vm170, %v4155
        %4188 = vst.msk [vmem:[#allocation2 + $0x100] sm:$0xff] %vm170, %v4156
        %4189 = vst.msk [vmem:[#allocation2 + $0x108] sm:$0xff] %vm170, %v4157
        %4190 = vst.msk [vmem:[#allocation2 + $0x110] sm:$0xff] %vm170, %v4158
        %v4191 = vld [vmem:[#allocation2 + $0x7] sm:$0xff]
        %v4192 = vld [vmem:[#allocation2 + $0xf] sm:$0xff]
        %v4193 = vld [vmem:[#allocation2 + $0x17] sm:$0xff]
        %v4194 = vld [vmem:[#allocation2 + $0x1f] sm:$0xff]
        %v4195 = vld [vmem:[#allocation2 + $0x27] sm:$0xff]
        %v4196 = vld [vmem:[#allocation2 + $0x2f] sm:$0xff]
        %v4197 = vld [vmem:[#allocation2 + $0x37] sm:$0xff]
        %v4198 = vld [vmem:[#allocation2 + $0x3f] sm:$0xff]
        %v4199 = vld [vmem:[#allocation2 + $0x47] sm:$0xff]
        %v4200 = vld [vmem:[#allocation2 + $0x4f] sm:$0xff]
        %v4201 = vld [vmem:[#allocation2 + $0x57] sm:$0xff]
        %v4202 = vld [vmem:[#allocation2 + $0x5f] sm:$0xff]
        %v4203 = vld [vmem:[#allocation2 + $0x67] sm:$0xff]
        %v4204 = vld [vmem:[#allocation2 + $0x6f] sm:$0xff]
        %v4205 = vld [vmem:[#allocation2 + $0x77] sm:$0xff]
        %v4206 = vld [vmem:[#allocation2 + $0x7f] sm:$0xff]
        %v4207 = vld [vmem:[#allocation2 + $0x87] sm:$0xff]
        %v4208 = vld [vmem:[#allocation2 + $0x8f] sm:$0xff]
        %v4209 = vld [vmem:[#allocation2 + $0x97] sm:$0xff]
        %v4210 = vld [vmem:[#allocation2 + $0x9f] sm:$0xff]
        %v4211 = vld [vmem:[#allocation2 + $0xa7] sm:$0xff]
        %v4212 = vld [vmem:[#allocation2 + $0xaf] sm:$0xff]
        %v4213 = vld [vmem:[#allocation2 + $0xb7] sm:$0xff]
        %v4214 = vld [vmem:[#allocation2 + $0xbf] sm:$0xff]
        %v4215 = vld [vmem:[#allocation2 + $0xc7] sm:$0xff]
        %v4216 = vld [vmem:[#allocation2 + $0xcf] sm:$0xff]
        %v4217 = vld [vmem:[#allocation2 + $0xd7] sm:$0xff]
        %v4218 = vld [vmem:[#allocation2 + $0xdf] sm:$0xff]
        %v4219 = vld [vmem:[#allocation2 + $0xe7] sm:$0xff]
        %v4220 = vld [vmem:[#allocation2 + $0xef] sm:$0xff]
        %v4221 = vld [vmem:[#allocation2 + $0xf7] sm:$0xff]
        %v4222 = vld [vmem:[#allocation2 + $0xff] sm:$0xff]
        %v4223 = vsel %vm341, %v4191, 0.0
        %v4224 = vsel %vm342, %v4192, 0.0
        %v4225 = vsel %vm343, %v4193, 0.0
        %v4226 = vsel %vm344, %v4194, 0.0
        %v4227 = vsel %vm345, %v4195, 0.0
        %v4228 = vsel %vm346, %v4196, 0.0
        %v4229 = vsel %vm347, %v4197, 0.0
        %v4230 = vsel %vm348, %v4198, 0.0
        %v4231 = vsel %vm349, %v4199, 0.0
        %v4232 = vsel %vm350, %v4200, 0.0
        %v4233 = vsel %vm351, %v4201, 0.0
        %v4234 = vsel %vm352, %v4202, 0.0
        %v4235 = vsel %vm353, %v4203, 0.0
        %v4236 = vsel %vm354, %v4204, 0.0
        %v4237 = vsel %vm355, %v4205, 0.0
        %v4238 = vsel %vm356, %v4206, 0.0
        %v4239 = vsel %vm357, %v4207, 0.0
        %v4240 = vsel %vm358, %v4208, 0.0
        %v4241 = vsel %vm359, %v4209, 0.0
        %v4242 = vsel %vm360, %v4210, 0.0
        %v4243 = vsel %vm361, %v4211, 0.0
        %v4244 = vsel %vm362, %v4212, 0.0
        %v4245 = vsel %vm363, %v4213, 0.0
        %v4246 = vsel %vm364, %v4214, 0.0
        %v4247 = vsel %vm365, %v4215, 0.0
        %v4248 = vsel %vm366, %v4216, 0.0
        %v4249 = vsel %vm367, %v4217, 0.0
        %v4250 = vsel %vm368, %v4218, 0.0
        %v4251 = vsel %vm369, %v4219, 0.0
        %v4252 = vsel %vm370, %v4220, 0.0
        %v4253 = vsel %vm371, %v4221, 0.0
        %v4254 = vsel %vm372, %v4222, 0.0
        %v4255 = vpack.c.bf16 %v4224, %v4223
        %v4256 = vpack.c.bf16 %v4226, %v4225
        %v4257 = vpack.c.bf16 %v4228, %v4227
        %v4258 = vpack.c.bf16 %v4230, %v4229
        %v4259 = vpack.c.bf16 %v4232, %v4231
        %v4260 = vpack.c.bf16 %v4234, %v4233
        %v4261 = vpack.c.bf16 %v4236, %v4235
        %v4262 = vpack.c.bf16 %v4238, %v4237
        %v4263 = vpack.c.bf16 %v4240, %v4239
        %v4264 = vpack.c.bf16 %v4242, %v4241
        %v4265 = vpack.c.bf16 %v4244, %v4243
        %v4266 = vpack.c.bf16 %v4246, %v4245
        %v4267 = vpack.c.bf16 %v4248, %v4247
        %v4268 = vpack.c.bf16 %v4250, %v4249
        %v4269 = vpack.c.bf16 %v4252, %v4251
        %v4270 = vpack.c.bf16 %v4254, %v4253
        %v4287 = vunpack.c.l.b16 %v4255
        %v4288 = vunpack.c.h.b16 %v4255
        %v4289 = vunpack.c.l.b16 %v4256
        %v4290 = vunpack.c.h.b16 %v4256
        %v4291 = vunpack.c.l.b16 %v4257
        %v4292 = vunpack.c.h.b16 %v4257
        %v4293 = vunpack.c.l.b16 %v4258
        %v4294 = vunpack.c.h.b16 %v4258
        %v4295 = vunpack.c.l.b16 %v4259
        %v4296 = vunpack.c.h.b16 %v4259
        %v4297 = vunpack.c.l.b16 %v4260
        %v4298 = vunpack.c.h.b16 %v4260
        %v4299 = vunpack.c.l.b16 %v4261
        %v4300 = vunpack.c.h.b16 %v4261
        %v4301 = vunpack.c.l.b16 %v4262
        %v4302 = vunpack.c.h.b16 %v4262
        %v4303 = vunpack.c.l.b16 %v4263
        %v4304 = vunpack.c.h.b16 %v4263
        %v4305 = vunpack.c.l.b16 %v4264
        %v4306 = vunpack.c.h.b16 %v4264
        %v4307 = vunpack.c.l.b16 %v4265
        %v4308 = vunpack.c.h.b16 %v4265
        %v4309 = vunpack.c.l.b16 %v4266
        %v4310 = vunpack.c.h.b16 %v4266
        %v4311 = vunpack.c.l.b16 %v4267
        %v4312 = vunpack.c.h.b16 %v4267
        %v4313 = vunpack.c.l.b16 %v4268
        %v4314 = vunpack.c.h.b16 %v4268
        %v4315 = vunpack.c.l.b16 %v4269
        %v4316 = vunpack.c.h.b16 %v4269
        %v4317 = vunpack.c.l.b16 %v4270
        %v4318 = vunpack.c.h.b16 %v4270
        %v4319 = vpack.c.b16 %v4287, %v4287
        %v4320 = vpack.c.b16 %v4288, %v4288
        %v4321 = vpack.c.b16 %v4289, %v4289
        %v4322 = vpack.c.b16 %v4290, %v4290
        %v4323 = vpack.c.b16 %v4291, %v4291
        %v4324 = vpack.c.b16 %v4292, %v4292
        %v4325 = vpack.c.b16 %v4293, %v4293
        %v4326 = vpack.c.b16 %v4294, %v4294
        %v4327 = vpack.c.b16 %v4295, %v4295
        %v4328 = vpack.c.b16 %v4296, %v4296
        %v4329 = vpack.c.b16 %v4297, %v4297
        %v4330 = vpack.c.b16 %v4298, %v4298
        %v4331 = vpack.c.b16 %v4299, %v4299
        %v4332 = vpack.c.b16 %v4300, %v4300
        %v4333 = vpack.c.b16 %v4301, %v4301
        %v4334 = vpack.c.b16 %v4302, %v4302
        %v4335 = vpack.c.b16 %v4303, %v4303
        %v4336 = vpack.c.b16 %v4304, %v4304
        %v4337 = vpack.c.b16 %v4305, %v4305
        %v4338 = vpack.c.b16 %v4306, %v4306
        %v4339 = vpack.c.b16 %v4307, %v4307
        %v4340 = vpack.c.b16 %v4308, %v4308
        %v4341 = vpack.c.b16 %v4309, %v4309
        %v4342 = vpack.c.b16 %v4310, %v4310
        %v4343 = vpack.c.b16 %v4311, %v4311
        %v4344 = vpack.c.b16 %v4312, %v4312
        %v4345 = vpack.c.b16 %v4313, %v4313
        %v4346 = vpack.c.b16 %v4314, %v4314
        %v4347 = vpack.c.b16 %v4315, %v4315
        %v4348 = vpack.c.b16 %v4316, %v4316
        %v4349 = vpack.c.b16 %v4317, %v4317
        %v4350 = vpack.c.b16 %v4318, %v4318
        %4383 = vst.msk [vmem:[#allocation3] sm:$0xf] %vm757, %v4319
        %4384 = vst.msk [vmem:[#allocation3 + $0xc] sm:$0xf] %vm757, %v4320
        %4385 = vst.msk [vmem:[#allocation3 + $0x18] sm:$0xf] %vm757, %v4321
        %4386 = vst.msk [vmem:[#allocation3 + $0x24] sm:$0xf] %vm757, %v4322
        %4387 = vst.msk [vmem:[#allocation3 + $0x30] sm:$0xf] %vm757, %v4323
        %4388 = vst.msk [vmem:[#allocation3 + $0x3c] sm:$0xf] %vm757, %v4324
        %4389 = vst.msk [vmem:[#allocation3 + $0x48] sm:$0xf] %vm757, %v4325
        %4390 = vst.msk [vmem:[#allocation3 + $0x54] sm:$0xf] %vm757, %v4326
        %4391 = vst.msk [vmem:[#allocation3 + $0x60] sm:$0xf] %vm757, %v4327
        %4392 = vst.msk [vmem:[#allocation3 + $0x6c] sm:$0xf] %vm757, %v4328
        %4393 = vst.msk [vmem:[#allocation3 + $0x78] sm:$0xf] %vm757, %v4329
        %4394 = vst.msk [vmem:[#allocation3 + $0x84] sm:$0xf] %vm757, %v4330
        %4395 = vst.msk [vmem:[#allocation3 + $0x90] sm:$0xf] %vm757, %v4331
        %4396 = vst.msk [vmem:[#allocation3 + $0x9c] sm:$0xf] %vm757, %v4332
        %4397 = vst.msk [vmem:[#allocation3 + $0xa8] sm:$0xf] %vm757, %v4333
        %4398 = vst.msk [vmem:[#allocation3 + $0xb4] sm:$0xf] %vm757, %v4334
        %4399 = vst.msk [vmem:[#allocation3 + $0xc0] sm:$0xf] %vm757, %v4335
        %4400 = vst.msk [vmem:[#allocation3 + $0xcc] sm:$0xf] %vm757, %v4336
        %4401 = vst.msk [vmem:[#allocation3 + $0xd8] sm:$0xf] %vm757, %v4337
        %4402 = vst.msk [vmem:[#allocation3 + $0xe4] sm:$0xf] %vm757, %v4338
        %4403 = vst.msk [vmem:[#allocation3 + $0xf0] sm:$0xf] %vm757, %v4339
        %4404 = vst.msk [vmem:[#allocation3 + $0xfc] sm:$0xf] %vm757, %v4340
        %4405 = vst.msk [vmem:[#allocation3 + $0x108] sm:$0xf] %vm757, %v4341
        %4406 = vst.msk [vmem:[#allocation3 + $0x114] sm:$0xf] %vm757, %v4342
        %4407 = vst.msk [vmem:[#allocation3 + $0x120] sm:$0xf] %vm757, %v4343
        %4408 = vst.msk [vmem:[#allocation3 + $0x12c] sm:$0xf] %vm757, %v4344
        %4409 = vst.msk [vmem:[#allocation3 + $0x138] sm:$0xf] %vm757, %v4345
        %4410 = vst.msk [vmem:[#allocation3 + $0x144] sm:$0xf] %vm757, %v4346
        %4411 = vst.msk [vmem:[#allocation3 + $0x150] sm:$0xf] %vm757, %v4347
        %4412 = vst.msk [vmem:[#allocation3 + $0x15c] sm:$0xf] %vm757, %v4348
        %4413 = vst.msk [vmem:[#allocation3 + $0x168] sm:$0xf] %vm757, %v4349
        %4414 = vst.msk [vmem:[#allocation3 + $0x174] sm:$0xf] %vm757, %v4350
        %v4415 = vld [vmem:[#allocation2 + $0x8] sm:$0xff]
        %v4416 = vld [vmem:[#allocation2 + $0x10] sm:$0xff]
        %v4417 = vld [vmem:[#allocation2 + $0x18] sm:$0xff]
        %v4418 = vld [vmem:[#allocation2 + $0x20] sm:$0xff]
        %v4419 = vld [vmem:[#allocation2 + $0x28] sm:$0xff]
        %v4420 = vld [vmem:[#allocation2 + $0x30] sm:$0xff]
        %v4421 = vld [vmem:[#allocation2 + $0x38] sm:$0xff]
        %v4422 = vld [vmem:[#allocation2 + $0x40] sm:$0xff]
        %v4423 = vld [vmem:[#allocation2 + $0x48] sm:$0xff]
        %v4424 = vld [vmem:[#allocation2 + $0x50] sm:$0xff]
        %v4425 = vld [vmem:[#allocation2 + $0x58] sm:$0xff]
        %v4426 = vld [vmem:[#allocation2 + $0x60] sm:$0xff]
        %v4427 = vld [vmem:[#allocation2 + $0x68] sm:$0xff]
        %v4428 = vld [vmem:[#allocation2 + $0x70] sm:$0xff]
        %v4429 = vld [vmem:[#allocation2 + $0x78] sm:$0xff]
        %v4430 = vld [vmem:[#allocation2 + $0x80] sm:$0xff]
        %v4431 = vld [vmem:[#allocation2 + $0x88] sm:$0xff]
        %v4432 = vld [vmem:[#allocation2 + $0x90] sm:$0xff]
        %v4433 = vld [vmem:[#allocation2 + $0x98] sm:$0xff]
        %v4434 = vld [vmem:[#allocation2 + $0xa0] sm:$0xff]
        %v4435 = vld [vmem:[#allocation2 + $0xa8] sm:$0xff]
        %v4436 = vld [vmem:[#allocation2 + $0xb0] sm:$0xff]
        %v4437 = vld [vmem:[#allocation2 + $0xb8] sm:$0xff]
        %v4438 = vld [vmem:[#allocation2 + $0xc0] sm:$0xff]
        %v4439 = vld [vmem:[#allocation2 + $0xc8] sm:$0xff]
        %v4440 = vld [vmem:[#allocation2 + $0xd0] sm:$0xff]
        %v4441 = vld [vmem:[#allocation2 + $0xd8] sm:$0xff]
        %v4442 = vld [vmem:[#allocation2 + $0xe0] sm:$0xff]
        %v4443 = vld [vmem:[#allocation2 + $0xe8] sm:$0xff]
        %v4444 = vld [vmem:[#allocation2 + $0xf0] sm:$0xff]
        %v4445 = vld [vmem:[#allocation2 + $0xf8] sm:$0xff]
        %v4446 = vld [vmem:[#allocation2 + $0x100] sm:$0xff]
        %v4447 = vpack.c.bf16 %v4416, %v4415
        %v4448 = vpack.c.bf16 %v4418, %v4417
        %v4449 = vpack.c.bf16 %v4420, %v4419
        %v4450 = vpack.c.bf16 %v4422, %v4421
        %v4451 = vpack.c.bf16 %v4424, %v4423
        %v4452 = vpack.c.bf16 %v4426, %v4425
        %v4453 = vpack.c.bf16 %v4428, %v4427
        %v4454 = vpack.c.bf16 %v4430, %v4429
        %v4455 = vpack.c.bf16 %v4432, %v4431
        %v4456 = vpack.c.bf16 %v4434, %v4433
        %v4457 = vpack.c.bf16 %v4436, %v4435
        %v4458 = vpack.c.bf16 %v4438, %v4437
        %v4459 = vpack.c.bf16 %v4440, %v4439
        %v4460 = vpack.c.bf16 %v4442, %v4441
        %v4461 = vpack.c.bf16 %v4444, %v4443
        %v4462 = vpack.c.bf16 %v4446, %v4445
        %v4479 = vunpack.c.l.b16 %v4447
        %v4480 = vunpack.c.h.b16 %v4447
        %v4481 = vunpack.c.l.b16 %v4448
        %v4482 = vunpack.c.h.b16 %v4448
        %v4483 = vunpack.c.l.b16 %v4449
        %v4484 = vunpack.c.h.b16 %v4449
        %v4485 = vunpack.c.l.b16 %v4450
        %v4486 = vunpack.c.h.b16 %v4450
        %v4487 = vunpack.c.l.b16 %v4451
        %v4488 = vunpack.c.h.b16 %v4451
        %v4489 = vunpack.c.l.b16 %v4452
        %v4490 = vunpack.c.h.b16 %v4452
        %v4491 = vunpack.c.l.b16 %v4453
        %v4492 = vunpack.c.h.b16 %v4453
        %v4493 = vunpack.c.l.b16 %v4454
        %v4494 = vunpack.c.h.b16 %v4454
        %v4495 = vunpack.c.l.b16 %v4455
        %v4496 = vunpack.c.h.b16 %v4455
        %v4497 = vunpack.c.l.b16 %v4456
        %v4498 = vunpack.c.h.b16 %v4456
        %v4499 = vunpack.c.l.b16 %v4457
        %v4500 = vunpack.c.h.b16 %v4457
        %v4501 = vunpack.c.l.b16 %v4458
        %v4502 = vunpack.c.h.b16 %v4458
        %v4503 = vunpack.c.l.b16 %v4459
        %v4504 = vunpack.c.h.b16 %v4459
        %v4505 = vunpack.c.l.b16 %v4460
        %v4506 = vunpack.c.h.b16 %v4460
        %v4507 = vunpack.c.l.b16 %v4461
        %v4508 = vunpack.c.h.b16 %v4461
        %v4509 = vunpack.c.l.b16 %v4462
        %v4510 = vunpack.c.h.b16 %v4462
        %v4511 = vpack.c.b16 %v4479, %v4479
        %v4512 = vpack.c.b16 %v4480, %v4480
        %v4513 = vpack.c.b16 %v4481, %v4481
        %v4514 = vpack.c.b16 %v4482, %v4482
        %v4515 = vpack.c.b16 %v4483, %v4483
        %v4516 = vpack.c.b16 %v4484, %v4484
        %v4517 = vpack.c.b16 %v4485, %v4485
        %v4518 = vpack.c.b16 %v4486, %v4486
        %v4519 = vpack.c.b16 %v4487, %v4487
        %v4520 = vpack.c.b16 %v4488, %v4488
        %v4521 = vpack.c.b16 %v4489, %v4489
        %v4522 = vpack.c.b16 %v4490, %v4490
        %v4523 = vpack.c.b16 %v4491, %v4491
        %v4524 = vpack.c.b16 %v4492, %v4492
        %v4525 = vpack.c.b16 %v4493, %v4493
        %v4526 = vpack.c.b16 %v4494, %v4494
        %v4527 = vpack.c.b16 %v4495, %v4495
        %v4528 = vpack.c.b16 %v4496, %v4496
        %v4529 = vpack.c.b16 %v4497, %v4497
        %v4530 = vpack.c.b16 %v4498, %v4498
        %v4531 = vpack.c.b16 %v4499, %v4499
        %v4532 = vpack.c.b16 %v4500, %v4500
        %v4533 = vpack.c.b16 %v4501, %v4501
        %v4534 = vpack.c.b16 %v4502, %v4502
        %v4535 = vpack.c.b16 %v4503, %v4503
        %v4536 = vpack.c.b16 %v4504, %v4504
        %v4537 = vpack.c.b16 %v4505, %v4505
        %v4538 = vpack.c.b16 %v4506, %v4506
        %v4539 = vpack.c.b16 %v4507, %v4507
        %v4540 = vpack.c.b16 %v4508, %v4508
        %v4541 = vpack.c.b16 %v4509, %v4509
        %v4542 = vpack.c.b16 %v4510, %v4510
        %4543 = vrot.lane.b32.xlu0 %v4511, 32
        %v4544 = vpop.permute.xlu0 %4543
        %4545 = vrot.lane.b32.xlu0 %v4512, 32
        %v4546 = vpop.permute.xlu0 %4545
        %4547 = vrot.lane.b32.xlu0 %v4513, 32
        %v4548 = vpop.permute.xlu0 %4547
        %4549 = vrot.lane.b32.xlu0 %v4514, 32
        %v4550 = vpop.permute.xlu0 %4549
        %4551 = vrot.lane.b32.xlu0 %v4515, 32
        %v4552 = vpop.permute.xlu0 %4551
        %4553 = vrot.lane.b32.xlu0 %v4516, 32
        %v4554 = vpop.permute.xlu0 %4553
        %4555 = vrot.lane.b32.xlu0 %v4517, 32
        %v4556 = vpop.permute.xlu0 %4555
        %4557 = vrot.lane.b32.xlu0 %v4518, 32
        %v4558 = vpop.permute.xlu0 %4557
        %4559 = vrot.lane.b32.xlu0 %v4519, 32
        %v4560 = vpop.permute.xlu0 %4559
        %4561 = vrot.lane.b32.xlu0 %v4520, 32
        %v4562 = vpop.permute.xlu0 %4561
        %4563 = vrot.lane.b32.xlu0 %v4521, 32
        %v4564 = vpop.permute.xlu0 %4563
        %4565 = vrot.lane.b32.xlu0 %v4522, 32
        %v4566 = vpop.permute.xlu0 %4565
        %4567 = vrot.lane.b32.xlu0 %v4523, 32
        %v4568 = vpop.permute.xlu0 %4567
        %4569 = vrot.lane.b32.xlu0 %v4524, 32
        %v4570 = vpop.permute.xlu0 %4569
        %4571 = vrot.lane.b32.xlu0 %v4525, 32
        %v4572 = vpop.permute.xlu0 %4571
        %4573 = vrot.lane.b32.xlu0 %v4526, 32
        %v4574 = vpop.permute.xlu0 %4573
        %4575 = vrot.lane.b32.xlu0 %v4527, 32
        %v4576 = vpop.permute.xlu0 %4575
        %4577 = vrot.lane.b32.xlu0 %v4528, 32
        %v4578 = vpop.permute.xlu0 %4577
        %4579 = vrot.lane.b32.xlu0 %v4529, 32
        %v4580 = vpop.permute.xlu0 %4579
        %4581 = vrot.lane.b32.xlu0 %v4530, 32
        %v4582 = vpop.permute.xlu0 %4581
        %4583 = vrot.lane.b32.xlu0 %v4531, 32
        %v4584 = vpop.permute.xlu0 %4583
        %4585 = vrot.lane.b32.xlu0 %v4532, 32
        %v4586 = vpop.permute.xlu0 %4585
        %4587 = vrot.lane.b32.xlu0 %v4533, 32
        %v4588 = vpop.permute.xlu0 %4587
        %4589 = vrot.lane.b32.xlu0 %v4534, 32
        %v4590 = vpop.permute.xlu0 %4589
        %4591 = vrot.lane.b32.xlu0 %v4535, 32
        %v4592 = vpop.permute.xlu0 %4591
        %4593 = vrot.lane.b32.xlu0 %v4536, 32
        %v4594 = vpop.permute.xlu0 %4593
        %4595 = vrot.lane.b32.xlu0 %v4537, 32
        %v4596 = vpop.permute.xlu0 %4595
        %4597 = vrot.lane.b32.xlu0 %v4538, 32
        %v4598 = vpop.permute.xlu0 %4597
        %4599 = vrot.lane.b32.xlu0 %v4539, 32
        %v4600 = vpop.permute.xlu0 %4599
        %4601 = vrot.lane.b32.xlu0 %v4540, 32
        %v4602 = vpop.permute.xlu0 %4601
        %4603 = vrot.lane.b32.xlu0 %v4541, 32
        %v4604 = vpop.permute.xlu0 %4603
        %4605 = vrot.lane.b32.xlu0 %v4542, 32
        %v4606 = vpop.permute.xlu0 %4605
        %4639 = vst.msk [vmem:[#allocation3] sm:$0xf] %vm177, %v4544
        %4640 = vst.msk [vmem:[#allocation3 + $0xc] sm:$0xf] %vm177, %v4546
        %4641 = vst.msk [vmem:[#allocation3 + $0x18] sm:$0xf] %vm177, %v4548
        %4642 = vst.msk [vmem:[#allocation3 + $0x24] sm:$0xf] %vm177, %v4550
        %4643 = vst.msk [vmem:[#allocation3 + $0x30] sm:$0xf] %vm177, %v4552
        %4644 = vst.msk [vmem:[#allocation3 + $0x3c] sm:$0xf] %vm177, %v4554
        %4645 = vst.msk [vmem:[#allocation3 + $0x48] sm:$0xf] %vm177, %v4556
        %4646 = vst.msk [vmem:[#allocation3 + $0x54] sm:$0xf] %vm177, %v4558
        %4647 = vst.msk [vmem:[#allocation3 + $0x60] sm:$0xf] %vm177, %v4560
        %4648 = vst.msk [vmem:[#allocation3 + $0x6c] sm:$0xf] %vm177, %v4562
        %4649 = vst.msk [vmem:[#allocation3 + $0x78] sm:$0xf] %vm177, %v4564
        %4650 = vst.msk [vmem:[#allocation3 + $0x84] sm:$0xf] %vm177, %v4566
        %4651 = vst.msk [vmem:[#allocation3 + $0x90] sm:$0xf] %vm177, %v4568
        %4652 = vst.msk [vmem:[#allocation3 + $0x9c] sm:$0xf] %vm177, %v4570
        %4653 = vst.msk [vmem:[#allocation3 + $0xa8] sm:$0xf] %vm177, %v4572
        %4654 = vst.msk [vmem:[#allocation3 + $0xb4] sm:$0xf] %vm177, %v4574
        %4655 = vst.msk [vmem:[#allocation3 + $0xc0] sm:$0xf] %vm177, %v4576
        %4656 = vst.msk [vmem:[#allocation3 + $0xcc] sm:$0xf] %vm177, %v4578
        %4657 = vst.msk [vmem:[#allocation3 + $0xd8] sm:$0xf] %vm177, %v4580
        %4658 = vst.msk [vmem:[#allocation3 + $0xe4] sm:$0xf] %vm177, %v4582
        %4659 = vst.msk [vmem:[#allocation3 + $0xf0] sm:$0xf] %vm177, %v4584
        %4660 = vst.msk [vmem:[#allocation3 + $0xfc] sm:$0xf] %vm177, %v4586
        %4661 = vst.msk [vmem:[#allocation3 + $0x108] sm:$0xf] %vm177, %v4588
        %4662 = vst.msk [vmem:[#allocation3 + $0x114] sm:$0xf] %vm177, %v4590
        %4663 = vst.msk [vmem:[#allocation3 + $0x120] sm:$0xf] %vm177, %v4592
        %4664 = vst.msk [vmem:[#allocation3 + $0x12c] sm:$0xf] %vm177, %v4594
        %4665 = vst.msk [vmem:[#allocation3 + $0x138] sm:$0xf] %vm177, %v4596
        %4666 = vst.msk [vmem:[#allocation3 + $0x144] sm:$0xf] %vm177, %v4598
        %4667 = vst.msk [vmem:[#allocation3 + $0x150] sm:$0xf] %vm177, %v4600
        %4668 = vst.msk [vmem:[#allocation3 + $0x15c] sm:$0xf] %vm177, %v4602
        %4669 = vst.msk [vmem:[#allocation3 + $0x168] sm:$0xf] %vm177, %v4604
        %4670 = vst.msk [vmem:[#allocation3 + $0x174] sm:$0xf] %vm177, %v4606
        %v4671 = vld [vmem:[#allocation2 + $0x9] sm:$0xff]
        %v4672 = vld [vmem:[#allocation2 + $0x11] sm:$0xff]
        %v4673 = vld [vmem:[#allocation2 + $0x19] sm:$0xff]
        %v4674 = vld [vmem:[#allocation2 + $0x21] sm:$0xff]
        %v4675 = vld [vmem:[#allocation2 + $0x29] sm:$0xff]
        %v4676 = vld [vmem:[#allocation2 + $0x31] sm:$0xff]
        %v4677 = vld [vmem:[#allocation2 + $0x39] sm:$0xff]
        %v4678 = vld [vmem:[#allocation2 + $0x41] sm:$0xff]
        %v4679 = vld [vmem:[#allocation2 + $0x49] sm:$0xff]
        %v4680 = vld [vmem:[#allocation2 + $0x51] sm:$0xff]
        %v4681 = vld [vmem:[#allocation2 + $0x59] sm:$0xff]
        %v4682 = vld [vmem:[#allocation2 + $0x61] sm:$0xff]
        %v4683 = vld [vmem:[#allocation2 + $0x69] sm:$0xff]
        %v4684 = vld [vmem:[#allocation2 + $0x71] sm:$0xff]
        %v4685 = vld [vmem:[#allocation2 + $0x79] sm:$0xff]
        %v4686 = vld [vmem:[#allocation2 + $0x81] sm:$0xff]
        %v4687 = vld [vmem:[#allocation2 + $0x89] sm:$0xff]
        %v4688 = vld [vmem:[#allocation2 + $0x91] sm:$0xff]
        %v4689 = vld [vmem:[#allocation2 + $0x99] sm:$0xff]
        %v4690 = vld [vmem:[#allocation2 + $0xa1] sm:$0xff]
        %v4691 = vld [vmem:[#allocation2 + $0xa9] sm:$0xff]
        %v4692 = vld [vmem:[#allocation2 + $0xb1] sm:$0xff]
        %v4693 = vld [vmem:[#allocation2 + $0xb9] sm:$0xff]
        %v4694 = vld [vmem:[#allocation2 + $0xc1] sm:$0xff]
        %v4695 = vld [vmem:[#allocation2 + $0xc9] sm:$0xff]
        %v4696 = vld [vmem:[#allocation2 + $0xd1] sm:$0xff]
        %v4697 = vld [vmem:[#allocation2 + $0xd9] sm:$0xff]
        %v4698 = vld [vmem:[#allocation2 + $0xe1] sm:$0xff]
        %v4699 = vld [vmem:[#allocation2 + $0xe9] sm:$0xff]
        %v4700 = vld [vmem:[#allocation2 + $0xf1] sm:$0xff]
        %v4701 = vld [vmem:[#allocation2 + $0xf9] sm:$0xff]
        %v4702 = vld [vmem:[#allocation2 + $0x101] sm:$0xff]
        %v4703 = vsel %vm373, %v4671, 0.0
        %v4704 = vsel %vm374, %v4672, 0.0
        %v4705 = vsel %vm375, %v4673, 0.0
        %v4706 = vsel %vm376, %v4674, 0.0
        %v4707 = vsel %vm377, %v4675, 0.0
        %v4708 = vsel %vm378, %v4676, 0.0
        %v4709 = vsel %vm379, %v4677, 0.0
        %v4710 = vsel %vm380, %v4678, 0.0
        %v4711 = vsel %vm381, %v4679, 0.0
        %v4712 = vsel %vm382, %v4680, 0.0
        %v4713 = vsel %vm383, %v4681, 0.0
        %v4714 = vsel %vm384, %v4682, 0.0
        %v4715 = vsel %vm385, %v4683, 0.0
        %v4716 = vsel %vm386, %v4684, 0.0
        %v4717 = vsel %vm387, %v4685, 0.0
        %v4718 = vsel %vm388, %v4686, 0.0
        %v4719 = vsel %vm389, %v4687, 0.0
        %v4720 = vsel %vm390, %v4688, 0.0
        %v4721 = vsel %vm391, %v4689, 0.0
        %v4722 = vsel %vm392, %v4690, 0.0
        %v4723 = vsel %vm393, %v4691, 0.0
        %v4724 = vsel %vm394, %v4692, 0.0
        %v4725 = vsel %vm395, %v4693, 0.0
        %v4726 = vsel %vm396, %v4694, 0.0
        %v4727 = vsel %vm397, %v4695, 0.0
        %v4728 = vsel %vm398, %v4696, 0.0
        %v4729 = vsel %vm399, %v4697, 0.0
        %v4730 = vsel %vm400, %v4698, 0.0
        %v4731 = vsel %vm401, %v4699, 0.0
        %v4732 = vsel %vm402, %v4700, 0.0
        %v4733 = vsel %vm403, %v4701, 0.0
        %v4734 = vsel %vm404, %v4702, 0.0
        %v4735 = vpack.c.bf16 %v4704, %v4703
        %v4736 = vpack.c.bf16 %v4706, %v4705
        %v4737 = vpack.c.bf16 %v4708, %v4707
        %v4738 = vpack.c.bf16 %v4710, %v4709
        %v4739 = vpack.c.bf16 %v4712, %v4711
        %v4740 = vpack.c.bf16 %v4714, %v4713
        %v4741 = vpack.c.bf16 %v4716, %v4715
        %v4742 = vpack.c.bf16 %v4718, %v4717
        %v4743 = vpack.c.bf16 %v4720, %v4719
        %v4744 = vpack.c.bf16 %v4722, %v4721
        %v4745 = vpack.c.bf16 %v4724, %v4723
        %v4746 = vpack.c.bf16 %v4726, %v4725
        %v4747 = vpack.c.bf16 %v4728, %v4727
        %v4748 = vpack.c.bf16 %v4730, %v4729
        %v4749 = vpack.c.bf16 %v4732, %v4731
        %v4750 = vpack.c.bf16 %v4734, %v4733
        %v4767 = vunpack.c.l.b16 %v4735
        %v4768 = vunpack.c.h.b16 %v4735
        %v4769 = vunpack.c.l.b16 %v4736
        %v4770 = vunpack.c.h.b16 %v4736
        %v4771 = vunpack.c.l.b16 %v4737
        %v4772 = vunpack.c.h.b16 %v4737
        %v4773 = vunpack.c.l.b16 %v4738
        %v4774 = vunpack.c.h.b16 %v4738
        %v4775 = vunpack.c.l.b16 %v4739
        %v4776 = vunpack.c.h.b16 %v4739
        %v4777 = vunpack.c.l.b16 %v4740
        %v4778 = vunpack.c.h.b16 %v4740
        %v4779 = vunpack.c.l.b16 %v4741
        %v4780 = vunpack.c.h.b16 %v4741
        %v4781 = vunpack.c.l.b16 %v4742
        %v4782 = vunpack.c.h.b16 %v4742
        %v4783 = vunpack.c.l.b16 %v4743
        %v4784 = vunpack.c.h.b16 %v4743
        %v4785 = vunpack.c.l.b16 %v4744
        %v4786 = vunpack.c.h.b16 %v4744
        %v4787 = vunpack.c.l.b16 %v4745
        %v4788 = vunpack.c.h.b16 %v4745
        %v4789 = vunpack.c.l.b16 %v4746
        %v4790 = vunpack.c.h.b16 %v4746
        %v4791 = vunpack.c.l.b16 %v4747
        %v4792 = vunpack.c.h.b16 %v4747
        %v4793 = vunpack.c.l.b16 %v4748
        %v4794 = vunpack.c.h.b16 %v4748
        %v4795 = vunpack.c.l.b16 %v4749
        %v4796 = vunpack.c.h.b16 %v4749
        %v4797 = vunpack.c.l.b16 %v4750
        %v4798 = vunpack.c.h.b16 %v4750
        %v4799 = vpack.c.b16 %v4767, %v4767
        %v4800 = vpack.c.b16 %v4768, %v4768
        %v4801 = vpack.c.b16 %v4769, %v4769
        %v4802 = vpack.c.b16 %v4770, %v4770
        %v4803 = vpack.c.b16 %v4771, %v4771
        %v4804 = vpack.c.b16 %v4772, %v4772
        %v4805 = vpack.c.b16 %v4773, %v4773
        %v4806 = vpack.c.b16 %v4774, %v4774
        %v4807 = vpack.c.b16 %v4775, %v4775
        %v4808 = vpack.c.b16 %v4776, %v4776
        %v4809 = vpack.c.b16 %v4777, %v4777
        %v4810 = vpack.c.b16 %v4778, %v4778
        %v4811 = vpack.c.b16 %v4779, %v4779
        %v4812 = vpack.c.b16 %v4780, %v4780
        %v4813 = vpack.c.b16 %v4781, %v4781
        %v4814 = vpack.c.b16 %v4782, %v4782
        %v4815 = vpack.c.b16 %v4783, %v4783
        %v4816 = vpack.c.b16 %v4784, %v4784
        %v4817 = vpack.c.b16 %v4785, %v4785
        %v4818 = vpack.c.b16 %v4786, %v4786
        %v4819 = vpack.c.b16 %v4787, %v4787
        %v4820 = vpack.c.b16 %v4788, %v4788
        %v4821 = vpack.c.b16 %v4789, %v4789
        %v4822 = vpack.c.b16 %v4790, %v4790
        %v4823 = vpack.c.b16 %v4791, %v4791
        %v4824 = vpack.c.b16 %v4792, %v4792
        %v4825 = vpack.c.b16 %v4793, %v4793
        %v4826 = vpack.c.b16 %v4794, %v4794
        %v4827 = vpack.c.b16 %v4795, %v4795
        %v4828 = vpack.c.b16 %v4796, %v4796
        %v4829 = vpack.c.b16 %v4797, %v4797
        %v4830 = vpack.c.b16 %v4798, %v4798
        %4831 = vrot.lane.b32.xlu0 %v4799, 64
        %v4832 = vpop.permute.xlu0 %4831
        %4833 = vrot.lane.b32.xlu0 %v4800, 64
        %v4834 = vpop.permute.xlu0 %4833
        %4835 = vrot.lane.b32.xlu0 %v4801, 64
        %v4836 = vpop.permute.xlu0 %4835
        %4837 = vrot.lane.b32.xlu0 %v4802, 64
        %v4838 = vpop.permute.xlu0 %4837
        %4839 = vrot.lane.b32.xlu0 %v4803, 64
        %v4840 = vpop.permute.xlu0 %4839
        %4841 = vrot.lane.b32.xlu0 %v4804, 64
        %v4842 = vpop.permute.xlu0 %4841
        %4843 = vrot.lane.b32.xlu0 %v4805, 64
        %v4844 = vpop.permute.xlu0 %4843
        %4845 = vrot.lane.b32.xlu0 %v4806, 64
        %v4846 = vpop.permute.xlu0 %4845
        %4847 = vrot.lane.b32.xlu0 %v4807, 64
        %v4848 = vpop.permute.xlu0 %4847
        %4849 = vrot.lane.b32.xlu0 %v4808, 64
        %v4850 = vpop.permute.xlu0 %4849
        %4851 = vrot.lane.b32.xlu0 %v4809, 64
        %v4852 = vpop.permute.xlu0 %4851
        %4853 = vrot.lane.b32.xlu0 %v4810, 64
        %v4854 = vpop.permute.xlu0 %4853
        %4855 = vrot.lane.b32.xlu0 %v4811, 64
        %v4856 = vpop.permute.xlu0 %4855
        %4857 = vrot.lane.b32.xlu0 %v4812, 64
        %v4858 = vpop.permute.xlu0 %4857
        %4859 = vrot.lane.b32.xlu0 %v4813, 64
        %v4860 = vpop.permute.xlu0 %4859
        %4861 = vrot.lane.b32.xlu0 %v4814, 64
        %v4862 = vpop.permute.xlu0 %4861
        %4863 = vrot.lane.b32.xlu0 %v4815, 64
        %v4864 = vpop.permute.xlu0 %4863
        %4865 = vrot.lane.b32.xlu0 %v4816, 64
        %v4866 = vpop.permute.xlu0 %4865
        %4867 = vrot.lane.b32.xlu0 %v4817, 64
        %v4868 = vpop.permute.xlu0 %4867
        %4869 = vrot.lane.b32.xlu0 %v4818, 64
        %v4870 = vpop.permute.xlu0 %4869
        %4871 = vrot.lane.b32.xlu0 %v4819, 64
        %v4872 = vpop.permute.xlu0 %4871
        %4873 = vrot.lane.b32.xlu0 %v4820, 64
        %v4874 = vpop.permute.xlu0 %4873
        %4875 = vrot.lane.b32.xlu0 %v4821, 64
        %v4876 = vpop.permute.xlu0 %4875
        %4877 = vrot.lane.b32.xlu0 %v4822, 64
        %v4878 = vpop.permute.xlu0 %4877
        %4879 = vrot.lane.b32.xlu0 %v4823, 64
        %v4880 = vpop.permute.xlu0 %4879
        %4881 = vrot.lane.b32.xlu0 %v4824, 64
        %v4882 = vpop.permute.xlu0 %4881
        %4883 = vrot.lane.b32.xlu0 %v4825, 64
        %v4884 = vpop.permute.xlu0 %4883
        %4885 = vrot.lane.b32.xlu0 %v4826, 64
        %v4886 = vpop.permute.xlu0 %4885
        %4887 = vrot.lane.b32.xlu0 %v4827, 64
        %v4888 = vpop.permute.xlu0 %4887
        %4889 = vrot.lane.b32.xlu0 %v4828, 64
        %v4890 = vpop.permute.xlu0 %4889
        %4891 = vrot.lane.b32.xlu0 %v4829, 64
        %v4892 = vpop.permute.xlu0 %4891
        %4893 = vrot.lane.b32.xlu0 %v4830, 64
        %v4894 = vpop.permute.xlu0 %4893
        %4927 = vst.msk [vmem:[#allocation3] sm:$0xf] %vm210, %v4832
        %4928 = vst.msk [vmem:[#allocation3 + $0xc] sm:$0xf] %vm210, %v4834
        %4929 = vst.msk [vmem:[#allocation3 + $0x18] sm:$0xf] %vm210, %v4836
        %4930 = vst.msk [vmem:[#allocation3 + $0x24] sm:$0xf] %vm210, %v4838
        %4931 = vst.msk [vmem:[#allocation3 + $0x30] sm:$0xf] %vm210, %v4840
        %4932 = vst.msk [vmem:[#allocation3 + $0x3c] sm:$0xf] %vm210, %v4842
        %4933 = vst.msk [vmem:[#allocation3 + $0x48] sm:$0xf] %vm210, %v4844
        %4934 = vst.msk [vmem:[#allocation3 + $0x54] sm:$0xf] %vm210, %v4846
        %4935 = vst.msk [vmem:[#allocation3 + $0x60] sm:$0xf] %vm210, %v4848
        %4936 = vst.msk [vmem:[#allocation3 + $0x6c] sm:$0xf] %vm210, %v4850
        %4937 = vst.msk [vmem:[#allocation3 + $0x78] sm:$0xf] %vm210, %v4852
        %4938 = vst.msk [vmem:[#allocation3 + $0x84] sm:$0xf] %vm210, %v4854
        %4939 = vst.msk [vmem:[#allocation3 + $0x90] sm:$0xf] %vm210, %v4856
        %4940 = vst.msk [vmem:[#allocation3 + $0x9c] sm:$0xf] %vm210, %v4858
        %4941 = vst.msk [vmem:[#allocation3 + $0xa8] sm:$0xf] %vm210, %v4860
        %4942 = vst.msk [vmem:[#allocation3 + $0xb4] sm:$0xf] %vm210, %v4862
        %4943 = vst.msk [vmem:[#allocation3 + $0xc0] sm:$0xf] %vm210, %v4864
        %4944 = vst.msk [vmem:[#allocation3 + $0xcc] sm:$0xf] %vm210, %v4866
        %4945 = vst.msk [vmem:[#allocation3 + $0xd8] sm:$0xf] %vm210, %v4868
        %4946 = vst.msk [vmem:[#allocation3 + $0xe4] sm:$0xf] %vm210, %v4870
        %4947 = vst.msk [vmem:[#allocation3 + $0xf0] sm:$0xf] %vm210, %v4872
        %4948 = vst.msk [vmem:[#allocation3 + $0xfc] sm:$0xf] %vm210, %v4874
        %4949 = vst.msk [vmem:[#allocation3 + $0x108] sm:$0xf] %vm210, %v4876
        %4950 = vst.msk [vmem:[#allocation3 + $0x114] sm:$0xf] %vm210, %v4878
        %4951 = vst.msk [vmem:[#allocation3 + $0x120] sm:$0xf] %vm210, %v4880
        %4952 = vst.msk [vmem:[#allocation3 + $0x12c] sm:$0xf] %vm210, %v4882
        %4953 = vst.msk [vmem:[#allocation3 + $0x138] sm:$0xf] %vm210, %v4884
        %4954 = vst.msk [vmem:[#allocation3 + $0x144] sm:$0xf] %vm210, %v4886
        %4955 = vst.msk [vmem:[#allocation3 + $0x150] sm:$0xf] %vm210, %v4888
        %4956 = vst.msk [vmem:[#allocation3 + $0x15c] sm:$0xf] %vm210, %v4890
        %4957 = vst.msk [vmem:[#allocation3 + $0x168] sm:$0xf] %vm210, %v4892
        %4958 = vst.msk [vmem:[#allocation3 + $0x174] sm:$0xf] %vm210, %v4894
        %v4959 = vld [vmem:[#allocation2 + $0x17] sm:$0xff]
        %v4960 = vld [vmem:[#allocation2 + $0x1f] sm:$0xff]
        %v4961 = vld [vmem:[#allocation2 + $0x27] sm:$0xff]
        %v4962 = vld [vmem:[#allocation2 + $0x2f] sm:$0xff]
        %v4963 = vld [vmem:[#allocation2 + $0x37] sm:$0xff]
        %v4964 = vld [vmem:[#allocation2 + $0x3f] sm:$0xff]
        %v4965 = vld [vmem:[#allocation2 + $0x47] sm:$0xff]
        %v4966 = vld [vmem:[#allocation2 + $0x4f] sm:$0xff]
        %v4967 = vld [vmem:[#allocation2 + $0x57] sm:$0xff]
        %v4968 = vld [vmem:[#allocation2 + $0x5f] sm:$0xff]
        %v4969 = vld [vmem:[#allocation2 + $0x67] sm:$0xff]
        %v4970 = vld [vmem:[#allocation2 + $0x6f] sm:$0xff]
        %v4971 = vld [vmem:[#allocation2 + $0x77] sm:$0xff]
        %v4972 = vld [vmem:[#allocation2 + $0x7f] sm:$0xff]
        %v4973 = vld [vmem:[#allocation2 + $0x87] sm:$0xff]
        %v4974 = vld [vmem:[#allocation2 + $0x8f] sm:$0xff]
        %v4975 = vld [vmem:[#allocation2 + $0x97] sm:$0xff]
        %v4976 = vld [vmem:[#allocation2 + $0x9f] sm:$0xff]
        %v4977 = vld [vmem:[#allocation2 + $0xa7] sm:$0xff]
        %v4978 = vld [vmem:[#allocation2 + $0xaf] sm:$0xff]
        %v4979 = vld [vmem:[#allocation2 + $0xb7] sm:$0xff]
        %v4980 = vld [vmem:[#allocation2 + $0xbf] sm:$0xff]
        %v4981 = vld [vmem:[#allocation2 + $0xc7] sm:$0xff]
        %v4982 = vld [vmem:[#allocation2 + $0xcf] sm:$0xff]
        %v4983 = vld [vmem:[#allocation2 + $0xd7] sm:$0xff]
        %v4984 = vld [vmem:[#allocation2 + $0xdf] sm:$0xff]
        %v4985 = vld [vmem:[#allocation2 + $0xe7] sm:$0xff]
        %v4986 = vld [vmem:[#allocation2 + $0xef] sm:$0xff]
        %v4987 = vld [vmem:[#allocation2 + $0xf7] sm:$0xff]
        %v4988 = vld [vmem:[#allocation2 + $0xff] sm:$0xff]
        %v4989 = vld [vmem:[#allocation2 + $0x107] sm:$0xff]
        %v4990 = vld [vmem:[#allocation2 + $0x10f] sm:$0xff]
        %v4991 = vsel %vm341, %v4959, 0.0
        %v4992 = vsel %vm342, %v4960, 0.0
        %v4993 = vsel %vm343, %v4961, 0.0
        %v4994 = vsel %vm344, %v4962, 0.0
        %v4995 = vsel %vm345, %v4963, 0.0
        %v4996 = vsel %vm346, %v4964, 0.0
        %v4997 = vsel %vm347, %v4965, 0.0
        %v4998 = vsel %vm348, %v4966, 0.0
        %v4999 = vsel %vm349, %v4967, 0.0
        %v5000 = vsel %vm350, %v4968, 0.0
        %v5001 = vsel %vm351, %v4969, 0.0
        %v5002 = vsel %vm352, %v4970, 0.0
        %v5003 = vsel %vm353, %v4971, 0.0
        %v5004 = vsel %vm354, %v4972, 0.0
        %v5005 = vsel %vm355, %v4973, 0.0
        %v5006 = vsel %vm356, %v4974, 0.0
        %v5007 = vsel %vm357, %v4975, 0.0
        %v5008 = vsel %vm358, %v4976, 0.0
        %v5009 = vsel %vm359, %v4977, 0.0
        %v5010 = vsel %vm360, %v4978, 0.0
        %v5011 = vsel %vm361, %v4979, 0.0
        %v5012 = vsel %vm362, %v4980, 0.0
        %v5013 = vsel %vm363, %v4981, 0.0
        %v5014 = vsel %vm364, %v4982, 0.0
        %v5015 = vsel %vm365, %v4983, 0.0
        %v5016 = vsel %vm366, %v4984, 0.0
        %v5017 = vsel %vm367, %v4985, 0.0
        %v5018 = vsel %vm368, %v4986, 0.0
        %v5019 = vsel %vm369, %v4987, 0.0
        %v5020 = vsel %vm370, %v4988, 0.0
        %v5021 = vsel %vm371, %v4989, 0.0
        %v5022 = vsel %vm372, %v4990, 0.0
        %v5023 = vpack.c.bf16 %v4992, %v4991
        %v5024 = vpack.c.bf16 %v4994, %v4993
        %v5025 = vpack.c.bf16 %v4996, %v4995
        %v5026 = vpack.c.bf16 %v4998, %v4997
        %v5027 = vpack.c.bf16 %v5000, %v4999
        %v5028 = vpack.c.bf16 %v5002, %v5001
        %v5029 = vpack.c.bf16 %v5004, %v5003
        %v5030 = vpack.c.bf16 %v5006, %v5005
        %v5031 = vpack.c.bf16 %v5008, %v5007
        %v5032 = vpack.c.bf16 %v5010, %v5009
        %v5033 = vpack.c.bf16 %v5012, %v5011
        %v5034 = vpack.c.bf16 %v5014, %v5013
        %v5035 = vpack.c.bf16 %v5016, %v5015
        %v5036 = vpack.c.bf16 %v5018, %v5017
        %v5037 = vpack.c.bf16 %v5020, %v5019
        %v5038 = vpack.c.bf16 %v5022, %v5021
        %v5055 = vunpack.c.l.b16 %v5023
        %v5056 = vunpack.c.h.b16 %v5023
        %v5057 = vunpack.c.l.b16 %v5024
        %v5058 = vunpack.c.h.b16 %v5024
        %v5059 = vunpack.c.l.b16 %v5025
        %v5060 = vunpack.c.h.b16 %v5025
        %v5061 = vunpack.c.l.b16 %v5026
        %v5062 = vunpack.c.h.b16 %v5026
        %v5063 = vunpack.c.l.b16 %v5027
        %v5064 = vunpack.c.h.b16 %v5027
        %v5065 = vunpack.c.l.b16 %v5028
        %v5066 = vunpack.c.h.b16 %v5028
        %v5067 = vunpack.c.l.b16 %v5029
        %v5068 = vunpack.c.h.b16 %v5029
        %v5069 = vunpack.c.l.b16 %v5030
        %v5070 = vunpack.c.h.b16 %v5030
        %v5071 = vunpack.c.l.b16 %v5031
        %v5072 = vunpack.c.h.b16 %v5031
        %v5073 = vunpack.c.l.b16 %v5032
        %v5074 = vunpack.c.h.b16 %v5032
        %v5075 = vunpack.c.l.b16 %v5033
        %v5076 = vunpack.c.h.b16 %v5033
        %v5077 = vunpack.c.l.b16 %v5034
        %v5078 = vunpack.c.h.b16 %v5034
        %v5079 = vunpack.c.l.b16 %v5035
        %v5080 = vunpack.c.h.b16 %v5035
        %v5081 = vunpack.c.l.b16 %v5036
        %v5082 = vunpack.c.h.b16 %v5036
        %v5083 = vunpack.c.l.b16 %v5037
        %v5084 = vunpack.c.h.b16 %v5037
        %v5085 = vunpack.c.l.b16 %v5038
        %v5086 = vunpack.c.h.b16 %v5038
        %v5087 = vpack.c.b16 %v5055, %v5055
        %v5088 = vpack.c.b16 %v5056, %v5056
        %v5089 = vpack.c.b16 %v5057, %v5057
        %v5090 = vpack.c.b16 %v5058, %v5058
        %v5091 = vpack.c.b16 %v5059, %v5059
        %v5092 = vpack.c.b16 %v5060, %v5060
        %v5093 = vpack.c.b16 %v5061, %v5061
        %v5094 = vpack.c.b16 %v5062, %v5062
        %v5095 = vpack.c.b16 %v5063, %v5063
        %v5096 = vpack.c.b16 %v5064, %v5064
        %v5097 = vpack.c.b16 %v5065, %v5065
        %v5098 = vpack.c.b16 %v5066, %v5066
        %v5099 = vpack.c.b16 %v5067, %v5067
        %v5100 = vpack.c.b16 %v5068, %v5068
        %v5101 = vpack.c.b16 %v5069, %v5069
        %v5102 = vpack.c.b16 %v5070, %v5070
        %v5103 = vpack.c.b16 %v5071, %v5071
        %v5104 = vpack.c.b16 %v5072, %v5072
        %v5105 = vpack.c.b16 %v5073, %v5073
        %v5106 = vpack.c.b16 %v5074, %v5074
        %v5107 = vpack.c.b16 %v5075, %v5075
        %v5108 = vpack.c.b16 %v5076, %v5076
        %v5109 = vpack.c.b16 %v5077, %v5077
        %v5110 = vpack.c.b16 %v5078, %v5078
        %v5111 = vpack.c.b16 %v5079, %v5079
        %v5112 = vpack.c.b16 %v5080, %v5080
        %v5113 = vpack.c.b16 %v5081, %v5081
        %v5114 = vpack.c.b16 %v5082, %v5082
        %v5115 = vpack.c.b16 %v5083, %v5083
        %v5116 = vpack.c.b16 %v5084, %v5084
        %v5117 = vpack.c.b16 %v5085, %v5085
        %v5118 = vpack.c.b16 %v5086, %v5086
        %5119 = vrot.lane.b32.xlu0 %v5087, 96
        %v5120 = vpop.permute.xlu0 %5119
        %5121 = vrot.lane.b32.xlu0 %v5088, 96
        %v5122 = vpop.permute.xlu0 %5121
        %5123 = vrot.lane.b32.xlu0 %v5089, 96
        %v5124 = vpop.permute.xlu0 %5123
        %5125 = vrot.lane.b32.xlu0 %v5090, 96
        %v5126 = vpop.permute.xlu0 %5125
        %5127 = vrot.lane.b32.xlu0 %v5091, 96
        %v5128 = vpop.permute.xlu0 %5127
        %5129 = vrot.lane.b32.xlu0 %v5092, 96
        %v5130 = vpop.permute.xlu0 %5129
        %5131 = vrot.lane.b32.xlu0 %v5093, 96
        %v5132 = vpop.permute.xlu0 %5131
        %5133 = vrot.lane.b32.xlu0 %v5094, 96
        %v5134 = vpop.permute.xlu0 %5133
        %5135 = vrot.lane.b32.xlu0 %v5095, 96
        %v5136 = vpop.permute.xlu0 %5135
        %5137 = vrot.lane.b32.xlu0 %v5096, 96
        %v5138 = vpop.permute.xlu0 %5137
        %5139 = vrot.lane.b32.xlu0 %v5097, 96
        %v5140 = vpop.permute.xlu0 %5139
        %5141 = vrot.lane.b32.xlu0 %v5098, 96
        %v5142 = vpop.permute.xlu0 %5141
        %5143 = vrot.lane.b32.xlu0 %v5099, 96
        %v5144 = vpop.permute.xlu0 %5143
        %5145 = vrot.lane.b32.xlu0 %v5100, 96
        %v5146 = vpop.permute.xlu0 %5145
        %5147 = vrot.lane.b32.xlu0 %v5101, 96
        %v5148 = vpop.permute.xlu0 %5147
        %5149 = vrot.lane.b32.xlu0 %v5102, 96
        %v5150 = vpop.permute.xlu0 %5149
        %5151 = vrot.lane.b32.xlu0 %v5103, 96
        %v5152 = vpop.permute.xlu0 %5151
        %5153 = vrot.lane.b32.xlu0 %v5104, 96
        %v5154 = vpop.permute.xlu0 %5153
        %5155 = vrot.lane.b32.xlu0 %v5105, 96
        %v5156 = vpop.permute.xlu0 %5155
        %5157 = vrot.lane.b32.xlu0 %v5106, 96
        %v5158 = vpop.permute.xlu0 %5157
        %5159 = vrot.lane.b32.xlu0 %v5107, 96
        %v5160 = vpop.permute.xlu0 %5159
        %5161 = vrot.lane.b32.xlu0 %v5108, 96
        %v5162 = vpop.permute.xlu0 %5161
        %5163 = vrot.lane.b32.xlu0 %v5109, 96
        %v5164 = vpop.permute.xlu0 %5163
        %5165 = vrot.lane.b32.xlu0 %v5110, 96
        %v5166 = vpop.permute.xlu0 %5165
        %5167 = vrot.lane.b32.xlu0 %v5111, 96
        %v5168 = vpop.permute.xlu0 %5167
        %5169 = vrot.lane.b32.xlu0 %v5112, 96
        %v5170 = vpop.permute.xlu0 %5169
        %5171 = vrot.lane.b32.xlu0 %v5113, 96
        %v5172 = vpop.permute.xlu0 %5171
        %5173 = vrot.lane.b32.xlu0 %v5114, 96
        %v5174 = vpop.permute.xlu0 %5173
        %5175 = vrot.lane.b32.xlu0 %v5115, 96
        %v5176 = vpop.permute.xlu0 %5175
        %5177 = vrot.lane.b32.xlu0 %v5116, 96
        %v5178 = vpop.permute.xlu0 %5177
        %5179 = vrot.lane.b32.xlu0 %v5117, 96
        %v5180 = vpop.permute.xlu0 %5179
        %5181 = vrot.lane.b32.xlu0 %v5118, 96
        %v5182 = vpop.permute.xlu0 %5181
        %5215 = vst.msk [vmem:[#allocation3] sm:$0xf] %vm243, %v5120
        %5216 = vst.msk [vmem:[#allocation3 + $0xc] sm:$0xf] %vm243, %v5122
        %5217 = vst.msk [vmem:[#allocation3 + $0x18] sm:$0xf] %vm243, %v5124
        %5218 = vst.msk [vmem:[#allocation3 + $0x24] sm:$0xf] %vm243, %v5126
        %5219 = vst.msk [vmem:[#allocation3 + $0x30] sm:$0xf] %vm243, %v5128
        %5220 = vst.msk [vmem:[#allocation3 + $0x3c] sm:$0xf] %vm243, %v5130
        %5221 = vst.msk [vmem:[#allocation3 + $0x48] sm:$0xf] %vm243, %v5132
        %5222 = vst.msk [vmem:[#allocation3 + $0x54] sm:$0xf] %vm243, %v5134
        %5223 = vst.msk [vmem:[#allocation3 + $0x60] sm:$0xf] %vm243, %v5136
        %5224 = vst.msk [vmem:[#allocation3 + $0x6c] sm:$0xf] %vm243, %v5138
        %5225 = vst.msk [vmem:[#allocation3 + $0x78] sm:$0xf] %vm243, %v5140
        %5226 = vst.msk [vmem:[#allocation3 + $0x84] sm:$0xf] %vm243, %v5142
        %5227 = vst.msk [vmem:[#allocation3 + $0x90] sm:$0xf] %vm243, %v5144
        %5228 = vst.msk [vmem:[#allocation3 + $0x9c] sm:$0xf] %vm243, %v5146
        %5229 = vst.msk [vmem:[#allocation3 + $0xa8] sm:$0xf] %vm243, %v5148
        %5230 = vst.msk [vmem:[#allocation3 + $0xb4] sm:$0xf] %vm243, %v5150
        %5231 = vst.msk [vmem:[#allocation3 + $0xc0] sm:$0xf] %vm243, %v5152
        %5232 = vst.msk [vmem:[#allocation3 + $0xcc] sm:$0xf] %vm243, %v5154
        %5233 = vst.msk [vmem:[#allocation3 + $0xd8] sm:$0xf] %vm243, %v5156
        %5234 = vst.msk [vmem:[#allocation3 + $0xe4] sm:$0xf] %vm243, %v5158
        %5235 = vst.msk [vmem:[#allocation3 + $0xf0] sm:$0xf] %vm243, %v5160
        %5236 = vst.msk [vmem:[#allocation3 + $0xfc] sm:$0xf] %vm243, %v5162
        %5237 = vst.msk [vmem:[#allocation3 + $0x108] sm:$0xf] %vm243, %v5164
        %5238 = vst.msk [vmem:[#allocation3 + $0x114] sm:$0xf] %vm243, %v5166
        %5239 = vst.msk [vmem:[#allocation3 + $0x120] sm:$0xf] %vm243, %v5168
        %5240 = vst.msk [vmem:[#allocation3 + $0x12c] sm:$0xf] %vm243, %v5170
        %5241 = vst.msk [vmem:[#allocation3 + $0x138] sm:$0xf] %vm243, %v5172
        %5242 = vst.msk [vmem:[#allocation3 + $0x144] sm:$0xf] %vm243, %v5174
        %5243 = vst.msk [vmem:[#allocation3 + $0x150] sm:$0xf] %vm243, %v5176
        %5244 = vst.msk [vmem:[#allocation3 + $0x15c] sm:$0xf] %vm243, %v5178
        %5245 = vst.msk [vmem:[#allocation3 + $0x168] sm:$0xf] %vm243, %v5180
        %5246 = vst.msk [vmem:[#allocation3 + $0x174] sm:$0xf] %vm243, %v5182
        %v5247 = vld [vmem:[#allocation2 + $0x18] sm:$0xff]
        %v5248 = vld [vmem:[#allocation2 + $0x20] sm:$0xff]
        %v5249 = vld [vmem:[#allocation2 + $0x28] sm:$0xff]
        %v5250 = vld [vmem:[#allocation2 + $0x30] sm:$0xff]
        %v5251 = vld [vmem:[#allocation2 + $0x38] sm:$0xff]
        %v5252 = vld [vmem:[#allocation2 + $0x40] sm:$0xff]
        %v5253 = vld [vmem:[#allocation2 + $0x48] sm:$0xff]
        %v5254 = vld [vmem:[#allocation2 + $0x50] sm:$0xff]
        %v5255 = vld [vmem:[#allocation2 + $0x58] sm:$0xff]
        %v5256 = vld [vmem:[#allocation2 + $0x60] sm:$0xff]
        %v5257 = vld [vmem:[#allocation2 + $0x68] sm:$0xff]
        %v5258 = vld [vmem:[#allocation2 + $0x70] sm:$0xff]
        %v5259 = vld [vmem:[#allocation2 + $0x78] sm:$0xff]
        %v5260 = vld [vmem:[#allocation2 + $0x80] sm:$0xff]
        %v5261 = vld [vmem:[#allocation2 + $0x88] sm:$0xff]
        %v5262 = vld [vmem:[#allocation2 + $0x90] sm:$0xff]
        %v5263 = vld [vmem:[#allocation2 + $0x98] sm:$0xff]
        %v5264 = vld [vmem:[#allocation2 + $0xa0] sm:$0xff]
        %v5265 = vld [vmem:[#allocation2 + $0xa8] sm:$0xff]
        %v5266 = vld [vmem:[#allocation2 + $0xb0] sm:$0xff]
        %v5267 = vld [vmem:[#allocation2 + $0xb8] sm:$0xff]
        %v5268 = vld [vmem:[#allocation2 + $0xc0] sm:$0xff]
        %v5269 = vld [vmem:[#allocation2 + $0xc8] sm:$0xff]
        %v5270 = vld [vmem:[#allocation2 + $0xd0] sm:$0xff]
        %v5271 = vld [vmem:[#allocation2 + $0xd8] sm:$0xff]
        %v5272 = vld [vmem:[#allocation2 + $0xe0] sm:$0xff]
        %v5273 = vld [vmem:[#allocation2 + $0xe8] sm:$0xff]
        %v5274 = vld [vmem:[#allocation2 + $0xf0] sm:$0xff]
        %v5275 = vld [vmem:[#allocation2 + $0xf8] sm:$0xff]
        %v5276 = vld [vmem:[#allocation2 + $0x100] sm:$0xff]
        %v5277 = vld [vmem:[#allocation2 + $0x108] sm:$0xff]
        %v5278 = vld [vmem:[#allocation2 + $0x110] sm:$0xff]
        %v5279 = vpack.c.bf16 %v5248, %v5247
        %v5280 = vpack.c.bf16 %v5250, %v5249
        %v5281 = vpack.c.bf16 %v5252, %v5251
        %v5282 = vpack.c.bf16 %v5254, %v5253
        %v5283 = vpack.c.bf16 %v5256, %v5255
        %v5284 = vpack.c.bf16 %v5258, %v5257
        %v5285 = vpack.c.bf16 %v5260, %v5259
        %v5286 = vpack.c.bf16 %v5262, %v5261
        %v5287 = vpack.c.bf16 %v5264, %v5263
        %v5288 = vpack.c.bf16 %v5266, %v5265
        %v5289 = vpack.c.bf16 %v5268, %v5267
        %v5290 = vpack.c.bf16 %v5270, %v5269
        %v5291 = vpack.c.bf16 %v5272, %v5271
        %v5292 = vpack.c.bf16 %v5274, %v5273
        %v5293 = vpack.c.bf16 %v5276, %v5275
        %v5294 = vpack.c.bf16 %v5278, %v5277
        %v5311 = vunpack.c.l.b16 %v5279
        %v5312 = vunpack.c.h.b16 %v5279
        %v5313 = vunpack.c.l.b16 %v5280
        %v5314 = vunpack.c.h.b16 %v5280
        %v5315 = vunpack.c.l.b16 %v5281
        %v5316 = vunpack.c.h.b16 %v5281
        %v5317 = vunpack.c.l.b16 %v5282
        %v5318 = vunpack.c.h.b16 %v5282
        %v5319 = vunpack.c.l.b16 %v5283
        %v5320 = vunpack.c.h.b16 %v5283
        %v5321 = vunpack.c.l.b16 %v5284
        %v5322 = vunpack.c.h.b16 %v5284
        %v5323 = vunpack.c.l.b16 %v5285
        %v5324 = vunpack.c.h.b16 %v5285
        %v5325 = vunpack.c.l.b16 %v5286
        %v5326 = vunpack.c.h.b16 %v5286
        %v5327 = vunpack.c.l.b16 %v5287
        %v5328 = vunpack.c.h.b16 %v5287
        %v5329 = vunpack.c.l.b16 %v5288
        %v5330 = vunpack.c.h.b16 %v5288
        %v5331 = vunpack.c.l.b16 %v5289
        %v5332 = vunpack.c.h.b16 %v5289
        %v5333 = vunpack.c.l.b16 %v5290
        %v5334 = vunpack.c.h.b16 %v5290
        %v5335 = vunpack.c.l.b16 %v5291
        %v5336 = vunpack.c.h.b16 %v5291
        %v5337 = vunpack.c.l.b16 %v5292
        %v5338 = vunpack.c.h.b16 %v5292
        %v5339 = vunpack.c.l.b16 %v5293
        %v5340 = vunpack.c.h.b16 %v5293
        %v5341 = vunpack.c.l.b16 %v5294
        %v5342 = vunpack.c.h.b16 %v5294
        %v5343 = vpack.c.b16 %v5311, %v5311
        %v5344 = vpack.c.b16 %v5312, %v5312
        %v5345 = vpack.c.b16 %v5313, %v5313
        %v5346 = vpack.c.b16 %v5314, %v5314
        %v5347 = vpack.c.b16 %v5315, %v5315
        %v5348 = vpack.c.b16 %v5316, %v5316
        %v5349 = vpack.c.b16 %v5317, %v5317
        %v5350 = vpack.c.b16 %v5318, %v5318
        %v5351 = vpack.c.b16 %v5319, %v5319
        %v5352 = vpack.c.b16 %v5320, %v5320
        %v5353 = vpack.c.b16 %v5321, %v5321
        %v5354 = vpack.c.b16 %v5322, %v5322
        %v5355 = vpack.c.b16 %v5323, %v5323
        %v5356 = vpack.c.b16 %v5324, %v5324
        %v5357 = vpack.c.b16 %v5325, %v5325
        %v5358 = vpack.c.b16 %v5326, %v5326
        %v5359 = vpack.c.b16 %v5327, %v5327
        %v5360 = vpack.c.b16 %v5328, %v5328
        %v5361 = vpack.c.b16 %v5329, %v5329
        %v5362 = vpack.c.b16 %v5330, %v5330
        %v5363 = vpack.c.b16 %v5331, %v5331
        %v5364 = vpack.c.b16 %v5332, %v5332
        %v5365 = vpack.c.b16 %v5333, %v5333
        %v5366 = vpack.c.b16 %v5334, %v5334
        %v5367 = vpack.c.b16 %v5335, %v5335
        %v5368 = vpack.c.b16 %v5336, %v5336
        %v5369 = vpack.c.b16 %v5337, %v5337
        %v5370 = vpack.c.b16 %v5338, %v5338
        %v5371 = vpack.c.b16 %v5339, %v5339
        %v5372 = vpack.c.b16 %v5340, %v5340
        %v5373 = vpack.c.b16 %v5341, %v5341
        %v5374 = vpack.c.b16 %v5342, %v5342
        %5407 = vst.msk [vmem:[#allocation3 + $0x4] sm:$0xf] %vm757, %v5343
        %5408 = vst.msk [vmem:[#allocation3 + $0x10] sm:$0xf] %vm757, %v5344
        %5409 = vst.msk [vmem:[#allocation3 + $0x1c] sm:$0xf] %vm757, %v5345
        %5410 = vst.msk [vmem:[#allocation3 + $0x28] sm:$0xf] %vm757, %v5346
        %5411 = vst.msk [vmem:[#allocation3 + $0x34] sm:$0xf] %vm757, %v5347
        %5412 = vst.msk [vmem:[#allocation3 + $0x40] sm:$0xf] %vm757, %v5348
        %5413 = vst.msk [vmem:[#allocation3 + $0x4c] sm:$0xf] %vm757, %v5349
        %5414 = vst.msk [vmem:[#allocation3 + $0x58] sm:$0xf] %vm757, %v5350
        %5415 = vst.msk [vmem:[#allocation3 + $0x64] sm:$0xf] %vm757, %v5351
        %5416 = vst.msk [vmem:[#allocation3 + $0x70] sm:$0xf] %vm757, %v5352
        %5417 = vst.msk [vmem:[#allocation3 + $0x7c] sm:$0xf] %vm757, %v5353
        %5418 = vst.msk [vmem:[#allocation3 + $0x88] sm:$0xf] %vm757, %v5354
        %5419 = vst.msk [vmem:[#allocation3 + $0x94] sm:$0xf] %vm757, %v5355
        %5420 = vst.msk [vmem:[#allocation3 + $0xa0] sm:$0xf] %vm757, %v5356
        %5421 = vst.msk [vmem:[#allocation3 + $0xac] sm:$0xf] %vm757, %v5357
        %5422 = vst.msk [vmem:[#allocation3 + $0xb8] sm:$0xf] %vm757, %v5358
        %5423 = vst.msk [vmem:[#allocation3 + $0xc4] sm:$0xf] %vm757, %v5359
        %5424 = vst.msk [vmem:[#allocation3 + $0xd0] sm:$0xf] %vm757, %v5360
        %5425 = vst.msk [vmem:[#allocation3 + $0xdc] sm:$0xf] %vm757, %v5361
        %5426 = vst.msk [vmem:[#allocation3 + $0xe8] sm:$0xf] %vm757, %v5362
        %5427 = vst.msk [vmem:[#allocation3 + $0xf4] sm:$0xf] %vm757, %v5363
        %5428 = vst.msk [vmem:[#allocation3 + $0x100] sm:$0xf] %vm757, %v5364
        %5429 = vst.msk [vmem:[#allocation3 + $0x10c] sm:$0xf] %vm757, %v5365
        %5430 = vst.msk [vmem:[#allocation3 + $0x118] sm:$0xf] %vm757, %v5366
        %5431 = vst.msk [vmem:[#allocation3 + $0x124] sm:$0xf] %vm757, %v5367
        %5432 = vst.msk [vmem:[#allocation3 + $0x130] sm:$0xf] %vm757, %v5368
        %5433 = vst.msk [vmem:[#allocation3 + $0x13c] sm:$0xf] %vm757, %v5369
        %5434 = vst.msk [vmem:[#allocation3 + $0x148] sm:$0xf] %vm757, %v5370
        %5435 = vst.msk [vmem:[#allocation3 + $0x154] sm:$0xf] %vm757, %v5371
        %5436 = vst.msk [vmem:[#allocation3 + $0x160] sm:$0xf] %vm757, %v5372
        %5437 = vst.msk [vmem:[#allocation3 + $0x16c] sm:$0xf] %vm757, %v5373
        %5438 = vst.msk [vmem:[#allocation3 + $0x178] sm:$0xf] %vm757, %v5374
        %v5439 = vld [vmem:[#allocation2 + $0x19] sm:$0xff]
        %v5440 = vld [vmem:[#allocation2 + $0x21] sm:$0xff]
        %v5441 = vld [vmem:[#allocation2 + $0x29] sm:$0xff]
        %v5442 = vld [vmem:[#allocation2 + $0x31] sm:$0xff]
        %v5443 = vld [vmem:[#allocation2 + $0x39] sm:$0xff]
        %v5444 = vld [vmem:[#allocation2 + $0x41] sm:$0xff]
        %v5445 = vld [vmem:[#allocation2 + $0x49] sm:$0xff]
        %v5446 = vld [vmem:[#allocation2 + $0x51] sm:$0xff]
        %v5447 = vld [vmem:[#allocation2 + $0x59] sm:$0xff]
        %v5448 = vld [vmem:[#allocation2 + $0x61] sm:$0xff]
        %v5449 = vld [vmem:[#allocation2 + $0x69] sm:$0xff]
        %v5450 = vld [vmem:[#allocation2 + $0x71] sm:$0xff]
        %v5451 = vld [vmem:[#allocation2 + $0x79] sm:$0xff]
        %v5452 = vld [vmem:[#allocation2 + $0x81] sm:$0xff]
        %v5453 = vld [vmem:[#allocation2 + $0x89] sm:$0xff]
        %v5454 = vld [vmem:[#allocation2 + $0x91] sm:$0xff]
        %v5455 = vld [vmem:[#allocation2 + $0x99] sm:$0xff]
        %v5456 = vld [vmem:[#allocation2 + $0xa1] sm:$0xff]
        %v5457 = vld [vmem:[#allocation2 + $0xa9] sm:$0xff]
        %v5458 = vld [vmem:[#allocation2 + $0xb1] sm:$0xff]
        %v5459 = vld [vmem:[#allocation2 + $0xb9] sm:$0xff]
        %v5460 = vld [vmem:[#allocation2 + $0xc1] sm:$0xff]
        %v5461 = vld [vmem:[#allocation2 + $0xc9] sm:$0xff]
        %v5462 = vld [vmem:[#allocation2 + $0xd1] sm:$0xff]
        %v5463 = vld [vmem:[#allocation2 + $0xd9] sm:$0xff]
        %v5464 = vld [vmem:[#allocation2 + $0xe1] sm:$0xff]
        %v5465 = vld [vmem:[#allocation2 + $0xe9] sm:$0xff]
        %v5466 = vld [vmem:[#allocation2 + $0xf1] sm:$0xff]
        %v5467 = vld [vmem:[#allocation2 + $0xf9] sm:$0xff]
        %v5468 = vld [vmem:[#allocation2 + $0x101] sm:$0xff]
        %v5469 = vld [vmem:[#allocation2 + $0x109] sm:$0xff]
        %v5470 = vld [vmem:[#allocation2 + $0x111] sm:$0xff]
        %v5471 = vsel %vm373, %v5439, 0.0
        %v5472 = vsel %vm374, %v5440, 0.0
        %v5473 = vsel %vm375, %v5441, 0.0
        %v5474 = vsel %vm376, %v5442, 0.0
        %v5475 = vsel %vm377, %v5443, 0.0
        %v5476 = vsel %vm378, %v5444, 0.0
        %v5477 = vsel %vm379, %v5445, 0.0
        %v5478 = vsel %vm380, %v5446, 0.0
        %v5479 = vsel %vm381, %v5447, 0.0
        %v5480 = vsel %vm382, %v5448, 0.0
        %v5481 = vsel %vm383, %v5449, 0.0
        %v5482 = vsel %vm384, %v5450, 0.0
        %v5483 = vsel %vm385, %v5451, 0.0
        %v5484 = vsel %vm386, %v5452, 0.0
        %v5485 = vsel %vm387, %v5453, 0.0
        %v5486 = vsel %vm388, %v5454, 0.0
        %v5487 = vsel %vm389, %v5455, 0.0
        %v5488 = vsel %vm390, %v5456, 0.0
        %v5489 = vsel %vm391, %v5457, 0.0
        %v5490 = vsel %vm392, %v5458, 0.0
        %v5491 = vsel %vm393, %v5459, 0.0
        %v5492 = vsel %vm394, %v5460, 0.0
        %v5493 = vsel %vm395, %v5461, 0.0
        %v5494 = vsel %vm396, %v5462, 0.0
        %v5495 = vsel %vm397, %v5463, 0.0
        %v5496 = vsel %vm398, %v5464, 0.0
        %v5497 = vsel %vm399, %v5465, 0.0
        %v5498 = vsel %vm400, %v5466, 0.0
        %v5499 = vsel %vm401, %v5467, 0.0
        %v5500 = vsel %vm402, %v5468, 0.0
        %v5501 = vsel %vm403, %v5469, 0.0
        %v5502 = vsel %vm404, %v5470, 0.0
        %v5503 = vpack.c.bf16 %v5472, %v5471
        %v5504 = vpack.c.bf16 %v5474, %v5473
        %v5505 = vpack.c.bf16 %v5476, %v5475
        %v5506 = vpack.c.bf16 %v5478, %v5477
        %v5507 = vpack.c.bf16 %v5480, %v5479
        %v5508 = vpack.c.bf16 %v5482, %v5481
        %v5509 = vpack.c.bf16 %v5484, %v5483
        %v5510 = vpack.c.bf16 %v5486, %v5485
        %v5511 = vpack.c.bf16 %v5488, %v5487
        %v5512 = vpack.c.bf16 %v5490, %v5489
        %v5513 = vpack.c.bf16 %v5492, %v5491
        %v5514 = vpack.c.bf16 %v5494, %v5493
        %v5515 = vpack.c.bf16 %v5496, %v5495
        %v5516 = vpack.c.bf16 %v5498, %v5497
        %v5517 = vpack.c.bf16 %v5500, %v5499
        %v5518 = vpack.c.bf16 %v5502, %v5501
        %v5535 = vunpack.c.l.b16 %v5503
        %v5536 = vunpack.c.h.b16 %v5503
        %v5537 = vunpack.c.l.b16 %v5504
        %v5538 = vunpack.c.h.b16 %v5504
        %v5539 = vunpack.c.l.b16 %v5505
        %v5540 = vunpack.c.h.b16 %v5505
        %v5541 = vunpack.c.l.b16 %v5506
        %v5542 = vunpack.c.h.b16 %v5506
        %v5543 = vunpack.c.l.b16 %v5507
        %v5544 = vunpack.c.h.b16 %v5507
        %v5545 = vunpack.c.l.b16 %v5508
        %v5546 = vunpack.c.h.b16 %v5508
        %v5547 = vunpack.c.l.b16 %v5509
        %v5548 = vunpack.c.h.b16 %v5509
        %v5549 = vunpack.c.l.b16 %v5510
        %v5550 = vunpack.c.h.b16 %v5510
        %v5551 = vunpack.c.l.b16 %v5511
        %v5552 = vunpack.c.h.b16 %v5511
        %v5553 = vunpack.c.l.b16 %v5512
        %v5554 = vunpack.c.h.b16 %v5512
        %v5555 = vunpack.c.l.b16 %v5513
        %v5556 = vunpack.c.h.b16 %v5513
        %v5557 = vunpack.c.l.b16 %v5514
        %v5558 = vunpack.c.h.b16 %v5514
        %v5559 = vunpack.c.l.b16 %v5515
        %v5560 = vunpack.c.h.b16 %v5515
        %v5561 = vunpack.c.l.b16 %v5516
        %v5562 = vunpack.c.h.b16 %v5516
        %v5563 = vunpack.c.l.b16 %v5517
        %v5564 = vunpack.c.h.b16 %v5517
        %v5565 = vunpack.c.l.b16 %v5518
        %v5566 = vunpack.c.h.b16 %v5518
        %v5567 = vpack.c.b16 %v5535, %v5535
        %v5568 = vpack.c.b16 %v5536, %v5536
        %v5569 = vpack.c.b16 %v5537, %v5537
        %v5570 = vpack.c.b16 %v5538, %v5538
        %v5571 = vpack.c.b16 %v5539, %v5539
        %v5572 = vpack.c.b16 %v5540, %v5540
        %v5573 = vpack.c.b16 %v5541, %v5541
        %v5574 = vpack.c.b16 %v5542, %v5542
        %v5575 = vpack.c.b16 %v5543, %v5543
        %v5576 = vpack.c.b16 %v5544, %v5544
        %v5577 = vpack.c.b16 %v5545, %v5545
        %v5578 = vpack.c.b16 %v5546, %v5546
        %v5579 = vpack.c.b16 %v5547, %v5547
        %v5580 = vpack.c.b16 %v5548, %v5548
        %v5581 = vpack.c.b16 %v5549, %v5549
        %v5582 = vpack.c.b16 %v5550, %v5550
        %v5583 = vpack.c.b16 %v5551, %v5551
        %v5584 = vpack.c.b16 %v5552, %v5552
        %v5585 = vpack.c.b16 %v5553, %v5553
        %v5586 = vpack.c.b16 %v5554, %v5554
        %v5587 = vpack.c.b16 %v5555, %v5555
        %v5588 = vpack.c.b16 %v5556, %v5556
        %v5589 = vpack.c.b16 %v5557, %v5557
        %v5590 = vpack.c.b16 %v5558, %v5558
        %v5591 = vpack.c.b16 %v5559, %v5559
        %v5592 = vpack.c.b16 %v5560, %v5560
        %v5593 = vpack.c.b16 %v5561, %v5561
        %v5594 = vpack.c.b16 %v5562, %v5562
        %v5595 = vpack.c.b16 %v5563, %v5563
        %v5596 = vpack.c.b16 %v5564, %v5564
        %v5597 = vpack.c.b16 %v5565, %v5565
        %v5598 = vpack.c.b16 %v5566, %v5566
        %5599 = vrot.lane.b32.xlu0 %v5567, 32
        %v5600 = vpop.permute.xlu0 %5599
        %5601 = vrot.lane.b32.xlu0 %v5568, 32
        %v5602 = vpop.permute.xlu0 %5601
        %5603 = vrot.lane.b32.xlu0 %v5569, 32
        %v5604 = vpop.permute.xlu0 %5603
        %5605 = vrot.lane.b32.xlu0 %v5570, 32
        %v5606 = vpop.permute.xlu0 %5605
        %5607 = vrot.lane.b32.xlu0 %v5571, 32
        %v5608 = vpop.permute.xlu0 %5607
        %5609 = vrot.lane.b32.xlu0 %v5572, 32
        %v5610 = vpop.permute.xlu0 %5609
        %5611 = vrot.lane.b32.xlu0 %v5573, 32
        %v5612 = vpop.permute.xlu0 %5611
        %5613 = vrot.lane.b32.xlu0 %v5574, 32
        %v5614 = vpop.permute.xlu0 %5613
        %5615 = vrot.lane.b32.xlu0 %v5575, 32
        %v5616 = vpop.permute.xlu0 %5615
        %5617 = vrot.lane.b32.xlu0 %v5576, 32
        %v5618 = vpop.permute.xlu0 %5617
        %5619 = vrot.lane.b32.xlu0 %v5577, 32
        %v5620 = vpop.permute.xlu0 %5619
        %5621 = vrot.lane.b32.xlu0 %v5578, 32
        %v5622 = vpop.permute.xlu0 %5621
        %5623 = vrot.lane.b32.xlu0 %v5579, 32
        %v5624 = vpop.permute.xlu0 %5623
        %5625 = vrot.lane.b32.xlu0 %v5580, 32
        %v5626 = vpop.permute.xlu0 %5625
        %5627 = vrot.lane.b32.xlu0 %v5581, 32
        %v5628 = vpop.permute.xlu0 %5627
        %5629 = vrot.lane.b32.xlu0 %v5582, 32
        %v5630 = vpop.permute.xlu0 %5629
        %5631 = vrot.lane.b32.xlu0 %v5583, 32
        %v5632 = vpop.permute.xlu0 %5631
        %5633 = vrot.lane.b32.xlu0 %v5584, 32
        %v5634 = vpop.permute.xlu0 %5633
        %5635 = vrot.lane.b32.xlu0 %v5585, 32
        %v5636 = vpop.permute.xlu0 %5635
        %5637 = vrot.lane.b32.xlu0 %v5586, 32
        %v5638 = vpop.permute.xlu0 %5637
        %5639 = vrot.lane.b32.xlu0 %v5587, 32
        %v5640 = vpop.permute.xlu0 %5639
        %5641 = vrot.lane.b32.xlu0 %v5588, 32
        %v5642 = vpop.permute.xlu0 %5641
        %5643 = vrot.lane.b32.xlu0 %v5589, 32
        %v5644 = vpop.permute.xlu0 %5643
        %5645 = vrot.lane.b32.xlu0 %v5590, 32
        %v5646 = vpop.permute.xlu0 %5645
        %5647 = vrot.lane.b32.xlu0 %v5591, 32
        %v5648 = vpop.permute.xlu0 %5647
        %5649 = vrot.lane.b32.xlu0 %v5592, 32
        %v5650 = vpop.permute.xlu0 %5649
        %5651 = vrot.lane.b32.xlu0 %v5593, 32
        %v5652 = vpop.permute.xlu0 %5651
        %5653 = vrot.lane.b32.xlu0 %v5594, 32
        %v5654 = vpop.permute.xlu0 %5653
        %5655 = vrot.lane.b32.xlu0 %v5595, 32
        %v5656 = vpop.permute.xlu0 %5655
        %5657 = vrot.lane.b32.xlu0 %v5596, 32
        %v5658 = vpop.permute.xlu0 %5657
        %5659 = vrot.lane.b32.xlu0 %v5597, 32
        %v5660 = vpop.permute.xlu0 %5659
        %5661 = vrot.lane.b32.xlu0 %v5598, 32
        %v5662 = vpop.permute.xlu0 %5661
        %5695 = vst.msk [vmem:[#allocation3 + $0x4] sm:$0xf] %vm177, %v5600
        %5696 = vst.msk [vmem:[#allocation3 + $0x10] sm:$0xf] %vm177, %v5602
        %5697 = vst.msk [vmem:[#allocation3 + $0x1c] sm:$0xf] %vm177, %v5604
        %5698 = vst.msk [vmem:[#allocation3 + $0x28] sm:$0xf] %vm177, %v5606
        %5699 = vst.msk [vmem:[#allocation3 + $0x34] sm:$0xf] %vm177, %v5608
        %5700 = vst.msk [vmem:[#allocation3 + $0x40] sm:$0xf] %vm177, %v5610
        %5701 = vst.msk [vmem:[#allocation3 + $0x4c] sm:$0xf] %vm177, %v5612
        %5702 = vst.msk [vmem:[#allocation3 + $0x58] sm:$0xf] %vm177, %v5614
        %5703 = vst.msk [vmem:[#allocation3 + $0x64] sm:$0xf] %vm177, %v5616
        %5704 = vst.msk [vmem:[#allocation3 + $0x70] sm:$0xf] %vm177, %v5618
        %5705 = vst.msk [vmem:[#allocation3 + $0x7c] sm:$0xf] %vm177, %v5620
        %5706 = vst.msk [vmem:[#allocation3 + $0x88] sm:$0xf] %vm177, %v5622
        %5707 = vst.msk [vmem:[#allocation3 + $0x94] sm:$0xf] %vm177, %v5624
        %5708 = vst.msk [vmem:[#allocation3 + $0xa0] sm:$0xf] %vm177, %v5626
        %5709 = vst.msk [vmem:[#allocation3 + $0xac] sm:$0xf] %vm177, %v5628
        %5710 = vst.msk [vmem:[#allocation3 + $0xb8] sm:$0xf] %vm177, %v5630
        %5711 = vst.msk [vmem:[#allocation3 + $0xc4] sm:$0xf] %vm177, %v5632
        %5712 = vst.msk [vmem:[#allocation3 + $0xd0] sm:$0xf] %vm177, %v5634
        %5713 = vst.msk [vmem:[#allocation3 + $0xdc] sm:$0xf] %vm177, %v5636
        %5714 = vst.msk [vmem:[#allocation3 + $0xe8] sm:$0xf] %vm177, %v5638
        %5715 = vst.msk [vmem:[#allocation3 + $0xf4] sm:$0xf] %vm177, %v5640
        %5716 = vst.msk [vmem:[#allocation3 + $0x100] sm:$0xf] %vm177, %v5642
        %5717 = vst.msk [vmem:[#allocation3 + $0x10c] sm:$0xf] %vm177, %v5644
        %5718 = vst.msk [vmem:[#allocation3 + $0x118] sm:$0xf] %vm177, %v5646
        %5719 = vst.msk [vmem:[#allocation3 + $0x124] sm:$0xf] %vm177, %v5648
        %5720 = vst.msk [vmem:[#allocation3 + $0x130] sm:$0xf] %vm177, %v5650
        %5721 = vst.msk [vmem:[#allocation3 + $0x13c] sm:$0xf] %vm177, %v5652
        %5722 = vst.msk [vmem:[#allocation3 + $0x148] sm:$0xf] %vm177, %v5654
        %5723 = vst.msk [vmem:[#allocation3 + $0x154] sm:$0xf] %vm177, %v5656
        %5724 = vst.msk [vmem:[#allocation3 + $0x160] sm:$0xf] %vm177, %v5658
        %5725 = vst.msk [vmem:[#allocation3 + $0x16c] sm:$0xf] %vm177, %v5660
        %5726 = vst.msk [vmem:[#allocation3 + $0x178] sm:$0xf] %vm177, %v5662
        %v5727 = vld [vmem:[#allocation2 + $0x27] sm:$0xff]
        %v5728 = vld [vmem:[#allocation2 + $0x2f] sm:$0xff]
        %v5729 = vld [vmem:[#allocation2 + $0x37] sm:$0xff]
        %v5730 = vld [vmem:[#allocation2 + $0x3f] sm:$0xff]
        %v5731 = vld [vmem:[#allocation2 + $0x47] sm:$0xff]
        %v5732 = vld [vmem:[#allocation2 + $0x4f] sm:$0xff]
        %v5733 = vld [vmem:[#allocation2 + $0x57] sm:$0xff]
        %v5734 = vld [vmem:[#allocation2 + $0x5f] sm:$0xff]
        %v5735 = vld [vmem:[#allocation2 + $0x67] sm:$0xff]
        %v5736 = vld [vmem:[#allocation2 + $0x6f] sm:$0xff]
        %v5737 = vld [vmem:[#allocation2 + $0x77] sm:$0xff]
        %v5738 = vld [vmem:[#allocation2 + $0x7f] sm:$0xff]
        %v5739 = vld [vmem:[#allocation2 + $0x87] sm:$0xff]
        %v5740 = vld [vmem:[#allocation2 + $0x8f] sm:$0xff]
        %v5741 = vld [vmem:[#allocation2 + $0x97] sm:$0xff]
        %v5742 = vld [vmem:[#allocation2 + $0x9f] sm:$0xff]
        %v5743 = vld [vmem:[#allocation2 + $0xa7] sm:$0xff]
        %v5744 = vld [vmem:[#allocation2 + $0xaf] sm:$0xff]
        %v5745 = vld [vmem:[#allocation2 + $0xb7] sm:$0xff]
        %v5746 = vld [vmem:[#allocation2 + $0xbf] sm:$0xff]
        %v5747 = vld [vmem:[#allocation2 + $0xc7] sm:$0xff]
        %v5748 = vld [vmem:[#allocation2 + $0xcf] sm:$0xff]
        %v5749 = vld [vmem:[#allocation2 + $0xd7] sm:$0xff]
        %v5750 = vld [vmem:[#allocation2 + $0xdf] sm:$0xff]
        %v5751 = vld [vmem:[#allocation2 + $0xe7] sm:$0xff]
        %v5752 = vld [vmem:[#allocation2 + $0xef] sm:$0xff]
        %v5753 = vld [vmem:[#allocation2 + $0xf7] sm:$0xff]
        %v5754 = vld [vmem:[#allocation2 + $0xff] sm:$0xff]
        %v5755 = vld [vmem:[#allocation2 + $0x107] sm:$0xff]
        %v5756 = vld [vmem:[#allocation2 + $0x10f] sm:$0xff]
        %v5757 = vld [vmem:[#allocation2 + $0x117] sm:$0xff]
        %v5758 = vld [vmem:[#allocation2 + $0x11f] sm:$0xff]
        %v5759 = vsel %vm341, %v5727, 0.0
        %v5760 = vsel %vm342, %v5728, 0.0
        %v5761 = vsel %vm343, %v5729, 0.0
        %v5762 = vsel %vm344, %v5730, 0.0
        %v5763 = vsel %vm345, %v5731, 0.0
        %v5764 = vsel %vm346, %v5732, 0.0
        %v5765 = vsel %vm347, %v5733, 0.0
        %v5766 = vsel %vm348, %v5734, 0.0
        %v5767 = vsel %vm349, %v5735, 0.0
        %v5768 = vsel %vm350, %v5736, 0.0
        %v5769 = vsel %vm351, %v5737, 0.0
        %v5770 = vsel %vm352, %v5738, 0.0
        %v5771 = vsel %vm353, %v5739, 0.0
        %v5772 = vsel %vm354, %v5740, 0.0
        %v5773 = vsel %vm355, %v5741, 0.0
        %v5774 = vsel %vm356, %v5742, 0.0
        %v5775 = vsel %vm357, %v5743, 0.0
        %v5776 = vsel %vm358, %v5744, 0.0
        %v5777 = vsel %vm359, %v5745, 0.0
        %v5778 = vsel %vm360, %v5746, 0.0
        %v5779 = vsel %vm361, %v5747, 0.0
        %v5780 = vsel %vm362, %v5748, 0.0
        %v5781 = vsel %vm363, %v5749, 0.0
        %v5782 = vsel %vm364, %v5750, 0.0
        %v5783 = vsel %vm365, %v5751, 0.0
        %v5784 = vsel %vm366, %v5752, 0.0
        %v5785 = vsel %vm367, %v5753, 0.0
        %v5786 = vsel %vm368, %v5754, 0.0
        %v5787 = vsel %vm369, %v5755, 0.0
        %v5788 = vsel %vm370, %v5756, 0.0
        %v5789 = vsel %vm371, %v5757, 0.0
        %v5790 = vsel %vm372, %v5758, 0.0
        %v5791 = vpack.c.bf16 %v5760, %v5759
        %v5792 = vpack.c.bf16 %v5762, %v5761
        %v5793 = vpack.c.bf16 %v5764, %v5763
        %v5794 = vpack.c.bf16 %v5766, %v5765
        %v5795 = vpack.c.bf16 %v5768, %v5767
        %v5796 = vpack.c.bf16 %v5770, %v5769
        %v5797 = vpack.c.bf16 %v5772, %v5771
        %v5798 = vpack.c.bf16 %v5774, %v5773
        %v5799 = vpack.c.bf16 %v5776, %v5775
        %v5800 = vpack.c.bf16 %v5778, %v5777
        %v5801 = vpack.c.bf16 %v5780, %v5779
        %v5802 = vpack.c.bf16 %v5782, %v5781
        %v5803 = vpack.c.bf16 %v5784, %v5783
        %v5804 = vpack.c.bf16 %v5786, %v5785
        %v5805 = vpack.c.bf16 %v5788, %v5787
        %v5806 = vpack.c.bf16 %v5790, %v5789
        %v5823 = vunpack.c.l.b16 %v5791
        %v5824 = vunpack.c.h.b16 %v5791
        %v5825 = vunpack.c.l.b16 %v5792
        %v5826 = vunpack.c.h.b16 %v5792
        %v5827 = vunpack.c.l.b16 %v5793
        %v5828 = vunpack.c.h.b16 %v5793
        %v5829 = vunpack.c.l.b16 %v5794
        %v5830 = vunpack.c.h.b16 %v5794
        %v5831 = vunpack.c.l.b16 %v5795
        %v5832 = vunpack.c.h.b16 %v5795
        %v5833 = vunpack.c.l.b16 %v5796
        %v5834 = vunpack.c.h.b16 %v5796
        %v5835 = vunpack.c.l.b16 %v5797
        %v5836 = vunpack.c.h.b16 %v5797
        %v5837 = vunpack.c.l.b16 %v5798
        %v5838 = vunpack.c.h.b16 %v5798
        %v5839 = vunpack.c.l.b16 %v5799
        %v5840 = vunpack.c.h.b16 %v5799
        %v5841 = vunpack.c.l.b16 %v5800
        %v5842 = vunpack.c.h.b16 %v5800
        %v5843 = vunpack.c.l.b16 %v5801
        %v5844 = vunpack.c.h.b16 %v5801
        %v5845 = vunpack.c.l.b16 %v5802
        %v5846 = vunpack.c.h.b16 %v5802
        %v5847 = vunpack.c.l.b16 %v5803
        %v5848 = vunpack.c.h.b16 %v5803
        %v5849 = vunpack.c.l.b16 %v5804
        %v5850 = vunpack.c.h.b16 %v5804
        %v5851 = vunpack.c.l.b16 %v5805
        %v5852 = vunpack.c.h.b16 %v5805
        %v5853 = vunpack.c.l.b16 %v5806
        %v5854 = vunpack.c.h.b16 %v5806
        %v5855 = vpack.c.b16 %v5823, %v5823
        %v5856 = vpack.c.b16 %v5824, %v5824
        %v5857 = vpack.c.b16 %v5825, %v5825
        %v5858 = vpack.c.b16 %v5826, %v5826
        %v5859 = vpack.c.b16 %v5827, %v5827
        %v5860 = vpack.c.b16 %v5828, %v5828
        %v5861 = vpack.c.b16 %v5829, %v5829
        %v5862 = vpack.c.b16 %v5830, %v5830
        %v5863 = vpack.c.b16 %v5831, %v5831
        %v5864 = vpack.c.b16 %v5832, %v5832
        %v5865 = vpack.c.b16 %v5833, %v5833
        %v5866 = vpack.c.b16 %v5834, %v5834
        %v5867 = vpack.c.b16 %v5835, %v5835
        %v5868 = vpack.c.b16 %v5836, %v5836
        %v5869 = vpack.c.b16 %v5837, %v5837
        %v5870 = vpack.c.b16 %v5838, %v5838
        %v5871 = vpack.c.b16 %v5839, %v5839
        %v5872 = vpack.c.b16 %v5840, %v5840
        %v5873 = vpack.c.b16 %v5841, %v5841
        %v5874 = vpack.c.b16 %v5842, %v5842
        %v5875 = vpack.c.b16 %v5843, %v5843
        %v5876 = vpack.c.b16 %v5844, %v5844
        %v5877 = vpack.c.b16 %v5845, %v5845
        %v5878 = vpack.c.b16 %v5846, %v5846
        %v5879 = vpack.c.b16 %v5847, %v5847
        %v5880 = vpack.c.b16 %v5848, %v5848
        %v5881 = vpack.c.b16 %v5849, %v5849
        %v5882 = vpack.c.b16 %v5850, %v5850
        %v5883 = vpack.c.b16 %v5851, %v5851
        %v5884 = vpack.c.b16 %v5852, %v5852
        %v5885 = vpack.c.b16 %v5853, %v5853
        %v5886 = vpack.c.b16 %v5854, %v5854
        %5887 = vrot.lane.b32.xlu0 %v5855, 64
        %v5888 = vpop.permute.xlu0 %5887
        %5889 = vrot.lane.b32.xlu0 %v5856, 64
        %v5890 = vpop.permute.xlu0 %5889
        %5891 = vrot.lane.b32.xlu0 %v5857, 64
        %v5892 = vpop.permute.xlu0 %5891
        %5893 = vrot.lane.b32.xlu0 %v5858, 64
        %v5894 = vpop.permute.xlu0 %5893
        %5895 = vrot.lane.b32.xlu0 %v5859, 64
        %v5896 = vpop.permute.xlu0 %5895
        %5897 = vrot.lane.b32.xlu0 %v5860, 64
        %v5898 = vpop.permute.xlu0 %5897
        %5899 = vrot.lane.b32.xlu0 %v5861, 64
        %v5900 = vpop.permute.xlu0 %5899
        %5901 = vrot.lane.b32.xlu0 %v5862, 64
        %v5902 = vpop.permute.xlu0 %5901
        %5903 = vrot.lane.b32.xlu0 %v5863, 64
        %v5904 = vpop.permute.xlu0 %5903
        %5905 = vrot.lane.b32.xlu0 %v5864, 64
        %v5906 = vpop.permute.xlu0 %5905
        %5907 = vrot.lane.b32.xlu0 %v5865, 64
        %v5908 = vpop.permute.xlu0 %5907
        %5909 = vrot.lane.b32.xlu0 %v5866, 64
        %v5910 = vpop.permute.xlu0 %5909
        %5911 = vrot.lane.b32.xlu0 %v5867, 64
        %v5912 = vpop.permute.xlu0 %5911
        %5913 = vrot.lane.b32.xlu0 %v5868, 64
        %v5914 = vpop.permute.xlu0 %5913
        %5915 = vrot.lane.b32.xlu0 %v5869, 64
        %v5916 = vpop.permute.xlu0 %5915
        %5917 = vrot.lane.b32.xlu0 %v5870, 64
        %v5918 = vpop.permute.xlu0 %5917
        %5919 = vrot.lane.b32.xlu0 %v5871, 64
        %v5920 = vpop.permute.xlu0 %5919
        %5921 = vrot.lane.b32.xlu0 %v5872, 64
        %v5922 = vpop.permute.xlu0 %5921
        %5923 = vrot.lane.b32.xlu0 %v5873, 64
        %v5924 = vpop.permute.xlu0 %5923
        %5925 = vrot.lane.b32.xlu0 %v5874, 64
        %v5926 = vpop.permute.xlu0 %5925
        %5927 = vrot.lane.b32.xlu0 %v5875, 64
        %v5928 = vpop.permute.xlu0 %5927
        %5929 = vrot.lane.b32.xlu0 %v5876, 64
        %v5930 = vpop.permute.xlu0 %5929
        %5931 = vrot.lane.b32.xlu0 %v5877, 64
        %v5932 = vpop.permute.xlu0 %5931
        %5933 = vrot.lane.b32.xlu0 %v5878, 64
        %v5934 = vpop.permute.xlu0 %5933
        %5935 = vrot.lane.b32.xlu0 %v5879, 64
        %v5936 = vpop.permute.xlu0 %5935
        %5937 = vrot.lane.b32.xlu0 %v5880, 64
        %v5938 = vpop.permute.xlu0 %5937
        %5939 = vrot.lane.b32.xlu0 %v5881, 64
        %v5940 = vpop.permute.xlu0 %5939
        %5941 = vrot.lane.b32.xlu0 %v5882, 64
        %v5942 = vpop.permute.xlu0 %5941
        %5943 = vrot.lane.b32.xlu0 %v5883, 64
        %v5944 = vpop.permute.xlu0 %5943
        %5945 = vrot.lane.b32.xlu0 %v5884, 64
        %v5946 = vpop.permute.xlu0 %5945
        %5947 = vrot.lane.b32.xlu0 %v5885, 64
        %v5948 = vpop.permute.xlu0 %5947
        %5949 = vrot.lane.b32.xlu0 %v5886, 64
        %v5950 = vpop.permute.xlu0 %5949
        %5983 = vst.msk [vmem:[#allocation3 + $0x4] sm:$0xf] %vm210, %v5888
        %5984 = vst.msk [vmem:[#allocation3 + $0x10] sm:$0xf] %vm210, %v5890
        %5985 = vst.msk [vmem:[#allocation3 + $0x1c] sm:$0xf] %vm210, %v5892
        %5986 = vst.msk [vmem:[#allocation3 + $0x28] sm:$0xf] %vm210, %v5894
        %5987 = vst.msk [vmem:[#allocation3 + $0x34] sm:$0xf] %vm210, %v5896
        %5988 = vst.msk [vmem:[#allocation3 + $0x40] sm:$0xf] %vm210, %v5898
        %5989 = vst.msk [vmem:[#allocation3 + $0x4c] sm:$0xf] %vm210, %v5900
        %5990 = vst.msk [vmem:[#allocation3 + $0x58] sm:$0xf] %vm210, %v5902
        %5991 = vst.msk [vmem:[#allocation3 + $0x64] sm:$0xf] %vm210, %v5904
        %5992 = vst.msk [vmem:[#allocation3 + $0x70] sm:$0xf] %vm210, %v5906
        %5993 = vst.msk [vmem:[#allocation3 + $0x7c] sm:$0xf] %vm210, %v5908
        %5994 = vst.msk [vmem:[#allocation3 + $0x88] sm:$0xf] %vm210, %v5910
        %5995 = vst.msk [vmem:[#allocation3 + $0x94] sm:$0xf] %vm210, %v5912
        %5996 = vst.msk [vmem:[#allocation3 + $0xa0] sm:$0xf] %vm210, %v5914
        %5997 = vst.msk [vmem:[#allocation3 + $0xac] sm:$0xf] %vm210, %v5916
        %5998 = vst.msk [vmem:[#allocation3 + $0xb8] sm:$0xf] %vm210, %v5918
        %5999 = vst.msk [vmem:[#allocation3 + $0xc4] sm:$0xf] %vm210, %v5920
        %6000 = vst.msk [vmem:[#allocation3 + $0xd0] sm:$0xf] %vm210, %v5922
        %6001 = vst.msk [vmem:[#allocation3 + $0xdc] sm:$0xf] %vm210, %v5924
        %6002 = vst.msk [vmem:[#allocation3 + $0xe8] sm:$0xf] %vm210, %v5926
        %6003 = vst.msk [vmem:[#allocation3 + $0xf4] sm:$0xf] %vm210, %v5928
        %6004 = vst.msk [vmem:[#allocation3 + $0x100] sm:$0xf] %vm210, %v5930
        %6005 = vst.msk [vmem:[#allocation3 + $0x10c] sm:$0xf] %vm210, %v5932
        %6006 = vst.msk [vmem:[#allocation3 + $0x118] sm:$0xf] %vm210, %v5934
        %6007 = vst.msk [vmem:[#allocation3 + $0x124] sm:$0xf] %vm210, %v5936
        %6008 = vst.msk [vmem:[#allocation3 + $0x130] sm:$0xf] %vm210, %v5938
        %6009 = vst.msk [vmem:[#allocation3 + $0x13c] sm:$0xf] %vm210, %v5940
        %6010 = vst.msk [vmem:[#allocation3 + $0x148] sm:$0xf] %vm210, %v5942
        %6011 = vst.msk [vmem:[#allocation3 + $0x154] sm:$0xf] %vm210, %v5944
        %6012 = vst.msk [vmem:[#allocation3 + $0x160] sm:$0xf] %vm210, %v5946
        %6013 = vst.msk [vmem:[#allocation3 + $0x16c] sm:$0xf] %vm210, %v5948
        %6014 = vst.msk [vmem:[#allocation3 + $0x178] sm:$0xf] %vm210, %v5950
        %v6015 = vld [vmem:[#allocation2 + $0x28] sm:$0xff]
        %v6016 = vld [vmem:[#allocation2 + $0x30] sm:$0xff]
        %v6017 = vld [vmem:[#allocation2 + $0x38] sm:$0xff]
        %v6018 = vld [vmem:[#allocation2 + $0x40] sm:$0xff]
        %v6019 = vld [vmem:[#allocation2 + $0x48] sm:$0xff]
        %v6020 = vld [vmem:[#allocation2 + $0x50] sm:$0xff]
        %v6021 = vld [vmem:[#allocation2 + $0x58] sm:$0xff]
        %v6022 = vld [vmem:[#allocation2 + $0x60] sm:$0xff]
        %v6023 = vld [vmem:[#allocation2 + $0x68] sm:$0xff]
        %v6024 = vld [vmem:[#allocation2 + $0x70] sm:$0xff]
        %v6025 = vld [vmem:[#allocation2 + $0x78] sm:$0xff]
        %v6026 = vld [vmem:[#allocation2 + $0x80] sm:$0xff]
        %v6027 = vld [vmem:[#allocation2 + $0x88] sm:$0xff]
        %v6028 = vld [vmem:[#allocation2 + $0x90] sm:$0xff]
        %v6029 = vld [vmem:[#allocation2 + $0x98] sm:$0xff]
        %v6030 = vld [vmem:[#allocation2 + $0xa0] sm:$0xff]
        %v6031 = vld [vmem:[#allocation2 + $0xa8] sm:$0xff]
        %v6032 = vld [vmem:[#allocation2 + $0xb0] sm:$0xff]
        %v6033 = vld [vmem:[#allocation2 + $0xb8] sm:$0xff]
        %v6034 = vld [vmem:[#allocation2 + $0xc0] sm:$0xff]
        %v6035 = vld [vmem:[#allocation2 + $0xc8] sm:$0xff]
        %v6036 = vld [vmem:[#allocation2 + $0xd0] sm:$0xff]
        %v6037 = vld [vmem:[#allocation2 + $0xd8] sm:$0xff]
        %v6038 = vld [vmem:[#allocation2 + $0xe0] sm:$0xff]
        %v6039 = vld [vmem:[#allocation2 + $0xe8] sm:$0xff]
        %v6040 = vld [vmem:[#allocation2 + $0xf0] sm:$0xff]
        %v6041 = vld [vmem:[#allocation2 + $0xf8] sm:$0xff]
        %v6042 = vld [vmem:[#allocation2 + $0x100] sm:$0xff]
        %v6043 = vld [vmem:[#allocation2 + $0x108] sm:$0xff]
        %v6044 = vld [vmem:[#allocation2 + $0x110] sm:$0xff]
        %v6045 = vld [vmem:[#allocation2 + $0x118] sm:$0xff]
        %v6046 = vld [vmem:[#allocation2 + $0x120] sm:$0xff]
        %v6047 = vpack.c.bf16 %v6016, %v6015
        %v6048 = vpack.c.bf16 %v6018, %v6017
        %v6049 = vpack.c.bf16 %v6020, %v6019
        %v6050 = vpack.c.bf16 %v6022, %v6021
        %v6051 = vpack.c.bf16 %v6024, %v6023
        %v6052 = vpack.c.bf16 %v6026, %v6025
        %v6053 = vpack.c.bf16 %v6028, %v6027
        %v6054 = vpack.c.bf16 %v6030, %v6029
        %v6055 = vpack.c.bf16 %v6032, %v6031
        %v6056 = vpack.c.bf16 %v6034, %v6033
        %v6057 = vpack.c.bf16 %v6036, %v6035
        %v6058 = vpack.c.bf16 %v6038, %v6037
        %v6059 = vpack.c.bf16 %v6040, %v6039
        %v6060 = vpack.c.bf16 %v6042, %v6041
        %v6061 = vpack.c.bf16 %v6044, %v6043
        %v6062 = vpack.c.bf16 %v6046, %v6045
        %v6079 = vunpack.c.l.b16 %v6047
        %v6080 = vunpack.c.h.b16 %v6047
        %v6081 = vunpack.c.l.b16 %v6048
        %v6082 = vunpack.c.h.b16 %v6048
        %v6083 = vunpack.c.l.b16 %v6049
        %v6084 = vunpack.c.h.b16 %v6049
        %v6085 = vunpack.c.l.b16 %v6050
        %v6086 = vunpack.c.h.b16 %v6050
        %v6087 = vunpack.c.l.b16 %v6051
        %v6088 = vunpack.c.h.b16 %v6051
        %v6089 = vunpack.c.l.b16 %v6052
        %v6090 = vunpack.c.h.b16 %v6052
        %v6091 = vunpack.c.l.b16 %v6053
        %v6092 = vunpack.c.h.b16 %v6053
        %v6093 = vunpack.c.l.b16 %v6054
        %v6094 = vunpack.c.h.b16 %v6054
        %v6095 = vunpack.c.l.b16 %v6055
        %v6096 = vunpack.c.h.b16 %v6055
        %v6097 = vunpack.c.l.b16 %v6056
        %v6098 = vunpack.c.h.b16 %v6056
        %v6099 = vunpack.c.l.b16 %v6057
        %v6100 = vunpack.c.h.b16 %v6057
        %v6101 = vunpack.c.l.b16 %v6058
        %v6102 = vunpack.c.h.b16 %v6058
        %v6103 = vunpack.c.l.b16 %v6059
        %v6104 = vunpack.c.h.b16 %v6059
        %v6105 = vunpack.c.l.b16 %v6060
        %v6106 = vunpack.c.h.b16 %v6060
        %v6107 = vunpack.c.l.b16 %v6061
        %v6108 = vunpack.c.h.b16 %v6061
        %v6109 = vunpack.c.l.b16 %v6062
        %v6110 = vunpack.c.h.b16 %v6062
        %v6111 = vpack.c.b16 %v6079, %v6079
        %v6112 = vpack.c.b16 %v6080, %v6080
        %v6113 = vpack.c.b16 %v6081, %v6081
        %v6114 = vpack.c.b16 %v6082, %v6082
        %v6115 = vpack.c.b16 %v6083, %v6083
        %v6116 = vpack.c.b16 %v6084, %v6084
        %v6117 = vpack.c.b16 %v6085, %v6085
        %v6118 = vpack.c.b16 %v6086, %v6086
        %v6119 = vpack.c.b16 %v6087, %v6087
        %v6120 = vpack.c.b16 %v6088, %v6088
        %v6121 = vpack.c.b16 %v6089, %v6089
        %v6122 = vpack.c.b16 %v6090, %v6090
        %v6123 = vpack.c.b16 %v6091, %v6091
        %v6124 = vpack.c.b16 %v6092, %v6092
        %v6125 = vpack.c.b16 %v6093, %v6093
        %v6126 = vpack.c.b16 %v6094, %v6094
        %v6127 = vpack.c.b16 %v6095, %v6095
        %v6128 = vpack.c.b16 %v6096, %v6096
        %v6129 = vpack.c.b16 %v6097, %v6097
        %v6130 = vpack.c.b16 %v6098, %v6098
        %v6131 = vpack.c.b16 %v6099, %v6099
        %v6132 = vpack.c.b16 %v6100, %v6100
        %v6133 = vpack.c.b16 %v6101, %v6101
        %v6134 = vpack.c.b16 %v6102, %v6102
        %v6135 = vpack.c.b16 %v6103, %v6103
        %v6136 = vpack.c.b16 %v6104, %v6104
        %v6137 = vpack.c.b16 %v6105, %v6105
        %v6138 = vpack.c.b16 %v6106, %v6106
        %v6139 = vpack.c.b16 %v6107, %v6107
        %v6140 = vpack.c.b16 %v6108, %v6108
        %v6141 = vpack.c.b16 %v6109, %v6109
        %v6142 = vpack.c.b16 %v6110, %v6110
        %6143 = vrot.lane.b32.xlu0 %v6111, 96
        %v6144 = vpop.permute.xlu0 %6143
        %6145 = vrot.lane.b32.xlu0 %v6112, 96
        %v6146 = vpop.permute.xlu0 %6145
        %6147 = vrot.lane.b32.xlu0 %v6113, 96
        %v6148 = vpop.permute.xlu0 %6147
        %6149 = vrot.lane.b32.xlu0 %v6114, 96
        %v6150 = vpop.permute.xlu0 %6149
        %6151 = vrot.lane.b32.xlu0 %v6115, 96
        %v6152 = vpop.permute.xlu0 %6151
        %6153 = vrot.lane.b32.xlu0 %v6116, 96
        %v6154 = vpop.permute.xlu0 %6153
        %6155 = vrot.lane.b32.xlu0 %v6117, 96
        %v6156 = vpop.permute.xlu0 %6155
        %6157 = vrot.lane.b32.xlu0 %v6118, 96
        %v6158 = vpop.permute.xlu0 %6157
        %6159 = vrot.lane.b32.xlu0 %v6119, 96
        %v6160 = vpop.permute.xlu0 %6159
        %6161 = vrot.lane.b32.xlu0 %v6120, 96
        %v6162 = vpop.permute.xlu0 %6161
        %6163 = vrot.lane.b32.xlu0 %v6121, 96
        %v6164 = vpop.permute.xlu0 %6163
        %6165 = vrot.lane.b32.xlu0 %v6122, 96
        %v6166 = vpop.permute.xlu0 %6165
        %6167 = vrot.lane.b32.xlu0 %v6123, 96
        %v6168 = vpop.permute.xlu0 %6167
        %6169 = vrot.lane.b32.xlu0 %v6124, 96
        %v6170 = vpop.permute.xlu0 %6169
        %6171 = vrot.lane.b32.xlu0 %v6125, 96
        %v6172 = vpop.permute.xlu0 %6171
        %6173 = vrot.lane.b32.xlu0 %v6126, 96
        %v6174 = vpop.permute.xlu0 %6173
        %6175 = vrot.lane.b32.xlu0 %v6127, 96
        %v6176 = vpop.permute.xlu0 %6175
        %6177 = vrot.lane.b32.xlu0 %v6128, 96
        %v6178 = vpop.permute.xlu0 %6177
        %6179 = vrot.lane.b32.xlu0 %v6129, 96
        %v6180 = vpop.permute.xlu0 %6179
        %6181 = vrot.lane.b32.xlu0 %v6130, 96
        %v6182 = vpop.permute.xlu0 %6181
        %6183 = vrot.lane.b32.xlu0 %v6131, 96
        %v6184 = vpop.permute.xlu0 %6183
        %6185 = vrot.lane.b32.xlu0 %v6132, 96
        %v6186 = vpop.permute.xlu0 %6185
        %6187 = vrot.lane.b32.xlu0 %v6133, 96
        %v6188 = vpop.permute.xlu0 %6187
        %6189 = vrot.lane.b32.xlu0 %v6134, 96
        %v6190 = vpop.permute.xlu0 %6189
        %6191 = vrot.lane.b32.xlu0 %v6135, 96
        %v6192 = vpop.permute.xlu0 %6191
        %6193 = vrot.lane.b32.xlu0 %v6136, 96
        %v6194 = vpop.permute.xlu0 %6193
        %6195 = vrot.lane.b32.xlu0 %v6137, 96
        %v6196 = vpop.permute.xlu0 %6195
        %6197 = vrot.lane.b32.xlu0 %v6138, 96
        %v6198 = vpop.permute.xlu0 %6197
        %6199 = vrot.lane.b32.xlu0 %v6139, 96
        %v6200 = vpop.permute.xlu0 %6199
        %6201 = vrot.lane.b32.xlu0 %v6140, 96
        %v6202 = vpop.permute.xlu0 %6201
        %6203 = vrot.lane.b32.xlu0 %v6141, 96
        %v6204 = vpop.permute.xlu0 %6203
        %6205 = vrot.lane.b32.xlu0 %v6142, 96
        %v6206 = vpop.permute.xlu0 %6205
        %6239 = vst.msk [vmem:[#allocation3 + $0x4] sm:$0xf] %vm243, %v6144
        %6240 = vst.msk [vmem:[#allocation3 + $0x10] sm:$0xf] %vm243, %v6146
        %6241 = vst.msk [vmem:[#allocation3 + $0x1c] sm:$0xf] %vm243, %v6148
        %6242 = vst.msk [vmem:[#allocation3 + $0x28] sm:$0xf] %vm243, %v6150
        %6243 = vst.msk [vmem:[#allocation3 + $0x34] sm:$0xf] %vm243, %v6152
        %6244 = vst.msk [vmem:[#allocation3 + $0x40] sm:$0xf] %vm243, %v6154
        %6245 = vst.msk [vmem:[#allocation3 + $0x4c] sm:$0xf] %vm243, %v6156
        %6246 = vst.msk [vmem:[#allocation3 + $0x58] sm:$0xf] %vm243, %v6158
        %6247 = vst.msk [vmem:[#allocation3 + $0x64] sm:$0xf] %vm243, %v6160
        %6248 = vst.msk [vmem:[#allocation3 + $0x70] sm:$0xf] %vm243, %v6162
        %6249 = vst.msk [vmem:[#allocation3 + $0x7c] sm:$0xf] %vm243, %v6164
        %6250 = vst.msk [vmem:[#allocation3 + $0x88] sm:$0xf] %vm243, %v6166
        %6251 = vst.msk [vmem:[#allocation3 + $0x94] sm:$0xf] %vm243, %v6168
        %6252 = vst.msk [vmem:[#allocation3 + $0xa0] sm:$0xf] %vm243, %v6170
        %6253 = vst.msk [vmem:[#allocation3 + $0xac] sm:$0xf] %vm243, %v6172
        %6254 = vst.msk [vmem:[#allocation3 + $0xb8] sm:$0xf] %vm243, %v6174
        %6255 = vst.msk [vmem:[#allocation3 + $0xc4] sm:$0xf] %vm243, %v6176
        %6256 = vst.msk [vmem:[#allocation3 + $0xd0] sm:$0xf] %vm243, %v6178
        %6257 = vst.msk [vmem:[#allocation3 + $0xdc] sm:$0xf] %vm243, %v6180
        %6258 = vst.msk [vmem:[#allocation3 + $0xe8] sm:$0xf] %vm243, %v6182
        %6259 = vst.msk [vmem:[#allocation3 + $0xf4] sm:$0xf] %vm243, %v6184
        %6260 = vst.msk [vmem:[#allocation3 + $0x100] sm:$0xf] %vm243, %v6186
        %6261 = vst.msk [vmem:[#allocation3 + $0x10c] sm:$0xf] %vm243, %v6188
        %6262 = vst.msk [vmem:[#allocation3 + $0x118] sm:$0xf] %vm243, %v6190
        %6263 = vst.msk [vmem:[#allocation3 + $0x124] sm:$0xf] %vm243, %v6192
        %6264 = vst.msk [vmem:[#allocation3 + $0x130] sm:$0xf] %vm243, %v6194
        %6265 = vst.msk [vmem:[#allocation3 + $0x13c] sm:$0xf] %vm243, %v6196
        %6266 = vst.msk [vmem:[#allocation3 + $0x148] sm:$0xf] %vm243, %v6198
        %6267 = vst.msk [vmem:[#allocation3 + $0x154] sm:$0xf] %vm243, %v6200
        %6268 = vst.msk [vmem:[#allocation3 + $0x160] sm:$0xf] %vm243, %v6202
        %6269 = vst.msk [vmem:[#allocation3 + $0x16c] sm:$0xf] %vm243, %v6204
        %6270 = vst.msk [vmem:[#allocation3 + $0x178] sm:$0xf] %vm243, %v6206
        %v6271 = vld [vmem:[#allocation2 + $0x29] sm:$0xff]
        %v6272 = vld [vmem:[#allocation2 + $0x31] sm:$0xff]
        %v6273 = vld [vmem:[#allocation2 + $0x39] sm:$0xff]
        %v6274 = vld [vmem:[#allocation2 + $0x41] sm:$0xff]
        %v6275 = vld [vmem:[#allocation2 + $0x49] sm:$0xff]
        %v6276 = vld [vmem:[#allocation2 + $0x51] sm:$0xff]
        %v6277 = vld [vmem:[#allocation2 + $0x59] sm:$0xff]
        %v6278 = vld [vmem:[#allocation2 + $0x61] sm:$0xff]
        %v6279 = vld [vmem:[#allocation2 + $0x69] sm:$0xff]
        %v6280 = vld [vmem:[#allocation2 + $0x71] sm:$0xff]
        %v6281 = vld [vmem:[#allocation2 + $0x79] sm:$0xff]
        %v6282 = vld [vmem:[#allocation2 + $0x81] sm:$0xff]
        %v6283 = vld [vmem:[#allocation2 + $0x89] sm:$0xff]
        %v6284 = vld [vmem:[#allocation2 + $0x91] sm:$0xff]
        %v6285 = vld [vmem:[#allocation2 + $0x99] sm:$0xff]
        %v6286 = vld [vmem:[#allocation2 + $0xa1] sm:$0xff]
        %v6287 = vld [vmem:[#allocation2 + $0xa9] sm:$0xff]
        %v6288 = vld [vmem:[#allocation2 + $0xb1] sm:$0xff]
        %v6289 = vld [vmem:[#allocation2 + $0xb9] sm:$0xff]
        %v6290 = vld [vmem:[#allocation2 + $0xc1] sm:$0xff]
        %v6291 = vld [vmem:[#allocation2 + $0xc9] sm:$0xff]
        %v6292 = vld [vmem:[#allocation2 + $0xd1] sm:$0xff]
        %v6293 = vld [vmem:[#allocation2 + $0xd9] sm:$0xff]
        %v6294 = vld [vmem:[#allocation2 + $0xe1] sm:$0xff]
        %v6295 = vld [vmem:[#allocation2 + $0xe9] sm:$0xff]
        %v6296 = vld [vmem:[#allocation2 + $0xf1] sm:$0xff]
        %v6297 = vld [vmem:[#allocation2 + $0xf9] sm:$0xff]
        %v6298 = vld [vmem:[#allocation2 + $0x101] sm:$0xff]
        %v6299 = vld [vmem:[#allocation2 + $0x109] sm:$0xff]
        %v6300 = vld [vmem:[#allocation2 + $0x111] sm:$0xff]
        %v6301 = vld [vmem:[#allocation2 + $0x119] sm:$0xff]
        %v6302 = vld [vmem:[#allocation2 + $0x121] sm:$0xff]
        %v6303 = vsel %vm373, %v6271, 0.0
        %v6304 = vsel %vm374, %v6272, 0.0
        %v6305 = vsel %vm375, %v6273, 0.0
        %v6306 = vsel %vm376, %v6274, 0.0
        %v6307 = vsel %vm377, %v6275, 0.0
        %v6308 = vsel %vm378, %v6276, 0.0
        %v6309 = vsel %vm379, %v6277, 0.0
        %v6310 = vsel %vm380, %v6278, 0.0
        %v6311 = vsel %vm381, %v6279, 0.0
        %v6312 = vsel %vm382, %v6280, 0.0
        %v6313 = vsel %vm383, %v6281, 0.0
        %v6314 = vsel %vm384, %v6282, 0.0
        %v6315 = vsel %vm385, %v6283, 0.0
        %v6316 = vsel %vm386, %v6284, 0.0
        %v6317 = vsel %vm387, %v6285, 0.0
        %v6318 = vsel %vm388, %v6286, 0.0
        %v6319 = vsel %vm389, %v6287, 0.0
        %v6320 = vsel %vm390, %v6288, 0.0
        %v6321 = vsel %vm391, %v6289, 0.0
        %v6322 = vsel %vm392, %v6290, 0.0
        %v6323 = vsel %vm393, %v6291, 0.0
        %v6324 = vsel %vm394, %v6292, 0.0
        %v6325 = vsel %vm395, %v6293, 0.0
        %v6326 = vsel %vm396, %v6294, 0.0
        %v6327 = vsel %vm397, %v6295, 0.0
        %v6328 = vsel %vm398, %v6296, 0.0
        %v6329 = vsel %vm399, %v6297, 0.0
        %v6330 = vsel %vm400, %v6298, 0.0
        %v6331 = vsel %vm401, %v6299, 0.0
        %v6332 = vsel %vm402, %v6300, 0.0
        %v6333 = vsel %vm403, %v6301, 0.0
        %v6334 = vsel %vm404, %v6302, 0.0
        %v6335 = vpack.c.bf16 %v6304, %v6303
        %v6336 = vpack.c.bf16 %v6306, %v6305
        %v6337 = vpack.c.bf16 %v6308, %v6307
        %v6338 = vpack.c.bf16 %v6310, %v6309
        %v6339 = vpack.c.bf16 %v6312, %v6311
        %v6340 = vpack.c.bf16 %v6314, %v6313
        %v6341 = vpack.c.bf16 %v6316, %v6315
        %v6342 = vpack.c.bf16 %v6318, %v6317
        %v6343 = vpack.c.bf16 %v6320, %v6319
        %v6344 = vpack.c.bf16 %v6322, %v6321
        %v6345 = vpack.c.bf16 %v6324, %v6323
        %v6346 = vpack.c.bf16 %v6326, %v6325
        %v6347 = vpack.c.bf16 %v6328, %v6327
        %v6348 = vpack.c.bf16 %v6330, %v6329
        %v6349 = vpack.c.bf16 %v6332, %v6331
        %v6350 = vpack.c.bf16 %v6334, %v6333
        %v6367 = vunpack.c.l.b16 %v6335
        %v6368 = vunpack.c.h.b16 %v6335
        %v6369 = vunpack.c.l.b16 %v6336
        %v6370 = vunpack.c.h.b16 %v6336
        %v6371 = vunpack.c.l.b16 %v6337
        %v6372 = vunpack.c.h.b16 %v6337
        %v6373 = vunpack.c.l.b16 %v6338
        %v6374 = vunpack.c.h.b16 %v6338
        %v6375 = vunpack.c.l.b16 %v6339
        %v6376 = vunpack.c.h.b16 %v6339
        %v6377 = vunpack.c.l.b16 %v6340
        %v6378 = vunpack.c.h.b16 %v6340
        %v6379 = vunpack.c.l.b16 %v6341
        %v6380 = vunpack.c.h.b16 %v6341
        %v6381 = vunpack.c.l.b16 %v6342
        %v6382 = vunpack.c.h.b16 %v6342
        %v6383 = vunpack.c.l.b16 %v6343
        %v6384 = vunpack.c.h.b16 %v6343
        %v6385 = vunpack.c.l.b16 %v6344
        %v6386 = vunpack.c.h.b16 %v6344
        %v6387 = vunpack.c.l.b16 %v6345
        %v6388 = vunpack.c.h.b16 %v6345
        %v6389 = vunpack.c.l.b16 %v6346
        %v6390 = vunpack.c.h.b16 %v6346
        %v6391 = vunpack.c.l.b16 %v6347
        %v6392 = vunpack.c.h.b16 %v6347
        %v6393 = vunpack.c.l.b16 %v6348
        %v6394 = vunpack.c.h.b16 %v6348
        %v6395 = vunpack.c.l.b16 %v6349
        %v6396 = vunpack.c.h.b16 %v6349
        %v6397 = vunpack.c.l.b16 %v6350
        %v6398 = vunpack.c.h.b16 %v6350
        %v6399 = vpack.c.b16 %v6367, %v6367
        %v6400 = vpack.c.b16 %v6368, %v6368
        %v6401 = vpack.c.b16 %v6369, %v6369
        %v6402 = vpack.c.b16 %v6370, %v6370
        %v6403 = vpack.c.b16 %v6371, %v6371
        %v6404 = vpack.c.b16 %v6372, %v6372
        %v6405 = vpack.c.b16 %v6373, %v6373
        %v6406 = vpack.c.b16 %v6374, %v6374
        %v6407 = vpack.c.b16 %v6375, %v6375
        %v6408 = vpack.c.b16 %v6376, %v6376
        %v6409 = vpack.c.b16 %v6377, %v6377
        %v6410 = vpack.c.b16 %v6378, %v6378
        %v6411 = vpack.c.b16 %v6379, %v6379
        %v6412 = vpack.c.b16 %v6380, %v6380
        %v6413 = vpack.c.b16 %v6381, %v6381
        %v6414 = vpack.c.b16 %v6382, %v6382
        %v6415 = vpack.c.b16 %v6383, %v6383
        %v6416 = vpack.c.b16 %v6384, %v6384
        %v6417 = vpack.c.b16 %v6385, %v6385
        %v6418 = vpack.c.b16 %v6386, %v6386
        %v6419 = vpack.c.b16 %v6387, %v6387
        %v6420 = vpack.c.b16 %v6388, %v6388
        %v6421 = vpack.c.b16 %v6389, %v6389
        %v6422 = vpack.c.b16 %v6390, %v6390
        %v6423 = vpack.c.b16 %v6391, %v6391
        %v6424 = vpack.c.b16 %v6392, %v6392
        %v6425 = vpack.c.b16 %v6393, %v6393
        %v6426 = vpack.c.b16 %v6394, %v6394
        %v6427 = vpack.c.b16 %v6395, %v6395
        %v6428 = vpack.c.b16 %v6396, %v6396
        %v6429 = vpack.c.b16 %v6397, %v6397
        %v6430 = vpack.c.b16 %v6398, %v6398
        %6463 = vst.msk [vmem:[#allocation3 + $0x8] sm:$0xf] %vm757, %v6399
        %6464 = vst.msk [vmem:[#allocation3 + $0x14] sm:$0xf] %vm757, %v6400
        %6465 = vst.msk [vmem:[#allocation3 + $0x20] sm:$0xf] %vm757, %v6401
        %6466 = vst.msk [vmem:[#allocation3 + $0x2c] sm:$0xf] %vm757, %v6402
        %6467 = vst.msk [vmem:[#allocation3 + $0x38] sm:$0xf] %vm757, %v6403
        %6468 = vst.msk [vmem:[#allocation3 + $0x44] sm:$0xf] %vm757, %v6404
        %6469 = vst.msk [vmem:[#allocation3 + $0x50] sm:$0xf] %vm757, %v6405
        %6470 = vst.msk [vmem:[#allocation3 + $0x5c] sm:$0xf] %vm757, %v6406
        %6471 = vst.msk [vmem:[#allocation3 + $0x68] sm:$0xf] %vm757, %v6407
        %6472 = vst.msk [vmem:[#allocation3 + $0x74] sm:$0xf] %vm757, %v6408
        %6473 = vst.msk [vmem:[#allocation3 + $0x80] sm:$0xf] %vm757, %v6409
        %6474 = vst.msk [vmem:[#allocation3 + $0x8c] sm:$0xf] %vm757, %v6410
        %6475 = vst.msk [vmem:[#allocation3 + $0x98] sm:$0xf] %vm757, %v6411
        %6476 = vst.msk [vmem:[#allocation3 + $0xa4] sm:$0xf] %vm757, %v6412
        %6477 = vst.msk [vmem:[#allocation3 + $0xb0] sm:$0xf] %vm757, %v6413
        %6478 = vst.msk [vmem:[#allocation3 + $0xbc] sm:$0xf] %vm757, %v6414
        %6479 = vst.msk [vmem:[#allocation3 + $0xc8] sm:$0xf] %vm757, %v6415
        %6480 = vst.msk [vmem:[#allocation3 + $0xd4] sm:$0xf] %vm757, %v6416
        %6481 = vst.msk [vmem:[#allocation3 + $0xe0] sm:$0xf] %vm757, %v6417
        %6482 = vst.msk [vmem:[#allocation3 + $0xec] sm:$0xf] %vm757, %v6418
        %6483 = vst.msk [vmem:[#allocation3 + $0xf8] sm:$0xf] %vm757, %v6419
        %6484 = vst.msk [vmem:[#allocation3 + $0x104] sm:$0xf] %vm757, %v6420
        %6485 = vst.msk [vmem:[#allocation3 + $0x110] sm:$0xf] %vm757, %v6421
        %6486 = vst.msk [vmem:[#allocation3 + $0x11c] sm:$0xf] %vm757, %v6422
        %6487 = vst.msk [vmem:[#allocation3 + $0x128] sm:$0xf] %vm757, %v6423
        %6488 = vst.msk [vmem:[#allocation3 + $0x134] sm:$0xf] %vm757, %v6424
        %6489 = vst.msk [vmem:[#allocation3 + $0x140] sm:$0xf] %vm757, %v6425
        %6490 = vst.msk [vmem:[#allocation3 + $0x14c] sm:$0xf] %vm757, %v6426
        %6491 = vst.msk [vmem:[#allocation3 + $0x158] sm:$0xf] %vm757, %v6427
        %6492 = vst.msk [vmem:[#allocation3 + $0x164] sm:$0xf] %vm757, %v6428
        %6493 = vst.msk [vmem:[#allocation3 + $0x170] sm:$0xf] %vm757, %v6429
        %6494 = vst.msk [vmem:[#allocation3 + $0x17c] sm:$0xf] %vm757, %v6430
        %v6495 = vld [vmem:[#allocation3] sm:$0xff]
        %v6496 = vld [vmem:[#allocation3 + $0x8] sm:$0xf]
        %v6497 = vld [vmem:[#allocation3 + $0xc] sm:$0xff]
        %v6498 = vld [vmem:[#allocation3 + $0x14] sm:$0xf]
        %v6499 = vld [vmem:[#allocation3 + $0x18] sm:$0xff]
        %v6500 = vld [vmem:[#allocation3 + $0x20] sm:$0xf]
        %v6501 = vld [vmem:[#allocation3 + $0x24] sm:$0xff]
        %v6502 = vld [vmem:[#allocation3 + $0x2c] sm:$0xf]
        %v6503 = vld [vmem:[#allocation3 + $0x30] sm:$0xff]
        %v6504 = vld [vmem:[#allocation3 + $0x38] sm:$0xf]
        %v6505 = vld [vmem:[#allocation3 + $0x3c] sm:$0xff]
        %v6506 = vld [vmem:[#allocation3 + $0x44] sm:$0xf]
        %v6507 = vld [vmem:[#allocation3 + $0x48] sm:$0xff]
        %v6508 = vld [vmem:[#allocation3 + $0x50] sm:$0xf]
        %v6509 = vld [vmem:[#allocation3 + $0x54] sm:$0xff]
        %v6510 = vld [vmem:[#allocation3 + $0x5c] sm:$0xf]
        %v6511 = vld [vmem:[#allocation3 + $0x60] sm:$0xff]
        %v6512 = vld [vmem:[#allocation3 + $0x68] sm:$0xf]
        %v6513 = vld [vmem:[#allocation3 + $0x6c] sm:$0xff]
        %v6514 = vld [vmem:[#allocation3 + $0x74] sm:$0xf]
        %v6515 = vld [vmem:[#allocation3 + $0x78] sm:$0xff]
        %v6516 = vld [vmem:[#allocation3 + $0x80] sm:$0xf]
        %v6517 = vld [vmem:[#allocation3 + $0x84] sm:$0xff]
        %v6518 = vld [vmem:[#allocation3 + $0x8c] sm:$0xf]
        %v6519 = vld [vmem:[#allocation3 + $0x90] sm:$0xff]
        %v6520 = vld [vmem:[#allocation3 + $0x98] sm:$0xf]
        %v6521 = vld [vmem:[#allocation3 + $0x9c] sm:$0xff]
        %v6522 = vld [vmem:[#allocation3 + $0xa4] sm:$0xf]
        %v6523 = vld [vmem:[#allocation3 + $0xa8] sm:$0xff]
        %v6524 = vld [vmem:[#allocation3 + $0xb0] sm:$0xf]
        %v6525 = vld [vmem:[#allocation3 + $0xb4] sm:$0xff]
        %v6526 = vld [vmem:[#allocation3 + $0xbc] sm:$0xf]
        %v6527 = vld [vmem:[#allocation3 + $0xc0] sm:$0xff]
        %v6528 = vld [vmem:[#allocation3 + $0xc8] sm:$0xf]
        %v6529 = vld [vmem:[#allocation3 + $0xcc] sm:$0xff]
        %v6530 = vld [vmem:[#allocation3 + $0xd4] sm:$0xf]
        %v6531 = vld [vmem:[#allocation3 + $0xd8] sm:$0xff]
        %v6532 = vld [vmem:[#allocation3 + $0xe0] sm:$0xf]
        %v6533 = vld [vmem:[#allocation3 + $0xe4] sm:$0xff]
        %v6534 = vld [vmem:[#allocation3 + $0xec] sm:$0xf]
        %v6535 = vld [vmem:[#allocation3 + $0xf0] sm:$0xff]
        %v6536 = vld [vmem:[#allocation3 + $0xf8] sm:$0xf]
        %v6537 = vld [vmem:[#allocation3 + $0xfc] sm:$0xff]
        %v6538 = vld [vmem:[#allocation3 + $0x104] sm:$0xf]
        %v6539 = vld [vmem:[#allocation3 + $0x108] sm:$0xff]
        %v6540 = vld [vmem:[#allocation3 + $0x110] sm:$0xf]
        %v6541 = vld [vmem:[#allocation3 + $0x114] sm:$0xff]
        %v6542 = vld [vmem:[#allocation3 + $0x11c] sm:$0xf]
        %v6543 = vld [vmem:[#allocation3 + $0x120] sm:$0xff]
        %v6544 = vld [vmem:[#allocation3 + $0x128] sm:$0xf]
        %v6545 = vld [vmem:[#allocation3 + $0x12c] sm:$0xff]
        %v6546 = vld [vmem:[#allocation3 + $0x134] sm:$0xf]
        %v6547 = vld [vmem:[#allocation3 + $0x138] sm:$0xff]
        %v6548 = vld [vmem:[#allocation3 + $0x140] sm:$0xf]
        %v6549 = vld [vmem:[#allocation3 + $0x144] sm:$0xff]
        %v6550 = vld [vmem:[#allocation3 + $0x14c] sm:$0xf]
        %v6551 = vld [vmem:[#allocation3 + $0x150] sm:$0xff]
        %v6552 = vld [vmem:[#allocation3 + $0x158] sm:$0xf]
        %v6553 = vld [vmem:[#allocation3 + $0x15c] sm:$0xff]
        %v6554 = vld [vmem:[#allocation3 + $0x164] sm:$0xf]
        %v6555 = vld [vmem:[#allocation3 + $0x168] sm:$0xff]
        %v6556 = vld [vmem:[#allocation3 + $0x170] sm:$0xf]
        %v6557 = vld [vmem:[#allocation3 + $0x174] sm:$0xff]
        %v6558 = vld [vmem:[#allocation3 + $0x17c] sm:$0xf]
        %s6559 = scalar_lea.vmem %s1, 192
        %v6560 = vld [vmem:[%s6559] sm:$0xf]
        %v6561 = vld [vmem:[%s6559 + $0x4] sm:$0xf]
        %v6562 = vld [vmem:[%s6559 + $0x8] sm:$0xf]
        %v6563 = vld [vmem:[%s6559 + $0xc] sm:$0xf]
        %v6564 = vld [vmem:[%s6559 + $0x10] sm:$0xf]
        %v6565 = vld [vmem:[%s6559 + $0x14] sm:$0xf]
        %v6566 = vld [vmem:[%s6559 + $0x18] sm:$0xf]
        %v6567 = vld [vmem:[%s6559 + $0x1c] sm:$0xf]
        %v6568 = vld [vmem:[%s6559 + $0x20] sm:$0xf]
        %v6569 = vld [vmem:[%s6559 + $0x24] sm:$0xf]
        %v6570 = vld [vmem:[%s6559 + $0x28] sm:$0xf]
        %v6571 = vld [vmem:[%s6559 + $0x2c] sm:$0xf]
        %v6572 = vld [vmem:[%s6559 + $0x30] sm:$0xf]
        %v6573 = vld [vmem:[%s6559 + $0x34] sm:$0xf]
        %v6574 = vld [vmem:[%s6559 + $0x38] sm:$0xf]
        %v6575 = vld [vmem:[%s6559 + $0x3c] sm:$0xf]
        %v6576 = vld [vmem:[%s6559 + $0x40] sm:$0xf]
        %v6577 = vld [vmem:[%s6559 + $0x44] sm:$0xf]
        %v6578 = vld [vmem:[%s6559 + $0x48] sm:$0xf]
        %v6579 = vld [vmem:[%s6559 + $0x4c] sm:$0xf]
        %v6580 = vld [vmem:[%s6559 + $0x50] sm:$0xf]
        %v6581 = vld [vmem:[%s6559 + $0x54] sm:$0xf]
        %v6582 = vld [vmem:[%s6559 + $0x58] sm:$0xf]
        %v6583 = vld [vmem:[%s6559 + $0x5c] sm:$0xf]
        %v6584 = vld [vmem:[%s6559 + $0x60] sm:$0xf]
        %v6585 = vld [vmem:[%s6559 + $0x64] sm:$0xf]
        %v6586 = vld [vmem:[%s6559 + $0x68] sm:$0xf]
        %v6587 = vld [vmem:[%s6559 + $0x6c] sm:$0xf]
        %v6588 = vld [vmem:[%s6559 + $0x70] sm:$0xf]
        %v6589 = vld [vmem:[%s6559 + $0x74] sm:$0xf]
        %v6590 = vld [vmem:[%s6559 + $0x78] sm:$0xf]
        %v6591 = vld [vmem:[%s6559 + $0x7c] sm:$0xf]
        %v6592 = vld [vmem:[%s6559 + $0x80] sm:$0xf]
        %v6593 = vld [vmem:[%s6559 + $0x84] sm:$0xf]
        %v6594 = vld [vmem:[%s6559 + $0x88] sm:$0xf]
        %v6595 = vld [vmem:[%s6559 + $0x8c] sm:$0xf]
        %v6596 = vld [vmem:[%s6559 + $0x90] sm:$0xf]
        %v6597 = vld [vmem:[%s6559 + $0x94] sm:$0xf]
        %v6598 = vld [vmem:[%s6559 + $0x98] sm:$0xf]
        %v6599 = vld [vmem:[%s6559 + $0x9c] sm:$0xf]
        %v6600 = vld [vmem:[%s6559 + $0xa0] sm:$0xf]
        %v6601 = vld [vmem:[%s6559 + $0xa4] sm:$0xf]
        %v6602 = vld [vmem:[%s6559 + $0xa8] sm:$0xf]
        %v6603 = vld [vmem:[%s6559 + $0xac] sm:$0xf]
        %v6604 = vld [vmem:[%s6559 + $0xb0] sm:$0xf]
        %v6605 = vld [vmem:[%s6559 + $0xb4] sm:$0xf]
        %v6606 = vld [vmem:[%s6559 + $0xb8] sm:$0xf]
        %v6607 = vld [vmem:[%s6559 + $0xbc] sm:$0xf]
        %v6672 = vunpack.c.l.b16 %v6495
        %v6673 = vunpack.c.h.b16 %v6495
        %v6674 = vunpack.c.l.b16 %v6496
        %v6675 = vunpack.c.l.b16 %v6497
        %v6676 = vunpack.c.h.b16 %v6497
        %v6677 = vunpack.c.l.b16 %v6498
        %v6678 = vunpack.c.l.b16 %v6499
        %v6679 = vunpack.c.h.b16 %v6499
        %v6680 = vunpack.c.l.b16 %v6500
        %v6681 = vunpack.c.l.b16 %v6501
        %v6682 = vunpack.c.h.b16 %v6501
        %v6683 = vunpack.c.l.b16 %v6502
        %v6684 = vunpack.c.l.b16 %v6503
        %v6685 = vunpack.c.h.b16 %v6503
        %v6686 = vunpack.c.l.b16 %v6504
        %v6687 = vunpack.c.l.b16 %v6505
        %v6688 = vunpack.c.h.b16 %v6505
        %v6689 = vunpack.c.l.b16 %v6506
        %v6690 = vunpack.c.l.b16 %v6507
        %v6691 = vunpack.c.h.b16 %v6507
        %v6692 = vunpack.c.l.b16 %v6508
        %v6693 = vunpack.c.l.b16 %v6509
        %v6694 = vunpack.c.h.b16 %v6509
        %v6695 = vunpack.c.l.b16 %v6510
        %v6696 = vunpack.c.l.b16 %v6511
        %v6697 = vunpack.c.h.b16 %v6511
        %v6698 = vunpack.c.l.b16 %v6512
        %v6699 = vunpack.c.l.b16 %v6513
        %v6700 = vunpack.c.h.b16 %v6513
        %v6701 = vunpack.c.l.b16 %v6514
        %v6702 = vunpack.c.l.b16 %v6515
        %v6703 = vunpack.c.h.b16 %v6515
        %v6704 = vunpack.c.l.b16 %v6516
        %v6705 = vunpack.c.l.b16 %v6517
        %v6706 = vunpack.c.h.b16 %v6517
        %v6707 = vunpack.c.l.b16 %v6518
        %v6708 = vunpack.c.l.b16 %v6519
        %v6709 = vunpack.c.h.b16 %v6519
        %v6710 = vunpack.c.l.b16 %v6520
        %v6711 = vunpack.c.l.b16 %v6521
        %v6712 = vunpack.c.h.b16 %v6521
        %v6713 = vunpack.c.l.b16 %v6522
        %v6714 = vunpack.c.l.b16 %v6523
        %v6715 = vunpack.c.h.b16 %v6523
        %v6716 = vunpack.c.l.b16 %v6524
        %v6717 = vunpack.c.l.b16 %v6525
        %v6718 = vunpack.c.h.b16 %v6525
        %v6719 = vunpack.c.l.b16 %v6526
        %v6720 = vunpack.c.l.b16 %v6527
        %v6721 = vunpack.c.h.b16 %v6527
        %v6722 = vunpack.c.l.b16 %v6528
        %v6723 = vunpack.c.l.b16 %v6529
        %v6724 = vunpack.c.h.b16 %v6529
        %v6725 = vunpack.c.l.b16 %v6530
        %v6726 = vunpack.c.l.b16 %v6531
        %v6727 = vunpack.c.h.b16 %v6531
        %v6728 = vunpack.c.l.b16 %v6532
        %v6729 = vunpack.c.l.b16 %v6533
        %v6730 = vunpack.c.h.b16 %v6533
        %v6731 = vunpack.c.l.b16 %v6534
        %v6732 = vunpack.c.l.b16 %v6535
        %v6733 = vunpack.c.h.b16 %v6535
        %v6734 = vunpack.c.l.b16 %v6536
        %v6735 = vunpack.c.l.b16 %v6537
        %v6736 = vunpack.c.h.b16 %v6537
        %v6737 = vunpack.c.l.b16 %v6538
        %v6738 = vunpack.c.l.b16 %v6539
        %v6739 = vunpack.c.h.b16 %v6539
        %v6740 = vunpack.c.l.b16 %v6540
        %v6741 = vunpack.c.l.b16 %v6541
        %v6742 = vunpack.c.h.b16 %v6541
        %v6743 = vunpack.c.l.b16 %v6542
        %v6744 = vunpack.c.l.b16 %v6543
        %v6745 = vunpack.c.h.b16 %v6543
        %v6746 = vunpack.c.l.b16 %v6544
        %v6747 = vunpack.c.l.b16 %v6545
        %v6748 = vunpack.c.h.b16 %v6545
        %v6749 = vunpack.c.l.b16 %v6546
        %v6750 = vunpack.c.l.b16 %v6547
        %v6751 = vunpack.c.h.b16 %v6547
        %v6752 = vunpack.c.l.b16 %v6548
        %v6753 = vunpack.c.l.b16 %v6549
        %v6754 = vunpack.c.h.b16 %v6549
        %v6755 = vunpack.c.l.b16 %v6550
        %v6756 = vunpack.c.l.b16 %v6551
        %v6757 = vunpack.c.h.b16 %v6551
        %v6758 = vunpack.c.l.b16 %v6552
        %v6759 = vunpack.c.l.b16 %v6553
        %v6760 = vunpack.c.h.b16 %v6553
        %v6761 = vunpack.c.l.b16 %v6554
        %v6762 = vunpack.c.l.b16 %v6555
        %v6763 = vunpack.c.h.b16 %v6555
        %v6764 = vunpack.c.l.b16 %v6556
        %v6765 = vunpack.c.l.b16 %v6557
        %v6766 = vunpack.c.h.b16 %v6557
        %v6767 = vunpack.c.l.b16 %v6558
        %v6768 = vpack.c.b16 %v6675, %v6672
        %v6769 = vpack.c.b16 %v6676, %v6673
        %v6770 = vpack.c.b16 %v6677, %v6674
        %v6771 = vpack.c.b16 %v6681, %v6678
        %v6772 = vpack.c.b16 %v6682, %v6679
        %v6773 = vpack.c.b16 %v6683, %v6680
        %v6774 = vpack.c.b16 %v6687, %v6684
        %v6775 = vpack.c.b16 %v6688, %v6685
        %v6776 = vpack.c.b16 %v6689, %v6686
        %v6777 = vpack.c.b16 %v6693, %v6690
        %v6778 = vpack.c.b16 %v6694, %v6691
        %v6779 = vpack.c.b16 %v6695, %v6692
        %v6780 = vpack.c.b16 %v6699, %v6696
        %v6781 = vpack.c.b16 %v6700, %v6697
        %v6782 = vpack.c.b16 %v6701, %v6698
        %v6783 = vpack.c.b16 %v6705, %v6702
        %v6784 = vpack.c.b16 %v6706, %v6703
        %v6785 = vpack.c.b16 %v6707, %v6704
        %v6786 = vpack.c.b16 %v6711, %v6708
        %v6787 = vpack.c.b16 %v6712, %v6709
        %v6788 = vpack.c.b16 %v6713, %v6710
        %v6789 = vpack.c.b16 %v6717, %v6714
        %v6790 = vpack.c.b16 %v6718, %v6715
        %v6791 = vpack.c.b16 %v6719, %v6716
        %v6792 = vpack.c.b16 %v6723, %v6720
        %v6793 = vpack.c.b16 %v6724, %v6721
        %v6794 = vpack.c.b16 %v6725, %v6722
        %v6795 = vpack.c.b16 %v6729, %v6726
        %v6796 = vpack.c.b16 %v6730, %v6727
        %v6797 = vpack.c.b16 %v6731, %v6728
        %v6798 = vpack.c.b16 %v6735, %v6732
        %v6799 = vpack.c.b16 %v6736, %v6733
        %v6800 = vpack.c.b16 %v6737, %v6734
        %v6801 = vpack.c.b16 %v6741, %v6738
        %v6802 = vpack.c.b16 %v6742, %v6739
        %v6803 = vpack.c.b16 %v6743, %v6740
        %v6804 = vpack.c.b16 %v6747, %v6744
        %v6805 = vpack.c.b16 %v6748, %v6745
        %v6806 = vpack.c.b16 %v6749, %v6746
        %v6807 = vpack.c.b16 %v6753, %v6750
        %v6808 = vpack.c.b16 %v6754, %v6751
        %v6809 = vpack.c.b16 %v6755, %v6752
        %v6810 = vpack.c.b16 %v6759, %v6756
        %v6811 = vpack.c.b16 %v6760, %v6757
        %v6812 = vpack.c.b16 %v6761, %v6758
        %v6813 = vpack.c.b16 %v6765, %v6762
        %v6814 = vpack.c.b16 %v6766, %v6763
        %v6815 = vpack.c.b16 %v6767, %v6764
        %v6912 = vunpack.c.l.b16 %v6560
        %v6913 = vunpack.c.l.b16 %v6561
        %v6914 = vunpack.c.l.b16 %v6562
        %v6915 = vunpack.c.l.b16 %v6563
        %v6916 = vunpack.c.l.b16 %v6564
        %v6917 = vunpack.c.l.b16 %v6565
        %v6918 = vunpack.c.l.b16 %v6566
        %v6919 = vunpack.c.l.b16 %v6567
        %v6920 = vunpack.c.l.b16 %v6568
        %v6921 = vunpack.c.l.b16 %v6569
        %v6922 = vunpack.c.l.b16 %v6570
        %v6923 = vunpack.c.l.b16 %v6571
        %v6924 = vunpack.c.l.b16 %v6572
        %v6925 = vunpack.c.l.b16 %v6573
        %v6926 = vunpack.c.l.b16 %v6574
        %v6927 = vunpack.c.l.b16 %v6575
        %v6928 = vunpack.c.l.b16 %v6576
        %v6929 = vunpack.c.l.b16 %v6577
        %v6930 = vunpack.c.l.b16 %v6578
        %v6931 = vunpack.c.l.b16 %v6579
        %v6932 = vunpack.c.l.b16 %v6580
        %v6933 = vunpack.c.l.b16 %v6581
        %v6934 = vunpack.c.l.b16 %v6582
        %v6935 = vunpack.c.l.b16 %v6583
        %v6936 = vunpack.c.l.b16 %v6584
        %v6937 = vunpack.c.l.b16 %v6585
        %v6938 = vunpack.c.l.b16 %v6586
        %v6939 = vunpack.c.l.b16 %v6587
        %v6940 = vunpack.c.l.b16 %v6588
        %v6941 = vunpack.c.l.b16 %v6589
        %v6942 = vunpack.c.l.b16 %v6590
        %v6943 = vunpack.c.l.b16 %v6591
        %v6944 = vunpack.c.l.b16 %v6592
        %v6945 = vunpack.c.l.b16 %v6593
        %v6946 = vunpack.c.l.b16 %v6594
        %v6947 = vunpack.c.l.b16 %v6595
        %v6948 = vunpack.c.l.b16 %v6596
        %v6949 = vunpack.c.l.b16 %v6597
        %v6950 = vunpack.c.l.b16 %v6598
        %v6951 = vunpack.c.l.b16 %v6599
        %v6952 = vunpack.c.l.b16 %v6600
        %v6953 = vunpack.c.l.b16 %v6601
        %v6954 = vunpack.c.l.b16 %v6602
        %v6955 = vunpack.c.l.b16 %v6603
        %v6956 = vunpack.c.l.b16 %v6604
        %v6957 = vunpack.c.l.b16 %v6605
        %v6958 = vunpack.c.l.b16 %v6606
        %v6959 = vunpack.c.l.b16 %v6607
        %v6960 = vpack.c.b16 %v6913, %v6912
        %v6961 = vpack.c.b16 %v6915, %v6914
        %v6962 = vpack.c.b16 %v6917, %v6916
        %v6963 = vpack.c.b16 %v6919, %v6918
        %v6964 = vpack.c.b16 %v6921, %v6920
        %v6965 = vpack.c.b16 %v6923, %v6922
        %v6966 = vpack.c.b16 %v6925, %v6924
        %v6967 = vpack.c.b16 %v6927, %v6926
        %v6968 = vpack.c.b16 %v6929, %v6928
        %v6969 = vpack.c.b16 %v6931, %v6930
        %v6970 = vpack.c.b16 %v6933, %v6932
        %v6971 = vpack.c.b16 %v6935, %v6934
        %v6972 = vpack.c.b16 %v6937, %v6936
        %v6973 = vpack.c.b16 %v6939, %v6938
        %v6974 = vpack.c.b16 %v6941, %v6940
        %v6975 = vpack.c.b16 %v6943, %v6942
        %v6976 = vpack.c.b16 %v6945, %v6944
        %v6977 = vpack.c.b16 %v6947, %v6946
        %v6978 = vpack.c.b16 %v6949, %v6948
        %v6979 = vpack.c.b16 %v6951, %v6950
        %v6980 = vpack.c.b16 %v6953, %v6952
        %v6981 = vpack.c.b16 %v6955, %v6954
        %v6982 = vpack.c.b16 %v6957, %v6956
        %v6983 = vpack.c.b16 %v6959, %v6958
        %7008 = vmatprep.subr.bf16.mxu0 0
        %7009 = vmatpush1.bf16.msra.mxu0 %v6967
        %7010 = vmatprep.subr.bf16.mxu0 0
        %7011 = vmatpush1.bf16.msra.mxu0 %v6966
        %7012 = vmatprep.subr.bf16.mxu0 0
        %7013 = vmatpush1.bf16.msra.mxu0 %v6965
        %7014 = vmatprep.subr.bf16.mxu0 0
        %7015 = vmatpush1.bf16.msra.mxu0 %v6964
        %7016 = vmatprep.subr.bf16.mxu0 0
        %7017 = vmatpush1.bf16.msra.mxu0 %v6963
        %7018 = vmatprep.subr.bf16.mxu0 0
        %7019 = vmatpush1.bf16.msra.mxu0 %v6962
        %7020 = vmatprep.subr.bf16.mxu0 0
        %7021 = vmatpush1.bf16.msra.mxu0 %v6961
        %7022 = vmatprep.subr.bf16.mxu0 0
        %7023 = vmatpush1.bf16.msra.mxu0 %v6960
        %7024 = vmatprep.subr.bf16.mxu0 0
        %7025 = vmatpush2.bf16.msra.mxu0 %v6975
        %7026 = vmatprep.subr.bf16.mxu0 0
        %7027 = vmatpush2.bf16.msra.mxu0 %v6974
        %7028 = vmatprep.subr.bf16.mxu0 0
        %7029 = vmatpush2.bf16.msra.mxu0 %v6973
        %7030 = vmatprep.subr.bf16.mxu0 0
        %7031 = vmatpush2.bf16.msra.mxu0 %v6972
        %7032 = vmatprep.subr.bf16.mxu0 0
        %7033 = vmatpush2.bf16.msra.mxu0 %v6971
        %7034 = vmatprep.subr.bf16.mxu0 0
        %7035 = vmatpush2.bf16.msra.mxu0 %v6970
        %7036 = vmatprep.subr.bf16.mxu0 0
        %7037 = vmatpush2.bf16.msra.mxu0 %v6969
        %7038 = vmatprep.subr.bf16.mxu0 0
        %7039 = vmatpush2.bf16.msra.mxu0 %v6968
        %7040 = vmatprep.mubr.bf16.mxu0 %v6769
        %7041 = vmatmul.mubr.bf16.gmra.mxu0 %v6768
        %v7042 = vpop.f32.mrf.mxu0
        %v7043 = vadd.f32 0.0, %v7042
        %v7044 = vpop.f32.mrf.mxu0
        %v7045 = vpop.f32.mrf.mxu0
        %v7046 = vadd.f32 0.0, %v7045
        %v7047 = vpop.f32.mrf.mxu0
        %7048 = vmatprep.mubr.bf16.mxu0 %v6772
        %7049 = vmatmul.mubr.bf16.gmra.mxu0 %v6771
        %v7050 = vpop.f32.mrf.mxu0
        %v7051 = vadd.f32 0.0, %v7050
        %v7052 = vpop.f32.mrf.mxu0
        %v7053 = vpop.f32.mrf.mxu0
        %v7054 = vadd.f32 0.0, %v7053
        %v7055 = vpop.f32.mrf.mxu0
        %7056 = vmatprep.mubr.bf16.mxu0 %v6775
        %7057 = vmatmul.mubr.bf16.gmra.mxu0 %v6774
        %v7058 = vpop.f32.mrf.mxu0
        %v7059 = vadd.f32 0.0, %v7058
        %v7060 = vpop.f32.mrf.mxu0
        %v7061 = vpop.f32.mrf.mxu0
        %v7062 = vadd.f32 0.0, %v7061
        %v7063 = vpop.f32.mrf.mxu0
        %7064 = vmatprep.mubr.bf16.mxu0 %v6778
        %7065 = vmatmul.mubr.bf16.gmra.mxu0 %v6777
        %v7066 = vpop.f32.mrf.mxu0
        %v7067 = vadd.f32 0.0, %v7066
        %v7068 = vpop.f32.mrf.mxu0
        %v7069 = vpop.f32.mrf.mxu0
        %v7070 = vadd.f32 0.0, %v7069
        %v7071 = vpop.f32.mrf.mxu0
        %7072 = vmatprep.mubr.bf16.mxu0 %v6781
        %7073 = vmatmul.mubr.bf16.gmra.mxu0 %v6780
        %v7074 = vpop.f32.mrf.mxu0
        %v7075 = vadd.f32 0.0, %v7074
        %v7076 = vpop.f32.mrf.mxu0
        %v7077 = vpop.f32.mrf.mxu0
        %v7078 = vadd.f32 0.0, %v7077
        %v7079 = vpop.f32.mrf.mxu0
        %7080 = vmatprep.mubr.bf16.mxu0 %v6784
        %7081 = vmatmul.mubr.bf16.gmra.mxu0 %v6783
        %v7082 = vpop.f32.mrf.mxu0
        %v7083 = vadd.f32 0.0, %v7082
        %v7084 = vpop.f32.mrf.mxu0
        %v7085 = vpop.f32.mrf.mxu0
        %v7086 = vadd.f32 0.0, %v7085
        %v7087 = vpop.f32.mrf.mxu0
        %7088 = vmatprep.mubr.bf16.mxu0 %v6787
        %7089 = vmatmul.mubr.bf16.gmra.mxu0 %v6786
        %v7090 = vpop.f32.mrf.mxu0
        %v7091 = vadd.f32 0.0, %v7090
        %v7092 = vpop.f32.mrf.mxu0
        %v7093 = vpop.f32.mrf.mxu0
        %v7094 = vadd.f32 0.0, %v7093
        %v7095 = vpop.f32.mrf.mxu0
        %7096 = vmatprep.mubr.bf16.mxu0 %v6790
        %7097 = vmatmul.mubr.bf16.gmra.mxu0 %v6789
        %v7098 = vpop.f32.mrf.mxu0
        %v7099 = vadd.f32 0.0, %v7098
        %v7100 = vpop.f32.mrf.mxu0
        %v7101 = vpop.f32.mrf.mxu0
        %v7102 = vadd.f32 0.0, %v7101
        %v7103 = vpop.f32.mrf.mxu0
        %7104 = vmatprep.mubr.bf16.mxu0 %v6793
        %7105 = vmatmul.mubr.bf16.gmra.mxu0 %v6792
        %v7106 = vpop.f32.mrf.mxu0
        %v7107 = vadd.f32 0.0, %v7106
        %v7108 = vpop.f32.mrf.mxu0
        %v7109 = vpop.f32.mrf.mxu0
        %v7110 = vadd.f32 0.0, %v7109
        %v7111 = vpop.f32.mrf.mxu0
        %7112 = vmatprep.mubr.bf16.mxu0 %v6796
        %7113 = vmatmul.mubr.bf16.gmra.mxu0 %v6795
        %v7114 = vpop.f32.mrf.mxu0
        %v7115 = vadd.f32 0.0, %v7114
        %v7116 = vpop.f32.mrf.mxu0
        %v7117 = vpop.f32.mrf.mxu0
        %v7118 = vadd.f32 0.0, %v7117
        %v7119 = vpop.f32.mrf.mxu0
        %7120 = vmatprep.mubr.bf16.mxu0 %v6799
        %7121 = vmatmul.mubr.bf16.gmra.mxu0 %v6798
        %v7122 = vpop.f32.mrf.mxu0
        %v7123 = vadd.f32 0.0, %v7122
        %v7124 = vpop.f32.mrf.mxu0
        %v7125 = vpop.f32.mrf.mxu0
        %v7126 = vadd.f32 0.0, %v7125
        %v7127 = vpop.f32.mrf.mxu0
        %7128 = vmatprep.mubr.bf16.mxu0 %v6802
        %7129 = vmatmul.mubr.bf16.gmra.mxu0 %v6801
        %v7130 = vpop.f32.mrf.mxu0
        %v7131 = vadd.f32 0.0, %v7130
        %v7132 = vpop.f32.mrf.mxu0
        %v7133 = vpop.f32.mrf.mxu0
        %v7134 = vadd.f32 0.0, %v7133
        %v7135 = vpop.f32.mrf.mxu0
        %7136 = vmatprep.mubr.bf16.mxu0 %v6805
        %7137 = vmatmul.mubr.bf16.gmra.mxu0 %v6804
        %v7138 = vpop.f32.mrf.mxu0
        %v7139 = vadd.f32 0.0, %v7138
        %v7140 = vpop.f32.mrf.mxu0
        %v7141 = vpop.f32.mrf.mxu0
        %v7142 = vadd.f32 0.0, %v7141
        %v7143 = vpop.f32.mrf.mxu0
        %7144 = vmatprep.mubr.bf16.mxu0 %v6808
        %7145 = vmatmul.mubr.bf16.gmra.mxu0 %v6807
        %v7146 = vpop.f32.mrf.mxu0
        %v7147 = vadd.f32 0.0, %v7146
        %v7148 = vpop.f32.mrf.mxu0
        %v7149 = vpop.f32.mrf.mxu0
        %v7150 = vadd.f32 0.0, %v7149
        %v7151 = vpop.f32.mrf.mxu0
        %7152 = vmatprep.mubr.bf16.mxu0 %v6811
        %7153 = vmatmul.mubr.bf16.gmra.mxu0 %v6810
        %v7154 = vpop.f32.mrf.mxu0
        %v7155 = vadd.f32 0.0, %v7154
        %v7156 = vpop.f32.mrf.mxu0
        %v7157 = vpop.f32.mrf.mxu0
        %v7158 = vadd.f32 0.0, %v7157
        %v7159 = vpop.f32.mrf.mxu0
        %7160 = vmatprep.mubr.bf16.mxu0 %v6814
        %7161 = vmatmul.mubr.bf16.gmra.mxu0 %v6813
        %v7162 = vpop.f32.mrf.mxu0
        %v7163 = vadd.f32 0.0, %v7162
        %v7164 = vpop.f32.mrf.mxu0
        %v7165 = vpop.f32.mrf.mxu0
        %v7166 = vadd.f32 0.0, %v7165
        %v7167 = vpop.f32.mrf.mxu0
        %7168 = vdwg.mxu0
        %7169 = vmatprep.subr.bf16.mxu0 0
        %7170 = vmatpush1.bf16.msra.mxu0 %v6983
        %7171 = vmatprep.subr.bf16.mxu0 0
        %7172 = vmatpush1.bf16.msra.mxu0 %v6982
        %7173 = vmatprep.subr.bf16.mxu0 0
        %7174 = vmatpush1.bf16.msra.mxu0 %v6981
        %7175 = vmatprep.subr.bf16.mxu0 0
        %7176 = vmatpush1.bf16.msra.mxu0 %v6980
        %7177 = vmatprep.subr.bf16.mxu0 0
        %7178 = vmatpush1.bf16.msra.mxu0 %v6979
        %7179 = vmatprep.subr.bf16.mxu0 0
        %7180 = vmatpush1.bf16.msra.mxu0 %v6978
        %7181 = vmatprep.subr.bf16.mxu0 0
        %7182 = vmatpush1.bf16.msra.mxu0 %v6977
        %7183 = vmatprep.subr.bf16.mxu0 0
        %7184 = vmatpush1.bf16.msra.mxu0 %v6976
        %7185 = vmatprep.subr.bf16.mxu0 0
        %7186 = vmatpush2.bf16.msra.mxu0 0
        %7187 = vmatprep.subr.bf16.mxu0 0
        %7188 = vmatpush2.bf16.msra.mxu0 0
        %7189 = vmatprep.subr.bf16.mxu0 0
        %7190 = vmatpush2.bf16.msra.mxu0 0
        %7191 = vmatprep.subr.bf16.mxu0 0
        %7192 = vmatpush2.bf16.msra.mxu0 0
        %7193 = vmatprep.subr.bf16.mxu0 0
        %7194 = vmatpush2.bf16.msra.mxu0 0
        %7195 = vmatprep.subr.bf16.mxu0 0
        %7196 = vmatpush2.bf16.msra.mxu0 0
        %7197 = vmatprep.subr.bf16.mxu0 0
        %7198 = vmatpush2.bf16.msra.mxu0 0
        %7199 = vmatprep.subr.bf16.mxu0 0
        %7200 = vmatpush2.bf16.msra.mxu0 0
        %7201 = vmatprep.mubr.bf16.mxu0 0
        %7202 = vmatmul.mubr.bf16.gmra.mxu0 %v6770
        %v7203 = vpop.f32.mrf.mxu0
        %v7204 = vadd.f32 %v7043, %v7203
        %v7205 = vpop.f32.mrf.mxu0
        %v7206 = vpop.f32.mrf.mxu0
        %v7207 = vadd.f32 %v7046, %v7206
        %v7208 = vpop.f32.mrf.mxu0
        %7209 = vmatprep.mubr.bf16.mxu0 0
        %7210 = vmatmul.mubr.bf16.gmra.mxu0 %v6773
        %v7211 = vpop.f32.mrf.mxu0
        %v7212 = vadd.f32 %v7051, %v7211
        %v7213 = vpop.f32.mrf.mxu0
        %v7214 = vpop.f32.mrf.mxu0
        %v7215 = vadd.f32 %v7054, %v7214
        %v7216 = vpop.f32.mrf.mxu0
        %7217 = vmatprep.mubr.bf16.mxu0 0
        %7218 = vmatmul.mubr.bf16.gmra.mxu0 %v6776
        %v7219 = vpop.f32.mrf.mxu0
        %v7220 = vadd.f32 %v7059, %v7219
        %v7221 = vpop.f32.mrf.mxu0
        %v7222 = vpop.f32.mrf.mxu0
        %v7223 = vadd.f32 %v7062, %v7222
        %v7224 = vpop.f32.mrf.mxu0
        %7225 = vmatprep.mubr.bf16.mxu0 0
        %7226 = vmatmul.mubr.bf16.gmra.mxu0 %v6779
        %v7227 = vpop.f32.mrf.mxu0
        %v7228 = vadd.f32 %v7067, %v7227
        %v7229 = vpop.f32.mrf.mxu0
        %v7230 = vpop.f32.mrf.mxu0
        %v7231 = vadd.f32 %v7070, %v7230
        %v7232 = vpop.f32.mrf.mxu0
        %7233 = vmatprep.mubr.bf16.mxu0 0
        %7234 = vmatmul.mubr.bf16.gmra.mxu0 %v6782
        %v7235 = vpop.f32.mrf.mxu0
        %v7236 = vadd.f32 %v7075, %v7235
        %v7237 = vpop.f32.mrf.mxu0
        %v7238 = vpop.f32.mrf.mxu0
        %v7239 = vadd.f32 %v7078, %v7238
        %v7240 = vpop.f32.mrf.mxu0
        %7241 = vmatprep.mubr.bf16.mxu0 0
        %7242 = vmatmul.mubr.bf16.gmra.mxu0 %v6785
        %v7243 = vpop.f32.mrf.mxu0
        %v7244 = vadd.f32 %v7083, %v7243
        %v7245 = vpop.f32.mrf.mxu0
        %v7246 = vpop.f32.mrf.mxu0
        %v7247 = vadd.f32 %v7086, %v7246
        %v7248 = vpop.f32.mrf.mxu0
        %7249 = vmatprep.mubr.bf16.mxu0 0
        %7250 = vmatmul.mubr.bf16.gmra.mxu0 %v6788
        %v7251 = vpop.f32.mrf.mxu0
        %v7252 = vadd.f32 %v7091, %v7251
        %v7253 = vpop.f32.mrf.mxu0
        %v7254 = vpop.f32.mrf.mxu0
        %v7255 = vadd.f32 %v7094, %v7254
        %v7256 = vpop.f32.mrf.mxu0
        %7257 = vmatprep.mubr.bf16.mxu0 0
        %7258 = vmatmul.mubr.bf16.gmra.mxu0 %v6791
        %v7259 = vpop.f32.mrf.mxu0
        %v7260 = vadd.f32 %v7099, %v7259
        %v7261 = vpop.f32.mrf.mxu0
        %v7262 = vpop.f32.mrf.mxu0
        %v7263 = vadd.f32 %v7102, %v7262
        %v7264 = vpop.f32.mrf.mxu0
        %7265 = vmatprep.mubr.bf16.mxu0 0
        %7266 = vmatmul.mubr.bf16.gmra.mxu0 %v6794
        %v7267 = vpop.f32.mrf.mxu0
        %v7268 = vadd.f32 %v7107, %v7267
        %v7269 = vpop.f32.mrf.mxu0
        %v7270 = vpop.f32.mrf.mxu0
        %v7271 = vadd.f32 %v7110, %v7270
        %v7272 = vpop.f32.mrf.mxu0
        %7273 = vmatprep.mubr.bf16.mxu0 0
        %7274 = vmatmul.mubr.bf16.gmra.mxu0 %v6797
        %v7275 = vpop.f32.mrf.mxu0
        %v7276 = vadd.f32 %v7115, %v7275
        %v7277 = vpop.f32.mrf.mxu0
        %v7278 = vpop.f32.mrf.mxu0
        %v7279 = vadd.f32 %v7118, %v7278
        %v7280 = vpop.f32.mrf.mxu0
        %7281 = vmatprep.mubr.bf16.mxu0 0
        %7282 = vmatmul.mubr.bf16.gmra.mxu0 %v6800
        %v7283 = vpop.f32.mrf.mxu0
        %v7284 = vadd.f32 %v7123, %v7283
        %v7285 = vpop.f32.mrf.mxu0
        %v7286 = vpop.f32.mrf.mxu0
        %v7287 = vadd.f32 %v7126, %v7286
        %v7288 = vpop.f32.mrf.mxu0
        %7289 = vmatprep.mubr.bf16.mxu0 0
        %7290 = vmatmul.mubr.bf16.gmra.mxu0 %v6803
        %v7291 = vpop.f32.mrf.mxu0
        %v7292 = vadd.f32 %v7131, %v7291
        %v7293 = vpop.f32.mrf.mxu0
        %v7294 = vpop.f32.mrf.mxu0
        %v7295 = vadd.f32 %v7134, %v7294
        %v7296 = vpop.f32.mrf.mxu0
        %7297 = vmatprep.mubr.bf16.mxu0 0
        %7298 = vmatmul.mubr.bf16.gmra.mxu0 %v6806
        %v7299 = vpop.f32.mrf.mxu0
        %v7300 = vadd.f32 %v7139, %v7299
        %v7301 = vpop.f32.mrf.mxu0
        %v7302 = vpop.f32.mrf.mxu0
        %v7303 = vadd.f32 %v7142, %v7302
        %v7304 = vpop.f32.mrf.mxu0
        %7305 = vmatprep.mubr.bf16.mxu0 0
        %7306 = vmatmul.mubr.bf16.gmra.mxu0 %v6809
        %v7307 = vpop.f32.mrf.mxu0
        %v7308 = vadd.f32 %v7147, %v7307
        %v7309 = vpop.f32.mrf.mxu0
        %v7310 = vpop.f32.mrf.mxu0
        %v7311 = vadd.f32 %v7150, %v7310
        %v7312 = vpop.f32.mrf.mxu0
        %7313 = vmatprep.mubr.bf16.mxu0 0
        %7314 = vmatmul.mubr.bf16.gmra.mxu0 %v6812
        %v7315 = vpop.f32.mrf.mxu0
        %v7316 = vadd.f32 %v7155, %v7315
        %v7317 = vpop.f32.mrf.mxu0
        %v7318 = vpop.f32.mrf.mxu0
        %v7319 = vadd.f32 %v7158, %v7318
        %v7320 = vpop.f32.mrf.mxu0
        %7321 = vmatprep.mubr.bf16.mxu0 0
        %7322 = vmatmul.mubr.bf16.gmra.mxu0 %v6815
        %v7323 = vpop.f32.mrf.mxu0
        %v7324 = vadd.f32 %v7163, %v7323
        %v7325 = vpop.f32.mrf.mxu0
        %v7326 = vpop.f32.mrf.mxu0
        %v7327 = vadd.f32 %v7166, %v7326
        %v7328 = vpop.f32.mrf.mxu0
        %7329 = vdwg.mxu0
        %v7330 = vmax.f32 %v7204, 0.0
        %v7331 = vmax.f32 %v7207, 0.0
        %v7332 = vmax.f32 %v7212, 0.0
        %v7333 = vmax.f32 %v7215, 0.0
        %v7334 = vmax.f32 %v7220, 0.0
        %v7335 = vmax.f32 %v7223, 0.0
        %v7336 = vmax.f32 %v7228, 0.0
        %v7337 = vmax.f32 %v7231, 0.0
        %v7338 = vmax.f32 %v7236, 0.0
        %v7339 = vmax.f32 %v7239, 0.0
        %v7340 = vmax.f32 %v7244, 0.0
        %v7341 = vmax.f32 %v7247, 0.0
        %v7342 = vmax.f32 %v7252, 0.0
        %v7343 = vmax.f32 %v7255, 0.0
        %v7344 = vmax.f32 %v7260, 0.0
        %v7345 = vmax.f32 %v7263, 0.0
        %v7346 = vmax.f32 %v7268, 0.0
        %v7347 = vmax.f32 %v7271, 0.0
        %v7348 = vmax.f32 %v7276, 0.0
        %v7349 = vmax.f32 %v7279, 0.0
        %v7350 = vmax.f32 %v7284, 0.0
        %v7351 = vmax.f32 %v7287, 0.0
        %v7352 = vmax.f32 %v7292, 0.0
        %v7353 = vmax.f32 %v7295, 0.0
        %v7354 = vmax.f32 %v7300, 0.0
        %v7355 = vmax.f32 %v7303, 0.0
        %v7356 = vmax.f32 %v7308, 0.0
        %v7357 = vmax.f32 %v7311, 0.0
        %v7358 = vmax.f32 %v7316, 0.0
        %v7359 = vmax.f32 %v7319, 0.0
        %v7360 = vmax.f32 %v7324, 0.0
        %v7361 = vmax.f32 %v7327, 0.0
        %v7362 = vpack.c.bf16 %v7331, %v7330
        %v7363 = vpack.c.bf16 %v7333, %v7332
        %v7364 = vpack.c.bf16 %v7335, %v7334
        %v7365 = vpack.c.bf16 %v7337, %v7336
        %v7366 = vpack.c.bf16 %v7339, %v7338
        %v7367 = vpack.c.bf16 %v7341, %v7340
        %v7368 = vpack.c.bf16 %v7343, %v7342
        %v7369 = vpack.c.bf16 %v7345, %v7344
        %v7370 = vpack.c.bf16 %v7347, %v7346
        %v7371 = vpack.c.bf16 %v7349, %v7348
        %v7372 = vpack.c.bf16 %v7351, %v7350
        %v7373 = vpack.c.bf16 %v7353, %v7352
        %v7374 = vpack.c.bf16 %v7355, %v7354
        %v7375 = vpack.c.bf16 %v7357, %v7356
        %v7376 = vpack.c.bf16 %v7359, %v7358
        %v7377 = vpack.c.bf16 %v7361, %v7360
        %s7378 = scalar_lea.vmem %s2, 4
        %v7379 = vld [vmem:[%s7378] sm:$0xf]
        %v7381 = vsel %vm3753, %v7362, 0
        %v7384 = vsel %vm3753, %v7363, 0
        %v7387 = vsel %vm3753, %v7364, 0
        %v7390 = vsel %vm3753, %v7365, 0
        %v7393 = vsel %vm3753, %v7366, 0
        %v7396 = vsel %vm3753, %v7367, 0
        %v7399 = vsel %vm3753, %v7368, 0
        %v7402 = vsel %vm3753, %v7369, 0
        %v7405 = vsel %vm3753, %v7370, 0
        %v7408 = vsel %vm3753, %v7371, 0
        %v7411 = vsel %vm3753, %v7372, 0
        %v7414 = vsel %vm3753, %v7373, 0
        %v7417 = vsel %vm3753, %v7374, 0
        %v7420 = vsel %vm3753, %v7375, 0
        %v7423 = vsel %vm3753, %v7376, 0
        %v7426 = vsel %vm3753, %v7377, 0
        %v7429 = vsel %vm3802, %v7379, 0
        %7431 = vmatprep.subr.bf16.mxu0 0
        %7432 = vmatpush1.bf16.msra.mxu0 0
        %7433 = vmatprep.subr.bf16.mxu0 0
        %7434 = vmatpush1.bf16.msra.mxu0 0
        %7435 = vmatprep.subr.bf16.mxu0 0
        %7436 = vmatpush1.bf16.msra.mxu0 0
        %7437 = vmatprep.subr.bf16.mxu0 0
        %7438 = vmatpush1.bf16.msra.mxu0 0
        %7439 = vmatprep.subr.bf16.mxu0 0
        %7440 = vmatpush1.bf16.msra.mxu0 0
        %7441 = vmatprep.subr.bf16.mxu0 0
        %7442 = vmatpush1.bf16.msra.mxu0 0
        %7443 = vmatprep.subr.bf16.mxu0 0
        %7444 = vmatpush1.bf16.msra.mxu0 0
        %7445 = vmatprep.subr.bf16.mxu0 0
        %7446 = vmatpush1.bf16.msra.mxu0 %v7429
        %7447 = vmatprep.subr.bf16.mxu0 0
        %7448 = vmatpush2.bf16.msra.mxu0 0
        %7449 = vmatprep.subr.bf16.mxu0 0
        %7450 = vmatpush2.bf16.msra.mxu0 0
        %7451 = vmatprep.subr.bf16.mxu0 0
        %7452 = vmatpush2.bf16.msra.mxu0 0
        %7453 = vmatprep.subr.bf16.mxu0 0
        %7454 = vmatpush2.bf16.msra.mxu0 0
        %7455 = vmatprep.subr.bf16.mxu0 0
        %7456 = vmatpush2.bf16.msra.mxu0 0
        %7457 = vmatprep.subr.bf16.mxu0 0
        %7458 = vmatpush2.bf16.msra.mxu0 0
        %7459 = vmatprep.subr.bf16.mxu0 0
        %7460 = vmatpush2.bf16.msra.mxu0 0
        %7461 = vmatprep.subr.bf16.mxu0 0
        %7462 = vmatpush2.bf16.msra.mxu0 0
        %7463 = vmatprep.mubr.bf16.mxu0 0
        %7464 = vmatmul.mubr.bf16.gmra.mxu0 %v7381
        %v7465 = vpop.f32.mrf.mxu0
        %v7466 = vadd.f32 0.0, %v7465
        %v7467 = vpop.f32.mrf.mxu0
        %v7468 = vpop.f32.mrf.mxu0
        %v7469 = vadd.f32 0.0, %v7468
        %v7470 = vpop.f32.mrf.mxu0
        %7471 = vmatprep.mubr.bf16.mxu0 0
        %7472 = vmatmul.mubr.bf16.gmra.mxu0 %v7384
        %v7473 = vpop.f32.mrf.mxu0
        %v7474 = vadd.f32 0.0, %v7473
        %v7475 = vpop.f32.mrf.mxu0
        %v7476 = vpop.f32.mrf.mxu0
        %v7477 = vadd.f32 0.0, %v7476
        %v7478 = vpop.f32.mrf.mxu0
        %7479 = vmatprep.mubr.bf16.mxu0 0
        %7480 = vmatmul.mubr.bf16.gmra.mxu0 %v7387
        %v7481 = vpop.f32.mrf.mxu0
        %v7482 = vadd.f32 0.0, %v7481
        %v7483 = vpop.f32.mrf.mxu0
        %v7484 = vpop.f32.mrf.mxu0
        %v7485 = vadd.f32 0.0, %v7484
        %v7486 = vpop.f32.mrf.mxu0
        %7487 = vmatprep.mubr.bf16.mxu0 0
        %7488 = vmatmul.mubr.bf16.gmra.mxu0 %v7390
        %v7489 = vpop.f32.mrf.mxu0
        %v7490 = vadd.f32 0.0, %v7489
        %v7491 = vpop.f32.mrf.mxu0
        %v7492 = vpop.f32.mrf.mxu0
        %v7493 = vadd.f32 0.0, %v7492
        %v7494 = vpop.f32.mrf.mxu0
        %7495 = vmatprep.mubr.bf16.mxu0 0
        %7496 = vmatmul.mubr.bf16.gmra.mxu0 %v7393
        %v7497 = vpop.f32.mrf.mxu0
        %v7498 = vadd.f32 0.0, %v7497
        %v7499 = vpop.f32.mrf.mxu0
        %v7500 = vpop.f32.mrf.mxu0
        %v7501 = vadd.f32 0.0, %v7500
        %v7502 = vpop.f32.mrf.mxu0
        %7503 = vmatprep.mubr.bf16.mxu0 0
        %7504 = vmatmul.mubr.bf16.gmra.mxu0 %v7396
        %v7505 = vpop.f32.mrf.mxu0
        %v7506 = vadd.f32 0.0, %v7505
        %v7507 = vpop.f32.mrf.mxu0
        %v7508 = vpop.f32.mrf.mxu0
        %v7509 = vadd.f32 0.0, %v7508
        %v7510 = vpop.f32.mrf.mxu0
        %7511 = vmatprep.mubr.bf16.mxu0 0
        %7512 = vmatmul.mubr.bf16.gmra.mxu0 %v7399
        %v7513 = vpop.f32.mrf.mxu0
        %v7514 = vadd.f32 0.0, %v7513
        %v7515 = vpop.f32.mrf.mxu0
        %v7516 = vpop.f32.mrf.mxu0
        %v7517 = vadd.f32 0.0, %v7516
        %v7518 = vpop.f32.mrf.mxu0
        %7519 = vmatprep.mubr.bf16.mxu0 0
        %7520 = vmatmul.mubr.bf16.gmra.mxu0 %v7402
        %v7521 = vpop.f32.mrf.mxu0
        %v7522 = vadd.f32 0.0, %v7521
        %v7523 = vpop.f32.mrf.mxu0
        %v7524 = vpop.f32.mrf.mxu0
        %v7525 = vadd.f32 0.0, %v7524
        %v7526 = vpop.f32.mrf.mxu0
        %7527 = vmatprep.mubr.bf16.mxu0 0
        %7528 = vmatmul.mubr.bf16.gmra.mxu0 %v7405
        %v7529 = vpop.f32.mrf.mxu0
        %v7530 = vadd.f32 0.0, %v7529
        %v7531 = vpop.f32.mrf.mxu0
        %v7532 = vpop.f32.mrf.mxu0
        %v7533 = vadd.f32 0.0, %v7532
        %v7534 = vpop.f32.mrf.mxu0
        %7535 = vmatprep.mubr.bf16.mxu0 0
        %7536 = vmatmul.mubr.bf16.gmra.mxu0 %v7408
        %v7537 = vpop.f32.mrf.mxu0
        %v7538 = vadd.f32 0.0, %v7537
        %v7539 = vpop.f32.mrf.mxu0
        %v7540 = vpop.f32.mrf.mxu0
        %v7541 = vadd.f32 0.0, %v7540
        %v7542 = vpop.f32.mrf.mxu0
        %7543 = vmatprep.mubr.bf16.mxu0 0
        %7544 = vmatmul.mubr.bf16.gmra.mxu0 %v7411
        %v7545 = vpop.f32.mrf.mxu0
        %v7546 = vadd.f32 0.0, %v7545
        %v7547 = vpop.f32.mrf.mxu0
        %v7548 = vpop.f32.mrf.mxu0
        %v7549 = vadd.f32 0.0, %v7548
        %v7550 = vpop.f32.mrf.mxu0
        %7551 = vmatprep.mubr.bf16.mxu0 0
        %7552 = vmatmul.mubr.bf16.gmra.mxu0 %v7414
        %v7553 = vpop.f32.mrf.mxu0
        %v7554 = vadd.f32 0.0, %v7553
        %v7555 = vpop.f32.mrf.mxu0
        %v7556 = vpop.f32.mrf.mxu0
        %v7557 = vadd.f32 0.0, %v7556
        %v7558 = vpop.f32.mrf.mxu0
        %7559 = vmatprep.mubr.bf16.mxu0 0
        %7560 = vmatmul.mubr.bf16.gmra.mxu0 %v7417
        %v7561 = vpop.f32.mrf.mxu0
        %v7562 = vadd.f32 0.0, %v7561
        %v7563 = vpop.f32.mrf.mxu0
        %v7564 = vpop.f32.mrf.mxu0
        %v7565 = vadd.f32 0.0, %v7564
        %v7566 = vpop.f32.mrf.mxu0
        %7567 = vmatprep.mubr.bf16.mxu0 0
        %7568 = vmatmul.mubr.bf16.gmra.mxu0 %v7420
        %v7569 = vpop.f32.mrf.mxu0
        %v7570 = vadd.f32 0.0, %v7569
        %v7571 = vpop.f32.mrf.mxu0
        %v7572 = vpop.f32.mrf.mxu0
        %v7573 = vadd.f32 0.0, %v7572
        %v7574 = vpop.f32.mrf.mxu0
        %7575 = vmatprep.mubr.bf16.mxu0 0
        %7576 = vmatmul.mubr.bf16.gmra.mxu0 %v7423
        %v7577 = vpop.f32.mrf.mxu0
        %v7578 = vadd.f32 0.0, %v7577
        %v7579 = vpop.f32.mrf.mxu0
        %v7580 = vpop.f32.mrf.mxu0
        %v7581 = vadd.f32 0.0, %v7580
        %v7582 = vpop.f32.mrf.mxu0
        %7583 = vmatprep.mubr.bf16.mxu0 0
        %7584 = vmatmul.mubr.bf16.gmra.mxu0 %v7426
        %v7585 = vpop.f32.mrf.mxu0
        %v7586 = vadd.f32 0.0, %v7585
        %v7587 = vpop.f32.mrf.mxu0
        %v7588 = vpop.f32.mrf.mxu0
        %v7589 = vadd.f32 0.0, %v7588
        %v7590 = vpop.f32.mrf.mxu0
        %7591 = vdwg.mxu0
        %v7592 = vld [vmem:[%s163] sm:$0xff]
        %v7593 = vld [vmem:[%s163 + $0x8] sm:$0xff]
        %v7594 = vld [vmem:[%s163 + $0x10] sm:$0xff]
        %v7595 = vld [vmem:[%s163 + $0x18] sm:$0xff]
        %v7596 = vld [vmem:[%s163 + $0x20] sm:$0xff]
        %v7597 = vld [vmem:[%s163 + $0x28] sm:$0xff]
        %v7598 = vld [vmem:[%s163 + $0x30] sm:$0xff]
        %v7599 = vld [vmem:[%s163 + $0x38] sm:$0xff]
        %v7600 = vld [vmem:[%s163 + $0x40] sm:$0xff]
        %v7601 = vld [vmem:[%s163 + $0x48] sm:$0xff]
        %v7602 = vld [vmem:[%s163 + $0x50] sm:$0xff]
        %v7603 = vld [vmem:[%s163 + $0x58] sm:$0xff]
        %v7604 = vld [vmem:[%s163 + $0x60] sm:$0xff]
        %v7605 = vld [vmem:[%s163 + $0x68] sm:$0xff]
        %v7606 = vld [vmem:[%s163 + $0x70] sm:$0xff]
        %v7607 = vld [vmem:[%s163 + $0x78] sm:$0xff]
        %v7608 = vld [vmem:[%s163 + $0x80] sm:$0xff]
        %v7609 = vld [vmem:[%s163 + $0x88] sm:$0xff]
        %v7610 = vld [vmem:[%s163 + $0x90] sm:$0xff]
        %v7611 = vld [vmem:[%s163 + $0x98] sm:$0xff]
        %v7612 = vld [vmem:[%s163 + $0xa0] sm:$0xff]
        %v7613 = vld [vmem:[%s163 + $0xa8] sm:$0xff]
        %v7614 = vld [vmem:[%s163 + $0xb0] sm:$0xff]
        %v7615 = vld [vmem:[%s163 + $0xb8] sm:$0xff]
        %v7616 = vld [vmem:[%s163 + $0xc0] sm:$0xff]
        %v7617 = vld [vmem:[%s163 + $0xc8] sm:$0xff]
        %v7618 = vld [vmem:[%s163 + $0xd0] sm:$0xff]
        %v7619 = vld [vmem:[%s163 + $0xd8] sm:$0xff]
        %v7620 = vld [vmem:[%s163 + $0xe0] sm:$0xff]
        %v7621 = vld [vmem:[%s163 + $0xe8] sm:$0xff]
        %v7622 = vld [vmem:[%s163 + $0xf0] sm:$0xff]
        %v7623 = vld [vmem:[%s163 + $0xf8] sm:$0xff]
        %v7624 = vmax.f32 %v7592, 0.0
        %v7625 = vmax.f32 %v7593, 0.0
        %v7626 = vmax.f32 %v7594, 0.0
        %v7627 = vmax.f32 %v7595, 0.0
        %v7628 = vmax.f32 %v7596, 0.0
        %v7629 = vmax.f32 %v7597, 0.0
        %v7630 = vmax.f32 %v7598, 0.0
        %v7631 = vmax.f32 %v7599, 0.0
        %v7632 = vmax.f32 %v7600, 0.0
        %v7633 = vmax.f32 %v7601, 0.0
        %v7634 = vmax.f32 %v7602, 0.0
        %v7635 = vmax.f32 %v7603, 0.0
        %v7636 = vmax.f32 %v7604, 0.0
        %v7637 = vmax.f32 %v7605, 0.0
        %v7638 = vmax.f32 %v7606, 0.0
        %v7639 = vmax.f32 %v7607, 0.0
        %v7640 = vmax.f32 %v7608, 0.0
        %v7641 = vmax.f32 %v7609, 0.0
        %v7642 = vmax.f32 %v7610, 0.0
        %v7643 = vmax.f32 %v7611, 0.0
        %v7644 = vmax.f32 %v7612, 0.0
        %v7645 = vmax.f32 %v7613, 0.0
        %v7646 = vmax.f32 %v7614, 0.0
        %v7647 = vmax.f32 %v7615, 0.0
        %v7648 = vmax.f32 %v7616, 0.0
        %v7649 = vmax.f32 %v7617, 0.0
        %v7650 = vmax.f32 %v7618, 0.0
        %v7651 = vmax.f32 %v7619, 0.0
        %v7652 = vmax.f32 %v7620, 0.0
        %v7653 = vmax.f32 %v7621, 0.0
        %v7654 = vmax.f32 %v7622, 0.0
        %v7655 = vmax.f32 %v7623, 0.0
        %v7656 = vadd.f32 %v7624, %v7466
        %v7657 = vadd.f32 %v7625, %v7469
        %v7658 = vadd.f32 %v7626, %v7474
        %v7659 = vadd.f32 %v7627, %v7477
        %v7660 = vadd.f32 %v7628, %v7482
        %v7661 = vadd.f32 %v7629, %v7485
        %v7662 = vadd.f32 %v7630, %v7490
        %v7663 = vadd.f32 %v7631, %v7493
        %v7664 = vadd.f32 %v7632, %v7498
        %v7665 = vadd.f32 %v7633, %v7501
        %v7666 = vadd.f32 %v7634, %v7506
        %v7667 = vadd.f32 %v7635, %v7509
        %v7668 = vadd.f32 %v7636, %v7514
        %v7669 = vadd.f32 %v7637, %v7517
        %v7670 = vadd.f32 %v7638, %v7522
        %v7671 = vadd.f32 %v7639, %v7525
        %v7672 = vadd.f32 %v7640, %v7530
        %v7673 = vadd.f32 %v7641, %v7533
        %v7674 = vadd.f32 %v7642, %v7538
        %v7675 = vadd.f32 %v7643, %v7541
        %v7676 = vadd.f32 %v7644, %v7546
        %v7677 = vadd.f32 %v7645, %v7549
        %v7678 = vadd.f32 %v7646, %v7554
        %v7679 = vadd.f32 %v7647, %v7557
        %v7680 = vadd.f32 %v7648, %v7562
        %v7681 = vadd.f32 %v7649, %v7565
        %v7682 = vadd.f32 %v7650, %v7570
        %v7683 = vadd.f32 %v7651, %v7573
        %v7684 = vadd.f32 %v7652, %v7578
        %v7685 = vadd.f32 %v7653, %v7581
        %v7686 = vadd.f32 %v7654, %v7586
        %v7687 = vadd.f32 %v7655, %v7589
        %7688 = vst.msk [vmem:[%s163] sm:$0xff] %vm170, %v7656
        %7689 = vst.msk [vmem:[%s163 + $0x8] sm:$0xff] %vm170, %v7657
        %7690 = vst.msk [vmem:[%s163 + $0x10] sm:$0xff] %vm170, %v7658
        %7691 = vst.msk [vmem:[%s163 + $0x18] sm:$0xff] %vm170, %v7659
        %7692 = vst.msk [vmem:[%s163 + $0x20] sm:$0xff] %vm170, %v7660
        %7693 = vst.msk [vmem:[%s163 + $0x28] sm:$0xff] %vm170, %v7661
        %7694 = vst.msk [vmem:[%s163 + $0x30] sm:$0xff] %vm170, %v7662
        %7695 = vst.msk [vmem:[%s163 + $0x38] sm:$0xff] %vm170, %v7663
        %7696 = vst.msk [vmem:[%s163 + $0x40] sm:$0xff] %vm170, %v7664
        %7697 = vst.msk [vmem:[%s163 + $0x48] sm:$0xff] %vm170, %v7665
        %7698 = vst.msk [vmem:[%s163 + $0x50] sm:$0xff] %vm170, %v7666
        %7699 = vst.msk [vmem:[%s163 + $0x58] sm:$0xff] %vm170, %v7667
        %7700 = vst.msk [vmem:[%s163 + $0x60] sm:$0xff] %vm170, %v7668
        %7701 = vst.msk [vmem:[%s163 + $0x68] sm:$0xff] %vm170, %v7669
        %7702 = vst.msk [vmem:[%s163 + $0x70] sm:$0xff] %vm170, %v7670
        %7703 = vst.msk [vmem:[%s163 + $0x78] sm:$0xff] %vm170, %v7671
        %7704 = vst.msk [vmem:[%s163 + $0x80] sm:$0xff] %vm170, %v7672
        %7705 = vst.msk [vmem:[%s163 + $0x88] sm:$0xff] %vm170, %v7673
        %7706 = vst.msk [vmem:[%s163 + $0x90] sm:$0xff] %vm170, %v7674
        %7707 = vst.msk [vmem:[%s163 + $0x98] sm:$0xff] %vm170, %v7675
        %7708 = vst.msk [vmem:[%s163 + $0xa0] sm:$0xff] %vm170, %v7676
        %7709 = vst.msk [vmem:[%s163 + $0xa8] sm:$0xff] %vm170, %v7677
        %7710 = vst.msk [vmem:[%s163 + $0xb0] sm:$0xff] %vm170, %v7678
        %7711 = vst.msk [vmem:[%s163 + $0xb8] sm:$0xff] %vm170, %v7679
        %7712 = vst.msk [vmem:[%s163 + $0xc0] sm:$0xff] %vm170, %v7680
        %7713 = vst.msk [vmem:[%s163 + $0xc8] sm:$0xff] %vm170, %v7681
        %7714 = vst.msk [vmem:[%s163 + $0xd0] sm:$0xff] %vm170, %v7682
        %7715 = vst.msk [vmem:[%s163 + $0xd8] sm:$0xff] %vm170, %v7683
        %7716 = vst.msk [vmem:[%s163 + $0xe0] sm:$0xff] %vm170, %v7684
        %7717 = vst.msk [vmem:[%s163 + $0xe8] sm:$0xff] %vm170, %v7685
        %7718 = vst.msk [vmem:[%s163 + $0xf0] sm:$0xff] %vm170, %v7686
        %7719 = vst.msk [vmem:[%s163 + $0xf8] sm:$0xff] %vm170, %v7687
        %v7720 = vld [vmem:[%s163] sm:$0xff]
        %v7721 = vld [vmem:[%s163 + $0x8] sm:$0xff]
        %v7722 = vld [vmem:[%s163 + $0x10] sm:$0xff]
        %v7723 = vld [vmem:[%s163 + $0x18] sm:$0xff]
        %v7724 = vld [vmem:[%s163 + $0x20] sm:$0xff]
        %v7725 = vld [vmem:[%s163 + $0x28] sm:$0xff]
        %v7726 = vld [vmem:[%s163 + $0x30] sm:$0xff]
        %v7727 = vld [vmem:[%s163 + $0x38] sm:$0xff]
        %v7728 = vld [vmem:[%s163 + $0x40] sm:$0xff]
        %v7729 = vld [vmem:[%s163 + $0x48] sm:$0xff]
        %v7730 = vld [vmem:[%s163 + $0x50] sm:$0xff]
        %v7731 = vld [vmem:[%s163 + $0x58] sm:$0xff]
        %v7732 = vld [vmem:[%s163 + $0x60] sm:$0xff]
        %v7733 = vld [vmem:[%s163 + $0x68] sm:$0xff]
        %v7734 = vld [vmem:[%s163 + $0x70] sm:$0xff]
        %v7735 = vld [vmem:[%s163 + $0x78] sm:$0xff]
        %v7736 = vld [vmem:[%s163 + $0x80] sm:$0xff]
        %v7737 = vld [vmem:[%s163 + $0x88] sm:$0xff]
        %v7738 = vld [vmem:[%s163 + $0x90] sm:$0xff]
        %v7739 = vld [vmem:[%s163 + $0x98] sm:$0xff]
        %v7740 = vld [vmem:[%s163 + $0xa0] sm:$0xff]
        %v7741 = vld [vmem:[%s163 + $0xa8] sm:$0xff]
        %v7742 = vld [vmem:[%s163 + $0xb0] sm:$0xff]
        %v7743 = vld [vmem:[%s163 + $0xb8] sm:$0xff]
        %v7744 = vld [vmem:[%s163 + $0xc0] sm:$0xff]
        %v7745 = vld [vmem:[%s163 + $0xc8] sm:$0xff]
        %v7746 = vld [vmem:[%s163 + $0xd0] sm:$0xff]
        %v7747 = vld [vmem:[%s163 + $0xd8] sm:$0xff]
        %v7748 = vld [vmem:[%s163 + $0xe0] sm:$0xff]
        %v7749 = vld [vmem:[%s163 + $0xe8] sm:$0xff]
        %v7750 = vld [vmem:[%s163 + $0xf0] sm:$0xff]
        %v7751 = vld [vmem:[%s163 + $0xf8] sm:$0xff]
        %v7752 = vmax.f32 %v7720, 0.0
        %v7753 = vmax.f32 %v7721, 0.0
        %v7754 = vmax.f32 %v7722, 0.0
        %v7755 = vmax.f32 %v7723, 0.0
        %v7756 = vmax.f32 %v7724, 0.0
        %v7757 = vmax.f32 %v7725, 0.0
        %v7758 = vmax.f32 %v7726, 0.0
        %v7759 = vmax.f32 %v7727, 0.0
        %v7760 = vmax.f32 %v7728, 0.0
        %v7761 = vmax.f32 %v7729, 0.0
        %v7762 = vmax.f32 %v7730, 0.0
        %v7763 = vmax.f32 %v7731, 0.0
        %v7764 = vmax.f32 %v7732, 0.0
        %v7765 = vmax.f32 %v7733, 0.0
        %v7766 = vmax.f32 %v7734, 0.0
        %v7767 = vmax.f32 %v7735, 0.0
        %v7768 = vmax.f32 %v7736, 0.0
        %v7769 = vmax.f32 %v7737, 0.0
        %v7770 = vmax.f32 %v7738, 0.0
        %v7771 = vmax.f32 %v7739, 0.0
        %v7772 = vmax.f32 %v7740, 0.0
        %v7773 = vmax.f32 %v7741, 0.0
        %v7774 = vmax.f32 %v7742, 0.0
        %v7775 = vmax.f32 %v7743, 0.0
        %v7776 = vmax.f32 %v7744, 0.0
        %v7777 = vmax.f32 %v7745, 0.0
        %v7778 = vmax.f32 %v7746, 0.0
        %v7779 = vmax.f32 %v7747, 0.0
        %v7780 = vmax.f32 %v7748, 0.0
        %v7781 = vmax.f32 %v7749, 0.0
        %v7782 = vmax.f32 %v7750, 0.0
        %v7783 = vmax.f32 %v7751, 0.0
        %7784 = vst.msk [vmem:[%s163] sm:$0xff] %vm170, %v7752
        %7785 = vst.msk [vmem:[%s163 + $0x8] sm:$0xff] %vm170, %v7753
        %7786 = vst.msk [vmem:[%s163 + $0x10] sm:$0xff] %vm170, %v7754
        %7787 = vst.msk [vmem:[%s163 + $0x18] sm:$0xff] %vm170, %v7755
        %7788 = vst.msk [vmem:[%s163 + $0x20] sm:$0xff] %vm170, %v7756
        %7789 = vst.msk [vmem:[%s163 + $0x28] sm:$0xff] %vm170, %v7757
        %7790 = vst.msk [vmem:[%s163 + $0x30] sm:$0xff] %vm170, %v7758
        %7791 = vst.msk [vmem:[%s163 + $0x38] sm:$0xff] %vm170, %v7759
        %7792 = vst.msk [vmem:[%s163 + $0x40] sm:$0xff] %vm170, %v7760
        %7793 = vst.msk [vmem:[%s163 + $0x48] sm:$0xff] %vm170, %v7761
        %7794 = vst.msk [vmem:[%s163 + $0x50] sm:$0xff] %vm170, %v7762
        %7795 = vst.msk [vmem:[%s163 + $0x58] sm:$0xff] %vm170, %v7763
        %7796 = vst.msk [vmem:[%s163 + $0x60] sm:$0xff] %vm170, %v7764
        %7797 = vst.msk [vmem:[%s163 + $0x68] sm:$0xff] %vm170, %v7765
        %7798 = vst.msk [vmem:[%s163 + $0x70] sm:$0xff] %vm170, %v7766
        %7799 = vst.msk [vmem:[%s163 + $0x78] sm:$0xff] %vm170, %v7767
        %7800 = vst.msk [vmem:[%s163 + $0x80] sm:$0xff] %vm170, %v7768
        %7801 = vst.msk [vmem:[%s163 + $0x88] sm:$0xff] %vm170, %v7769
        %7802 = vst.msk [vmem:[%s163 + $0x90] sm:$0xff] %vm170, %v7770
        %7803 = vst.msk [vmem:[%s163 + $0x98] sm:$0xff] %vm170, %v7771
        %7804 = vst.msk [vmem:[%s163 + $0xa0] sm:$0xff] %vm170, %v7772
        %7805 = vst.msk [vmem:[%s163 + $0xa8] sm:$0xff] %vm170, %v7773
        %7806 = vst.msk [vmem:[%s163 + $0xb0] sm:$0xff] %vm170, %v7774
        %7807 = vst.msk [vmem:[%s163 + $0xb8] sm:$0xff] %vm170, %v7775
        %7808 = vst.msk [vmem:[%s163 + $0xc0] sm:$0xff] %vm170, %v7776
        %7809 = vst.msk [vmem:[%s163 + $0xc8] sm:$0xff] %vm170, %v7777
        %7810 = vst.msk [vmem:[%s163 + $0xd0] sm:$0xff] %vm170, %v7778
        %7811 = vst.msk [vmem:[%s163 + $0xd8] sm:$0xff] %vm170, %v7779
        %7812 = vst.msk [vmem:[%s163 + $0xe0] sm:$0xff] %vm170, %v7780
        %7813 = vst.msk [vmem:[%s163 + $0xe8] sm:$0xff] %vm170, %v7781
        %7814 = vst.msk [vmem:[%s163 + $0xf0] sm:$0xff] %vm170, %v7782
        %7815 = vst.msk [vmem:[%s163 + $0xf8] sm:$0xff] %vm170, %v7783
        %s7816 = sand.u32 %s93, 1
        %s7817 = scalar_lea.sflag [#allocation5], %s7816
        %s7818 = sand.u32 %s93, 1
        %s7819 = smul.addr %s7818, 256
        %s7820 = scalar_lea.vmem [#allocation4], %s7819
        // Predicated region
        $region33: #{residual_stack_forward.1} parent=31 // pred_check
          %p7821 = pneg %p103
        $region34: #{residual_stack_forward.1} parent=31 // pred_check_branch
          %7823 = sbr.rel (%p7821) target = $region36
        $region35: #{residual_stack_forward.1} parent=31 // pred_region
          %s7825 = ssub.s32 4096, 4096
          %7826 = vsyncadd %s7817, %s7825
          %s7827 = smul.addr %s17, 32
          %s7828 = smul.addr %s7827, 128
          %s7829 = scalar_lea.hbm %s3, %s7828
          %s7830 = sshll.u32 %s7820, 4
          %s7831 = int_to_ptr.vmem [resolvable:$true] %s7830
          %7836 = dma.vmem_to_hbm [thread:$0]  %s7831, 4096, %s7829, %s7817, 128, 128, 8
        $region36: #{residual_stack_forward.1} parent=31 // pred_fallthru
          _
      $region32: #{residual_stack_forward.1} parent=5 // pred_fallthru
        _
      %p7837 = scmp.le.s32.totalorder 2, %s12
      // Predicated region
      $region37: #{residual_stack_forward.1} parent=5 // pred_check
        %p7838 = pneg %p7837
      $region38: #{residual_stack_forward.1} parent=5 // pred_check_branch
        %7840 = sbr.rel (%p7838) target = $region40
      $region39: #{residual_stack_forward.1} parent=5 // pred_region
        %s7841 = ssub.s32 %s12, 2
        // Predicated region
        $region41: #{residual_stack_forward.1} parent=39 // pred_check
          %p7842 = pneg %p109
        $region42: #{residual_stack_forward.1} parent=39 // pred_check_branch
          %7844 = sbr.rel (%p7842) target = $region44
        $region43: #{residual_stack_forward.1} parent=39 // pred_region
          %s7845 = sand.u32 %s94, 1
          %s7846 = scalar_lea.sflag [#allocation5], %s7845
          %s7847 = sand.u32 %s94, 1
          %s7848 = smul.addr %s7847, 256
          %s7849 = scalar_lea.vmem [#allocation4], %s7848
          %7850 = dma.done %s7846, 4096
        $region44: #{residual_stack_forward.1} parent=39 // pred_fallthru
          _
      $region40: #{residual_stack_forward.1} parent=5 // pred_fallthru
        _
    $region6: #{residual_stack_forward.1} parent=1 // loop_footer
      %s16 = sadd.s32 1, %s12
    $region7: #{residual_stack_forward.1} parent=1 // loop_footer_branch
      %11 = sbr.rel target = $region3
    $region8: #{residual_stack_forward.1} parent=1 // loop_exit
      _
    %7851 = vsyncpa [#allocation5], 1
    %s7852 = scalar_lea.sflag [#allocation5], 1
    %7853 = vsyncpa %s7852, 1

</llo_original>
